<compile_context>
chip_gen: v5e
topology: v5e:2x2
jax: 0.10.0
libtpu: 0.0.40
codegen_flags: <defaults>
</compile_context>

<pallas_src>
import functools

import numpy as np
import jax
import jax.numpy as jnp
from jax import lax
from jax.experimental import pallas as pl
from jax.experimental.pallas import tpu as pltpu


# Precision knobs.
#   NOTE(perf, v5e): the review suggests lax.Precision.HIGH (bf16_3x) for the
#   flop-dominant DFT/iDFT/conv dots; HIGHEST is kept here because it is the
#   guaranteed-supported, accuracy-safe setting -- flip once validated.
_PREC_SPECTRAL = lax.Precision.HIGHEST   # DFT / iDFT / 1x1 conv / projection head
_PREC_MIX = lax.Precision.DEFAULT        # per-mode channel mix (weights ~ 1/W^2)

_N_LAYERS = 3


# ---------------------------------------------------------------------------
# Kernel
# ---------------------------------------------------------------------------
def _fno1d_kernel(h0_ref, ft_ref, gt_ref,
                  wre_ref, wim_ref, cwt_ref, cb_ref,
                  qwt_ref, qb_ref, ow_ref, ob_ref,
                  o_ref, h_scr, *, bt, s, w, m):
    f32 = jnp.float32
    l = pl.program_id(1)                       # layer index (arbitrary grid axis)
    bdims = (((2,), (1,)), ((0,), (0,)))       # leading-batch batched matmul

    @pl.when(l == 0)
    def _():
        h_scr[...] = h0_ref[...].astype(f32)   # (bt, w, s)  -- NCW, as in torch

    h = h_scr[...]                             # (bt, w, s)
    hflat = h.reshape(bt * w, s)               # free: merges leading dims only

    # ---- SpectralConv1d -----------------------------------------------------
    # Truncated rFFT of every (batch, channel) row: one 2D matmul, M = bt*w.
    x2 = jnp.dot(hflat, ft_ref[...], precision=_PREC_SPECTRAL,
                 preferred_element_type=f32)                       # (bt*w, 2m)

    # Regroup to mode-major (2m, bt, w) with small per-batch (w, 2m) transposes.
    xkbw = jnp.stack(
        [x2[b * w:(b + 1) * w, :].T for b in range(bt)], axis=1)   # (2m, bt, w)
    xr, xi = xkbw[:m], xkbw[m:]                                    # (m, bt, w) each

    # Per-mode complex channel mix, batched over the mode axis on the MXU.
    wre = wre_ref[0]                                               # (m, w, w)
    wim = wim_ref[0]
    rr = lax.dot_general(xr, wre, bdims, precision=_PREC_MIX, preferred_element_type=f32)
    ii = lax.dot_general(xi, wim, bdims, precision=_PREC_MIX, preferred_element_type=f32)
    ri = lax.dot_general(xr, wim, bdims, precision=_PREC_MIX, preferred_element_type=f32)
    ir = lax.dot_general(xi, wre, bdims, precision=_PREC_MIX, preferred_element_type=f32)
    out_all = jnp.concatenate([rr - ii, ri + ir], axis=0)          # (2m, bt, w)

    # Back to row-major (bt*w, 2m), then the irFFT (kept modes only) is again
    # one 2D matmul with M = bt*w.
    ri2 = jnp.concatenate([out_all[:, b, :].T for b in range(bt)], axis=0)  # (bt*w, 2m)
    spec = jnp.dot(ri2, gt_ref[...], precision=_PREC_SPECTRAL,
                   preferred_element_type=f32).reshape(bt, w, s)   # (bt, w, s)

    # ---- 1x1 Conv1d (channel mix), batched over the bt tile -----------------
    cwt = jnp.broadcast_to(cwt_ref[0][None], (bt, w, w))           # (bt, w_out, w_in)
    conv = lax.dot_general(cwt, h, bdims, precision=_PREC_SPECTRAL,
                           preferred_element_type=f32) + cb_ref[0]  # (bt, w, s)

    h_scr[...] = jnp.tanh(spec + conv)

    # ---- projection head: only after the last Fourier layer -----------------
    @pl.when(l == _N_LAYERS - 1)
    def _():
        hf = h_scr[...]                                            # (bt, w, s)
        qwt = jnp.broadcast_to(qwt_ref[...][None], (bt, 32, w))
        q = jnp.tanh(lax.dot_general(qwt, hf, bdims, precision=_PREC_SPECTRAL,
                                     preferred_element_type=f32)
                     + qb_ref[...])                                # (bt, 32, s)
        out = jnp.sum(q * ow_ref[...], axis=1) + ob_ref[...]       # (bt, s)  lane-dense
        o_ref[...] = out[:, None, :].astype(o_ref.dtype)           # (bt, 1, s)


# ---------------------------------------------------------------------------
# Wrapper helpers
# ---------------------------------------------------------------------------
@functools.lru_cache(maxsize=None)
def _dft_mats(S, modes):
    """Forward truncated rDFT  FT (S, 2m)  and inverse  GT (2m, S), f64-built."""
    k = np.arange(modes, dtype=np.float64)
    s = np.arange(S, dtype=np.float64)
    ang = 2.0 * np.pi * np.outer(s, k) / S                  # (S, modes)
    FT = np.concatenate([np.cos(ang), -np.sin(ang)], axis=1)          # (S, 2m)
    c = np.where(k == 0, 1.0, 2.0)                           # Hermitian weights
    if S % 2 == 0:
        c = np.where(k == S // 2, 1.0, c)                    # Nyquist bin
    GrT = (np.cos(ang) * c[None, :] / S).T                   # (m, S)
    GiT = (-np.sin(ang) * c[None, :] / S).T                  # (m, S)
    GT = np.concatenate([GrT, GiT], axis=0)                  # (2m, S)
    return jnp.asarray(FT, jnp.float32), jnp.asarray(GT, jnp.float32)


def _vmem_limit_bytes():
    try:
        cap = int(pltpu.get_tpu_info().vmem_capacity_bytes)
    except Exception:
        cap = 64 * 1024 * 1024
    return max(32 * 1024 * 1024, min(int(cap * 0.875), 112 * 1024 * 1024))


def _vmem_bytes_estimate(bt, S, W, modes):
    act = 7 * bt * W * S                              # h scratch, 2x input, spec/conv/temps
    spc = 12 * modes * bt * W                         # x2 / xkbw / mix products / ri2
    wts = 2 * (2 * modes * W * W + W * W + W)         # double-buffered per-layer weights
    cst = 4 * modes * S + 40 * W + 2 * bt * S         # DFT matrices + head + out block
    return 4 * (act + spc + wts + cst)


def _pick_block_batch(B, S, W, modes, budget):
    cands = [d for d in range(1, B + 1)
             if B % d == 0 and _vmem_bytes_estimate(d, S, W, modes) <= budget]
    if not cands:
        return 1
    best = max(cands)
    if B // best < 2:                                  # keep >= 2 grid steps for megacore
        two_step = [d for d in cands if B // d >= 2 and d >= 8]
        if two_step:
            best = max(two_step)
    return best


# ---------------------------------------------------------------------------
# Wrapper
# ---------------------------------------------------------------------------
def fno1d_pallas(x, params, modes, block_batch=None):
    B, S, _cin = x.shape
    assert modes <= S // 2 + 1, "modes must not exceed S//2 + 1 (rFFT bins)"
    pw, pb = params[0], params[1]
    W = pw.shape[1]

    # linear_p (K=2 contraction) stays in XLA, followed by the torch permute(0,2,1).
    h0 = jnp.dot(x, pw, precision=lax.Precision.HIGHEST) + pb        # (B, S, W)
    h0 = jnp.transpose(h0, (0, 2, 1)).astype(jnp.float32)            # (B, W, S)  NCW

    FT, GT = _dft_mats(S, modes)

    # Per-layer weights stacked on a leading layer axis -> streamed by the grid.
    wre_all = jnp.stack([params[2 + 4 * l] for l in range(_N_LAYERS)])            # (3,m,W,W)
    wim_all = jnp.stack([params[3 + 4 * l] for l in range(_N_LAYERS)])            # (3,m,W,W)
    cwt_all = jnp.stack([params[4 + 4 * l].T for l in range(_N_LAYERS)])          # (3,W,W) [o,i]
    cb_all = jnp.stack([params[5 + 4 * l].reshape(W, 1) for l in range(_N_LAYERS)])  # (3,W,1)
    qw, qb, ow, ob = params[14:18]
    qwt = qw.T                                                       # (32, W)
    qb_c = qb.reshape(32, 1)
    ow_c = ow.reshape(32, 1)
    ob_c = ob.reshape(1, 1)

    vmem_limit = _vmem_limit_bytes()
    bt = block_batch if block_batch is not None else _pick_block_batch(
        B, S, W, modes, int(0.8 * vmem_limit))
    assert B % bt == 0

    grid = (B // bt, _N_LAYERS)
    kern = functools.partial(_fno1d_kernel, bt=bt, s=S, w=W, m=modes)

    def _call(single_buffer_consts):
        def const_spec(shape):
            idx = lambda g, l: (0,) * len(shape)
            if single_buffer_consts:
                return pl.BlockSpec(shape, idx, pipeline_mode=pl.Buffered(1))
            return pl.BlockSpec(shape, idx)

        in_specs = [
            pl.BlockSpec((bt, W, S), lambda g, l: (g, 0, 0)),            # h0 (NCW)
            const_spec(FT.shape),                                        # (S, 2m)
            const_spec(GT.shape),                                        # (2m, S)
            pl.BlockSpec((1, modes, W, W), lambda g, l: (l, 0, 0, 0)),   # wre (streamed)
            pl.BlockSpec((1, modes, W, W), lambda g, l: (l, 0, 0, 0)),   # wim (streamed)
            pl.BlockSpec((1, W, W), lambda g, l: (l, 0, 0)),             # conv weight^T
            pl.BlockSpec((1, W, 1), lambda g, l: (l, 0, 0)),             # conv bias
            const_spec(qwt.shape),
            const_spec(qb_c.shape),
            const_spec(ow_c.shape),
            const_spec(ob_c.shape),
        ]
        out = pl.pallas_call(
            kern,
            out_shape=jax.ShapeDtypeStruct((B, 1, S), jnp.float32),
            grid=grid,
            in_specs=in_specs,
            out_specs=pl.BlockSpec((bt, 1, S), lambda g, l: (g, 0, 0)),
            scratch_shapes=[pltpu.VMEM((bt, W, S), jnp.float32)],
            compiler_params=pltpu.CompilerParams(
                dimension_semantics=("parallel", "arbitrary"),
                vmem_limit_bytes=vmem_limit),
        )(h0, FT, GT, wre_all, wim_all, cwt_all, cb_all, qwt, qb_c, ow_c, ob_c)
        return jax.block_until_ready(out)

    try:
        out3 = _call(True)
    except Exception:
        # Fallback for jax versions without BlockSpec(pipeline_mode=pl.Buffered(1)).
        out3 = _call(False)
    return out3[:, 0, :, None]                                        # (B, S, 1)


# ---------------------------------------------------------------------------
# Parameters & pure-JAX reference
# ---------------------------------------------------------------------------
def init_params(key, width, modes):
    keys = iter(jax.random.split(key, 20))

    def u(shape, lo, hi):
        return jax.random.uniform(next(keys), shape, jnp.float32, lo, hi)

    params = [u((2, width), -0.5, 0.5), u((1, width), -0.5, 0.5)]     # linear_p
    wscale = 1.0 / (width * width)
    cscale = 1.0 / float(np.sqrt(width))
    for _ in range(_N_LAYERS):
        params += [u((modes, width, width), 0.0, wscale),             # wre  (k, i, o)
                   u((modes, width, width), 0.0, wscale),             # wim  (k, i, o)
                   u((width, width), -cscale, cscale),                # conv weight (i, o)
                   u((1, width), -cscale, cscale)]                    # conv bias
    params += [u((width, 32), -cscale, cscale),                       # linear_q
               u((1, 32), -0.1, 0.1),
               u((32, 1), -1.0 / float(np.sqrt(32.0)), 1.0 / float(np.sqrt(32.0))),
               u((1, 1), -0.1, 0.1)]                                  # output_layer
    return params


def fno1d_ref(x, params, modes):
    """Pure-JAX reference mirroring the PyTorch forward (real FFT, f32 matmuls)."""
    with jax.default_matmul_precision("highest"):
        B, S, _ = x.shape
        pw, pb = params[0], params[1]
        h = x @ pw + pb                                    # (B, S, W)
        for l in range(_N_LAYERS):
            wre, wim, cw, cb = params[2 + 4 * l: 6 + 4 * l]
            hc = jnp.transpose(h, (0, 2, 1))               # (B, W, S)  NCW
            xft = jnp.fft.rfft(hc, axis=-1)
            wc = (wre + 1j * wim).astype(jnp.complex64)    # (modes, in, out)
            outm = jnp.einsum('bik,kio->bok', xft[:, :, :modes], wc)
            out_ft = jnp.zeros((B, h.shape[-1], S // 2 + 1),
                               jnp.complex64).at[:, :, :modes].set(outm)
            spec = jnp.fft.irfft(out_ft, n=S, axis=-1)     # (B, W, S)
            spec = jnp.transpose(spec, (0, 2, 1))          # (B, S, W)
            h = jnp.tanh(spec + (h @ cw + cb))
        qw, qb, ow, ob = params[14:18]
        q = jnp.tanh(h @ qw + qb)
        return q @ ow + ob


if __name__ == "__main__":
    key = jax.random.PRNGKey(0)
    # Config 1: auto block_batch (bt=2, one batch grid step, 3 layer steps).
    # Config 2: modes == S//2 + 1 (Nyquist bin) and bt=1 (multi-step batch axis).
    for (B, S, modes, width, bb) in [(2, 16, 8, 32, None),
                                     (2, 16, 9, 32, 1)]:
        kx, kp = jax.random.split(jax.random.fold_in(key, modes))
        x = jax.random.normal(kx, (B, S, 2), jnp.float32)     # (batch, x=s, c=2)
        params = init_params(kp, width, modes)

        out = jax.block_until_ready(fno1d_pallas(x, params, modes, block_batch=bb))
        assert out.shape == (B, S, 1), out.shape

        ref = fno1d_ref(x, params, modes)
        err = float(jnp.max(jnp.abs(out - ref)))
        if not (err < 2e-3):
            raise AssertionError(
                f"kernel/reference mismatch (modes={modes}, bt={bb}): max abs err {err}")
    print("KERNEL_OK")
</pallas_src>

<mosaic_0001>
module attributes {stable_mosaic.version = 11 : i64} {
  func.func @_fno1d_kernel(%arg0: i32, %arg1: i32, %arg2: memref<2x32x16xf32, #tpu.memory_space<vmem>>, %arg3: memref<16x16xf32, #tpu.memory_space<vmem>>, %arg4: memref<16x16xf32, #tpu.memory_space<vmem>>, %arg5: memref<1x8x32x32xf32, #tpu.memory_space<vmem>>, %arg6: memref<1x8x32x32xf32, #tpu.memory_space<vmem>>, %arg7: memref<1x32x32xf32, #tpu.memory_space<vmem>>, %arg8: memref<1x32x1xf32, #tpu.memory_space<vmem>>, %arg9: memref<32x32xf32, #tpu.memory_space<vmem>>, %arg10: memref<32x1xf32, #tpu.memory_space<vmem>>, %arg11: memref<32x1xf32, #tpu.memory_space<vmem>>, %arg12: memref<1x1xf32, #tpu.memory_space<vmem>>, %arg13: memref<2x1x16xf32, #tpu.memory_space<vmem>>, %arg14: memref<2x32x16xf32, #tpu.memory_space<vmem>>) attributes {dimension_semantics = [#tpu.dimension_semantics<parallel>, #tpu.dimension_semantics<arbitrary>], iteration_bounds = array<i64: 1, 3>, scalar_prefetch = 0 : i64, scratch_operands = 1 : i64, tpu.core_type = #tpu.core_type<tc>, window_params = [{transform_indices = @transform_0, window_bounds = array<i64: 2, 32, 16>}, {pipeline_mode = #tpu.pipeline_mode<synchronous>, transform_indices = @transform_1, window_bounds = array<i64: 16, 16>}, {pipeline_mode = #tpu.pipeline_mode<synchronous>, transform_indices = @transform_2, window_bounds = array<i64: 16, 16>}, {transform_indices = @transform_3, window_bounds = array<i64: 1, 8, 32, 32>}, {transform_indices = @transform_4, window_bounds = array<i64: 1, 8, 32, 32>}, {transform_indices = @transform_5, window_bounds = array<i64: 1, 32, 32>}, {transform_indices = @transform_6, window_bounds = array<i64: 1, 32, 1>}, {pipeline_mode = #tpu.pipeline_mode<synchronous>, transform_indices = @transform_7, window_bounds = array<i64: 32, 32>}, {pipeline_mode = #tpu.pipeline_mode<synchronous>, transform_indices = @transform_8, window_bounds = array<i64: 32, 1>}, {pipeline_mode = #tpu.pipeline_mode<synchronous>, transform_indices = @transform_9, window_bounds = array<i64: 32, 1>}, {pipeline_mode = #tpu.pipeline_mode<synchronous>, transform_indices = @transform_10, window_bounds = array<i64: 1, 1>}, {transform_indices = @transform_11, window_bounds = array<i64: 2, 1, 16>}]} {
    %c0_i32 = arith.constant 0 : i32
    %0 = arith.cmpi eq, %arg1, %c0_i32 : i32
    %1 = arith.extui %0 : i1 to i32
    %c0_i32_0 = arith.constant 0 : i32
    %2 = arith.cmpi ne, %1, %c0_i32_0 : i32
    scf.if %2 {
      %c0_31 = arith.constant 0 : index
      %c0_32 = arith.constant 0 : index
      %c0_33 = arith.constant 0 : index
      %54 = vector.load %arg2[%c0_31, %c0_32, %c0_33] : memref<2x32x16xf32, #tpu.memory_space<vmem>>, vector<2x32x16xf32>
      %c0_34 = arith.constant 0 : index
      %c0_35 = arith.constant 0 : index
      %c0_36 = arith.constant 0 : index
      %55 = vector.load %arg14[%c0_34, %c0_35, %c0_36] : memref<2x32x16xf32, #tpu.memory_space<vmem>>, vector<2x32x16xf32>
      tpu.vector_store %arg14[%c0_34, %c0_35, %c0_36], %54 {strides = array<i32>} : memref<2x32x16xf32, #tpu.memory_space<vmem>>, vector<2x32x16xf32>,
    } else {
    }
    %c0 = arith.constant 0 : index
    %c0_1 = arith.constant 0 : index
    %c0_2 = arith.constant 0 : index
    %3 = vector.load %arg14[%c0, %c0_1, %c0_2] : memref<2x32x16xf32, #tpu.memory_space<vmem>>, vector<2x32x16xf32>
    %4 = vector.shape_cast %3 : vector<2x32x16xf32> to vector<64x16xf32>
    %c0_3 = arith.constant 0 : index
    %c0_4 = arith.constant 0 : index
    %5 = vector.load %arg3[%c0_3, %c0_4] : memref<16x16xf32, #tpu.memory_space<vmem>>, vector<16x16xf32>
    %cst = arith.constant dense<0.000000e+00> : vector<64x16xf32>
    %6 = tpu.matmul %4, %5, %cst {dimension_numbers = #tpu.dot_dimension_numbers<[1], [0], [0], [1], [0, 0, 1, 1], [], []>, precision = #tpu.contract_precision<fp32>} : vector<64x16xf32>, vector<16x16xf32>, vector<64x16xf32> -> vector<64x16xf32>
    %7 = vector.extract_strided_slice %6 {offsets = [0, 0], sizes = [32, 16], strides = [1, 1]} : vector<64x16xf32> to vector<32x16xf32>
    %8 = tpu.transpose %7, [1, 0] : vector<32x16xf32> -> vector<16x32xf32>
    %9 = vector.extract_strided_slice %6 {offsets = [32, 0], sizes = [32, 16], strides = [1, 1]} : vector<64x16xf32> to vector<32x16xf32>
    %10 = tpu.transpose %9, [1, 0] : vector<32x16xf32> -> vector<16x32xf32>
    %11 = vector.shape_cast %8 : vector<16x32xf32> to vector<16x1x32xf32>
    %12 = vector.shape_cast %10 : vector<16x32xf32> to vector<16x1x32xf32>
    %13 = tpu.concatenate %11, %12 in 1 : vector<16x1x32xf32>, vector<16x1x32xf32> -> vector<16x2x32xf32>
    %14 = vector.extract_strided_slice %13 {offsets = [0, 0, 0], sizes = [8, 2, 32], strides = [1, 1, 1]} : vector<16x2x32xf32> to vector<8x2x32xf32>
    %15 = vector.extract_strided_slice %13 {offsets = [8, 0, 0], sizes = [8, 2, 32], strides = [1, 1, 1]} : vector<16x2x32xf32> to vector<8x2x32xf32>
    %c0_5 = arith.constant 0 : index
    %c0_6 = arith.constant 0 : index
    %c0_7 = arith.constant 0 : index
    %c0_8 = arith.constant 0 : index
    %16 = vector.load %arg5[%c0_5, %c0_6, %c0_7, %c0_8] : memref<1x8x32x32xf32, #tpu.memory_space<vmem>>, vector<1x8x32x32xf32>
    %17 = vector.shape_cast %16 : vector<1x8x32x32xf32> to vector<8x32x32xf32>
    %c0_9 = arith.constant 0 : index
    %c0_10 = arith.constant 0 : index
    %c0_11 = arith.constant 0 : index
    %c0_12 = arith.constant 0 : index
    %18 = vector.load %arg6[%c0_9, %c0_10, %c0_11, %c0_12] : memref<1x8x32x32xf32, #tpu.memory_space<vmem>>, vector<1x8x32x32xf32>
    %19 = vector.shape_cast %18 : vector<1x8x32x32xf32> to vector<8x32x32xf32>
    %cst_13 = arith.constant dense<0.000000e+00> : vector<8x2x32xf32>
    %20 = tpu.matmul %14, %17, %cst_13 {dimension_numbers = #tpu.dot_dimension_numbers<[2], [1], [1], [2], [0, 0, 0, 1, 1, 2], [0], [0]>} : vector<8x2x32xf32>, vector<8x32x32xf32>, vector<8x2x32xf32> -> vector<8x2x32xf32>
    %cst_14 = arith.constant dense<0.000000e+00> : vector<8x2x32xf32>
    %21 = tpu.matmul %15, %19, %cst_14 {dimension_numbers = #tpu.dot_dimension_numbers<[2], [1], [1], [2], [0, 0, 0, 1, 1, 2], [0], [0]>} : vector<8x2x32xf32>, vector<8x32x32xf32>, vector<8x2x32xf32> -> vector<8x2x32xf32>
    %cst_15 = arith.constant dense<0.000000e+00> : vector<8x2x32xf32>
    %22 = tpu.matmul %14, %19, %cst_15 {dimension_numbers = #tpu.dot_dimension_numbers<[2], [1], [1], [2], [0, 0, 0, 1, 1, 2], [0], [0]>} : vector<8x2x32xf32>, vector<8x32x32xf32>, vector<8x2x32xf32> -> vector<8x2x32xf32>
    %cst_16 = arith.constant dense<0.000000e+00> : vector<8x2x32xf32>
    %23 = tpu.matmul %15, %17, %cst_16 {dimension_numbers = #tpu.dot_dimension_numbers<[2], [1], [1], [2], [0, 0, 0, 1, 1, 2], [0], [0]>} : vector<8x2x32xf32>, vector<8x32x32xf32>, vector<8x2x32xf32> -> vector<8x2x32xf32>
    %24 = arith.subf %20, %21 : vector<8x2x32xf32>
    %25 = arith.addf %22, %23 : vector<8x2x32xf32>
    %26 = tpu.concatenate %24, %25 in 0 : vector<8x2x32xf32>, vector<8x2x32xf32> -> vector<16x2x32xf32>
    %27 = vector.extract_strided_slice %26 {offsets = [0, 0, 0], sizes = [16, 1, 32], strides = [1, 1, 1]} : vector<16x2x32xf32> to vector<16x1x32xf32>
    %28 = vector.shape_cast %27 : vector<16x1x32xf32> to vector<16x32xf32>
    %29 = tpu.transpose %28, [1, 0] : vector<16x32xf32> -> vector<32x16xf32>
    %30 = vector.extract_strided_slice %26 {offsets = [0, 1, 0], sizes = [16, 1, 32], strides = [1, 1, 1]} : vector<16x2x32xf32> to vector<16x1x32xf32>
    %31 = vector.shape_cast %30 : vector<16x1x32xf32> to vector<16x32xf32>
    %32 = tpu.transpose %31, [1, 0] : vector<16x32xf32> -> vector<32x16xf32>
    %33 = tpu.concatenate %29, %32 in 0 : vector<32x16xf32>, vector<32x16xf32> -> vector<64x16xf32>
    %c0_17 = arith.constant 0 : index
    %c0_18 = arith.constant 0 : index
    %34 = vector.load %arg4[%c0_17, %c0_18] : memref<16x16xf32, #tpu.memory_space<vmem>>, vector<16x16xf32>
    %cst_19 = arith.constant dense<0.000000e+00> : vector<64x16xf32>
    %35 = tpu.matmul %33, %34, %cst_19 {dimension_numbers = #tpu.dot_dimension_numbers<[1], [0], [0], [1], [0, 0, 1, 1], [], []>, precision = #tpu.contract_precision<fp32>} : vector<64x16xf32>, vector<16x16xf32>, vector<64x16xf32> -> vector<64x16xf32>
    %36 = vector.shape_cast %35 : vector<64x16xf32> to vector<2x32x16xf32>
    %c0_20 = arith.constant 0 : index
    %c0_21 = arith.constant 0 : index
    %c0_22 = arith.constant 0 : index
    %37 = vector.load %arg7[%c0_20, %c0_21, %c0_22] : memref<1x32x32xf32, #tpu.memory_space<vmem>>, vector<1x32x32xf32>
    %38 = vector.shape_cast %37 : vector<1x32x32xf32> to vector<32x32xf32>
    %39 = vector.shape_cast %38 : vector<32x32xf32> to vector<1x32x32xf32>
    %40 = vector.shape_cast %39 : vector<1x32x32xf32> to vector<1x32x32xf32>
    %41 = vector.broadcast %40 : vector<1x32x32xf32> to vector<2x32x32xf32>
    %cst_23 = arith.constant dense<0.000000e+00> : vector<2x32x16xf32>
    %42 = tpu.matmul %41, %3, %cst_23 {dimension_numbers = #tpu.dot_dimension_numbers<[2], [1], [1], [2], [0, 0, 0, 1, 1, 2], [0], [0]>, precision = #tpu.contract_precision<fp32>} : vector<2x32x32xf32>, vector<2x32x16xf32>, vector<2x32x16xf32> -> vector<2x32x16xf32>
    %c0_24 = arith.constant 0 : index
    %c0_25 = arith.constant 0 : index
    %c0_26 = arith.constant 0 : index
    %43 = vector.load %arg8[%c0_24, %c0_25, %c0_26] : memref<1x32x1xf32, #tpu.memory_space<vmem>>, vector<1x32x1xf32>
    %44 = vector.shape_cast %43 : vector<1x32x1xf32> to vector<32x1xf32>
    %45 = vector.shape_cast %44 : vector<32x1xf32> to vector<1x32x1xf32>
    %46 = vector.broadcast %45 : vector<1x32x1xf32> to vector<2x32x16xf32>
    %47 = arith.addf %42, %46 : vector<2x32x16xf32>
    %48 = arith.addf %36, %47 : vector<2x32x16xf32>
    %49 = math.tanh %48 : vector<2x32x16xf32>
    %c0_27 = arith.constant 0 : index
    %c0_28 = arith.constant 0 : index
    %c0_29 = arith.constant 0 : index
    %50 = vector.load %arg14[%c0_27, %c0_28, %c0_29] : memref<2x32x16xf32, #tpu.memory_space<vmem>>, vector<2x32x16xf32>
    tpu.vector_store %arg14[%c0_27, %c0_28, %c0_29], %49 {strides = array<i32>} : memref<2x32x16xf32, #tpu.memory_space<vmem>>, vector<2x32x16xf32>,
    %c2_i32 = arith.constant 2 : i32
    %51 = arith.cmpi eq, %arg1, %c2_i32 : i32
    %52 = arith.extui %51 : i1 to i32
    %c0_i32_30 = arith.constant 0 : i32
    %53 = arith.cmpi ne, %52, %c0_i32_30 : i32
    scf.if %53 {
      %c0_31 = arith.constant 0 : index
      %c0_32 = arith.constant 0 : index
      %c0_33 = arith.constant 0 : index
      %54 = vector.load %arg14[%c0_31, %c0_32, %c0_33] : memref<2x32x16xf32, #tpu.memory_space<vmem>>, vector<2x32x16xf32>
      %c0_34 = arith.constant 0 : index
      %c0_35 = arith.constant 0 : index
      %55 = vector.load %arg9[%c0_34, %c0_35] : memref<32x32xf32, #tpu.memory_space<vmem>>, vector<32x32xf32>
      %56 = vector.shape_cast %55 : vector<32x32xf32> to vector<1x32x32xf32>
      %57 = vector.shape_cast %56 : vector<1x32x32xf32> to vector<1x32x32xf32>
      %58 = vector.broadcast %57 : vector<1x32x32xf32> to vector<2x32x32xf32>
      %cst_36 = arith.constant dense<0.000000e+00> : vector<2x32x16xf32>
      %59 = tpu.matmul %58, %54, %cst_36 {dimension_numbers = #tpu.dot_dimension_numbers<[2], [1], [1], [2], [0, 0, 0, 1, 1, 2], [0], [0]>, precision = #tpu.contract_precision<fp32>} : vector<2x32x32xf32>, vector<2x32x16xf32>, vector<2x32x16xf32> -> vector<2x32x16xf32>
      %c0_37 = arith.constant 0 : index
      %c0_38 = arith.constant 0 : index
      %60 = vector.load %arg10[%c0_37, %c0_38] : memref<32x1xf32, #tpu.memory_space<vmem>>, vector<32x1xf32>
      %61 = vector.shape_cast %60 : vector<32x1xf32> to vector<1x32x1xf32>
      %62 = vector.broadcast %61 : vector<1x32x1xf32> to vector<2x32x16xf32>
      %63 = arith.addf %59, %62 : vector<2x32x16xf32>
      %64 = math.tanh %63 : vector<2x32x16xf32>
      %c0_39 = arith.constant 0 : index
      %c0_40 = arith.constant 0 : index
      %65 = vector.load %arg11[%c0_39, %c0_40] : memref<32x1xf32, #tpu.memory_space<vmem>>, vector<32x1xf32>
      %66 = vector.shape_cast %65 : vector<32x1xf32> to vector<1x32x1xf32>
      %67 = vector.broadcast %66 : vector<1x32x1xf32> to vector<2x32x16xf32>
      %68 = arith.mulf %64, %67 : vector<2x32x16xf32>
      %cst_41 = arith.constant dense<0.000000e+00> : vector<2x16xf32>
      %69 = vector.multi_reduction <add>, %68, %cst_41 [1] : vector<2x32x16xf32> to vector<2x16xf32>
      %c0_42 = arith.constant 0 : index
      %c0_43 = arith.constant 0 : index
      %70 = vector.load %arg12[%c0_42, %c0_43] : memref<1x1xf32, #tpu.memory_space<vmem>>, vector<1x1xf32>
      %71 = vector.broadcast %70 : vector<1x1xf32> to vector<2x16xf32>
      %72 = arith.addf %69, %71 : vector<2x16xf32>
      %73 = vector.shape_cast %72 : vector<2x16xf32> to vector<2x1x16xf32>
      %c0_44 = arith.constant 0 : index
      %c0_45 = arith.constant 0 : index
      %c0_46 = arith.constant 0 : index
      %74 = vector.load %arg13[%c0_44, %c0_45, %c0_46] : memref<2x1x16xf32, #tpu.memory_space<vmem>>, vector<2x1x16xf32>
      tpu.vector_store %arg13[%c0_44, %c0_45, %c0_46], %73 {strides = array<i32>} : memref<2x1x16xf32, #tpu.memory_space<vmem>>, vector<2x1x16xf32>,
    } else {
    }
    return
  }
  func.func @transform_0(%arg0: i32, %arg1: i32) -> (i32, i32, i32) {
    %c0_i32 = arith.constant 0 : i32
    %c0_i32_0 = arith.constant 0 : i32
    %c0_i32_1 = arith.constant 0 : i32
    return %arg0, %c0_i32, %c0_i32_0 : i32, i32, i32
  }
  func.func @transform_1(%arg0: i32, %arg1: i32) -> (i32, i32) {
    %c0_i32 = arith.constant 0 : i32
    %c0_i32_0 = arith.constant 0 : i32
    %c0_i32_1 = arith.constant 0 : i32
    return %c0_i32, %c0_i32_0 : i32, i32
  }
  func.func @transform_2(%arg0: i32, %arg1: i32) -> (i32, i32) {
    %c0_i32 = arith.constant 0 : i32
    %c0_i32_0 = arith.constant 0 : i32
    %c0_i32_1 = arith.constant 0 : i32
    return %c0_i32, %c0_i32_0 : i32, i32
  }
  func.func @transform_3(%arg0: i32, %arg1: i32) -> (i32, i32, i32, i32) {
    %c0_i32 = arith.constant 0 : i32
    %c0_i32_0 = arith.constant 0 : i32
    %c0_i32_1 = arith.constant 0 : i32
    %c0_i32_2 = arith.constant 0 : i32
    return %arg1, %c0_i32, %c0_i32_0, %c0_i32_1 : i32, i32, i32, i32
  }
  func.func @transform_4(%arg0: i32, %arg1: i32) -> (i32, i32, i32, i32) {
    %c0_i32 = arith.constant 0 : i32
    %c0_i32_0 = arith.constant 0 : i32
    %c0_i32_1 = arith.constant 0 : i32
    %c0_i32_2 = arith.constant 0 : i32
    return %arg1, %c0_i32, %c0_i32_0, %c0_i32_1 : i32, i32, i32, i32
  }
  func.func @transform_5(%arg0: i32, %arg1: i32) -> (i32, i32, i32) {
    %c0_i32 = arith.constant 0 : i32
    %c0_i32_0 = arith.constant 0 : i32
    %c0_i32_1 = arith.constant 0 : i32
    return %arg1, %c0_i32, %c0_i32_0 : i32, i32, i32
  }
  func.func @transform_6(%arg0: i32, %arg1: i32) -> (i32, i32, i32) {
    %c0_i32 = arith.constant 0 : i32
    %c0_i32_0 = arith.constant 0 : i32
    %c0_i32_1 = arith.constant 0 : i32
    return %arg1, %c0_i32, %c0_i32_0 : i32, i32, i32
  }
  func.func @transform_7(%arg0: i32, %arg1: i32) -> (i32, i32) {
    %c0_i32 = arith.constant 0 : i32
    %c0_i32_0 = arith.constant 0 : i32
    %c0_i32_1 = arith.constant 0 : i32
    return %c0_i32, %c0_i32_0 : i32, i32
  }
  func.func @transform_8(%arg0: i32, %arg1: i32) -> (i32, i32) {
    %c0_i32 = arith.constant 0 : i32
    %c0_i32_0 = arith.constant 0 : i32
    %c0_i32_1 = arith.constant 0 : i32
    return %c0_i32, %c0_i32_0 : i32, i32
  }
  func.func @transform_9(%arg0: i32, %arg1: i32) -> (i32, i32) {
    %c0_i32 = arith.constant 0 : i32
    %c0_i32_0 = arith.constant 0 : i32
    %c0_i32_1 = arith.constant 0 : i32
    return %c0_i32, %c0_i32_0 : i32, i32
  }
  func.func @transform_10(%arg0: i32, %arg1: i32) -> (i32, i32) {
    %c0_i32 = arith.constant 0 : i32
    %c0_i32_0 = arith.constant 0 : i32
    %c0_i32_1 = arith.constant 0 : i32
    return %c0_i32, %c0_i32_0 : i32, i32
  }
  func.func @transform_11(%arg0: i32, %arg1: i32) -> (i32, i32, i32) {
    %c0_i32 = arith.constant 0 : i32
    %c0_i32_0 = arith.constant 0 : i32
    %c0_i32_1 = arith.constant 0 : i32
    return %arg0, %c0_i32, %c0_i32_0 : i32, i32, i32
  }
}

module attributes {stable_mosaic.version = 11 : i64} {
  func.func @_fno1d_kernel(%arg0: i32, %arg1: i32, %arg2: memref<2x32x16xf32, #tpu.memory_space<vmem>>, %arg3: memref<16x16xf32, #tpu.memory_space<vmem>>, %arg4: memref<16x16xf32, #tpu.memory_space<vmem>>, %arg5: memref<1x8x32x32xf32, #tpu.memory_space<vmem>>, %arg6: memref<1x8x32x32xf32, #tpu.memory_space<vmem>>, %arg7: memref<1x32x32xf32, #tpu.memory_space<vmem>>, %arg8: memref<1x32x1xf32, #tpu.memory_space<vmem>>, %arg9: memref<32x32xf32, #tpu.memory_space<vmem>>, %arg10: memref<32x1xf32, #tpu.memory_space<vmem>>, %arg11: memref<32x1xf32, #tpu.memory_space<vmem>>, %arg12: memref<1x1xf32, #tpu.memory_space<vmem>>, %arg13: memref<2x1x16xf32, #tpu.memory_space<vmem>>, %arg14: memref<2x32x16xf32, #tpu.memory_space<vmem>>) attributes {dimension_semantics = [#tpu.dimension_semantics<parallel>, #tpu.dimension_semantics<arbitrary>], iteration_bounds = array<i64: 1, 3>, scalar_prefetch = 0 : i64, scratch_operands = 1 : i64, tpu.core_type = #tpu.core_type<tc>, window_params = [{transform_indices = @transform_0, window_bounds = array<i64: 2, 32, 16>}, {pipeline_mode = #tpu.pipeline_mode<synchronous>, transform_indices = @transform_1, window_bounds = array<i64: 16, 16>}, {pipeline_mode = #tpu.pipeline_mode<synchronous>, transform_indices = @transform_2, window_bounds = array<i64: 16, 16>}, {transform_indices = @transform_3, window_bounds = array<i64: 1, 8, 32, 32>}, {transform_indices = @transform_4, window_bounds = array<i64: 1, 8, 32, 32>}, {transform_indices = @transform_5, window_bounds = array<i64: 1, 32, 32>}, {transform_indices = @transform_6, window_bounds = array<i64: 1, 32, 1>}, {pipeline_mode = #tpu.pipeline_mode<synchronous>, transform_indices = @transform_7, window_bounds = array<i64: 32, 32>}, {pipeline_mode = #tpu.pipeline_mode<synchronous>, transform_indices = @transform_8, window_bounds = array<i64: 32, 1>}, {pipeline_mode = #tpu.pipeline_mode<synchronous>, transform_indices = @transform_9, window_bounds = array<i64: 32, 1>}, {pipeline_mode = #tpu.pipeline_mode<synchronous>, transform_indices = @transform_10, window_bounds = array<i64: 1, 1>}, {transform_indices = @transform_11, window_bounds = array<i64: 2, 1, 16>}]} {
    %c0_i32 = arith.constant 0 : i32
    %0 = arith.cmpi eq, %arg1, %c0_i32 : i32
    %1 = arith.extui %0 : i1 to i32
    %c0_i32_0 = arith.constant 0 : i32
    %2 = arith.cmpi ne, %1, %c0_i32_0 : i32
    scf.if %2 {
      %c0_31 = arith.constant 0 : index
      %c0_32 = arith.constant 0 : index
      %c0_33 = arith.constant 0 : index
      %54 = vector.load %arg2[%c0_31, %c0_32, %c0_33] : memref<2x32x16xf32, #tpu.memory_space<vmem>>, vector<2x32x16xf32>
      %c0_34 = arith.constant 0 : index
      %c0_35 = arith.constant 0 : index
      %c0_36 = arith.constant 0 : index
      %55 = vector.load %arg14[%c0_34, %c0_35, %c0_36] : memref<2x32x16xf32, #tpu.memory_space<vmem>>, vector<2x32x16xf32>
      tpu.vector_store %arg14[%c0_34, %c0_35, %c0_36], %54 {strides = array<i32>} : memref<2x32x16xf32, #tpu.memory_space<vmem>>, vector<2x32x16xf32>,
    } else {
    }
    %c0 = arith.constant 0 : index
    %c0_1 = arith.constant 0 : index
    %c0_2 = arith.constant 0 : index
    %3 = vector.load %arg14[%c0, %c0_1, %c0_2] : memref<2x32x16xf32, #tpu.memory_space<vmem>>, vector<2x32x16xf32>
    %4 = vector.shape_cast %3 : vector<2x32x16xf32> to vector<64x16xf32>
    %c0_3 = arith.constant 0 : index
    %c0_4 = arith.constant 0 : index
    %5 = vector.load %arg3[%c0_3, %c0_4] : memref<16x16xf32, #tpu.memory_space<vmem>>, vector<16x16xf32>
    %cst = arith.constant dense<0.000000e+00> : vector<64x16xf32>
    %6 = tpu.matmul %4, %5, %cst {dimension_numbers = #tpu.dot_dimension_numbers<[1], [0], [0], [1], [0, 0, 1, 1], [], []>, precision = #tpu.contract_precision<fp32>} : vector<64x16xf32>, vector<16x16xf32>, vector<64x16xf32> -> vector<64x16xf32>
    %7 = vector.extract_strided_slice %6 {offsets = [0, 0], sizes = [32, 16], strides = [1, 1]} : vector<64x16xf32> to vector<32x16xf32>
    %8 = tpu.transpose %7, [1, 0] : vector<32x16xf32> -> vector<16x32xf32>
    %9 = vector.extract_strided_slice %6 {offsets = [32, 0], sizes = [32, 16], strides = [1, 1]} : vector<64x16xf32> to vector<32x16xf32>
    %10 = tpu.transpose %9, [1, 0] : vector<32x16xf32> -> vector<16x32xf32>
    %11 = vector.shape_cast %8 : vector<16x32xf32> to vector<16x1x32xf32>
    %12 = vector.shape_cast %10 : vector<16x32xf32> to vector<16x1x32xf32>
    %13 = tpu.concatenate %11, %12 in 1 : vector<16x1x32xf32>, vector<16x1x32xf32> -> vector<16x2x32xf32>
    %14 = vector.extract_strided_slice %13 {offsets = [0, 0, 0], sizes = [8, 2, 32], strides = [1, 1, 1]} : vector<16x2x32xf32> to vector<8x2x32xf32>
    %15 = vector.extract_strided_slice %13 {offsets = [8, 0, 0], sizes = [8, 2, 32], strides = [1, 1, 1]} : vector<16x2x32xf32> to vector<8x2x32xf32>
    %c0_5 = arith.constant 0 : index
    %c0_6 = arith.constant 0 : index
    %c0_7 = arith.constant 0 : index
    %c0_8 = arith.constant 0 : index
    %16 = vector.load %arg5[%c0_5, %c0_6, %c0_7, %c0_8] : memref<1x8x32x32xf32, #tpu.memory_space<vmem>>, vector<1x8x32x32xf32>
    %17 = vector.shape_cast %16 : vector<1x8x32x32xf32> to vector<8x32x32xf32>
    %c0_9 = arith.constant 0 : index
    %c0_10 = arith.constant 0 : index
    %c0_11 = arith.constant 0 : index
    %c0_12 = arith.constant 0 : index
    %18 = vector.load %arg6[%c0_9, %c0_10, %c0_11, %c0_12] : memref<1x8x32x32xf32, #tpu.memory_space<vmem>>, vector<1x8x32x32xf32>
    %19 = vector.shape_cast %18 : vector<1x8x32x32xf32> to vector<8x32x32xf32>
    %cst_13 = arith.constant dense<0.000000e+00> : vector<8x2x32xf32>
    %20 = tpu.matmul %14, %17, %cst_13 {dimension_numbers = #tpu.dot_dimension_numbers<[2], [1], [1], [2], [0, 0, 0, 1, 1, 2], [0], [0]>} : vector<8x2x32xf32>, vector<8x32x32xf32>, vector<8x2x32xf32> -> vector<8x2x32xf32>
    %cst_14 = arith.constant dense<0.000000e+00> : vector<8x2x32xf32>
    %21 = tpu.matmul %15, %19, %cst_14 {dimension_numbers = #tpu.dot_dimension_numbers<[2], [1], [1], [2], [0, 0, 0, 1, 1, 2], [0], [0]>} : vector<8x2x32xf32>, vector<8x32x32xf32>, vector<8x2x32xf32> -> vector<8x2x32xf32>
    %cst_15 = arith.constant dense<0.000000e+00> : vector<8x2x32xf32>
    %22 = tpu.matmul %14, %19, %cst_15 {dimension_numbers = #tpu.dot_dimension_numbers<[2], [1], [1], [2], [0, 0, 0, 1, 1, 2], [0], [0]>} : vector<8x2x32xf32>, vector<8x32x32xf32>, vector<8x2x32xf32> -> vector<8x2x32xf32>
    %cst_16 = arith.constant dense<0.000000e+00> : vector<8x2x32xf32>
    %23 = tpu.matmul %15, %17, %cst_16 {dimension_numbers = #tpu.dot_dimension_numbers<[2], [1], [1], [2], [0, 0, 0, 1, 1, 2], [0], [0]>} : vector<8x2x32xf32>, vector<8x32x32xf32>, vector<8x2x32xf32> -> vector<8x2x32xf32>
    %24 = arith.subf %20, %21 : vector<8x2x32xf32>
    %25 = arith.addf %22, %23 : vector<8x2x32xf32>
    %26 = tpu.concatenate %24, %25 in 0 : vector<8x2x32xf32>, vector<8x2x32xf32> -> vector<16x2x32xf32>
    %27 = vector.extract_strided_slice %26 {offsets = [0, 0, 0], sizes = [16, 1, 32], strides = [1, 1, 1]} : vector<16x2x32xf32> to vector<16x1x32xf32>
    %28 = vector.shape_cast %27 : vector<16x1x32xf32> to vector<16x32xf32>
    %29 = tpu.transpose %28, [1, 0] : vector<16x32xf32> -> vector<32x16xf32>
    %30 = vector.extract_strided_slice %26 {offsets = [0, 1, 0], sizes = [16, 1, 32], strides = [1, 1, 1]} : vector<16x2x32xf32> to vector<16x1x32xf32>
    %31 = vector.shape_cast %30 : vector<16x1x32xf32> to vector<16x32xf32>
    %32 = tpu.transpose %31, [1, 0] : vector<16x32xf32> -> vector<32x16xf32>
    %33 = tpu.concatenate %29, %32 in 0 : vector<32x16xf32>, vector<32x16xf32> -> vector<64x16xf32>
    %c0_17 = arith.constant 0 : index
    %c0_18 = arith.constant 0 : index
    %34 = vector.load %arg4[%c0_17, %c0_18] : memref<16x16xf32, #tpu.memory_space<vmem>>, vector<16x16xf32>
    %cst_19 = arith.constant dense<0.000000e+00> : vector<64x16xf32>
    %35 = tpu.matmul %33, %34, %cst_19 {dimension_numbers = #tpu.dot_dimension_numbers<[1], [0], [0], [1], [0, 0, 1, 1], [], []>, precision = #tpu.contract_precision<fp32>} : vector<64x16xf32>, vector<16x16xf32>, vector<64x16xf32> -> vector<64x16xf32>
    %36 = vector.shape_cast %35 : vector<64x16xf32> to vector<2x32x16xf32>
    %c0_20 = arith.constant 0 : index
    %c0_21 = arith.constant 0 : index
    %c0_22 = arith.constant 0 : index
    %37 = vector.load %arg7[%c0_20, %c0_21, %c0_22] : memref<1x32x32xf32, #tpu.memory_space<vmem>>, vector<1x32x32xf32>
    %38 = vector.shape_cast %37 : vector<1x32x32xf32> to vector<32x32xf32>
    %39 = vector.shape_cast %38 : vector<32x32xf32> to vector<1x32x32xf32>
    %40 = vector.shape_cast %39 : vector<1x32x32xf32> to vector<1x32x32xf32>
    %41 = vector.broadcast %40 : vector<1x32x32xf32> to vector<2x32x32xf32>
    %cst_23 = arith.constant dense<0.000000e+00> : vector<2x32x16xf32>
    %42 = tpu.matmul %41, %3, %cst_23 {dimension_numbers = #tpu.dot_dimension_numbers<[2], [1], [1], [2], [0, 0, 0, 1, 1, 2], [0], [0]>, precision = #tpu.contract_precision<fp32>} : vector<2x32x32xf32>, vector<2x32x16xf32>, vector<2x32x16xf32> -> vector<2x32x16xf32>
    %c0_24 = arith.constant 0 : index
    %c0_25 = arith.constant 0 : index
    %c0_26 = arith.constant 0 : index
    %43 = vector.load %arg8[%c0_24, %c0_25, %c0_26] : memref<1x32x1xf32, #tpu.memory_space<vmem>>, vector<1x32x1xf32>
    %44 = vector.shape_cast %43 : vector<1x32x1xf32> to vector<32x1xf32>
    %45 = vector.shape_cast %44 : vector<32x1xf32> to vector<1x32x1xf32>
    %46 = vector.broadcast %45 : vector<1x32x1xf32> to vector<2x32x16xf32>
    %47 = arith.addf %42, %46 : vector<2x32x16xf32>
    %48 = arith.addf %36, %47 : vector<2x32x16xf32>
    %49 = math.tanh %48 : vector<2x32x16xf32>
    %c0_27 = arith.constant 0 : index
    %c0_28 = arith.constant 0 : index
    %c0_29 = arith.constant 0 : index
    %50 = vector.load %arg14[%c0_27, %c0_28, %c0_29] : memref<2x32x16xf32, #tpu.memory_space<vmem>>, vector<2x32x16xf32>
    tpu.vector_store %arg14[%c0_27, %c0_28, %c0_29], %49 {strides = array<i32>} : memref<2x32x16xf32, #tpu.memory_space<vmem>>, vector<2x32x16xf32>,
    %c2_i32 = arith.constant 2 : i32
    %51 = arith.cmpi eq, %arg1, %c2_i32 : i32
    %52 = arith.extui %51 : i1 to i32
    %c0_i32_30 = arith.constant 0 : i32
    %53 = arith.cmpi ne, %52, %c0_i32_30 : i32
    scf.if %53 {
      %c0_31 = arith.constant 0 : index
      %c0_32 = arith.constant 0 : index
      %c0_33 = arith.constant 0 : index
      %54 = vector.load %arg14[%c0_31, %c0_32, %c0_33] : memref<2x32x16xf32, #tpu.memory_space<vmem>>, vector<2x32x16xf32>
      %c0_34 = arith.constant 0 : index
      %c0_35 = arith.constant 0 : index
      %55 = vector.load %arg9[%c0_34, %c0_35] : memref<32x32xf32, #tpu.memory_space<vmem>>, vector<32x32xf32>
      %56 = vector.shape_cast %55 : vector<32x32xf32> to vector<1x32x32xf32>
      %57 = vector.shape_cast %56 : vector<1x32x32xf32> to vector<1x32x32xf32>
      %58 = vector.broadcast %57 : vector<1x32x32xf32> to vector<2x32x32xf32>
      %cst_36 = arith.constant dense<0.000000e+00> : vector<2x32x16xf32>
      %59 = tpu.matmul %58, %54, %cst_36 {dimension_numbers = #tpu.dot_dimension_numbers<[2], [1], [1], [2], [0, 0, 0, 1, 1, 2], [0], [0]>, precision = #tpu.contract_precision<fp32>} : vector<2x32x32xf32>, vector<2x32x16xf32>, vector<2x32x16xf32> -> vector<2x32x16xf32>
      %c0_37 = arith.constant 0 : index
      %c0_38 = arith.constant 0 : index
      %60 = vector.load %arg10[%c0_37, %c0_38] : memref<32x1xf32, #tpu.memory_space<vmem>>, vector<32x1xf32>
      %61 = vector.shape_cast %60 : vector<32x1xf32> to vector<1x32x1xf32>
      %62 = vector.broadcast %61 : vector<1x32x1xf32> to vector<2x32x16xf32>
      %63 = arith.addf %59, %62 : vector<2x32x16xf32>
      %64 = math.tanh %63 : vector<2x32x16xf32>
      %c0_39 = arith.constant 0 : index
      %c0_40 = arith.constant 0 : index
      %65 = vector.load %arg11[%c0_39, %c0_40] : memref<32x1xf32, #tpu.memory_space<vmem>>, vector<32x1xf32>
      %66 = vector.shape_cast %65 : vector<32x1xf32> to vector<1x32x1xf32>
      %67 = vector.broadcast %66 : vector<1x32x1xf32> to vector<2x32x16xf32>
      %68 = arith.mulf %64, %67 : vector<2x32x16xf32>
      %cst_41 = arith.constant dense<0.000000e+00> : vector<2x16xf32>
      %69 = vector.multi_reduction <add>, %68, %cst_41 [1] : vector<2x32x16xf32> to vector<2x16xf32>
      %c0_42 = arith.constant 0 : index
      %c0_43 = arith.constant 0 : index
      %70 = vector.load %arg12[%c0_42, %c0_43] : memref<1x1xf32, #tpu.memory_space<vmem>>, vector<1x1xf32>
      %71 = vector.broadcast %70 : vector<1x1xf32> to vector<2x16xf32>
      %72 = arith.addf %69, %71 : vector<2x16xf32>
      %73 = vector.shape_cast %72 : vector<2x16xf32> to vector<2x1x16xf32>
      %c0_44 = arith.constant 0 : index
      %c0_45 = arith.constant 0 : index
      %c0_46 = arith.constant 0 : index
      %74 = vector.load %arg13[%c0_44, %c0_45, %c0_46] : memref<2x1x16xf32, #tpu.memory_space<vmem>>, vector<2x1x16xf32>
      tpu.vector_store %arg13[%c0_44, %c0_45, %c0_46], %73 {strides = array<i32>} : memref<2x1x16xf32, #tpu.memory_space<vmem>>, vector<2x1x16xf32>,
    } else {
    }
    return
  }
  func.func @transform_0(%arg0: i32, %arg1: i32) -> (i32, i32, i32) {
    %c0_i32 = arith.constant 0 : i32
    %c0_i32_0 = arith.constant 0 : i32
    %c0_i32_1 = arith.constant 0 : i32
    return %arg0, %c0_i32, %c0_i32_0 : i32, i32, i32
  }
  func.func @transform_1(%arg0: i32, %arg1: i32) -> (i32, i32) {
    %c0_i32 = arith.constant 0 : i32
    %c0_i32_0 = arith.constant 0 : i32
    %c0_i32_1 = arith.constant 0 : i32
    return %c0_i32, %c0_i32_0 : i32, i32
  }
  func.func @transform_2(%arg0: i32, %arg1: i32) -> (i32, i32) {
    %c0_i32 = arith.constant 0 : i32
    %c0_i32_0 = arith.constant 0 : i32
    %c0_i32_1 = arith.constant 0 : i32
    return %c0_i32, %c0_i32_0 : i32, i32
  }
  func.func @transform_3(%arg0: i32, %arg1: i32) -> (i32, i32, i32, i32) {
    %c0_i32 = arith.constant 0 : i32
    %c0_i32_0 = arith.constant 0 : i32
    %c0_i32_1 = arith.constant 0 : i32
    %c0_i32_2 = arith.constant 0 : i32
    return %arg1, %c0_i32, %c0_i32_0, %c0_i32_1 : i32, i32, i32, i32
  }
  func.func @transform_4(%arg0: i32, %arg1: i32) -> (i32, i32, i32, i32) {
    %c0_i32 = arith.constant 0 : i32
    %c0_i32_0 = arith.constant 0 : i32
    %c0_i32_1 = arith.constant 0 : i32
    %c0_i32_2 = arith.constant 0 : i32
    return %arg1, %c0_i32, %c0_i32_0, %c0_i32_1 : i32, i32, i32, i32
  }
  func.func @transform_5(%arg0: i32, %arg1: i32) -> (i32, i32, i32) {
    %c0_i32 = arith.constant 0 : i32
    %c0_i32_0 = arith.constant 0 : i32
    %c0_i32_1 = arith.constant 0 : i32
    return %arg1, %c0_i32, %c0_i32_0 : i32, i32, i32
  }
  func.func @transform_6(%arg0: i32, %arg1: i32) -> (i32, i32, i32) {
    %c0_i32 = arith.constant 0 : i32
    %c0_i32_0 = arith.constant 0 : i32
    %c0_i32_1 = arith.constant 0 : i32
    return %arg1, %c0_i32, %c0_i32_0 : i32, i32, i32
  }
  func.func @transform_7(%arg0: i32, %arg1: i32) -> (i32, i32) {
    %c0_i32 = arith.constant 0 : i32
    %c0_i32_0 = arith.constant 0 : i32
    %c0_i32_1 = arith.constant 0 : i32
    return %c0_i32, %c0_i32_0 : i32, i32
  }
  func.func @transform_8(%arg0: i32, %arg1: i32) -> (i32, i32) {
    %c0_i32 = arith.constant 0 : i32
    %c0_i32_0 = arith.constant 0 : i32
    %c0_i32_1 = arith.constant 0 : i32
    return %c0_i32, %c0_i32_0 : i32, i32
  }
  func.func @transform_9(%arg0: i32, %arg1: i32) -> (i32, i32) {
    %c0_i32 = arith.constant 0 : i32
    %c0_i32_0 = arith.constant 0 : i32
    %c0_i32_1 = arith.constant 0 : i32
    return %c0_i32, %c0_i32_0 : i32, i32
  }
  func.func @transform_10(%arg0: i32, %arg1: i32) -> (i32, i32) {
    %c0_i32 = arith.constant 0 : i32
    %c0_i32_0 = arith.constant 0 : i32
    %c0_i32_1 = arith.constant 0 : i32
    return %c0_i32, %c0_i32_0 : i32, i32
  }
  func.func @transform_11(%arg0: i32, %arg1: i32) -> (i32, i32, i32) {
    %c0_i32 = arith.constant 0 : i32
    %c0_i32_0 = arith.constant 0 : i32
    %c0_i32_1 = arith.constant 0 : i32
    return %arg0, %c0_i32, %c0_i32_0 : i32, i32, i32
  }
}

</mosaic_0001>

<llo_original>
// kernel: tpu_custom_call.1
$region0: #{tpu_custom_call.1}
  #allocation0 [shape = 'u32[]', space=smem, size = 0x4, offset = 0x4, fixed_abs, tag = 'smem constant byte address 0x4 - core index']
  #allocation1 [shape = 'u32[72,128]{1,0:T(1,128)}', space=vmem, size = 0x9000, scoped, tag = 'internal scratch']
  #allocation2 [shape = 'f32[2,32,16]{2,1,0:T(8,128)}', space=vmem, size = 0x8000, scoped, tag = 'scratch operand']
  #allocation3 [shape = 'f32[1,1]{1,0:T(1,128)S(1)}', space=vmem, size = 0x200, scoped, tag = 'scoped memory for tpu_custom_call.1']
  %s0 = inlined_call_operand.vmem [shape: f32[2,32,16], index: 0, kind: input, shape index: {}]
  %s1 = inlined_call_operand.vmem [shape: f32[16,16], index: 1, kind: input, shape index: {}]
  %s2 = inlined_call_operand.vmem [shape: f32[16,16], index: 2, kind: input, shape index: {}]
  %s3 = inlined_call_operand.hbm [shape: f32[3,8,32,32], index: 3, kind: input, shape index: {}]
  %s4 = inlined_call_operand.hbm [shape: f32[3,8,32,32], index: 4, kind: input, shape index: {}]
  %s5 = inlined_call_operand.vmem [shape: f32[3,32,32], index: 5, kind: input, shape index: {}]
  %s6 = inlined_call_operand.vmem [shape: f32[3,32,1], index: 6, kind: input, shape index: {}]
  %s7 = inlined_call_operand.vmem [shape: f32[32,32], index: 7, kind: input, shape index: {}]
  %s8 = inlined_call_operand.vmem [shape: f32[32,1], index: 8, kind: input, shape index: {}]
  %s9 = inlined_call_operand.vmem [shape: f32[32,1], index: 9, kind: input, shape index: {}]
  %s10 = inlined_call_operand.<no memory space> [shape: f32[1,1], index: 10, kind: input, shape index: {}]
  %s11 = inlined_call_operand.hbm [shape: f32[2,1,16], index: 11, kind: output, shape index: {}]
  %s12 = sld [smem:[#allocation0]]
  $region93: #{tpu_custom_call.1} parent=0
    _
  %s14 = ssub.s32 1, %s12
  %s15 = scalar_select 0, %s14, %s12
  %v16 = vstv %s10
  %17 = vst [vmem:[#allocation3] sm:$0x1] %v16
  $region1: #{tpu_custom_call.1} parent=0
    #allocation4 [shape = 'u8[262144]{0}', space=vmem, size = 0x40000, scoped, tag = 'input window, operand 3']
    #allocation5 [shape = 's32[2]{0}', space=sflag, size = 0x8, scoped, tag = 'scoped memory for tpu_custom_call.1']
    #allocation6 [shape = 's32[2]{0}', space=sflag, size = 0x8, scoped, tag = 'scoped memory for tpu_custom_call.1']
    #allocation7 [shape = 'u8[262144]{0}', space=vmem, size = 0x40000, scoped, tag = 'input window, operand 4']
    #allocation8 [shape = 's32[2]{0}', space=sflag, size = 0x8, scoped, tag = 'scoped memory for tpu_custom_call.1']
    #allocation9 [shape = 'u8[1024]{0}', space=vmem, size = 0x400, scoped, tag = 'output window, operand 0, single buffered']
    %18 = vsyncpa [#allocation5], 0
    %s19 = scalar_lea.sflag [#allocation5], 1
    %20 = vsyncpa %s19, 0
    %21 = vsyncpa [#allocation8], 0
    %s22 = scalar_lea.sflag [#allocation8], 1
    %23 = vsyncpa %s22, 0
    %24 = vsyncpa [#allocation6], 0
    loop: start=0, step=1, limit=5
    $region2: #{tpu_custom_call.1} parent=1 // loop_pre_header
      _
    $region3: #{tpu_custom_call.1} parent=1 // loop_header
      %s26 = sphi 0, %s30
      %p27 = scmp.ge.s32.totalorder %s26, 5
      %s33 = sphi 0, %s45
      %s34 = sphi 0, %s41
      %s35 = sphi 0, %s33
      %s36 = sphi 0, %s34
      %s37 = sphi 0, %s35
      %s38 = sphi 0, %s36
      %s48 = sphi 0, %s50
      %s51 = sphi 0, %s48
      %s52 = sphi 0, %s51
      %s68 = sphi 0, %s52
      %s72 = sphi 0, %s72
      %s74 = sphi 0, %s72
      %s75 = sphi 0, %s74
      %s89 = sphi 0, %s75
      %s93 = sphi 0, %s93
      %s95 = sphi 0, %s93
      %s96 = sphi 0, %s95
      %s110 = sphi 0, %s96
      %s116 = sphi 0, %s118
      %s119 = sphi 0, %s116
      %s120 = sphi 0, %s119
      %s136 = sphi 0, %s120
      %s142 = sphi 0, %s144
      %s145 = sphi 0, %s142
      %s146 = sphi 0, %s145
      %s162 = sphi 0, %s146
      %s168 = sphi 0, %s170
      %s171 = sphi 0, %s168
      %s172 = sphi 0, %s171
      %s188 = sphi 0, %s172
      %s194 = sphi 0, %s196
      %s197 = sphi 0, %s194
      %s198 = sphi 0, %s197
      %s214 = sphi 0, %s198
      %s218 = sphi 0, %s218
      %s220 = sphi 0, %s218
      %s221 = sphi 0, %s220
      %s235 = sphi 0, %s221
      %s239 = sphi 0, %s239
      %s241 = sphi 0, %s239
      %s242 = sphi 0, %s241
      %s256 = sphi 0, %s242
      %s260 = sphi 0, %s260
      %s262 = sphi 0, %s260
      %s263 = sphi 0, %s262
      %s277 = sphi 0, %s263
      %s281 = sphi 0, %s281
      %s283 = sphi 0, %s281
      %s284 = sphi 0, %s283
      %s298 = sphi 0, %s284
      %s304 = sphi 0, %s306
      %s307 = sphi 0, %s304
      %s308 = sphi 0, %s307
      %s324 = sphi 0, %s308
    $region4: #{tpu_custom_call.1} parent=1 // loop_header_branch
      %29 = sbr.rel (%p27) target = $region8
    $region5: #{tpu_custom_call.1} parent=1 // loop_body
      %s31 = ssub.s32 %s26, 1
      %s32 = ssub.s32 %s26, 2
      %s39 = sadd.s32 1, %s34
      %p40 = scmp.ge.s32.totalorder %s39, 3
      %s41 = scalar_select %p40, 0, %s39
      %s42 = sadd.s32 1, %s33
      %s43 = scalar_select %p40, %s42, %s33
      %p44 = scmp.ge.s32.totalorder %s43, 1
      %s45 = scalar_select %p44, 0, %s43
      %s46 = ssub.s32 %s33, %s45
      %p47 = scmp.eq.s32.totalorder %s46, 0
      %s49 = sadd.s32 %s48, 1
      %s50 = scalar_select %p47, %s48, %s49
      %p53 = pneg %p47
      %p54 = scmp.eq.s32.totalorder %s26, 2
      %p55 = por %p53, %p54
      %p56 = scmp.ne.s32.totalorder %s48, %s51
      %p57 = scmp.eq.s32.totalorder %s26, 0
      %p58 = por %p56, %p57
      %p59 = scmp.ne.s32.totalorder %s48, %s51
      %p60 = scmp.eq.s32.totalorder %s31, 2
      %p61 = por %p59, %p60
      %p62 = scmp.ne.s32.totalorder %s51, %s52
      %p63 = scmp.eq.s32.totalorder %s31, 0
      %p64 = por %p62, %p63
      %p65 = scmp.ne.s32.totalorder %s51, %s52
      %p66 = scmp.eq.s32.totalorder %s32, 2
      %p67 = por %p65, %p66
      %p69 = scmp.ne.s32.totalorder %s52, %s68
      %p70 = scmp.eq.s32.totalorder %s32, 0
      %p71 = por %p69, %p70
      %s73 = sadd.s32 %s72, 1
      %p76 = scmp.eq.s32.totalorder %s26, 2
      %p77 = scmp.ne.s32.totalorder %s72, %s74
      %p78 = scmp.eq.s32.totalorder %s26, 0
      %p79 = por %p77, %p78
      %p80 = scmp.ne.s32.totalorder %s72, %s74
      %p81 = scmp.eq.s32.totalorder %s31, 2
      %p82 = por %p80, %p81
      %p83 = scmp.ne.s32.totalorder %s74, %s75
      %p84 = scmp.eq.s32.totalorder %s31, 0
      %p85 = por %p83, %p84
      %p86 = scmp.ne.s32.totalorder %s74, %s75
      %p87 = scmp.eq.s32.totalorder %s32, 2
      %p88 = por %p86, %p87
      %p90 = scmp.ne.s32.totalorder %s75, %s89
      %p91 = scmp.eq.s32.totalorder %s32, 0
      %p92 = por %p90, %p91
      %s94 = sadd.s32 %s93, 1
      %p97 = scmp.eq.s32.totalorder %s26, 2
      %p98 = scmp.ne.s32.totalorder %s93, %s95
      %p99 = scmp.eq.s32.totalorder %s26, 0
      %p100 = por %p98, %p99
      %p101 = scmp.ne.s32.totalorder %s93, %s95
      %p102 = scmp.eq.s32.totalorder %s31, 2
      %p103 = por %p101, %p102
      %p104 = scmp.ne.s32.totalorder %s95, %s96
      %p105 = scmp.eq.s32.totalorder %s31, 0
      %p106 = por %p104, %p105
      %p107 = scmp.ne.s32.totalorder %s95, %s96
      %p108 = scmp.eq.s32.totalorder %s32, 2
      %p109 = por %p107, %p108
      %p111 = scmp.ne.s32.totalorder %s96, %s110
      %p112 = scmp.eq.s32.totalorder %s32, 0
      %p113 = por %p111, %p112
      %s114 = ssub.s32 %s34, %s41
      %p115 = scmp.eq.s32.totalorder %s114, 0
      %s117 = sadd.s32 %s116, 1
      %s118 = scalar_select %p115, %s116, %s117
      %p121 = pneg %p115
      %p122 = scmp.eq.s32.totalorder %s26, 2
      %p123 = por %p121, %p122
      %p124 = scmp.ne.s32.totalorder %s116, %s119
      %p125 = scmp.eq.s32.totalorder %s26, 0
      %p126 = por %p124, %p125
      %p127 = scmp.ne.s32.totalorder %s116, %s119
      %p128 = scmp.eq.s32.totalorder %s31, 2
      %p129 = por %p127, %p128
      %p130 = scmp.ne.s32.totalorder %s119, %s120
      %p131 = scmp.eq.s32.totalorder %s31, 0
      %p132 = por %p130, %p131
      %p133 = scmp.ne.s32.totalorder %s119, %s120
      %p134 = scmp.eq.s32.totalorder %s32, 2
      %p135 = por %p133, %p134
      %p137 = scmp.ne.s32.totalorder %s120, %s136
      %p138 = scmp.eq.s32.totalorder %s32, 0
      %p139 = por %p137, %p138
      %s140 = ssub.s32 %s34, %s41
      %p141 = scmp.eq.s32.totalorder %s140, 0
      %s143 = sadd.s32 %s142, 1
      %s144 = scalar_select %p141, %s142, %s143
      %p147 = pneg %p141
      %p148 = scmp.eq.s32.totalorder %s26, 2
      %p149 = por %p147, %p148
      %p150 = scmp.ne.s32.totalorder %s142, %s145
      %p151 = scmp.eq.s32.totalorder %s26, 0
      %p152 = por %p150, %p151
      %p153 = scmp.ne.s32.totalorder %s142, %s145
      %p154 = scmp.eq.s32.totalorder %s31, 2
      %p155 = por %p153, %p154
      %p156 = scmp.ne.s32.totalorder %s145, %s146
      %p157 = scmp.eq.s32.totalorder %s31, 0
      %p158 = por %p156, %p157
      %p159 = scmp.ne.s32.totalorder %s145, %s146
      %p160 = scmp.eq.s32.totalorder %s32, 2
      %p161 = por %p159, %p160
      %p163 = scmp.ne.s32.totalorder %s146, %s162
      %p164 = scmp.eq.s32.totalorder %s32, 0
      %p165 = por %p163, %p164
      %s166 = ssub.s32 %s34, %s41
      %p167 = scmp.eq.s32.totalorder %s166, 0
      %s169 = sadd.s32 %s168, 1
      %s170 = scalar_select %p167, %s168, %s169
      %p173 = pneg %p167
      %p174 = scmp.eq.s32.totalorder %s26, 2
      %p175 = por %p173, %p174
      %p176 = scmp.ne.s32.totalorder %s168, %s171
      %p177 = scmp.eq.s32.totalorder %s26, 0
      %p178 = por %p176, %p177
      %p179 = scmp.ne.s32.totalorder %s168, %s171
      %p180 = scmp.eq.s32.totalorder %s31, 2
      %p181 = por %p179, %p180
      %p182 = scmp.ne.s32.totalorder %s171, %s172
      %p183 = scmp.eq.s32.totalorder %s31, 0
      %p184 = por %p182, %p183
      %p185 = scmp.ne.s32.totalorder %s171, %s172
      %p186 = scmp.eq.s32.totalorder %s32, 2
      %p187 = por %p185, %p186
      %p189 = scmp.ne.s32.totalorder %s172, %s188
      %p190 = scmp.eq.s32.totalorder %s32, 0
      %p191 = por %p189, %p190
      %s192 = ssub.s32 %s34, %s41
      %p193 = scmp.eq.s32.totalorder %s192, 0
      %s195 = sadd.s32 %s194, 1
      %s196 = scalar_select %p193, %s194, %s195
      %p199 = pneg %p193
      %p200 = scmp.eq.s32.totalorder %s26, 2
      %p201 = por %p199, %p200
      %p202 = scmp.ne.s32.totalorder %s194, %s197
      %p203 = scmp.eq.s32.totalorder %s26, 0
      %p204 = por %p202, %p203
      %p205 = scmp.ne.s32.totalorder %s194, %s197
      %p206 = scmp.eq.s32.totalorder %s31, 2
      %p207 = por %p205, %p206
      %p208 = scmp.ne.s32.totalorder %s197, %s198
      %p209 = scmp.eq.s32.totalorder %s31, 0
      %p210 = por %p208, %p209
      %p211 = scmp.ne.s32.totalorder %s197, %s198
      %p212 = scmp.eq.s32.totalorder %s32, 2
      %p213 = por %p211, %p212
      %p215 = scmp.ne.s32.totalorder %s198, %s214
      %p216 = scmp.eq.s32.totalorder %s32, 0
      %p217 = por %p215, %p216
      %s219 = sadd.s32 %s218, 1
      %p222 = scmp.eq.s32.totalorder %s26, 2
      %p223 = scmp.ne.s32.totalorder %s218, %s220
      %p224 = scmp.eq.s32.totalorder %s26, 0
      %p225 = por %p223, %p224
      %p226 = scmp.ne.s32.totalorder %s218, %s220
      %p227 = scmp.eq.s32.totalorder %s31, 2
      %p228 = por %p226, %p227
      %p229 = scmp.ne.s32.totalorder %s220, %s221
      %p230 = scmp.eq.s32.totalorder %s31, 0
      %p231 = por %p229, %p230
      %p232 = scmp.ne.s32.totalorder %s220, %s221
      %p233 = scmp.eq.s32.totalorder %s32, 2
      %p234 = por %p232, %p233
      %p236 = scmp.ne.s32.totalorder %s221, %s235
      %p237 = scmp.eq.s32.totalorder %s32, 0
      %p238 = por %p236, %p237
      %s240 = sadd.s32 %s239, 1
      %p243 = scmp.eq.s32.totalorder %s26, 2
      %p244 = scmp.ne.s32.totalorder %s239, %s241
      %p245 = scmp.eq.s32.totalorder %s26, 0
      %p246 = por %p244, %p245
      %p247 = scmp.ne.s32.totalorder %s239, %s241
      %p248 = scmp.eq.s32.totalorder %s31, 2
      %p249 = por %p247, %p248
      %p250 = scmp.ne.s32.totalorder %s241, %s242
      %p251 = scmp.eq.s32.totalorder %s31, 0
      %p252 = por %p250, %p251
      %p253 = scmp.ne.s32.totalorder %s241, %s242
      %p254 = scmp.eq.s32.totalorder %s32, 2
      %p255 = por %p253, %p254
      %p257 = scmp.ne.s32.totalorder %s242, %s256
      %p258 = scmp.eq.s32.totalorder %s32, 0
      %p259 = por %p257, %p258
      %s261 = sadd.s32 %s260, 1
      %p264 = scmp.eq.s32.totalorder %s26, 2
      %p265 = scmp.ne.s32.totalorder %s260, %s262
      %p266 = scmp.eq.s32.totalorder %s26, 0
      %p267 = por %p265, %p266
      %p268 = scmp.ne.s32.totalorder %s260, %s262
      %p269 = scmp.eq.s32.totalorder %s31, 2
      %p270 = por %p268, %p269
      %p271 = scmp.ne.s32.totalorder %s262, %s263
      %p272 = scmp.eq.s32.totalorder %s31, 0
      %p273 = por %p271, %p272
      %p274 = scmp.ne.s32.totalorder %s262, %s263
      %p275 = scmp.eq.s32.totalorder %s32, 2
      %p276 = por %p274, %p275
      %p278 = scmp.ne.s32.totalorder %s263, %s277
      %p279 = scmp.eq.s32.totalorder %s32, 0
      %p280 = por %p278, %p279
      %s282 = sadd.s32 %s281, 1
      %p285 = scmp.eq.s32.totalorder %s26, 2
      %p286 = scmp.ne.s32.totalorder %s281, %s283
      %p287 = scmp.eq.s32.totalorder %s26, 0
      %p288 = por %p286, %p287
      %p289 = scmp.ne.s32.totalorder %s281, %s283
      %p290 = scmp.eq.s32.totalorder %s31, 2
      %p291 = por %p289, %p290
      %p292 = scmp.ne.s32.totalorder %s283, %s284
      %p293 = scmp.eq.s32.totalorder %s31, 0
      %p294 = por %p292, %p293
      %p295 = scmp.ne.s32.totalorder %s283, %s284
      %p296 = scmp.eq.s32.totalorder %s32, 2
      %p297 = por %p295, %p296
      %p299 = scmp.ne.s32.totalorder %s284, %s298
      %p300 = scmp.eq.s32.totalorder %s32, 0
      %p301 = por %p299, %p300
      %s302 = ssub.s32 %s33, %s45
      %p303 = scmp.eq.s32.totalorder %s302, 0
      %s305 = sadd.s32 %s304, 1
      %s306 = scalar_select %p303, %s304, %s305
      %p309 = pneg %p303
      %p310 = scmp.eq.s32.totalorder %s26, 2
      %p311 = por %p309, %p310
      %p312 = scmp.ne.s32.totalorder %s304, %s307
      %p313 = scmp.eq.s32.totalorder %s26, 0
      %p314 = por %p312, %p313
      %p315 = scmp.ne.s32.totalorder %s304, %s307
      %p316 = scmp.eq.s32.totalorder %s31, 2
      %p317 = por %p315, %p316
      %p318 = scmp.ne.s32.totalorder %s307, %s308
      %p319 = scmp.eq.s32.totalorder %s31, 0
      %p320 = por %p318, %p319
      %p321 = scmp.ne.s32.totalorder %s307, %s308
      %p322 = scmp.eq.s32.totalorder %s32, 2
      %p323 = por %p321, %p322
      %p325 = scmp.ne.s32.totalorder %s308, %s324
      %p326 = scmp.eq.s32.totalorder %s32, 0
      %p327 = por %p325, %p326
      %p328 = scmp.le.s32.totalorder 1, %s26
      %p329 = scmp.lt.s32.totalorder %s26, 4
      %p330 = pnand %p328, %p329
      %p331 = pneg %p330
      // Predicated region
      $region9: #{tpu_custom_call.1} parent=5 // pred_check
        _
      $region10: #{tpu_custom_call.1} parent=5 // pred_check_branch
        %333 = sbr.rel (%p330) target = $region12
      $region11: #{tpu_custom_call.1} parent=5 // pred_region
        %s334 = ssub.s32 %s26, 1
        // Predicated region
        $region13: #{tpu_custom_call.1} parent=11 // pred_check
          %p335 = pneg %p64
        $region14: #{tpu_custom_call.1} parent=11 // pred_check_branch
          %337 = sbr.rel (%p335) target = $region16
        $region15: #{tpu_custom_call.1} parent=11 // pred_region
          %s338 = smul.u32 2, %s35
          %p339 = scmp.lt.s32.totalorder %s338, 1
          %s340 = scalar_select %p339, %s338, 1
          %s341 = smul.addr %s340, 4
          %s342 = smul.addr %s341, 8
          %s343 = scalar_lea.vmem %s0, %s342
          %s344 = smul.u32 2, %s35
        $region16: #{tpu_custom_call.1} parent=11 // pred_fallthru
          _
        // Predicated region
        $region17: #{tpu_custom_call.1} parent=11 // pred_check
          %p345 = pneg %p85
        $region18: #{tpu_custom_call.1} parent=11 // pred_check_branch
          %347 = sbr.rel (%p345) target = $region20
        $region19: #{tpu_custom_call.1} parent=11 // pred_region
          _
        $region20: #{tpu_custom_call.1} parent=11 // pred_fallthru
          _
        // Predicated region
        $region21: #{tpu_custom_call.1} parent=11 // pred_check
          %p348 = pneg %p106
        $region22: #{tpu_custom_call.1} parent=11 // pred_check_branch
          %350 = sbr.rel (%p348) target = $region24
        $region23: #{tpu_custom_call.1} parent=11 // pred_region
          _
        $region24: #{tpu_custom_call.1} parent=11 // pred_fallthru
          _
        // Predicated region
        $region25: #{tpu_custom_call.1} parent=11 // pred_check
          %p351 = pneg %p231
        $region26: #{tpu_custom_call.1} parent=11 // pred_check_branch
          %353 = sbr.rel (%p351) target = $region28
        $region27: #{tpu_custom_call.1} parent=11 // pred_region
          _
        $region28: #{tpu_custom_call.1} parent=11 // pred_fallthru
          _
        // Predicated region
        $region29: #{tpu_custom_call.1} parent=11 // pred_check
          %p354 = pneg %p252
        $region30: #{tpu_custom_call.1} parent=11 // pred_check_branch
          %356 = sbr.rel (%p354) target = $region32
        $region31: #{tpu_custom_call.1} parent=11 // pred_region
          _
        $region32: #{tpu_custom_call.1} parent=11 // pred_fallthru
          _
        // Predicated region
        $region33: #{tpu_custom_call.1} parent=11 // pred_check
          %p357 = pneg %p273
        $region34: #{tpu_custom_call.1} parent=11 // pred_check_branch
          %359 = sbr.rel (%p357) target = $region36
        $region35: #{tpu_custom_call.1} parent=11 // pred_region
          _
        $region36: #{tpu_custom_call.1} parent=11 // pred_fallthru
          _
        // Predicated region
        $region37: #{tpu_custom_call.1} parent=11 // pred_check
          %p360 = pneg %p294
        $region38: #{tpu_custom_call.1} parent=11 // pred_check_branch
          %362 = sbr.rel (%p360) target = $region40
        $region39: #{tpu_custom_call.1} parent=11 // pred_region
          _
        $region40: #{tpu_custom_call.1} parent=11 // pred_fallthru
          _
      $region12: #{tpu_custom_call.1} parent=5 // pred_fallthru
        _
      %p363 = scmp.lt.s32.totalorder %s26, 3
      // Predicated region
      $region41: #{tpu_custom_call.1} parent=5 // pred_check
        %p364 = pneg %p363
      $region42: #{tpu_custom_call.1} parent=5 // pred_check_branch
        %366 = sbr.rel (%p364) target = $region44
      $region43: #{tpu_custom_call.1} parent=5 // pred_region
        // Predicated region
        $region45: #{tpu_custom_call.1} parent=43 // pred_check
          %p367 = pneg %p126
        $region46: #{tpu_custom_call.1} parent=43 // pred_check_branch
          %369 = sbr.rel (%p367) target = $region48
        $region47: #{tpu_custom_call.1} parent=43 // pred_region
          %s370 = sand.u32 %s116, 1
          %s371 = scalar_lea.sflag [#allocation5], %s370
          %s372 = sand.u32 %s116, 1
          %s373 = smul.addr %s372, 256
          %s374 = scalar_lea.vmem [#allocation4], %s373
          %376 = vsyncadd %s371, 0
          %s377 = smul.addr %s34, 32
          %s378 = smul.addr %s377, 8
          %s379 = scalar_lea.hbm %s3, %s378
          %s380 = sshll.u32 %s379, 4
          %s381 = int_to_ptr.hbm [resolvable:$true] %s380
          %s382 = sshll.u32 %s374, 4
          %s383 = int_to_ptr.vmem [resolvable:$true] %s382
          %388 = dma.hbm_to_vmem [thread:$0]  %s381, 4096, %s383, %s371, 128, 128, 8
        $region48: #{tpu_custom_call.1} parent=43 // pred_fallthru
          _
        // Predicated region
        $region49: #{tpu_custom_call.1} parent=43 // pred_check
          %p389 = pneg %p152
        $region50: #{tpu_custom_call.1} parent=43 // pred_check_branch
          %391 = sbr.rel (%p389) target = $region52
        $region51: #{tpu_custom_call.1} parent=43 // pred_region
          %s392 = sand.u32 %s142, 1
          %s393 = scalar_lea.sflag [#allocation8], %s392
          %s394 = sand.u32 %s142, 1
          %s395 = smul.addr %s394, 256
          %s396 = scalar_lea.vmem [#allocation7], %s395
          %398 = vsyncadd %s393, 0
          %s399 = smul.addr %s34, 32
          %s400 = smul.addr %s399, 8
          %s401 = scalar_lea.hbm %s4, %s400
          %s402 = sshll.u32 %s401, 4
          %s403 = int_to_ptr.hbm [resolvable:$true] %s402
          %s404 = sshll.u32 %s396, 4
          %s405 = int_to_ptr.vmem [resolvable:$true] %s404
          %410 = dma.hbm_to_vmem [thread:$0]  %s403, 4096, %s405, %s393, 128, 128, 8
        $region52: #{tpu_custom_call.1} parent=43 // pred_fallthru
          _
        // Predicated region
        $region53: #{tpu_custom_call.1} parent=43 // pred_check
          %p411 = pneg %p178
        $region54: #{tpu_custom_call.1} parent=43 // pred_check_branch
          %413 = sbr.rel (%p411) target = $region56
        $region55: #{tpu_custom_call.1} parent=43 // pred_region
          %p414 = scmp.lt.s32.totalorder %s34, 2
          %s415 = scalar_select %p414, %s34, 2
          %s416 = smul.addr %s415, 4
          %s417 = smul.addr %s416, 8
          %s418 = scalar_lea.vmem %s5, %s417
        $region56: #{tpu_custom_call.1} parent=43 // pred_fallthru
          _
        // Predicated region
        $region57: #{tpu_custom_call.1} parent=43 // pred_check
          %p419 = pneg %p204
        $region58: #{tpu_custom_call.1} parent=43 // pred_check_branch
          %421 = sbr.rel (%p419) target = $region60
        $region59: #{tpu_custom_call.1} parent=43 // pred_region
          %p422 = scmp.lt.s32.totalorder %s34, 2
          %s423 = scalar_select %p422, %s34, 2
          %s424 = smul.addr %s423, 4
          %s425 = smul.addr %s424, 8
          %s426 = scalar_lea.vmem %s6, %s425
        $region60: #{tpu_custom_call.1} parent=43 // pred_fallthru
          _
      $region44: #{tpu_custom_call.1} parent=5 // pred_fallthru
        _
      %p427 = scmp.le.s32.totalorder 1, %s26
      %p428 = scmp.lt.s32.totalorder %s26, 4
      %p429 = pnand %p427, %p428
      %p430 = pneg %p429
      // Predicated region
      $region61: #{tpu_custom_call.1} parent=5 // pred_check
        _
      $region62: #{tpu_custom_call.1} parent=5 // pred_check_branch
        %432 = sbr.rel (%p429) target = $region64
      $region63: #{tpu_custom_call.1} parent=5 // pred_region
        %s433 = ssub.s32 %s26, 1
        %s434 = sand.u32 %s119, 1
        %s435 = scalar_lea.sflag [#allocation5], %s434
        %s436 = sand.u32 %s119, 1
        %s437 = smul.addr %s436, 256
        %s438 = scalar_lea.vmem [#allocation4], %s437
        // Predicated region
        $region65: #{tpu_custom_call.1} parent=63 // pred_check
          %p439 = pneg %p132
        $region66: #{tpu_custom_call.1} parent=63 // pred_check_branch
          %441 = sbr.rel (%p439) target = $region68
        $region67: #{tpu_custom_call.1} parent=63 // pred_region
          %443 = dma.done %s435, 4096
        $region68: #{tpu_custom_call.1} parent=63 // pred_fallthru
          _
        %s444 = sand.u32 %s145, 1
        %s445 = scalar_lea.sflag [#allocation8], %s444
        %s446 = sand.u32 %s145, 1
        %s447 = smul.addr %s446, 256
        %s448 = scalar_lea.vmem [#allocation7], %s447
        // Predicated region
        $region69: #{tpu_custom_call.1} parent=63 // pred_check
          %p449 = pneg %p158
        $region70: #{tpu_custom_call.1} parent=63 // pred_check_branch
          %451 = sbr.rel (%p449) target = $region72
        $region71: #{tpu_custom_call.1} parent=63 // pred_region
          %453 = dma.done %s445, 4096
        $region72: #{tpu_custom_call.1} parent=63 // pred_fallthru
          _
        %s454 = smul.u32 2, %s35
        %p455 = scmp.lt.s32.totalorder %s454, 1
        %s456 = scalar_select %p455, %s454, 1
        %s457 = smul.addr %s456, 4
        %s458 = smul.addr %s457, 8
        %s459 = scalar_lea.vmem %s0, %s458
        %p460 = pneg %p64
        %p461 = pneg %p61
        %p462 = pneg %p85
        %p463 = pneg %p82
        %p464 = pneg %p106
        %p465 = pneg %p103
        %s466 = sand.u32 %s119, 1
        %s467 = scalar_lea.sflag [#allocation5], %s466
        %s468 = sand.u32 %s119, 1
        %s469 = smul.addr %s468, 256
        %s470 = scalar_lea.vmem [#allocation4], %s469
        %p471 = pneg %p132
        %p472 = pneg %p129
        %s473 = sand.u32 %s145, 1
        %s474 = scalar_lea.sflag [#allocation8], %s473
        %s475 = sand.u32 %s145, 1
        %s476 = smul.addr %s475, 256
        %s477 = scalar_lea.vmem [#allocation7], %s476
        %p478 = pneg %p158
        %p479 = pneg %p155
        %p480 = scmp.lt.s32.totalorder %s36, 2
        %s481 = scalar_select %p480, %s36, 2
        %s482 = smul.addr %s481, 4
        %s483 = smul.addr %s482, 8
        %s484 = scalar_lea.vmem %s5, %s483
        %p485 = pneg %p184
        %p486 = pneg %p181
        %p487 = scmp.lt.s32.totalorder %s36, 2
        %s488 = scalar_select %p487, %s36, 2
        %s489 = smul.addr %s488, 4
        %s490 = smul.addr %s489, 8
        %s491 = scalar_lea.vmem %s6, %s490
        %p492 = pneg %p210
        %p493 = pneg %p207
        %p494 = pneg %p231
        %p495 = pneg %p228
        %p496 = pneg %p252
        %p497 = pneg %p249
        %p498 = pneg %p273
        %p499 = pneg %p270
        %p500 = pneg %p294
        %p501 = pneg %p291
        %p502 = pneg %p320
        %p503 = pneg %p317
        %s504 = smul.u32 2, %s35
        %p505 = scmp.lt.s32.totalorder %s504, 1
        %s506 = scalar_select %p505, %s504, 1
        %s507 = smul.addr %s506, 4
        %s508 = smul.addr %s507, 8
        %s509 = scalar_lea.vmem %s0, %s508
        %s510 = smul.u32 2, %s35
        %p511 = scmp.lt.s32.totalorder %s36, 2
        %s512 = scalar_select %p511, %s36, 2
        %s513 = smul.addr %s512, 4
        %s514 = smul.addr %s513, 8
        %s515 = scalar_lea.vmem %s5, %s514
        %p516 = scmp.lt.s32.totalorder %s36, 2
        %s517 = scalar_select %p516, %s36, 2
        %s518 = smul.addr %s517, 4
        %s519 = smul.addr %s518, 8
        %s520 = scalar_lea.vmem %s6, %s519
        %s521 = smul.u32 2, %s35
        %p522 = scmp.eq.s32.totalorder %s36, 0
        // Predicated region
        $region73: #{tpu_custom_call.1} parent=63 // pred_check
          %p523 = pneg %p522
        $region74: #{tpu_custom_call.1} parent=63 // pred_check_branch
          %525 = sbr.rel (%p523) target = $region76
        $region75: #{tpu_custom_call.1} parent=63 // pred_region
          %v526 = vld [vmem:[%s509] sm:$0xff]
          %v527 = vld [vmem:[%s509 + $0x8] sm:$0xff]
          %v528 = vld [vmem:[%s509 + $0x10] sm:$0xff]
          %v529 = vld [vmem:[%s509 + $0x18] sm:$0xff]
          %v530 = vld [vmem:[%s509 + $0x20] sm:$0xff]
          %v531 = vld [vmem:[%s509 + $0x28] sm:$0xff]
          %v532 = vld [vmem:[%s509 + $0x30] sm:$0xff]
          %v533 = vld [vmem:[%s509 + $0x38] sm:$0xff]
          %vm534 = vcmask 130048
          %535 = vst.msk [vmem:[#allocation2] sm:$0xff] %vm534, %v526
          %536 = vst.msk [vmem:[#allocation2 + $0x8] sm:$0xff] %vm534, %v527
          %537 = vst.msk [vmem:[#allocation2 + $0x10] sm:$0xff] %vm534, %v528
          %538 = vst.msk [vmem:[#allocation2 + $0x18] sm:$0xff] %vm534, %v529
          %539 = vst.msk [vmem:[#allocation2 + $0x20] sm:$0xff] %vm534, %v530
          %540 = vst.msk [vmem:[#allocation2 + $0x28] sm:$0xff] %vm534, %v531
          %541 = vst.msk [vmem:[#allocation2 + $0x30] sm:$0xff] %vm534, %v532
          %542 = vst.msk [vmem:[#allocation2 + $0x38] sm:$0xff] %vm534, %v533
        $region76: #{tpu_custom_call.1} parent=63 // pred_fallthru
          _
        %v543 = vld [vmem:[#allocation2] sm:$0xff]
        %v544 = vld [vmem:[#allocation2 + $0x8] sm:$0xff]
        %v545 = vld [vmem:[#allocation2 + $0x10] sm:$0xff]
        %v546 = vld [vmem:[#allocation2 + $0x18] sm:$0xff]
        %v547 = vld [vmem:[#allocation2 + $0x20] sm:$0xff]
        %v548 = vld [vmem:[#allocation2 + $0x28] sm:$0xff]
        %v549 = vld [vmem:[#allocation2 + $0x30] sm:$0xff]
        %v550 = vld [vmem:[#allocation2 + $0x38] sm:$0xff]
        %v551 = vld [vmem:[%s1] sm:$0xff]
        %v552 = vld [vmem:[%s1 + $0x8] sm:$0xff]
        %vm553 = vcmask 130048
        %v555 = vsel %vm553, %v543, 0
        %v558 = vsel %vm553, %v544, 0
        %v561 = vsel %vm553, %v545, 0
        %v564 = vsel %vm553, %v546, 0
        %v567 = vsel %vm553, %v547, 0
        %v570 = vsel %vm553, %v548, 0
        %v573 = vsel %vm553, %v549, 0
        %v576 = vsel %vm553, %v550, 0
        %578 = vmatpush.msra.mxu0 0.0
        %579 = vmatpush.msra.mxu0 0.0
        %580 = vmatpush.msra.mxu0 0.0
        %581 = vmatpush.msra.mxu0 0.0
        %582 = vmatpush.msra.mxu0 0.0
        %583 = vmatpush.msra.mxu0 0.0
        %584 = vmatpush.msra.mxu0 0.0
        %585 = vmatpush.msra.mxu0 0.0
        %586 = vmatpush.msra.mxu0 0.0
        %587 = vmatpush.msra.mxu0 0.0
        %588 = vmatpush.msra.mxu0 0.0
        %589 = vmatpush.msra.mxu0 0.0
        %590 = vmatpush.msra.mxu0 0.0
        %591 = vmatpush.msra.mxu0 0.0
        %v592 = vand.u32 %v552, 4294901760
        %593 = vmatpush.msra.mxu0 %v592
        %v594 = vand.u32 %v551, 4294901760
        %595 = vmatpush.msra.mxu0 %v594
        %v596 = vand.u32 %v555, 4294901760
        %v597 = vsub.f32 %v555, %v596
        %v598 = vand.u32 %v597, 4294901760
        %v599 = vsub.f32 %v597, %v598
        %v600 = vand.u32 %v599, 4294901760
        %601 = vmatmul.f32.gmra.mxu0 %v600
        %v602 = vpop.f32.mrf.mxu0
        %v603 = vadd.f32 0.0, %v602
        %v604 = vand.u32 %v558, 4294901760
        %v605 = vsub.f32 %v558, %v604
        %v606 = vand.u32 %v605, 4294901760
        %v607 = vsub.f32 %v605, %v606
        %v608 = vand.u32 %v607, 4294901760
        %609 = vmatmul.f32.gmra.mxu0 %v608
        %v610 = vpop.f32.mrf.mxu0
        %v611 = vadd.f32 0.0, %v610
        %v612 = vand.u32 %v561, 4294901760
        %v613 = vsub.f32 %v561, %v612
        %v614 = vand.u32 %v613, 4294901760
        %v615 = vsub.f32 %v613, %v614
        %v616 = vand.u32 %v615, 4294901760
        %617 = vmatmul.f32.gmra.mxu0 %v616
        %v618 = vpop.f32.mrf.mxu0
        %v619 = vadd.f32 0.0, %v618
        %v620 = vand.u32 %v564, 4294901760
        %v621 = vsub.f32 %v564, %v620
        %v622 = vand.u32 %v621, 4294901760
        %v623 = vsub.f32 %v621, %v622
        %v624 = vand.u32 %v623, 4294901760
        %625 = vmatmul.f32.gmra.mxu0 %v624
        %v626 = vpop.f32.mrf.mxu0
        %v627 = vadd.f32 0.0, %v626
        %v628 = vand.u32 %v567, 4294901760
        %v629 = vsub.f32 %v567, %v628
        %v630 = vand.u32 %v629, 4294901760
        %v631 = vsub.f32 %v629, %v630
        %v632 = vand.u32 %v631, 4294901760
        %633 = vmatmul.f32.gmra.mxu0 %v632
        %v634 = vpop.f32.mrf.mxu0
        %v635 = vadd.f32 0.0, %v634
        %v636 = vand.u32 %v570, 4294901760
        %v637 = vsub.f32 %v570, %v636
        %v638 = vand.u32 %v637, 4294901760
        %v639 = vsub.f32 %v637, %v638
        %v640 = vand.u32 %v639, 4294901760
        %641 = vmatmul.f32.gmra.mxu0 %v640
        %v642 = vpop.f32.mrf.mxu0
        %v643 = vadd.f32 0.0, %v642
        %v644 = vand.u32 %v573, 4294901760
        %v645 = vsub.f32 %v573, %v644
        %v646 = vand.u32 %v645, 4294901760
        %v647 = vsub.f32 %v645, %v646
        %v648 = vand.u32 %v647, 4294901760
        %649 = vmatmul.f32.gmra.mxu0 %v648
        %v650 = vpop.f32.mrf.mxu0
        %v651 = vadd.f32 0.0, %v650
        %v652 = vand.u32 %v576, 4294901760
        %v653 = vsub.f32 %v576, %v652
        %v654 = vand.u32 %v653, 4294901760
        %v655 = vsub.f32 %v653, %v654
        %v656 = vand.u32 %v655, 4294901760
        %657 = vmatmul.f32.gmra.mxu0 %v656
        %v658 = vpop.f32.mrf.mxu0
        %v659 = vadd.f32 0.0, %v658
        %660 = vdwg.mxu0
        %661 = vmatpush.msra.mxu0 0.0
        %662 = vmatpush.msra.mxu0 0.0
        %663 = vmatpush.msra.mxu0 0.0
        %664 = vmatpush.msra.mxu0 0.0
        %665 = vmatpush.msra.mxu0 0.0
        %666 = vmatpush.msra.mxu0 0.0
        %667 = vmatpush.msra.mxu0 0.0
        %668 = vmatpush.msra.mxu0 0.0
        %669 = vmatpush.msra.mxu0 0.0
        %670 = vmatpush.msra.mxu0 0.0
        %671 = vmatpush.msra.mxu0 0.0
        %672 = vmatpush.msra.mxu0 0.0
        %673 = vmatpush.msra.mxu0 0.0
        %674 = vmatpush.msra.mxu0 0.0
        %v675 = vand.u32 %v552, 4294901760
        %v676 = vsub.f32 %v552, %v675
        %v677 = vand.u32 %v676, 4294901760
        %v678 = vsub.f32 %v676, %v677
        %v679 = vand.u32 %v678, 4294901760
        %680 = vmatpush.msra.mxu0 %v679
        %v681 = vand.u32 %v551, 4294901760
        %v682 = vsub.f32 %v551, %v681
        %v683 = vand.u32 %v682, 4294901760
        %v684 = vsub.f32 %v682, %v683
        %v685 = vand.u32 %v684, 4294901760
        %686 = vmatpush.msra.mxu0 %v685
        %v687 = vand.u32 %v555, 4294901760
        %688 = vmatmul.f32.gmra.mxu0 %v687
        %v689 = vpop.f32.mrf.mxu0
        %v690 = vadd.f32 %v603, %v689
        %v691 = vand.u32 %v558, 4294901760
        %692 = vmatmul.f32.gmra.mxu0 %v691
        %v693 = vpop.f32.mrf.mxu0
        %v694 = vadd.f32 %v611, %v693
        %v695 = vand.u32 %v561, 4294901760
        %696 = vmatmul.f32.gmra.mxu0 %v695
        %v697 = vpop.f32.mrf.mxu0
        %v698 = vadd.f32 %v619, %v697
        %v699 = vand.u32 %v564, 4294901760
        %700 = vmatmul.f32.gmra.mxu0 %v699
        %v701 = vpop.f32.mrf.mxu0
        %v702 = vadd.f32 %v627, %v701
        %v703 = vand.u32 %v567, 4294901760
        %704 = vmatmul.f32.gmra.mxu0 %v703
        %v705 = vpop.f32.mrf.mxu0
        %v706 = vadd.f32 %v635, %v705
        %v707 = vand.u32 %v570, 4294901760
        %708 = vmatmul.f32.gmra.mxu0 %v707
        %v709 = vpop.f32.mrf.mxu0
        %v710 = vadd.f32 %v643, %v709
        %v711 = vand.u32 %v573, 4294901760
        %712 = vmatmul.f32.gmra.mxu0 %v711
        %v713 = vpop.f32.mrf.mxu0
        %v714 = vadd.f32 %v651, %v713
        %v715 = vand.u32 %v576, 4294901760
        %716 = vmatmul.f32.gmra.mxu0 %v715
        %v717 = vpop.f32.mrf.mxu0
        %v718 = vadd.f32 %v659, %v717
        %719 = vdwg.mxu0
        %720 = vmatpush.msra.mxu0 0.0
        %721 = vmatpush.msra.mxu0 0.0
        %722 = vmatpush.msra.mxu0 0.0
        %723 = vmatpush.msra.mxu0 0.0
        %724 = vmatpush.msra.mxu0 0.0
        %725 = vmatpush.msra.mxu0 0.0
        %726 = vmatpush.msra.mxu0 0.0
        %727 = vmatpush.msra.mxu0 0.0
        %728 = vmatpush.msra.mxu0 0.0
        %729 = vmatpush.msra.mxu0 0.0
        %730 = vmatpush.msra.mxu0 0.0
        %731 = vmatpush.msra.mxu0 0.0
        %732 = vmatpush.msra.mxu0 0.0
        %733 = vmatpush.msra.mxu0 0.0
        %v734 = vand.u32 %v552, 4294901760
        %v735 = vsub.f32 %v552, %v734
        %736 = vmatpush.msra.mxu0 %v735
        %v737 = vand.u32 %v551, 4294901760
        %v738 = vsub.f32 %v551, %v737
        %739 = vmatpush.msra.mxu0 %v738
        %v740 = vand.u32 %v555, 4294901760
        %v741 = vsub.f32 %v555, %v740
        %742 = vmatmul.f32.gmra.mxu0 %v741
        %v743 = vpop.f32.mrf.mxu0
        %v744 = vadd.f32 %v690, %v743
        %v745 = vand.u32 %v558, 4294901760
        %v746 = vsub.f32 %v558, %v745
        %747 = vmatmul.f32.gmra.mxu0 %v746
        %v748 = vpop.f32.mrf.mxu0
        %v749 = vadd.f32 %v694, %v748
        %v750 = vand.u32 %v561, 4294901760
        %v751 = vsub.f32 %v561, %v750
        %752 = vmatmul.f32.gmra.mxu0 %v751
        %v753 = vpop.f32.mrf.mxu0
        %v754 = vadd.f32 %v698, %v753
        %v755 = vand.u32 %v564, 4294901760
        %v756 = vsub.f32 %v564, %v755
        %757 = vmatmul.f32.gmra.mxu0 %v756
        %v758 = vpop.f32.mrf.mxu0
        %v759 = vadd.f32 %v702, %v758
        %v760 = vand.u32 %v567, 4294901760
        %v761 = vsub.f32 %v567, %v760
        %762 = vmatmul.f32.gmra.mxu0 %v761
        %v763 = vpop.f32.mrf.mxu0
        %v764 = vadd.f32 %v706, %v763
        %v765 = vand.u32 %v570, 4294901760
        %v766 = vsub.f32 %v570, %v765
        %767 = vmatmul.f32.gmra.mxu0 %v766
        %v768 = vpop.f32.mrf.mxu0
        %v769 = vadd.f32 %v710, %v768
        %v770 = vand.u32 %v573, 4294901760
        %v771 = vsub.f32 %v573, %v770
        %772 = vmatmul.f32.gmra.mxu0 %v771
        %v773 = vpop.f32.mrf.mxu0
        %v774 = vadd.f32 %v714, %v773
        %v775 = vand.u32 %v576, 4294901760
        %v776 = vsub.f32 %v576, %v775
        %777 = vmatmul.f32.gmra.mxu0 %v776
        %v778 = vpop.f32.mrf.mxu0
        %v779 = vadd.f32 %v718, %v778
        %780 = vdwg.mxu0
        %781 = vmatpush.msra.mxu0 0.0
        %782 = vmatpush.msra.mxu0 0.0
        %783 = vmatpush.msra.mxu0 0.0
        %784 = vmatpush.msra.mxu0 0.0
        %785 = vmatpush.msra.mxu0 0.0
        %786 = vmatpush.msra.mxu0 0.0
        %787 = vmatpush.msra.mxu0 0.0
        %788 = vmatpush.msra.mxu0 0.0
        %789 = vmatpush.msra.mxu0 0.0
        %790 = vmatpush.msra.mxu0 0.0
        %791 = vmatpush.msra.mxu0 0.0
        %792 = vmatpush.msra.mxu0 0.0
        %793 = vmatpush.msra.mxu0 0.0
        %794 = vmatpush.msra.mxu0 0.0
        %v795 = vand.u32 %v552, 4294901760
        %796 = vmatpush.msra.mxu0 %v795
        %v797 = vand.u32 %v551, 4294901760
        %798 = vmatpush.msra.mxu0 %v797
        %v799 = vand.u32 %v555, 4294901760
        %v800 = vsub.f32 %v555, %v799
        %v801 = vand.u32 %v800, 4294901760
        %802 = vmatmul.f32.gmra.mxu0 %v801
        %v803 = vpop.f32.mrf.mxu0
        %v804 = vadd.f32 %v744, %v803
        %v805 = vand.u32 %v558, 4294901760
        %v806 = vsub.f32 %v558, %v805
        %v807 = vand.u32 %v806, 4294901760
        %808 = vmatmul.f32.gmra.mxu0 %v807
        %v809 = vpop.f32.mrf.mxu0
        %v810 = vadd.f32 %v749, %v809
        %v811 = vand.u32 %v561, 4294901760
        %v812 = vsub.f32 %v561, %v811
        %v813 = vand.u32 %v812, 4294901760
        %814 = vmatmul.f32.gmra.mxu0 %v813
        %v815 = vpop.f32.mrf.mxu0
        %v816 = vadd.f32 %v754, %v815
        %v817 = vand.u32 %v564, 4294901760
        %v818 = vsub.f32 %v564, %v817
        %v819 = vand.u32 %v818, 4294901760
        %820 = vmatmul.f32.gmra.mxu0 %v819
        %v821 = vpop.f32.mrf.mxu0
        %v822 = vadd.f32 %v759, %v821
        %v823 = vand.u32 %v567, 4294901760
        %v824 = vsub.f32 %v567, %v823
        %v825 = vand.u32 %v824, 4294901760
        %826 = vmatmul.f32.gmra.mxu0 %v825
        %v827 = vpop.f32.mrf.mxu0
        %v828 = vadd.f32 %v764, %v827
        %v829 = vand.u32 %v570, 4294901760
        %v830 = vsub.f32 %v570, %v829
        %v831 = vand.u32 %v830, 4294901760
        %832 = vmatmul.f32.gmra.mxu0 %v831
        %v833 = vpop.f32.mrf.mxu0
        %v834 = vadd.f32 %v769, %v833
        %v835 = vand.u32 %v573, 4294901760
        %v836 = vsub.f32 %v573, %v835
        %v837 = vand.u32 %v836, 4294901760
        %838 = vmatmul.f32.gmra.mxu0 %v837
        %v839 = vpop.f32.mrf.mxu0
        %v840 = vadd.f32 %v774, %v839
        %v841 = vand.u32 %v576, 4294901760
        %v842 = vsub.f32 %v576, %v841
        %v843 = vand.u32 %v842, 4294901760
        %844 = vmatmul.f32.gmra.mxu0 %v843
        %v845 = vpop.f32.mrf.mxu0
        %v846 = vadd.f32 %v779, %v845
        %847 = vdwg.mxu0
        %848 = vmatpush.msra.mxu0 0.0
        %849 = vmatpush.msra.mxu0 0.0
        %850 = vmatpush.msra.mxu0 0.0
        %851 = vmatpush.msra.mxu0 0.0
        %852 = vmatpush.msra.mxu0 0.0
        %853 = vmatpush.msra.mxu0 0.0
        %854 = vmatpush.msra.mxu0 0.0
        %855 = vmatpush.msra.mxu0 0.0
        %856 = vmatpush.msra.mxu0 0.0
        %857 = vmatpush.msra.mxu0 0.0
        %858 = vmatpush.msra.mxu0 0.0
        %859 = vmatpush.msra.mxu0 0.0
        %860 = vmatpush.msra.mxu0 0.0
        %861 = vmatpush.msra.mxu0 0.0
        %v862 = vand.u32 %v552, 4294901760
        %v863 = vsub.f32 %v552, %v862
        %v864 = vand.u32 %v863, 4294901760
        %865 = vmatpush.msra.mxu0 %v864
        %v866 = vand.u32 %v551, 4294901760
        %v867 = vsub.f32 %v551, %v866
        %v868 = vand.u32 %v867, 4294901760
        %869 = vmatpush.msra.mxu0 %v868
        %v870 = vand.u32 %v555, 4294901760
        %871 = vmatmul.f32.gmra.mxu0 %v870
        %v872 = vpop.f32.mrf.mxu0
        %v873 = vadd.f32 %v804, %v872
        %v874 = vand.u32 %v558, 4294901760
        %875 = vmatmul.f32.gmra.mxu0 %v874
        %v876 = vpop.f32.mrf.mxu0
        %v877 = vadd.f32 %v810, %v876
        %v878 = vand.u32 %v561, 4294901760
        %879 = vmatmul.f32.gmra.mxu0 %v878
        %v880 = vpop.f32.mrf.mxu0
        %v881 = vadd.f32 %v816, %v880
        %v882 = vand.u32 %v564, 4294901760
        %883 = vmatmul.f32.gmra.mxu0 %v882
        %v884 = vpop.f32.mrf.mxu0
        %v885 = vadd.f32 %v822, %v884
        %v886 = vand.u32 %v567, 4294901760
        %887 = vmatmul.f32.gmra.mxu0 %v886
        %v888 = vpop.f32.mrf.mxu0
        %v889 = vadd.f32 %v828, %v888
        %v890 = vand.u32 %v570, 4294901760
        %891 = vmatmul.f32.gmra.mxu0 %v890
        %v892 = vpop.f32.mrf.mxu0
        %v893 = vadd.f32 %v834, %v892
        %v894 = vand.u32 %v573, 4294901760
        %895 = vmatmul.f32.gmra.mxu0 %v894
        %v896 = vpop.f32.mrf.mxu0
        %v897 = vadd.f32 %v840, %v896
        %v898 = vand.u32 %v576, 4294901760
        %899 = vmatmul.f32.gmra.mxu0 %v898
        %v900 = vpop.f32.mrf.mxu0
        %v901 = vadd.f32 %v846, %v900
        %902 = vdwg.mxu0
        %903 = vmatpush.msra.mxu0 0.0
        %904 = vmatpush.msra.mxu0 0.0
        %905 = vmatpush.msra.mxu0 0.0
        %906 = vmatpush.msra.mxu0 0.0
        %907 = vmatpush.msra.mxu0 0.0
        %908 = vmatpush.msra.mxu0 0.0
        %909 = vmatpush.msra.mxu0 0.0
        %910 = vmatpush.msra.mxu0 0.0
        %911 = vmatpush.msra.mxu0 0.0
        %912 = vmatpush.msra.mxu0 0.0
        %913 = vmatpush.msra.mxu0 0.0
        %914 = vmatpush.msra.mxu0 0.0
        %915 = vmatpush.msra.mxu0 0.0
        %916 = vmatpush.msra.mxu0 0.0
        %v917 = vand.u32 %v552, 4294901760
        %918 = vmatpush.msra.mxu0 %v917
        %v919 = vand.u32 %v551, 4294901760
        %920 = vmatpush.msra.mxu0 %v919
        %v921 = vand.u32 %v555, 4294901760
        %922 = vmatmul.f32.gmra.mxu0 %v921
        %v923 = vpop.f32.mrf.mxu0
        %v924 = vadd.f32 %v873, %v923
        %v925 = vand.u32 %v558, 4294901760
        %926 = vmatmul.f32.gmra.mxu0 %v925
        %v927 = vpop.f32.mrf.mxu0
        %v928 = vadd.f32 %v877, %v927
        %v929 = vand.u32 %v561, 4294901760
        %930 = vmatmul.f32.gmra.mxu0 %v929
        %v931 = vpop.f32.mrf.mxu0
        %v932 = vadd.f32 %v881, %v931
        %v933 = vand.u32 %v564, 4294901760
        %934 = vmatmul.f32.gmra.mxu0 %v933
        %v935 = vpop.f32.mrf.mxu0
        %v936 = vadd.f32 %v885, %v935
        %v937 = vand.u32 %v567, 4294901760
        %938 = vmatmul.f32.gmra.mxu0 %v937
        %v939 = vpop.f32.mrf.mxu0
        %v940 = vadd.f32 %v889, %v939
        %v941 = vand.u32 %v570, 4294901760
        %942 = vmatmul.f32.gmra.mxu0 %v941
        %v943 = vpop.f32.mrf.mxu0
        %v944 = vadd.f32 %v893, %v943
        %v945 = vand.u32 %v573, 4294901760
        %946 = vmatmul.f32.gmra.mxu0 %v945
        %v947 = vpop.f32.mrf.mxu0
        %v948 = vadd.f32 %v897, %v947
        %v949 = vand.u32 %v576, 4294901760
        %950 = vmatmul.f32.gmra.mxu0 %v949
        %v951 = vpop.f32.mrf.mxu0
        %v952 = vadd.f32 %v901, %v951
        %953 = vdwg.mxu0
        %954 = vxpose.xlu0.b32.start [1/16] %v924, 128
        %955 = vxpose.xlu0.b32.cont [2/16] %v928, 128
        %956 = vxpose.xlu0.b32.cont [3/16] %v932, 128
        %957 = vxpose.xlu0.b32.cont [4/16] %v936, 128
        %958 = vxpose.xlu0.b32.cont [5/16] 0.0, 128
        %959 = vxpose.xlu0.b32.cont [6/16] 0.0, 128
        %960 = vxpose.xlu0.b32.cont [7/16] 0.0, 128
        %961 = vxpose.xlu0.b32.cont [8/16] 0.0, 128
        %962 = vxpose.xlu0.b32.cont [9/16] 0.0, 128
        %963 = vxpose.xlu0.b32.cont [10/16] 0.0, 128
        %964 = vxpose.xlu0.b32.cont [11/16] 0.0, 128
        %965 = vxpose.xlu0.b32.cont [12/16] 0.0, 128
        %966 = vxpose.xlu0.b32.cont [13/16] 0.0, 128
        %967 = vxpose.xlu0.b32.cont [14/16] 0.0, 128
        %968 = vxpose.xlu0.b32.cont [15/16] 0.0, 128
        %969 = vxpose.xlu0.b32.end [16/16] 0.0, 128
        %v970 = vpop.trf.xlu0
        %v971 = vpop.trf.xlu0
        %v972 = vpop.trf.xlu0
        %v973 = vpop.trf.xlu0
        %v974 = vpop.trf.xlu0
        %v975 = vpop.trf.xlu0
        %v976 = vpop.trf.xlu0
        %v977 = vpop.trf.xlu0
        %v978 = vpop.trf.xlu0
        %v979 = vpop.trf.xlu0
        %v980 = vpop.trf.xlu0
        %v981 = vpop.trf.xlu0
        %v982 = vpop.trf.xlu0
        %v983 = vpop.trf.xlu0
        %v984 = vpop.trf.xlu0
        %v985 = vpop.trf.xlu0
        %986 = vxpose.xlu0.b32.start [1/16] %v940, 128
        %987 = vxpose.xlu0.b32.cont [2/16] %v944, 128
        %988 = vxpose.xlu0.b32.cont [3/16] %v948, 128
        %989 = vxpose.xlu0.b32.cont [4/16] %v952, 128
        %990 = vxpose.xlu0.b32.cont [5/16] 0.0, 128
        %991 = vxpose.xlu0.b32.cont [6/16] 0.0, 128
        %992 = vxpose.xlu0.b32.cont [7/16] 0.0, 128
        %993 = vxpose.xlu0.b32.cont [8/16] 0.0, 128
        %994 = vxpose.xlu0.b32.cont [9/16] 0.0, 128
        %995 = vxpose.xlu0.b32.cont [10/16] 0.0, 128
        %996 = vxpose.xlu0.b32.cont [11/16] 0.0, 128
        %997 = vxpose.xlu0.b32.cont [12/16] 0.0, 128
        %998 = vxpose.xlu0.b32.cont [13/16] 0.0, 128
        %999 = vxpose.xlu0.b32.cont [14/16] 0.0, 128
        %1000 = vxpose.xlu0.b32.cont [15/16] 0.0, 128
        %1001 = vxpose.xlu0.b32.end [16/16] 0.0, 128
        %v1002 = vpop.trf.xlu0
        %v1003 = vpop.trf.xlu0
        %v1004 = vpop.trf.xlu0
        %v1005 = vpop.trf.xlu0
        %v1006 = vpop.trf.xlu0
        %v1007 = vpop.trf.xlu0
        %v1008 = vpop.trf.xlu0
        %v1009 = vpop.trf.xlu0
        %v1010 = vpop.trf.xlu0
        %v1011 = vpop.trf.xlu0
        %v1012 = vpop.trf.xlu0
        %v1013 = vpop.trf.xlu0
        %v1014 = vpop.trf.xlu0
        %v1015 = vpop.trf.xlu0
        %v1016 = vpop.trf.xlu0
        %v1017 = vpop.trf.xlu0
        %v1020 = vrot.slane %v970, 1
        %v1021 = vrot.slane %v970, 2
        %v1022 = vrot.slane %v970, 3
        %v1023 = vrot.slane %v970, 4
        %v1024 = vrot.slane %v970, 5
        %v1025 = vrot.slane %v970, 6
        %v1026 = vrot.slane %v970, 7
        %v1027 = vrot.slane %v971, 1
        %v1028 = vrot.slane %v971, 2
        %v1029 = vrot.slane %v971, 3
        %v1030 = vrot.slane %v971, 4
        %v1031 = vrot.slane %v971, 5
        %v1032 = vrot.slane %v971, 6
        %v1033 = vrot.slane %v971, 7
        %v1050 = vrot.slane %v1002, 1
        %v1051 = vrot.slane %v1002, 2
        %v1052 = vrot.slane %v1002, 3
        %v1053 = vrot.slane %v1002, 4
        %v1054 = vrot.slane %v1002, 5
        %v1055 = vrot.slane %v1002, 6
        %v1056 = vrot.slane %v1002, 7
        %v1057 = vrot.slane %v1003, 1
        %v1058 = vrot.slane %v1003, 2
        %v1059 = vrot.slane %v1003, 3
        %v1060 = vrot.slane %v1003, 4
        %v1061 = vrot.slane %v1003, 5
        %v1062 = vrot.slane %v1003, 6
        %v1063 = vrot.slane %v1003, 7
        %v1064 = vperm.slane %v1002, 0
        %v1065 = vperm.slane %v1050, 0
        %v1066 = vperm.slane %v1051, 0
        %v1067 = vperm.slane %v1052, 0
        %v1068 = vperm.slane %v1053, 0
        %v1069 = vperm.slane %v1054, 0
        %v1070 = vperm.slane %v1055, 0
        %v1071 = vperm.slane %v1056, 0
        %v1072 = vperm.slane %v1003, 0
        %v1073 = vperm.slane %v1057, 0
        %v1074 = vperm.slane %v1058, 0
        %v1075 = vperm.slane %v1059, 0
        %v1076 = vperm.slane %v1060, 0
        %v1077 = vperm.slane %v1061, 0
        %v1078 = vperm.slane %v1062, 0
        %v1079 = vperm.slane %v1063, 0
        %vm1096 = vcmask 1040384
        %v1097 = vsel %vm1096, %v970, %v1064
        %v1098 = vsel %vm1096, %v1020, %v1065
        %v1099 = vsel %vm1096, %v1021, %v1066
        %v1100 = vsel %vm1096, %v1022, %v1067
        %v1101 = vsel %vm1096, %v1023, %v1068
        %v1102 = vsel %vm1096, %v1024, %v1069
        %v1103 = vsel %vm1096, %v1025, %v1070
        %v1104 = vsel %vm1096, %v1026, %v1071
        %v1105 = vsel %vm1096, %v971, %v1072
        %v1106 = vsel %vm1096, %v1027, %v1073
        %v1107 = vsel %vm1096, %v1028, %v1074
        %v1108 = vsel %vm1096, %v1029, %v1075
        %v1109 = vsel %vm1096, %v1030, %v1076
        %v1110 = vsel %vm1096, %v1031, %v1077
        %v1111 = vsel %vm1096, %v1032, %v1078
        %v1112 = vsel %vm1096, %v1033, %v1079
        %v1113 = vld [vmem:[%s438] sm:$0xff]
        %v1114 = vld [vmem:[%s438 + $0x8] sm:$0xff]
        %v1115 = vld [vmem:[%s438 + $0x10] sm:$0xff]
        %v1116 = vld [vmem:[%s438 + $0x18] sm:$0xff]
        %v1117 = vld [vmem:[%s438 + $0x20] sm:$0xff]
        %v1118 = vld [vmem:[%s438 + $0x28] sm:$0xff]
        %v1119 = vld [vmem:[%s438 + $0x30] sm:$0xff]
        %v1120 = vld [vmem:[%s438 + $0x38] sm:$0xff]
        %v1121 = vld [vmem:[%s438 + $0x40] sm:$0xff]
        %v1122 = vld [vmem:[%s438 + $0x48] sm:$0xff]
        %v1123 = vld [vmem:[%s438 + $0x50] sm:$0xff]
        %v1124 = vld [vmem:[%s438 + $0x58] sm:$0xff]
        %v1125 = vld [vmem:[%s438 + $0x60] sm:$0xff]
        %v1126 = vld [vmem:[%s438 + $0x68] sm:$0xff]
        %v1127 = vld [vmem:[%s438 + $0x70] sm:$0xff]
        %v1128 = vld [vmem:[%s438 + $0x78] sm:$0xff]
        %v1129 = vld [vmem:[%s438 + $0x80] sm:$0xff]
        %v1130 = vld [vmem:[%s438 + $0x88] sm:$0xff]
        %v1131 = vld [vmem:[%s438 + $0x90] sm:$0xff]
        %v1132 = vld [vmem:[%s438 + $0x98] sm:$0xff]
        %v1133 = vld [vmem:[%s438 + $0xa0] sm:$0xff]
        %v1134 = vld [vmem:[%s438 + $0xa8] sm:$0xff]
        %v1135 = vld [vmem:[%s438 + $0xb0] sm:$0xff]
        %v1136 = vld [vmem:[%s438 + $0xb8] sm:$0xff]
        %v1137 = vld [vmem:[%s438 + $0xc0] sm:$0xff]
        %v1138 = vld [vmem:[%s438 + $0xc8] sm:$0xff]
        %v1139 = vld [vmem:[%s438 + $0xd0] sm:$0xff]
        %v1140 = vld [vmem:[%s438 + $0xd8] sm:$0xff]
        %v1141 = vld [vmem:[%s438 + $0xe0] sm:$0xff]
        %v1142 = vld [vmem:[%s438 + $0xe8] sm:$0xff]
        %v1143 = vld [vmem:[%s438 + $0xf0] sm:$0xff]
        %v1144 = vld [vmem:[%s438 + $0xf8] sm:$0xff]
        %v1145 = vld [vmem:[%s448] sm:$0xff]
        %v1146 = vld [vmem:[%s448 + $0x8] sm:$0xff]
        %v1147 = vld [vmem:[%s448 + $0x10] sm:$0xff]
        %v1148 = vld [vmem:[%s448 + $0x18] sm:$0xff]
        %v1149 = vld [vmem:[%s448 + $0x20] sm:$0xff]
        %v1150 = vld [vmem:[%s448 + $0x28] sm:$0xff]
        %v1151 = vld [vmem:[%s448 + $0x30] sm:$0xff]
        %v1152 = vld [vmem:[%s448 + $0x38] sm:$0xff]
        %v1153 = vld [vmem:[%s448 + $0x40] sm:$0xff]
        %v1154 = vld [vmem:[%s448 + $0x48] sm:$0xff]
        %v1155 = vld [vmem:[%s448 + $0x50] sm:$0xff]
        %v1156 = vld [vmem:[%s448 + $0x58] sm:$0xff]
        %v1157 = vld [vmem:[%s448 + $0x60] sm:$0xff]
        %v1158 = vld [vmem:[%s448 + $0x68] sm:$0xff]
        %v1159 = vld [vmem:[%s448 + $0x70] sm:$0xff]
        %v1160 = vld [vmem:[%s448 + $0x78] sm:$0xff]
        %v1161 = vld [vmem:[%s448 + $0x80] sm:$0xff]
        %v1162 = vld [vmem:[%s448 + $0x88] sm:$0xff]
        %v1163 = vld [vmem:[%s448 + $0x90] sm:$0xff]
        %v1164 = vld [vmem:[%s448 + $0x98] sm:$0xff]
        %v1165 = vld [vmem:[%s448 + $0xa0] sm:$0xff]
        %v1166 = vld [vmem:[%s448 + $0xa8] sm:$0xff]
        %v1167 = vld [vmem:[%s448 + $0xb0] sm:$0xff]
        %v1168 = vld [vmem:[%s448 + $0xb8] sm:$0xff]
        %v1169 = vld [vmem:[%s448 + $0xc0] sm:$0xff]
        %v1170 = vld [vmem:[%s448 + $0xc8] sm:$0xff]
        %v1171 = vld [vmem:[%s448 + $0xd0] sm:$0xff]
        %v1172 = vld [vmem:[%s448 + $0xd8] sm:$0xff]
        %v1173 = vld [vmem:[%s448 + $0xe0] sm:$0xff]
        %v1174 = vld [vmem:[%s448 + $0xe8] sm:$0xff]
        %v1175 = vld [vmem:[%s448 + $0xf0] sm:$0xff]
        %v1176 = vld [vmem:[%s448 + $0xf8] sm:$0xff]
        %vm1177 = vcmask 261120
        %v1179 = vsel %vm1177, %v1097, 0
        %1181 = vmatpush.msra.mxu0 0.0
        %1182 = vmatpush.msra.mxu0 0.0
        %1183 = vmatpush.msra.mxu0 0.0
        %1184 = vmatpush.msra.mxu0 0.0
        %1185 = vmatpush.msra.mxu0 0.0
        %1186 = vmatpush.msra.mxu0 0.0
        %1187 = vmatpush.msra.mxu0 0.0
        %1188 = vmatpush.msra.mxu0 0.0
        %1189 = vmatpush.msra.mxu0 0.0
        %1190 = vmatpush.msra.mxu0 0.0
        %1191 = vmatpush.msra.mxu0 0.0
        %1192 = vmatpush.msra.mxu0 0.0
        %1193 = vmatpush.msra.mxu0 %v1116
        %1194 = vmatpush.msra.mxu0 %v1115
        %1195 = vmatpush.msra.mxu0 %v1114
        %1196 = vmatpush.msra.mxu0 %v1113
        %1197 = vmatmul.f32.gmra.mxu0 %v1179
        %v1198 = vpop.f32.mrf.mxu0
        %v1199 = vadd.f32 0.0, %v1198
        %1200 = vdwg.mxu0
        %v1202 = vsel %vm1177, %v1098, 0
        %1204 = vmatpush.msra.mxu0 0.0
        %1205 = vmatpush.msra.mxu0 0.0
        %1206 = vmatpush.msra.mxu0 0.0
        %1207 = vmatpush.msra.mxu0 0.0
        %1208 = vmatpush.msra.mxu0 0.0
        %1209 = vmatpush.msra.mxu0 0.0
        %1210 = vmatpush.msra.mxu0 0.0
        %1211 = vmatpush.msra.mxu0 0.0
        %1212 = vmatpush.msra.mxu0 0.0
        %1213 = vmatpush.msra.mxu0 0.0
        %1214 = vmatpush.msra.mxu0 0.0
        %1215 = vmatpush.msra.mxu0 0.0
        %1216 = vmatpush.msra.mxu0 %v1120
        %1217 = vmatpush.msra.mxu0 %v1119
        %1218 = vmatpush.msra.mxu0 %v1118
        %1219 = vmatpush.msra.mxu0 %v1117
        %1220 = vmatmul.f32.gmra.mxu0 %v1202
        %v1221 = vpop.f32.mrf.mxu0
        %v1222 = vadd.f32 0.0, %v1221
        %1223 = vdwg.mxu0
        %v1225 = vsel %vm1177, %v1099, 0
        %1227 = vmatpush.msra.mxu0 0.0
        %1228 = vmatpush.msra.mxu0 0.0
        %1229 = vmatpush.msra.mxu0 0.0
        %1230 = vmatpush.msra.mxu0 0.0
        %1231 = vmatpush.msra.mxu0 0.0
        %1232 = vmatpush.msra.mxu0 0.0
        %1233 = vmatpush.msra.mxu0 0.0
        %1234 = vmatpush.msra.mxu0 0.0
        %1235 = vmatpush.msra.mxu0 0.0
        %1236 = vmatpush.msra.mxu0 0.0
        %1237 = vmatpush.msra.mxu0 0.0
        %1238 = vmatpush.msra.mxu0 0.0
        %1239 = vmatpush.msra.mxu0 %v1124
        %1240 = vmatpush.msra.mxu0 %v1123
        %1241 = vmatpush.msra.mxu0 %v1122
        %1242 = vmatpush.msra.mxu0 %v1121
        %1243 = vmatmul.f32.gmra.mxu0 %v1225
        %v1244 = vpop.f32.mrf.mxu0
        %v1245 = vadd.f32 0.0, %v1244
        %1246 = vdwg.mxu0
        %v1248 = vsel %vm1177, %v1100, 0
        %1250 = vmatpush.msra.mxu0 0.0
        %1251 = vmatpush.msra.mxu0 0.0
        %1252 = vmatpush.msra.mxu0 0.0
        %1253 = vmatpush.msra.mxu0 0.0
        %1254 = vmatpush.msra.mxu0 0.0
        %1255 = vmatpush.msra.mxu0 0.0
        %1256 = vmatpush.msra.mxu0 0.0
        %1257 = vmatpush.msra.mxu0 0.0
        %1258 = vmatpush.msra.mxu0 0.0
        %1259 = vmatpush.msra.mxu0 0.0
        %1260 = vmatpush.msra.mxu0 0.0
        %1261 = vmatpush.msra.mxu0 0.0
        %1262 = vmatpush.msra.mxu0 %v1128
        %1263 = vmatpush.msra.mxu0 %v1127
        %1264 = vmatpush.msra.mxu0 %v1126
        %1265 = vmatpush.msra.mxu0 %v1125
        %1266 = vmatmul.f32.gmra.mxu0 %v1248
        %v1267 = vpop.f32.mrf.mxu0
        %v1268 = vadd.f32 0.0, %v1267
        %1269 = vdwg.mxu0
        %v1271 = vsel %vm1177, %v1101, 0
        %1273 = vmatpush.msra.mxu0 0.0
        %1274 = vmatpush.msra.mxu0 0.0
        %1275 = vmatpush.msra.mxu0 0.0
        %1276 = vmatpush.msra.mxu0 0.0
        %1277 = vmatpush.msra.mxu0 0.0
        %1278 = vmatpush.msra.mxu0 0.0
        %1279 = vmatpush.msra.mxu0 0.0
        %1280 = vmatpush.msra.mxu0 0.0
        %1281 = vmatpush.msra.mxu0 0.0
        %1282 = vmatpush.msra.mxu0 0.0
        %1283 = vmatpush.msra.mxu0 0.0
        %1284 = vmatpush.msra.mxu0 0.0
        %1285 = vmatpush.msra.mxu0 %v1132
        %1286 = vmatpush.msra.mxu0 %v1131
        %1287 = vmatpush.msra.mxu0 %v1130
        %1288 = vmatpush.msra.mxu0 %v1129
        %1289 = vmatmul.f32.gmra.mxu0 %v1271
        %v1290 = vpop.f32.mrf.mxu0
        %v1291 = vadd.f32 0.0, %v1290
        %1292 = vdwg.mxu0
        %v1294 = vsel %vm1177, %v1102, 0
        %1296 = vmatpush.msra.mxu0 0.0
        %1297 = vmatpush.msra.mxu0 0.0
        %1298 = vmatpush.msra.mxu0 0.0
        %1299 = vmatpush.msra.mxu0 0.0
        %1300 = vmatpush.msra.mxu0 0.0
        %1301 = vmatpush.msra.mxu0 0.0
        %1302 = vmatpush.msra.mxu0 0.0
        %1303 = vmatpush.msra.mxu0 0.0
        %1304 = vmatpush.msra.mxu0 0.0
        %1305 = vmatpush.msra.mxu0 0.0
        %1306 = vmatpush.msra.mxu0 0.0
        %1307 = vmatpush.msra.mxu0 0.0
        %1308 = vmatpush.msra.mxu0 %v1136
        %1309 = vmatpush.msra.mxu0 %v1135
        %1310 = vmatpush.msra.mxu0 %v1134
        %1311 = vmatpush.msra.mxu0 %v1133
        %1312 = vmatmul.f32.gmra.mxu0 %v1294
        %v1313 = vpop.f32.mrf.mxu0
        %v1314 = vadd.f32 0.0, %v1313
        %1315 = vdwg.mxu0
        %v1317 = vsel %vm1177, %v1103, 0
        %1319 = vmatpush.msra.mxu0 0.0
        %1320 = vmatpush.msra.mxu0 0.0
        %1321 = vmatpush.msra.mxu0 0.0
        %1322 = vmatpush.msra.mxu0 0.0
        %1323 = vmatpush.msra.mxu0 0.0
        %1324 = vmatpush.msra.mxu0 0.0
        %1325 = vmatpush.msra.mxu0 0.0
        %1326 = vmatpush.msra.mxu0 0.0
        %1327 = vmatpush.msra.mxu0 0.0
        %1328 = vmatpush.msra.mxu0 0.0
        %1329 = vmatpush.msra.mxu0 0.0
        %1330 = vmatpush.msra.mxu0 0.0
        %1331 = vmatpush.msra.mxu0 %v1140
        %1332 = vmatpush.msra.mxu0 %v1139
        %1333 = vmatpush.msra.mxu0 %v1138
        %1334 = vmatpush.msra.mxu0 %v1137
        %1335 = vmatmul.f32.gmra.mxu0 %v1317
        %v1336 = vpop.f32.mrf.mxu0
        %v1337 = vadd.f32 0.0, %v1336
        %1338 = vdwg.mxu0
        %v1340 = vsel %vm1177, %v1104, 0
        %1342 = vmatpush.msra.mxu0 0.0
        %1343 = vmatpush.msra.mxu0 0.0
        %1344 = vmatpush.msra.mxu0 0.0
        %1345 = vmatpush.msra.mxu0 0.0
        %1346 = vmatpush.msra.mxu0 0.0
        %1347 = vmatpush.msra.mxu0 0.0
        %1348 = vmatpush.msra.mxu0 0.0
        %1349 = vmatpush.msra.mxu0 0.0
        %1350 = vmatpush.msra.mxu0 0.0
        %1351 = vmatpush.msra.mxu0 0.0
        %1352 = vmatpush.msra.mxu0 0.0
        %1353 = vmatpush.msra.mxu0 0.0
        %1354 = vmatpush.msra.mxu0 %v1144
        %1355 = vmatpush.msra.mxu0 %v1143
        %1356 = vmatpush.msra.mxu0 %v1142
        %1357 = vmatpush.msra.mxu0 %v1141
        %1358 = vmatmul.f32.gmra.mxu0 %v1340
        %v1359 = vpop.f32.mrf.mxu0
        %v1360 = vadd.f32 0.0, %v1359
        %1361 = vdwg.mxu0
        %v1363 = vsel %vm1177, %v1105, 0
        %1365 = vmatpush.msra.mxu0 0.0
        %1366 = vmatpush.msra.mxu0 0.0
        %1367 = vmatpush.msra.mxu0 0.0
        %1368 = vmatpush.msra.mxu0 0.0
        %1369 = vmatpush.msra.mxu0 0.0
        %1370 = vmatpush.msra.mxu0 0.0
        %1371 = vmatpush.msra.mxu0 0.0
        %1372 = vmatpush.msra.mxu0 0.0
        %1373 = vmatpush.msra.mxu0 0.0
        %1374 = vmatpush.msra.mxu0 0.0
        %1375 = vmatpush.msra.mxu0 0.0
        %1376 = vmatpush.msra.mxu0 0.0
        %1377 = vmatpush.msra.mxu0 %v1148
        %1378 = vmatpush.msra.mxu0 %v1147
        %1379 = vmatpush.msra.mxu0 %v1146
        %1380 = vmatpush.msra.mxu0 %v1145
        %1381 = vmatmul.f32.gmra.mxu0 %v1363
        %v1382 = vpop.f32.mrf.mxu0
        %v1383 = vadd.f32 0.0, %v1382
        %1384 = vdwg.mxu0
        %v1386 = vsel %vm1177, %v1106, 0
        %1388 = vmatpush.msra.mxu0 0.0
        %1389 = vmatpush.msra.mxu0 0.0
        %1390 = vmatpush.msra.mxu0 0.0
        %1391 = vmatpush.msra.mxu0 0.0
        %1392 = vmatpush.msra.mxu0 0.0
        %1393 = vmatpush.msra.mxu0 0.0
        %1394 = vmatpush.msra.mxu0 0.0
        %1395 = vmatpush.msra.mxu0 0.0
        %1396 = vmatpush.msra.mxu0 0.0
        %1397 = vmatpush.msra.mxu0 0.0
        %1398 = vmatpush.msra.mxu0 0.0
        %1399 = vmatpush.msra.mxu0 0.0
        %1400 = vmatpush.msra.mxu0 %v1152
        %1401 = vmatpush.msra.mxu0 %v1151
        %1402 = vmatpush.msra.mxu0 %v1150
        %1403 = vmatpush.msra.mxu0 %v1149
        %1404 = vmatmul.f32.gmra.mxu0 %v1386
        %v1405 = vpop.f32.mrf.mxu0
        %v1406 = vadd.f32 0.0, %v1405
        %1407 = vdwg.mxu0
        %v1409 = vsel %vm1177, %v1107, 0
        %1411 = vmatpush.msra.mxu0 0.0
        %1412 = vmatpush.msra.mxu0 0.0
        %1413 = vmatpush.msra.mxu0 0.0
        %1414 = vmatpush.msra.mxu0 0.0
        %1415 = vmatpush.msra.mxu0 0.0
        %1416 = vmatpush.msra.mxu0 0.0
        %1417 = vmatpush.msra.mxu0 0.0
        %1418 = vmatpush.msra.mxu0 0.0
        %1419 = vmatpush.msra.mxu0 0.0
        %1420 = vmatpush.msra.mxu0 0.0
        %1421 = vmatpush.msra.mxu0 0.0
        %1422 = vmatpush.msra.mxu0 0.0
        %1423 = vmatpush.msra.mxu0 %v1156
        %1424 = vmatpush.msra.mxu0 %v1155
        %1425 = vmatpush.msra.mxu0 %v1154
        %1426 = vmatpush.msra.mxu0 %v1153
        %1427 = vmatmul.f32.gmra.mxu0 %v1409
        %v1428 = vpop.f32.mrf.mxu0
        %v1429 = vadd.f32 0.0, %v1428
        %1430 = vdwg.mxu0
        %v1432 = vsel %vm1177, %v1108, 0
        %1434 = vmatpush.msra.mxu0 0.0
        %1435 = vmatpush.msra.mxu0 0.0
        %1436 = vmatpush.msra.mxu0 0.0
        %1437 = vmatpush.msra.mxu0 0.0
        %1438 = vmatpush.msra.mxu0 0.0
        %1439 = vmatpush.msra.mxu0 0.0
        %1440 = vmatpush.msra.mxu0 0.0
        %1441 = vmatpush.msra.mxu0 0.0
        %1442 = vmatpush.msra.mxu0 0.0
        %1443 = vmatpush.msra.mxu0 0.0
        %1444 = vmatpush.msra.mxu0 0.0
        %1445 = vmatpush.msra.mxu0 0.0
        %1446 = vmatpush.msra.mxu0 %v1160
        %1447 = vmatpush.msra.mxu0 %v1159
        %1448 = vmatpush.msra.mxu0 %v1158
        %1449 = vmatpush.msra.mxu0 %v1157
        %1450 = vmatmul.f32.gmra.mxu0 %v1432
        %v1451 = vpop.f32.mrf.mxu0
        %v1452 = vadd.f32 0.0, %v1451
        %1453 = vdwg.mxu0
        %v1455 = vsel %vm1177, %v1109, 0
        %1457 = vmatpush.msra.mxu0 0.0
        %1458 = vmatpush.msra.mxu0 0.0
        %1459 = vmatpush.msra.mxu0 0.0
        %1460 = vmatpush.msra.mxu0 0.0
        %1461 = vmatpush.msra.mxu0 0.0
        %1462 = vmatpush.msra.mxu0 0.0
        %1463 = vmatpush.msra.mxu0 0.0
        %1464 = vmatpush.msra.mxu0 0.0
        %1465 = vmatpush.msra.mxu0 0.0
        %1466 = vmatpush.msra.mxu0 0.0
        %1467 = vmatpush.msra.mxu0 0.0
        %1468 = vmatpush.msra.mxu0 0.0
        %1469 = vmatpush.msra.mxu0 %v1164
        %1470 = vmatpush.msra.mxu0 %v1163
        %1471 = vmatpush.msra.mxu0 %v1162
        %1472 = vmatpush.msra.mxu0 %v1161
        %1473 = vmatmul.f32.gmra.mxu0 %v1455
        %v1474 = vpop.f32.mrf.mxu0
        %v1475 = vadd.f32 0.0, %v1474
        %1476 = vdwg.mxu0
        %v1478 = vsel %vm1177, %v1110, 0
        %1480 = vmatpush.msra.mxu0 0.0
        %1481 = vmatpush.msra.mxu0 0.0
        %1482 = vmatpush.msra.mxu0 0.0
        %1483 = vmatpush.msra.mxu0 0.0
        %1484 = vmatpush.msra.mxu0 0.0
        %1485 = vmatpush.msra.mxu0 0.0
        %1486 = vmatpush.msra.mxu0 0.0
        %1487 = vmatpush.msra.mxu0 0.0
        %1488 = vmatpush.msra.mxu0 0.0
        %1489 = vmatpush.msra.mxu0 0.0
        %1490 = vmatpush.msra.mxu0 0.0
        %1491 = vmatpush.msra.mxu0 0.0
        %1492 = vmatpush.msra.mxu0 %v1168
        %1493 = vmatpush.msra.mxu0 %v1167
        %1494 = vmatpush.msra.mxu0 %v1166
        %1495 = vmatpush.msra.mxu0 %v1165
        %1496 = vmatmul.f32.gmra.mxu0 %v1478
        %v1497 = vpop.f32.mrf.mxu0
        %v1498 = vadd.f32 0.0, %v1497
        %1499 = vdwg.mxu0
        %v1501 = vsel %vm1177, %v1111, 0
        %1503 = vmatpush.msra.mxu0 0.0
        %1504 = vmatpush.msra.mxu0 0.0
        %1505 = vmatpush.msra.mxu0 0.0
        %1506 = vmatpush.msra.mxu0 0.0
        %1507 = vmatpush.msra.mxu0 0.0
        %1508 = vmatpush.msra.mxu0 0.0
        %1509 = vmatpush.msra.mxu0 0.0
        %1510 = vmatpush.msra.mxu0 0.0
        %1511 = vmatpush.msra.mxu0 0.0
        %1512 = vmatpush.msra.mxu0 0.0
        %1513 = vmatpush.msra.mxu0 0.0
        %1514 = vmatpush.msra.mxu0 0.0
        %1515 = vmatpush.msra.mxu0 %v1172
        %1516 = vmatpush.msra.mxu0 %v1171
        %1517 = vmatpush.msra.mxu0 %v1170
        %1518 = vmatpush.msra.mxu0 %v1169
        %1519 = vmatmul.f32.gmra.mxu0 %v1501
        %v1520 = vpop.f32.mrf.mxu0
        %v1521 = vadd.f32 0.0, %v1520
        %1522 = vdwg.mxu0
        %v1524 = vsel %vm1177, %v1112, 0
        %1526 = vmatpush.msra.mxu0 0.0
        %1527 = vmatpush.msra.mxu0 0.0
        %1528 = vmatpush.msra.mxu0 0.0
        %1529 = vmatpush.msra.mxu0 0.0
        %1530 = vmatpush.msra.mxu0 0.0
        %1531 = vmatpush.msra.mxu0 0.0
        %1532 = vmatpush.msra.mxu0 0.0
        %1533 = vmatpush.msra.mxu0 0.0
        %1534 = vmatpush.msra.mxu0 0.0
        %1535 = vmatpush.msra.mxu0 0.0
        %1536 = vmatpush.msra.mxu0 0.0
        %1537 = vmatpush.msra.mxu0 0.0
        %1538 = vmatpush.msra.mxu0 %v1176
        %1539 = vmatpush.msra.mxu0 %v1175
        %1540 = vmatpush.msra.mxu0 %v1174
        %1541 = vmatpush.msra.mxu0 %v1173
        %1542 = vmatmul.f32.gmra.mxu0 %v1524
        %v1543 = vpop.f32.mrf.mxu0
        %v1544 = vadd.f32 0.0, %v1543
        %1545 = vdwg.mxu0
        %1546 = vmatpush.msra.mxu0 0.0
        %1547 = vmatpush.msra.mxu0 0.0
        %1548 = vmatpush.msra.mxu0 0.0
        %1549 = vmatpush.msra.mxu0 0.0
        %1550 = vmatpush.msra.mxu0 0.0
        %1551 = vmatpush.msra.mxu0 0.0
        %1552 = vmatpush.msra.mxu0 0.0
        %1553 = vmatpush.msra.mxu0 0.0
        %1554 = vmatpush.msra.mxu0 0.0
        %1555 = vmatpush.msra.mxu0 0.0
        %1556 = vmatpush.msra.mxu0 0.0
        %1557 = vmatpush.msra.mxu0 0.0
        %1558 = vmatpush.msra.mxu0 %v1116
        %1559 = vmatpush.msra.mxu0 %v1115
        %1560 = vmatpush.msra.mxu0 %v1114
        %1561 = vmatpush.msra.mxu0 %v1113
        %1562 = vmatmul.f32.gmra.mxu0 %v1363
        %v1563 = vpop.f32.mrf.mxu0
        %v1564 = vadd.f32 0.0, %v1563
        %1565 = vdwg.mxu0
        %1566 = vmatpush.msra.mxu0 0.0
        %1567 = vmatpush.msra.mxu0 0.0
        %1568 = vmatpush.msra.mxu0 0.0
        %1569 = vmatpush.msra.mxu0 0.0
        %1570 = vmatpush.msra.mxu0 0.0
        %1571 = vmatpush.msra.mxu0 0.0
        %1572 = vmatpush.msra.mxu0 0.0
        %1573 = vmatpush.msra.mxu0 0.0
        %1574 = vmatpush.msra.mxu0 0.0
        %1575 = vmatpush.msra.mxu0 0.0
        %1576 = vmatpush.msra.mxu0 0.0
        %1577 = vmatpush.msra.mxu0 0.0
        %1578 = vmatpush.msra.mxu0 %v1120
        %1579 = vmatpush.msra.mxu0 %v1119
        %1580 = vmatpush.msra.mxu0 %v1118
        %1581 = vmatpush.msra.mxu0 %v1117
        %1582 = vmatmul.f32.gmra.mxu0 %v1386
        %v1583 = vpop.f32.mrf.mxu0
        %v1584 = vadd.f32 0.0, %v1583
        %1585 = vdwg.mxu0
        %1586 = vmatpush.msra.mxu0 0.0
        %1587 = vmatpush.msra.mxu0 0.0
        %1588 = vmatpush.msra.mxu0 0.0
        %1589 = vmatpush.msra.mxu0 0.0
        %1590 = vmatpush.msra.mxu0 0.0
        %1591 = vmatpush.msra.mxu0 0.0
        %1592 = vmatpush.msra.mxu0 0.0
        %1593 = vmatpush.msra.mxu0 0.0
        %1594 = vmatpush.msra.mxu0 0.0
        %1595 = vmatpush.msra.mxu0 0.0
        %1596 = vmatpush.msra.mxu0 0.0
        %1597 = vmatpush.msra.mxu0 0.0
        %1598 = vmatpush.msra.mxu0 %v1124
        %1599 = vmatpush.msra.mxu0 %v1123
        %1600 = vmatpush.msra.mxu0 %v1122
        %1601 = vmatpush.msra.mxu0 %v1121
        %1602 = vmatmul.f32.gmra.mxu0 %v1409
        %v1603 = vpop.f32.mrf.mxu0
        %v1604 = vadd.f32 0.0, %v1603
        %1605 = vdwg.mxu0
        %1606 = vmatpush.msra.mxu0 0.0
        %1607 = vmatpush.msra.mxu0 0.0
        %1608 = vmatpush.msra.mxu0 0.0
        %1609 = vmatpush.msra.mxu0 0.0
        %1610 = vmatpush.msra.mxu0 0.0
        %1611 = vmatpush.msra.mxu0 0.0
        %1612 = vmatpush.msra.mxu0 0.0
        %1613 = vmatpush.msra.mxu0 0.0
        %1614 = vmatpush.msra.mxu0 0.0
        %1615 = vmatpush.msra.mxu0 0.0
        %1616 = vmatpush.msra.mxu0 0.0
        %1617 = vmatpush.msra.mxu0 0.0
        %1618 = vmatpush.msra.mxu0 %v1128
        %1619 = vmatpush.msra.mxu0 %v1127
        %1620 = vmatpush.msra.mxu0 %v1126
        %1621 = vmatpush.msra.mxu0 %v1125
        %1622 = vmatmul.f32.gmra.mxu0 %v1432
        %v1623 = vpop.f32.mrf.mxu0
        %v1624 = vadd.f32 0.0, %v1623
        %1625 = vdwg.mxu0
        %1626 = vmatpush.msra.mxu0 0.0
        %1627 = vmatpush.msra.mxu0 0.0
        %1628 = vmatpush.msra.mxu0 0.0
        %1629 = vmatpush.msra.mxu0 0.0
        %1630 = vmatpush.msra.mxu0 0.0
        %1631 = vmatpush.msra.mxu0 0.0
        %1632 = vmatpush.msra.mxu0 0.0
        %1633 = vmatpush.msra.mxu0 0.0
        %1634 = vmatpush.msra.mxu0 0.0
        %1635 = vmatpush.msra.mxu0 0.0
        %1636 = vmatpush.msra.mxu0 0.0
        %1637 = vmatpush.msra.mxu0 0.0
        %1638 = vmatpush.msra.mxu0 %v1132
        %1639 = vmatpush.msra.mxu0 %v1131
        %1640 = vmatpush.msra.mxu0 %v1130
        %1641 = vmatpush.msra.mxu0 %v1129
        %1642 = vmatmul.f32.gmra.mxu0 %v1455
        %v1643 = vpop.f32.mrf.mxu0
        %v1644 = vadd.f32 0.0, %v1643
        %1645 = vdwg.mxu0
        %1646 = vmatpush.msra.mxu0 0.0
        %1647 = vmatpush.msra.mxu0 0.0
        %1648 = vmatpush.msra.mxu0 0.0
        %1649 = vmatpush.msra.mxu0 0.0
        %1650 = vmatpush.msra.mxu0 0.0
        %1651 = vmatpush.msra.mxu0 0.0
        %1652 = vmatpush.msra.mxu0 0.0
        %1653 = vmatpush.msra.mxu0 0.0
        %1654 = vmatpush.msra.mxu0 0.0
        %1655 = vmatpush.msra.mxu0 0.0
        %1656 = vmatpush.msra.mxu0 0.0
        %1657 = vmatpush.msra.mxu0 0.0
        %1658 = vmatpush.msra.mxu0 %v1136
        %1659 = vmatpush.msra.mxu0 %v1135
        %1660 = vmatpush.msra.mxu0 %v1134
        %1661 = vmatpush.msra.mxu0 %v1133
        %1662 = vmatmul.f32.gmra.mxu0 %v1478
        %v1663 = vpop.f32.mrf.mxu0
        %v1664 = vadd.f32 0.0, %v1663
        %1665 = vdwg.mxu0
        %1666 = vmatpush.msra.mxu0 0.0
        %1667 = vmatpush.msra.mxu0 0.0
        %1668 = vmatpush.msra.mxu0 0.0
        %1669 = vmatpush.msra.mxu0 0.0
        %1670 = vmatpush.msra.mxu0 0.0
        %1671 = vmatpush.msra.mxu0 0.0
        %1672 = vmatpush.msra.mxu0 0.0
        %1673 = vmatpush.msra.mxu0 0.0
        %1674 = vmatpush.msra.mxu0 0.0
        %1675 = vmatpush.msra.mxu0 0.0
        %1676 = vmatpush.msra.mxu0 0.0
        %1677 = vmatpush.msra.mxu0 0.0
        %1678 = vmatpush.msra.mxu0 %v1140
        %1679 = vmatpush.msra.mxu0 %v1139
        %1680 = vmatpush.msra.mxu0 %v1138
        %1681 = vmatpush.msra.mxu0 %v1137
        %1682 = vmatmul.f32.gmra.mxu0 %v1501
        %v1683 = vpop.f32.mrf.mxu0
        %v1684 = vadd.f32 0.0, %v1683
        %1685 = vdwg.mxu0
        %1686 = vmatpush.msra.mxu0 0.0
        %1687 = vmatpush.msra.mxu0 0.0
        %1688 = vmatpush.msra.mxu0 0.0
        %1689 = vmatpush.msra.mxu0 0.0
        %1690 = vmatpush.msra.mxu0 0.0
        %1691 = vmatpush.msra.mxu0 0.0
        %1692 = vmatpush.msra.mxu0 0.0
        %1693 = vmatpush.msra.mxu0 0.0
        %1694 = vmatpush.msra.mxu0 0.0
        %1695 = vmatpush.msra.mxu0 0.0
        %1696 = vmatpush.msra.mxu0 0.0
        %1697 = vmatpush.msra.mxu0 0.0
        %1698 = vmatpush.msra.mxu0 %v1144
        %1699 = vmatpush.msra.mxu0 %v1143
        %1700 = vmatpush.msra.mxu0 %v1142
        %1701 = vmatpush.msra.mxu0 %v1141
        %1702 = vmatmul.f32.gmra.mxu0 %v1524
        %v1703 = vpop.f32.mrf.mxu0
        %v1704 = vadd.f32 0.0, %v1703
        %1705 = vdwg.mxu0
        %v1706 = vsub.f32 %v1199, %v1383
        %v1707 = vsub.f32 %v1222, %v1406
        %v1708 = vsub.f32 %v1245, %v1429
        %v1709 = vsub.f32 %v1268, %v1452
        %v1710 = vsub.f32 %v1291, %v1475
        %v1711 = vsub.f32 %v1314, %v1498
        %v1712 = vsub.f32 %v1337, %v1521
        %v1713 = vsub.f32 %v1360, %v1544
        %1714 = vmatpush.msra.mxu0 0.0
        %1715 = vmatpush.msra.mxu0 0.0
        %1716 = vmatpush.msra.mxu0 0.0
        %1717 = vmatpush.msra.mxu0 0.0
        %1718 = vmatpush.msra.mxu0 0.0
        %1719 = vmatpush.msra.mxu0 0.0
        %1720 = vmatpush.msra.mxu0 0.0
        %1721 = vmatpush.msra.mxu0 0.0
        %1722 = vmatpush.msra.mxu0 0.0
        %1723 = vmatpush.msra.mxu0 0.0
        %1724 = vmatpush.msra.mxu0 0.0
        %1725 = vmatpush.msra.mxu0 0.0
        %1726 = vmatpush.msra.mxu0 %v1148
        %1727 = vmatpush.msra.mxu0 %v1147
        %1728 = vmatpush.msra.mxu0 %v1146
        %1729 = vmatpush.msra.mxu0 %v1145
        %1730 = vmatmul.f32.gmra.mxu0 %v1179
        %v1731 = vpop.f32.mrf.mxu0
        %v1732 = vadd.f32 %v1564, %v1731
        %1733 = vdwg.mxu0
        %1734 = vmatpush.msra.mxu0 0.0
        %1735 = vmatpush.msra.mxu0 0.0
        %1736 = vmatpush.msra.mxu0 0.0
        %1737 = vmatpush.msra.mxu0 0.0
        %1738 = vmatpush.msra.mxu0 0.0
        %1739 = vmatpush.msra.mxu0 0.0
        %1740 = vmatpush.msra.mxu0 0.0
        %1741 = vmatpush.msra.mxu0 0.0
        %1742 = vmatpush.msra.mxu0 0.0
        %1743 = vmatpush.msra.mxu0 0.0
        %1744 = vmatpush.msra.mxu0 0.0
        %1745 = vmatpush.msra.mxu0 0.0
        %1746 = vmatpush.msra.mxu0 %v1152
        %1747 = vmatpush.msra.mxu0 %v1151
        %1748 = vmatpush.msra.mxu0 %v1150
        %1749 = vmatpush.msra.mxu0 %v1149
        %1750 = vmatmul.f32.gmra.mxu0 %v1202
        %v1751 = vpop.f32.mrf.mxu0
        %v1752 = vadd.f32 %v1584, %v1751
        %1753 = vdwg.mxu0
        %1754 = vmatpush.msra.mxu0 0.0
        %1755 = vmatpush.msra.mxu0 0.0
        %1756 = vmatpush.msra.mxu0 0.0
        %1757 = vmatpush.msra.mxu0 0.0
        %1758 = vmatpush.msra.mxu0 0.0
        %1759 = vmatpush.msra.mxu0 0.0
        %1760 = vmatpush.msra.mxu0 0.0
        %1761 = vmatpush.msra.mxu0 0.0
        %1762 = vmatpush.msra.mxu0 0.0
        %1763 = vmatpush.msra.mxu0 0.0
        %1764 = vmatpush.msra.mxu0 0.0
        %1765 = vmatpush.msra.mxu0 0.0
        %1766 = vmatpush.msra.mxu0 %v1156
        %1767 = vmatpush.msra.mxu0 %v1155
        %1768 = vmatpush.msra.mxu0 %v1154
        %1769 = vmatpush.msra.mxu0 %v1153
        %1770 = vmatmul.f32.gmra.mxu0 %v1225
        %v1771 = vpop.f32.mrf.mxu0
        %v1772 = vadd.f32 %v1604, %v1771
        %1773 = vdwg.mxu0
        %1774 = vmatpush.msra.mxu0 0.0
        %1775 = vmatpush.msra.mxu0 0.0
        %1776 = vmatpush.msra.mxu0 0.0
        %1777 = vmatpush.msra.mxu0 0.0
        %1778 = vmatpush.msra.mxu0 0.0
        %1779 = vmatpush.msra.mxu0 0.0
        %1780 = vmatpush.msra.mxu0 0.0
        %1781 = vmatpush.msra.mxu0 0.0
        %1782 = vmatpush.msra.mxu0 0.0
        %1783 = vmatpush.msra.mxu0 0.0
        %1784 = vmatpush.msra.mxu0 0.0
        %1785 = vmatpush.msra.mxu0 0.0
        %1786 = vmatpush.msra.mxu0 %v1160
        %1787 = vmatpush.msra.mxu0 %v1159
        %1788 = vmatpush.msra.mxu0 %v1158
        %1789 = vmatpush.msra.mxu0 %v1157
        %1790 = vmatmul.f32.gmra.mxu0 %v1248
        %v1791 = vpop.f32.mrf.mxu0
        %v1792 = vadd.f32 %v1624, %v1791
        %1793 = vdwg.mxu0
        %1794 = vmatpush.msra.mxu0 0.0
        %1795 = vmatpush.msra.mxu0 0.0
        %1796 = vmatpush.msra.mxu0 0.0
        %1797 = vmatpush.msra.mxu0 0.0
        %1798 = vmatpush.msra.mxu0 0.0
        %1799 = vmatpush.msra.mxu0 0.0
        %1800 = vmatpush.msra.mxu0 0.0
        %1801 = vmatpush.msra.mxu0 0.0
        %1802 = vmatpush.msra.mxu0 0.0
        %1803 = vmatpush.msra.mxu0 0.0
        %1804 = vmatpush.msra.mxu0 0.0
        %1805 = vmatpush.msra.mxu0 0.0
        %1806 = vmatpush.msra.mxu0 %v1164
        %1807 = vmatpush.msra.mxu0 %v1163
        %1808 = vmatpush.msra.mxu0 %v1162
        %1809 = vmatpush.msra.mxu0 %v1161
        %1810 = vmatmul.f32.gmra.mxu0 %v1271
        %v1811 = vpop.f32.mrf.mxu0
        %v1812 = vadd.f32 %v1644, %v1811
        %1813 = vdwg.mxu0
        %1814 = vmatpush.msra.mxu0 0.0
        %1815 = vmatpush.msra.mxu0 0.0
        %1816 = vmatpush.msra.mxu0 0.0
        %1817 = vmatpush.msra.mxu0 0.0
        %1818 = vmatpush.msra.mxu0 0.0
        %1819 = vmatpush.msra.mxu0 0.0
        %1820 = vmatpush.msra.mxu0 0.0
        %1821 = vmatpush.msra.mxu0 0.0
        %1822 = vmatpush.msra.mxu0 0.0
        %1823 = vmatpush.msra.mxu0 0.0
        %1824 = vmatpush.msra.mxu0 0.0
        %1825 = vmatpush.msra.mxu0 0.0
        %1826 = vmatpush.msra.mxu0 %v1168
        %1827 = vmatpush.msra.mxu0 %v1167
        %1828 = vmatpush.msra.mxu0 %v1166
        %1829 = vmatpush.msra.mxu0 %v1165
        %1830 = vmatmul.f32.gmra.mxu0 %v1294
        %v1831 = vpop.f32.mrf.mxu0
        %v1832 = vadd.f32 %v1664, %v1831
        %1833 = vdwg.mxu0
        %1834 = vmatpush.msra.mxu0 0.0
        %1835 = vmatpush.msra.mxu0 0.0
        %1836 = vmatpush.msra.mxu0 0.0
        %1837 = vmatpush.msra.mxu0 0.0
        %1838 = vmatpush.msra.mxu0 0.0
        %1839 = vmatpush.msra.mxu0 0.0
        %1840 = vmatpush.msra.mxu0 0.0
        %1841 = vmatpush.msra.mxu0 0.0
        %1842 = vmatpush.msra.mxu0 0.0
        %1843 = vmatpush.msra.mxu0 0.0
        %1844 = vmatpush.msra.mxu0 0.0
        %1845 = vmatpush.msra.mxu0 0.0
        %1846 = vmatpush.msra.mxu0 %v1172
        %1847 = vmatpush.msra.mxu0 %v1171
        %1848 = vmatpush.msra.mxu0 %v1170
        %1849 = vmatpush.msra.mxu0 %v1169
        %1850 = vmatmul.f32.gmra.mxu0 %v1317
        %v1851 = vpop.f32.mrf.mxu0
        %v1852 = vadd.f32 %v1684, %v1851
        %1853 = vdwg.mxu0
        %1854 = vmatpush.msra.mxu0 0.0
        %1855 = vmatpush.msra.mxu0 0.0
        %1856 = vmatpush.msra.mxu0 0.0
        %1857 = vmatpush.msra.mxu0 0.0
        %1858 = vmatpush.msra.mxu0 0.0
        %1859 = vmatpush.msra.mxu0 0.0
        %1860 = vmatpush.msra.mxu0 0.0
        %1861 = vmatpush.msra.mxu0 0.0
        %1862 = vmatpush.msra.mxu0 0.0
        %1863 = vmatpush.msra.mxu0 0.0
        %1864 = vmatpush.msra.mxu0 0.0
        %1865 = vmatpush.msra.mxu0 0.0
        %1866 = vmatpush.msra.mxu0 %v1176
        %1867 = vmatpush.msra.mxu0 %v1175
        %1868 = vmatpush.msra.mxu0 %v1174
        %1869 = vmatpush.msra.mxu0 %v1173
        %1870 = vmatmul.f32.gmra.mxu0 %v1340
        %v1871 = vpop.f32.mrf.mxu0
        %v1872 = vadd.f32 %v1704, %v1871
        %1873 = vdwg.mxu0
        %v1890 = vrot.slane %v1707, 7
        %vm1891 = vcmask 1041409
        %v1892 = vsel %vm1891, %v1890, %v1706
        %v1893 = vrot.slane %v1708, 6
        %vm1894 = vcmask 1042434
        %v1895 = vsel %vm1894, %v1893, %v1892
        %v1896 = vrot.slane %v1709, 5
        %vm1897 = vcmask 1043459
        %v1898 = vsel %vm1897, %v1896, %v1895
        %v1899 = vrot.slane %v1710, 4
        %vm1900 = vcmask 1044484
        %v1901 = vsel %vm1900, %v1899, %v1898
        %v1902 = vrot.slane %v1711, 3
        %vm1903 = vcmask 1045509
        %v1904 = vsel %vm1903, %v1902, %v1901
        %v1905 = vrot.slane %v1712, 2
        %vm1906 = vcmask 1046534
        %v1907 = vsel %vm1906, %v1905, %v1904
        %v1908 = vrot.slane %v1713, 1
        %vm1909 = vcmask 1047559
        %v1910 = vsel %vm1909, %v1908, %v1907
        %v1911 = vrot.slane %v1752, 7
        %v1912 = vsel %vm1891, %v1911, %v1732
        %v1913 = vrot.slane %v1772, 6
        %v1914 = vsel %vm1894, %v1913, %v1912
        %v1915 = vrot.slane %v1792, 5
        %v1916 = vsel %vm1897, %v1915, %v1914
        %v1917 = vrot.slane %v1812, 4
        %v1918 = vsel %vm1900, %v1917, %v1916
        %v1919 = vrot.slane %v1832, 3
        %v1920 = vsel %vm1903, %v1919, %v1918
        %v1921 = vrot.slane %v1852, 2
        %v1922 = vsel %vm1906, %v1921, %v1920
        %v1923 = vrot.slane %v1872, 1
        %v1924 = vsel %vm1909, %v1923, %v1922
        %1927 = vxpose.xlu0.b32.start [1/16] %v1910, 128
        %1928 = vxpose.xlu0.b32.cont [2/16] %v1924, 128
        %1929 = vxpose.xlu0.b32.cont [3/16] 0.0, 128
        %1930 = vxpose.xlu0.b32.cont [4/16] 0.0, 128
        %1931 = vxpose.xlu0.b32.cont [5/16] 0.0, 128
        %1932 = vxpose.xlu0.b32.cont [6/16] 0.0, 128
        %1933 = vxpose.xlu0.b32.cont [7/16] 0.0, 128
        %1934 = vxpose.xlu0.b32.cont [8/16] 0.0, 128
        %1935 = vxpose.xlu0.b32.cont [9/16] 0.0, 128
        %1936 = vxpose.xlu0.b32.cont [10/16] 0.0, 128
        %1937 = vxpose.xlu0.b32.cont [11/16] 0.0, 128
        %1938 = vxpose.xlu0.b32.cont [12/16] 0.0, 128
        %1939 = vxpose.xlu0.b32.cont [13/16] 0.0, 128
        %1940 = vxpose.xlu0.b32.cont [14/16] 0.0, 128
        %1941 = vxpose.xlu0.b32.cont [15/16] 0.0, 128
        %1942 = vxpose.xlu0.b32.end [16/16] 0.0, 128
        %v1943 = vpop.trf.xlu0
        %v1944 = vpop.trf.xlu0
        %v1945 = vpop.trf.xlu0
        %v1946 = vpop.trf.xlu0
        %v1947 = vpop.trf.xlu0
        %v1948 = vpop.trf.xlu0
        %v1949 = vpop.trf.xlu0
        %v1950 = vpop.trf.xlu0
        %v1951 = vpop.trf.xlu0
        %v1952 = vpop.trf.xlu0
        %v1953 = vpop.trf.xlu0
        %v1954 = vpop.trf.xlu0
        %v1955 = vpop.trf.xlu0
        %v1956 = vpop.trf.xlu0
        %v1957 = vpop.trf.xlu0
        %v1958 = vpop.trf.xlu0
        %v1959 = vrot.slane %v1706, 1
        %v1960 = vsel %vm1891, %v1707, %v1959
        %v1961 = vrot.slane %v1708, 7
        %v1962 = vsel %vm1894, %v1961, %v1960
        %v1963 = vrot.slane %v1709, 6
        %v1964 = vsel %vm1897, %v1963, %v1962
        %v1965 = vrot.slane %v1710, 5
        %v1966 = vsel %vm1900, %v1965, %v1964
        %v1967 = vrot.slane %v1711, 4
        %v1968 = vsel %vm1903, %v1967, %v1966
        %v1969 = vrot.slane %v1712, 3
        %v1970 = vsel %vm1906, %v1969, %v1968
        %v1971 = vrot.slane %v1713, 2
        %v1972 = vsel %vm1909, %v1971, %v1970
        %v1973 = vrot.slane %v1732, 1
        %v1974 = vsel %vm1891, %v1752, %v1973
        %v1975 = vrot.slane %v1772, 7
        %v1976 = vsel %vm1894, %v1975, %v1974
        %v1977 = vrot.slane %v1792, 6
        %v1978 = vsel %vm1897, %v1977, %v1976
        %v1979 = vrot.slane %v1812, 5
        %v1980 = vsel %vm1900, %v1979, %v1978
        %v1981 = vrot.slane %v1832, 4
        %v1982 = vsel %vm1903, %v1981, %v1980
        %v1983 = vrot.slane %v1852, 3
        %v1984 = vsel %vm1906, %v1983, %v1982
        %v1985 = vrot.slane %v1872, 2
        %v1986 = vsel %vm1909, %v1985, %v1984
        %1989 = vxpose.xlu0.b32.start [1/16] %v1972, 128
        %1990 = vxpose.xlu0.b32.cont [2/16] %v1986, 128
        %1991 = vxpose.xlu0.b32.cont [3/16] 0.0, 128
        %1992 = vxpose.xlu0.b32.cont [4/16] 0.0, 128
        %1993 = vxpose.xlu0.b32.cont [5/16] 0.0, 128
        %1994 = vxpose.xlu0.b32.cont [6/16] 0.0, 128
        %1995 = vxpose.xlu0.b32.cont [7/16] 0.0, 128
        %1996 = vxpose.xlu0.b32.cont [8/16] 0.0, 128
        %1997 = vxpose.xlu0.b32.cont [9/16] 0.0, 128
        %1998 = vxpose.xlu0.b32.cont [10/16] 0.0, 128
        %1999 = vxpose.xlu0.b32.cont [11/16] 0.0, 128
        %2000 = vxpose.xlu0.b32.cont [12/16] 0.0, 128
        %2001 = vxpose.xlu0.b32.cont [13/16] 0.0, 128
        %2002 = vxpose.xlu0.b32.cont [14/16] 0.0, 128
        %2003 = vxpose.xlu0.b32.cont [15/16] 0.0, 128
        %2004 = vxpose.xlu0.b32.end [16/16] 0.0, 128
        %v2005 = vpop.trf.xlu0
        %v2006 = vpop.trf.xlu0
        %v2007 = vpop.trf.xlu0
        %v2008 = vpop.trf.xlu0
        %v2009 = vpop.trf.xlu0
        %v2010 = vpop.trf.xlu0
        %v2011 = vpop.trf.xlu0
        %v2012 = vpop.trf.xlu0
        %v2013 = vpop.trf.xlu0
        %v2014 = vpop.trf.xlu0
        %v2015 = vpop.trf.xlu0
        %v2016 = vpop.trf.xlu0
        %v2017 = vpop.trf.xlu0
        %v2018 = vpop.trf.xlu0
        %v2019 = vpop.trf.xlu0
        %v2020 = vpop.trf.xlu0
        %v2021 = vld [vmem:[%s2] sm:$0xff]
        %v2022 = vld [vmem:[%s2 + $0x8] sm:$0xff]
        %v2024 = vsel %vm553, %v1943, 0
        %v2027 = vsel %vm553, %v1944, 0
        %v2030 = vsel %vm553, %v1945, 0
        %v2033 = vsel %vm553, %v1946, 0
        %v2036 = vsel %vm553, %v2005, 0
        %v2039 = vsel %vm553, %v2006, 0
        %v2042 = vsel %vm553, %v2007, 0
        %v2045 = vsel %vm553, %v2008, 0
        %2047 = vmatpush.msra.mxu0 0.0
        %2048 = vmatpush.msra.mxu0 0.0
        %2049 = vmatpush.msra.mxu0 0.0
        %2050 = vmatpush.msra.mxu0 0.0
        %2051 = vmatpush.msra.mxu0 0.0
        %2052 = vmatpush.msra.mxu0 0.0
        %2053 = vmatpush.msra.mxu0 0.0
        %2054 = vmatpush.msra.mxu0 0.0
        %2055 = vmatpush.msra.mxu0 0.0
        %2056 = vmatpush.msra.mxu0 0.0
        %2057 = vmatpush.msra.mxu0 0.0
        %2058 = vmatpush.msra.mxu0 0.0
        %2059 = vmatpush.msra.mxu0 0.0
        %2060 = vmatpush.msra.mxu0 0.0
        %v2061 = vand.u32 %v2022, 4294901760
        %2062 = vmatpush.msra.mxu0 %v2061
        %v2063 = vand.u32 %v2021, 4294901760
        %2064 = vmatpush.msra.mxu0 %v2063
        %v2065 = vand.u32 %v2024, 4294901760
        %v2066 = vsub.f32 %v2024, %v2065
        %v2067 = vand.u32 %v2066, 4294901760
        %v2068 = vsub.f32 %v2066, %v2067
        %v2069 = vand.u32 %v2068, 4294901760
        %2070 = vmatmul.f32.gmra.mxu0 %v2069
        %v2071 = vpop.f32.mrf.mxu0
        %v2072 = vadd.f32 0.0, %v2071
        %v2073 = vand.u32 %v2027, 4294901760
        %v2074 = vsub.f32 %v2027, %v2073
        %v2075 = vand.u32 %v2074, 4294901760
        %v2076 = vsub.f32 %v2074, %v2075
        %v2077 = vand.u32 %v2076, 4294901760
        %2078 = vmatmul.f32.gmra.mxu0 %v2077
        %v2079 = vpop.f32.mrf.mxu0
        %v2080 = vadd.f32 0.0, %v2079
        %v2081 = vand.u32 %v2030, 4294901760
        %v2082 = vsub.f32 %v2030, %v2081
        %v2083 = vand.u32 %v2082, 4294901760
        %v2084 = vsub.f32 %v2082, %v2083
        %v2085 = vand.u32 %v2084, 4294901760
        %2086 = vmatmul.f32.gmra.mxu0 %v2085
        %v2087 = vpop.f32.mrf.mxu0
        %v2088 = vadd.f32 0.0, %v2087
        %v2089 = vand.u32 %v2033, 4294901760
        %v2090 = vsub.f32 %v2033, %v2089
        %v2091 = vand.u32 %v2090, 4294901760
        %v2092 = vsub.f32 %v2090, %v2091
        %v2093 = vand.u32 %v2092, 4294901760
        %2094 = vmatmul.f32.gmra.mxu0 %v2093
        %v2095 = vpop.f32.mrf.mxu0
        %v2096 = vadd.f32 0.0, %v2095
        %v2097 = vand.u32 %v2036, 4294901760
        %v2098 = vsub.f32 %v2036, %v2097
        %v2099 = vand.u32 %v2098, 4294901760
        %v2100 = vsub.f32 %v2098, %v2099
        %v2101 = vand.u32 %v2100, 4294901760
        %2102 = vmatmul.f32.gmra.mxu0 %v2101
        %v2103 = vpop.f32.mrf.mxu0
        %v2104 = vadd.f32 0.0, %v2103
        %v2105 = vand.u32 %v2039, 4294901760
        %v2106 = vsub.f32 %v2039, %v2105
        %v2107 = vand.u32 %v2106, 4294901760
        %v2108 = vsub.f32 %v2106, %v2107
        %v2109 = vand.u32 %v2108, 4294901760
        %2110 = vmatmul.f32.gmra.mxu0 %v2109
        %v2111 = vpop.f32.mrf.mxu0
        %v2112 = vadd.f32 0.0, %v2111
        %v2113 = vand.u32 %v2042, 4294901760
        %v2114 = vsub.f32 %v2042, %v2113
        %v2115 = vand.u32 %v2114, 4294901760
        %v2116 = vsub.f32 %v2114, %v2115
        %v2117 = vand.u32 %v2116, 4294901760
        %2118 = vmatmul.f32.gmra.mxu0 %v2117
        %v2119 = vpop.f32.mrf.mxu0
        %v2120 = vadd.f32 0.0, %v2119
        %v2121 = vand.u32 %v2045, 4294901760
        %v2122 = vsub.f32 %v2045, %v2121
        %v2123 = vand.u32 %v2122, 4294901760
        %v2124 = vsub.f32 %v2122, %v2123
        %v2125 = vand.u32 %v2124, 4294901760
        %2126 = vmatmul.f32.gmra.mxu0 %v2125
        %v2127 = vpop.f32.mrf.mxu0
        %v2128 = vadd.f32 0.0, %v2127
        %2129 = vdwg.mxu0
        %2130 = vmatpush.msra.mxu0 0.0
        %2131 = vmatpush.msra.mxu0 0.0
        %2132 = vmatpush.msra.mxu0 0.0
        %2133 = vmatpush.msra.mxu0 0.0
        %2134 = vmatpush.msra.mxu0 0.0
        %2135 = vmatpush.msra.mxu0 0.0
        %2136 = vmatpush.msra.mxu0 0.0
        %2137 = vmatpush.msra.mxu0 0.0
        %2138 = vmatpush.msra.mxu0 0.0
        %2139 = vmatpush.msra.mxu0 0.0
        %2140 = vmatpush.msra.mxu0 0.0
        %2141 = vmatpush.msra.mxu0 0.0
        %2142 = vmatpush.msra.mxu0 0.0
        %2143 = vmatpush.msra.mxu0 0.0
        %v2144 = vand.u32 %v2022, 4294901760
        %v2145 = vsub.f32 %v2022, %v2144
        %v2146 = vand.u32 %v2145, 4294901760
        %v2147 = vsub.f32 %v2145, %v2146
        %v2148 = vand.u32 %v2147, 4294901760
        %2149 = vmatpush.msra.mxu0 %v2148
        %v2150 = vand.u32 %v2021, 4294901760
        %v2151 = vsub.f32 %v2021, %v2150
        %v2152 = vand.u32 %v2151, 4294901760
        %v2153 = vsub.f32 %v2151, %v2152
        %v2154 = vand.u32 %v2153, 4294901760
        %2155 = vmatpush.msra.mxu0 %v2154
        %v2156 = vand.u32 %v2024, 4294901760
        %2157 = vmatmul.f32.gmra.mxu0 %v2156
        %v2158 = vpop.f32.mrf.mxu0
        %v2159 = vadd.f32 %v2072, %v2158
        %v2160 = vand.u32 %v2027, 4294901760
        %2161 = vmatmul.f32.gmra.mxu0 %v2160
        %v2162 = vpop.f32.mrf.mxu0
        %v2163 = vadd.f32 %v2080, %v2162
        %v2164 = vand.u32 %v2030, 4294901760
        %2165 = vmatmul.f32.gmra.mxu0 %v2164
        %v2166 = vpop.f32.mrf.mxu0
        %v2167 = vadd.f32 %v2088, %v2166
        %v2168 = vand.u32 %v2033, 4294901760
        %2169 = vmatmul.f32.gmra.mxu0 %v2168
        %v2170 = vpop.f32.mrf.mxu0
        %v2171 = vadd.f32 %v2096, %v2170
        %v2172 = vand.u32 %v2036, 4294901760
        %2173 = vmatmul.f32.gmra.mxu0 %v2172
        %v2174 = vpop.f32.mrf.mxu0
        %v2175 = vadd.f32 %v2104, %v2174
        %v2176 = vand.u32 %v2039, 4294901760
        %2177 = vmatmul.f32.gmra.mxu0 %v2176
        %v2178 = vpop.f32.mrf.mxu0
        %v2179 = vadd.f32 %v2112, %v2178
        %v2180 = vand.u32 %v2042, 4294901760
        %2181 = vmatmul.f32.gmra.mxu0 %v2180
        %v2182 = vpop.f32.mrf.mxu0
        %v2183 = vadd.f32 %v2120, %v2182
        %v2184 = vand.u32 %v2045, 4294901760
        %2185 = vmatmul.f32.gmra.mxu0 %v2184
        %v2186 = vpop.f32.mrf.mxu0
        %v2187 = vadd.f32 %v2128, %v2186
        %2188 = vdwg.mxu0
        %2189 = vmatpush.msra.mxu0 0.0
        %2190 = vmatpush.msra.mxu0 0.0
        %2191 = vmatpush.msra.mxu0 0.0
        %2192 = vmatpush.msra.mxu0 0.0
        %2193 = vmatpush.msra.mxu0 0.0
        %2194 = vmatpush.msra.mxu0 0.0
        %2195 = vmatpush.msra.mxu0 0.0
        %2196 = vmatpush.msra.mxu0 0.0
        %2197 = vmatpush.msra.mxu0 0.0
        %2198 = vmatpush.msra.mxu0 0.0
        %2199 = vmatpush.msra.mxu0 0.0
        %2200 = vmatpush.msra.mxu0 0.0
        %2201 = vmatpush.msra.mxu0 0.0
        %2202 = vmatpush.msra.mxu0 0.0
        %v2203 = vand.u32 %v2022, 4294901760
        %v2204 = vsub.f32 %v2022, %v2203
        %2205 = vmatpush.msra.mxu0 %v2204
        %v2206 = vand.u32 %v2021, 4294901760
        %v2207 = vsub.f32 %v2021, %v2206
        %2208 = vmatpush.msra.mxu0 %v2207
        %v2209 = vand.u32 %v2024, 4294901760
        %v2210 = vsub.f32 %v2024, %v2209
        %2211 = vmatmul.f32.gmra.mxu0 %v2210
        %v2212 = vpop.f32.mrf.mxu0
        %v2213 = vadd.f32 %v2159, %v2212
        %v2214 = vand.u32 %v2027, 4294901760
        %v2215 = vsub.f32 %v2027, %v2214
        %2216 = vmatmul.f32.gmra.mxu0 %v2215
        %v2217 = vpop.f32.mrf.mxu0
        %v2218 = vadd.f32 %v2163, %v2217
        %v2219 = vand.u32 %v2030, 4294901760
        %v2220 = vsub.f32 %v2030, %v2219
        %2221 = vmatmul.f32.gmra.mxu0 %v2220
        %v2222 = vpop.f32.mrf.mxu0
        %v2223 = vadd.f32 %v2167, %v2222
        %v2224 = vand.u32 %v2033, 4294901760
        %v2225 = vsub.f32 %v2033, %v2224
        %2226 = vmatmul.f32.gmra.mxu0 %v2225
        %v2227 = vpop.f32.mrf.mxu0
        %v2228 = vadd.f32 %v2171, %v2227
        %v2229 = vand.u32 %v2036, 4294901760
        %v2230 = vsub.f32 %v2036, %v2229
        %2231 = vmatmul.f32.gmra.mxu0 %v2230
        %v2232 = vpop.f32.mrf.mxu0
        %v2233 = vadd.f32 %v2175, %v2232
        %v2234 = vand.u32 %v2039, 4294901760
        %v2235 = vsub.f32 %v2039, %v2234
        %2236 = vmatmul.f32.gmra.mxu0 %v2235
        %v2237 = vpop.f32.mrf.mxu0
        %v2238 = vadd.f32 %v2179, %v2237
        %v2239 = vand.u32 %v2042, 4294901760
        %v2240 = vsub.f32 %v2042, %v2239
        %2241 = vmatmul.f32.gmra.mxu0 %v2240
        %v2242 = vpop.f32.mrf.mxu0
        %v2243 = vadd.f32 %v2183, %v2242
        %v2244 = vand.u32 %v2045, 4294901760
        %v2245 = vsub.f32 %v2045, %v2244
        %2246 = vmatmul.f32.gmra.mxu0 %v2245
        %v2247 = vpop.f32.mrf.mxu0
        %v2248 = vadd.f32 %v2187, %v2247
        %2249 = vdwg.mxu0
        %2250 = vmatpush.msra.mxu0 0.0
        %2251 = vmatpush.msra.mxu0 0.0
        %2252 = vmatpush.msra.mxu0 0.0
        %2253 = vmatpush.msra.mxu0 0.0
        %2254 = vmatpush.msra.mxu0 0.0
        %2255 = vmatpush.msra.mxu0 0.0
        %2256 = vmatpush.msra.mxu0 0.0
        %2257 = vmatpush.msra.mxu0 0.0
        %2258 = vmatpush.msra.mxu0 0.0
        %2259 = vmatpush.msra.mxu0 0.0
        %2260 = vmatpush.msra.mxu0 0.0
        %2261 = vmatpush.msra.mxu0 0.0
        %2262 = vmatpush.msra.mxu0 0.0
        %2263 = vmatpush.msra.mxu0 0.0
        %v2264 = vand.u32 %v2022, 4294901760
        %2265 = vmatpush.msra.mxu0 %v2264
        %v2266 = vand.u32 %v2021, 4294901760
        %2267 = vmatpush.msra.mxu0 %v2266
        %v2268 = vand.u32 %v2024, 4294901760
        %v2269 = vsub.f32 %v2024, %v2268
        %v2270 = vand.u32 %v2269, 4294901760
        %2271 = vmatmul.f32.gmra.mxu0 %v2270
        %v2272 = vpop.f32.mrf.mxu0
        %v2273 = vadd.f32 %v2213, %v2272
        %v2274 = vand.u32 %v2027, 4294901760
        %v2275 = vsub.f32 %v2027, %v2274
        %v2276 = vand.u32 %v2275, 4294901760
        %2277 = vmatmul.f32.gmra.mxu0 %v2276
        %v2278 = vpop.f32.mrf.mxu0
        %v2279 = vadd.f32 %v2218, %v2278
        %v2280 = vand.u32 %v2030, 4294901760
        %v2281 = vsub.f32 %v2030, %v2280
        %v2282 = vand.u32 %v2281, 4294901760
        %2283 = vmatmul.f32.gmra.mxu0 %v2282
        %v2284 = vpop.f32.mrf.mxu0
        %v2285 = vadd.f32 %v2223, %v2284
        %v2286 = vand.u32 %v2033, 4294901760
        %v2287 = vsub.f32 %v2033, %v2286
        %v2288 = vand.u32 %v2287, 4294901760
        %2289 = vmatmul.f32.gmra.mxu0 %v2288
        %v2290 = vpop.f32.mrf.mxu0
        %v2291 = vadd.f32 %v2228, %v2290
        %v2292 = vand.u32 %v2036, 4294901760
        %v2293 = vsub.f32 %v2036, %v2292
        %v2294 = vand.u32 %v2293, 4294901760
        %2295 = vmatmul.f32.gmra.mxu0 %v2294
        %v2296 = vpop.f32.mrf.mxu0
        %v2297 = vadd.f32 %v2233, %v2296
        %v2298 = vand.u32 %v2039, 4294901760
        %v2299 = vsub.f32 %v2039, %v2298
        %v2300 = vand.u32 %v2299, 4294901760
        %2301 = vmatmul.f32.gmra.mxu0 %v2300
        %v2302 = vpop.f32.mrf.mxu0
        %v2303 = vadd.f32 %v2238, %v2302
        %v2304 = vand.u32 %v2042, 4294901760
        %v2305 = vsub.f32 %v2042, %v2304
        %v2306 = vand.u32 %v2305, 4294901760
        %2307 = vmatmul.f32.gmra.mxu0 %v2306
        %v2308 = vpop.f32.mrf.mxu0
        %v2309 = vadd.f32 %v2243, %v2308
        %v2310 = vand.u32 %v2045, 4294901760
        %v2311 = vsub.f32 %v2045, %v2310
        %v2312 = vand.u32 %v2311, 4294901760
        %2313 = vmatmul.f32.gmra.mxu0 %v2312
        %v2314 = vpop.f32.mrf.mxu0
        %v2315 = vadd.f32 %v2248, %v2314
        %2316 = vdwg.mxu0
        %2317 = vmatpush.msra.mxu0 0.0
        %2318 = vmatpush.msra.mxu0 0.0
        %2319 = vmatpush.msra.mxu0 0.0
        %2320 = vmatpush.msra.mxu0 0.0
        %2321 = vmatpush.msra.mxu0 0.0
        %2322 = vmatpush.msra.mxu0 0.0
        %2323 = vmatpush.msra.mxu0 0.0
        %2324 = vmatpush.msra.mxu0 0.0
        %2325 = vmatpush.msra.mxu0 0.0
        %2326 = vmatpush.msra.mxu0 0.0
        %2327 = vmatpush.msra.mxu0 0.0
        %2328 = vmatpush.msra.mxu0 0.0
        %2329 = vmatpush.msra.mxu0 0.0
        %2330 = vmatpush.msra.mxu0 0.0
        %v2331 = vand.u32 %v2022, 4294901760
        %v2332 = vsub.f32 %v2022, %v2331
        %v2333 = vand.u32 %v2332, 4294901760
        %2334 = vmatpush.msra.mxu0 %v2333
        %v2335 = vand.u32 %v2021, 4294901760
        %v2336 = vsub.f32 %v2021, %v2335
        %v2337 = vand.u32 %v2336, 4294901760
        %2338 = vmatpush.msra.mxu0 %v2337
        %v2339 = vand.u32 %v2024, 4294901760
        %2340 = vmatmul.f32.gmra.mxu0 %v2339
        %v2341 = vpop.f32.mrf.mxu0
        %v2342 = vadd.f32 %v2273, %v2341
        %v2343 = vand.u32 %v2027, 4294901760
        %2344 = vmatmul.f32.gmra.mxu0 %v2343
        %v2345 = vpop.f32.mrf.mxu0
        %v2346 = vadd.f32 %v2279, %v2345
        %v2347 = vand.u32 %v2030, 4294901760
        %2348 = vmatmul.f32.gmra.mxu0 %v2347
        %v2349 = vpop.f32.mrf.mxu0
        %v2350 = vadd.f32 %v2285, %v2349
        %v2351 = vand.u32 %v2033, 4294901760
        %2352 = vmatmul.f32.gmra.mxu0 %v2351
        %v2353 = vpop.f32.mrf.mxu0
        %v2354 = vadd.f32 %v2291, %v2353
        %v2355 = vand.u32 %v2036, 4294901760
        %2356 = vmatmul.f32.gmra.mxu0 %v2355
        %v2357 = vpop.f32.mrf.mxu0
        %v2358 = vadd.f32 %v2297, %v2357
        %v2359 = vand.u32 %v2039, 4294901760
        %2360 = vmatmul.f32.gmra.mxu0 %v2359
        %v2361 = vpop.f32.mrf.mxu0
        %v2362 = vadd.f32 %v2303, %v2361
        %v2363 = vand.u32 %v2042, 4294901760
        %2364 = vmatmul.f32.gmra.mxu0 %v2363
        %v2365 = vpop.f32.mrf.mxu0
        %v2366 = vadd.f32 %v2309, %v2365
        %v2367 = vand.u32 %v2045, 4294901760
        %2368 = vmatmul.f32.gmra.mxu0 %v2367
        %v2369 = vpop.f32.mrf.mxu0
        %v2370 = vadd.f32 %v2315, %v2369
        %2371 = vdwg.mxu0
        %2372 = vmatpush.msra.mxu0 0.0
        %2373 = vmatpush.msra.mxu0 0.0
        %2374 = vmatpush.msra.mxu0 0.0
        %2375 = vmatpush.msra.mxu0 0.0
        %2376 = vmatpush.msra.mxu0 0.0
        %2377 = vmatpush.msra.mxu0 0.0
        %2378 = vmatpush.msra.mxu0 0.0
        %2379 = vmatpush.msra.mxu0 0.0
        %2380 = vmatpush.msra.mxu0 0.0
        %2381 = vmatpush.msra.mxu0 0.0
        %2382 = vmatpush.msra.mxu0 0.0
        %2383 = vmatpush.msra.mxu0 0.0
        %2384 = vmatpush.msra.mxu0 0.0
        %2385 = vmatpush.msra.mxu0 0.0
        %v2386 = vand.u32 %v2022, 4294901760
        %2387 = vmatpush.msra.mxu0 %v2386
        %v2388 = vand.u32 %v2021, 4294901760
        %2389 = vmatpush.msra.mxu0 %v2388
        %v2390 = vand.u32 %v2024, 4294901760
        %2391 = vmatmul.f32.gmra.mxu0 %v2390
        %v2392 = vpop.f32.mrf.mxu0
        %v2393 = vadd.f32 %v2342, %v2392
        %v2394 = vand.u32 %v2027, 4294901760
        %2395 = vmatmul.f32.gmra.mxu0 %v2394
        %v2396 = vpop.f32.mrf.mxu0
        %v2397 = vadd.f32 %v2346, %v2396
        %v2398 = vand.u32 %v2030, 4294901760
        %2399 = vmatmul.f32.gmra.mxu0 %v2398
        %v2400 = vpop.f32.mrf.mxu0
        %v2401 = vadd.f32 %v2350, %v2400
        %v2402 = vand.u32 %v2033, 4294901760
        %2403 = vmatmul.f32.gmra.mxu0 %v2402
        %v2404 = vpop.f32.mrf.mxu0
        %v2405 = vadd.f32 %v2354, %v2404
        %v2406 = vand.u32 %v2036, 4294901760
        %2407 = vmatmul.f32.gmra.mxu0 %v2406
        %v2408 = vpop.f32.mrf.mxu0
        %v2409 = vadd.f32 %v2358, %v2408
        %v2410 = vand.u32 %v2039, 4294901760
        %2411 = vmatmul.f32.gmra.mxu0 %v2410
        %v2412 = vpop.f32.mrf.mxu0
        %v2413 = vadd.f32 %v2362, %v2412
        %v2414 = vand.u32 %v2042, 4294901760
        %2415 = vmatmul.f32.gmra.mxu0 %v2414
        %v2416 = vpop.f32.mrf.mxu0
        %v2417 = vadd.f32 %v2366, %v2416
        %v2418 = vand.u32 %v2045, 4294901760
        %2419 = vmatmul.f32.gmra.mxu0 %v2418
        %v2420 = vpop.f32.mrf.mxu0
        %v2421 = vadd.f32 %v2370, %v2420
        %2422 = vdwg.mxu0
        %v2423 = vld [vmem:[%s515] sm:$0xff]
        %v2424 = vld [vmem:[%s515 + $0x8] sm:$0xff]
        %v2425 = vld [vmem:[%s515 + $0x10] sm:$0xff]
        %v2426 = vld [vmem:[%s515 + $0x18] sm:$0xff]
        %v2427 = vld [vmem:[%s520] sm:$0xff]
        %v2428 = vld [vmem:[%s520 + $0x8] sm:$0xff]
        %v2429 = vld [vmem:[%s520 + $0x10] sm:$0xff]
        %v2430 = vld [vmem:[%s520 + $0x18] sm:$0xff]
        %2432 = vset.pattern.permute.xlu0 0
        %2433 = vperm.xlu0 %2432, %v2427
        %v2434 = vpop.permute.xlu0 %2433
        %2437 = vset.pattern.permute.xlu0 0
        %2438 = vperm.xlu0 %2437, %v2428
        %v2439 = vpop.permute.xlu0 %2438
        %2442 = vset.pattern.permute.xlu0 0
        %2443 = vperm.xlu0 %2442, %v2429
        %v2444 = vpop.permute.xlu0 %2443
        %2447 = vset.pattern.permute.xlu0 0
        %2448 = vperm.xlu0 %2447, %v2430
        %v2449 = vpop.permute.xlu0 %2448
        %v2452 = vsel %vm1177, %v2423, 0
        %v2455 = vsel %vm1177, %v2424, 0
        %v2458 = vsel %vm1177, %v2425, 0
        %v2461 = vsel %vm1177, %v2426, 0
        %2463 = vmatpush.msra.mxu0 0.0
        %2464 = vmatpush.msra.mxu0 0.0
        %2465 = vmatpush.msra.mxu0 0.0
        %2466 = vmatpush.msra.mxu0 0.0
        %2467 = vmatpush.msra.mxu0 0.0
        %2468 = vmatpush.msra.mxu0 0.0
        %2469 = vmatpush.msra.mxu0 0.0
        %2470 = vmatpush.msra.mxu0 0.0
        %2471 = vmatpush.msra.mxu0 0.0
        %2472 = vmatpush.msra.mxu0 0.0
        %2473 = vmatpush.msra.mxu0 0.0
        %2474 = vmatpush.msra.mxu0 0.0
        %v2475 = vand.u32 %v546, 4294901760
        %2476 = vmatpush.msra.mxu0 %v2475
        %v2477 = vand.u32 %v545, 4294901760
        %2478 = vmatpush.msra.mxu0 %v2477
        %v2479 = vand.u32 %v544, 4294901760
        %2480 = vmatpush.msra.mxu0 %v2479
        %v2481 = vand.u32 %v543, 4294901760
        %2482 = vmatpush.msra.mxu0 %v2481
        %v2483 = vand.u32 %v2452, 4294901760
        %v2484 = vsub.f32 %v2452, %v2483
        %v2485 = vand.u32 %v2484, 4294901760
        %v2486 = vsub.f32 %v2484, %v2485
        %v2487 = vand.u32 %v2486, 4294901760
        %2488 = vmatmul.f32.gmra.mxu0 %v2487
        %v2489 = vpop.f32.mrf.mxu0
        %v2490 = vadd.f32 %v2434, %v2489
        %v2491 = vand.u32 %v2455, 4294901760
        %v2492 = vsub.f32 %v2455, %v2491
        %v2493 = vand.u32 %v2492, 4294901760
        %v2494 = vsub.f32 %v2492, %v2493
        %v2495 = vand.u32 %v2494, 4294901760
        %2496 = vmatmul.f32.gmra.mxu0 %v2495
        %v2497 = vpop.f32.mrf.mxu0
        %v2498 = vadd.f32 %v2439, %v2497
        %v2499 = vand.u32 %v2458, 4294901760
        %v2500 = vsub.f32 %v2458, %v2499
        %v2501 = vand.u32 %v2500, 4294901760
        %v2502 = vsub.f32 %v2500, %v2501
        %v2503 = vand.u32 %v2502, 4294901760
        %2504 = vmatmul.f32.gmra.mxu0 %v2503
        %v2505 = vpop.f32.mrf.mxu0
        %v2506 = vadd.f32 %v2444, %v2505
        %v2507 = vand.u32 %v2461, 4294901760
        %v2508 = vsub.f32 %v2461, %v2507
        %v2509 = vand.u32 %v2508, 4294901760
        %v2510 = vsub.f32 %v2508, %v2509
        %v2511 = vand.u32 %v2510, 4294901760
        %2512 = vmatmul.f32.gmra.mxu0 %v2511
        %v2513 = vpop.f32.mrf.mxu0
        %v2514 = vadd.f32 %v2449, %v2513
        %2515 = vdwg.mxu0
        %2516 = vmatpush.msra.mxu0 0.0
        %2517 = vmatpush.msra.mxu0 0.0
        %2518 = vmatpush.msra.mxu0 0.0
        %2519 = vmatpush.msra.mxu0 0.0
        %2520 = vmatpush.msra.mxu0 0.0
        %2521 = vmatpush.msra.mxu0 0.0
        %2522 = vmatpush.msra.mxu0 0.0
        %2523 = vmatpush.msra.mxu0 0.0
        %2524 = vmatpush.msra.mxu0 0.0
        %2525 = vmatpush.msra.mxu0 0.0
        %2526 = vmatpush.msra.mxu0 0.0
        %2527 = vmatpush.msra.mxu0 0.0
        %v2528 = vand.u32 %v546, 4294901760
        %v2529 = vsub.f32 %v546, %v2528
        %v2530 = vand.u32 %v2529, 4294901760
        %v2531 = vsub.f32 %v2529, %v2530
        %v2532 = vand.u32 %v2531, 4294901760
        %2533 = vmatpush.msra.mxu0 %v2532
        %v2534 = vand.u32 %v545, 4294901760
        %v2535 = vsub.f32 %v545, %v2534
        %v2536 = vand.u32 %v2535, 4294901760
        %v2537 = vsub.f32 %v2535, %v2536
        %v2538 = vand.u32 %v2537, 4294901760
        %2539 = vmatpush.msra.mxu0 %v2538
        %v2540 = vand.u32 %v544, 4294901760
        %v2541 = vsub.f32 %v544, %v2540
        %v2542 = vand.u32 %v2541, 4294901760
        %v2543 = vsub.f32 %v2541, %v2542
        %v2544 = vand.u32 %v2543, 4294901760
        %2545 = vmatpush.msra.mxu0 %v2544
        %v2546 = vand.u32 %v543, 4294901760
        %v2547 = vsub.f32 %v543, %v2546
        %v2548 = vand.u32 %v2547, 4294901760
        %v2549 = vsub.f32 %v2547, %v2548
        %v2550 = vand.u32 %v2549, 4294901760
        %2551 = vmatpush.msra.mxu0 %v2550
        %v2552 = vand.u32 %v2452, 4294901760
        %2553 = vmatmul.f32.gmra.mxu0 %v2552
        %v2554 = vpop.f32.mrf.mxu0
        %v2555 = vadd.f32 %v2490, %v2554
        %v2556 = vand.u32 %v2455, 4294901760
        %2557 = vmatmul.f32.gmra.mxu0 %v2556
        %v2558 = vpop.f32.mrf.mxu0
        %v2559 = vadd.f32 %v2498, %v2558
        %v2560 = vand.u32 %v2458, 4294901760
        %2561 = vmatmul.f32.gmra.mxu0 %v2560
        %v2562 = vpop.f32.mrf.mxu0
        %v2563 = vadd.f32 %v2506, %v2562
        %v2564 = vand.u32 %v2461, 4294901760
        %2565 = vmatmul.f32.gmra.mxu0 %v2564
        %v2566 = vpop.f32.mrf.mxu0
        %v2567 = vadd.f32 %v2514, %v2566
        %2568 = vdwg.mxu0
        %2569 = vmatpush.msra.mxu0 0.0
        %2570 = vmatpush.msra.mxu0 0.0
        %2571 = vmatpush.msra.mxu0 0.0
        %2572 = vmatpush.msra.mxu0 0.0
        %2573 = vmatpush.msra.mxu0 0.0
        %2574 = vmatpush.msra.mxu0 0.0
        %2575 = vmatpush.msra.mxu0 0.0
        %2576 = vmatpush.msra.mxu0 0.0
        %2577 = vmatpush.msra.mxu0 0.0
        %2578 = vmatpush.msra.mxu0 0.0
        %2579 = vmatpush.msra.mxu0 0.0
        %2580 = vmatpush.msra.mxu0 0.0
        %v2581 = vand.u32 %v546, 4294901760
        %v2582 = vsub.f32 %v546, %v2581
        %2583 = vmatpush.msra.mxu0 %v2582
        %v2584 = vand.u32 %v545, 4294901760
        %v2585 = vsub.f32 %v545, %v2584
        %2586 = vmatpush.msra.mxu0 %v2585
        %v2587 = vand.u32 %v544, 4294901760
        %v2588 = vsub.f32 %v544, %v2587
        %2589 = vmatpush.msra.mxu0 %v2588
        %v2590 = vand.u32 %v543, 4294901760
        %v2591 = vsub.f32 %v543, %v2590
        %2592 = vmatpush.msra.mxu0 %v2591
        %v2593 = vand.u32 %v2452, 4294901760
        %v2594 = vsub.f32 %v2452, %v2593
        %2595 = vmatmul.f32.gmra.mxu0 %v2594
        %v2596 = vpop.f32.mrf.mxu0
        %v2597 = vadd.f32 %v2555, %v2596
        %v2598 = vand.u32 %v2455, 4294901760
        %v2599 = vsub.f32 %v2455, %v2598
        %2600 = vmatmul.f32.gmra.mxu0 %v2599
        %v2601 = vpop.f32.mrf.mxu0
        %v2602 = vadd.f32 %v2559, %v2601
        %v2603 = vand.u32 %v2458, 4294901760
        %v2604 = vsub.f32 %v2458, %v2603
        %2605 = vmatmul.f32.gmra.mxu0 %v2604
        %v2606 = vpop.f32.mrf.mxu0
        %v2607 = vadd.f32 %v2563, %v2606
        %v2608 = vand.u32 %v2461, 4294901760
        %v2609 = vsub.f32 %v2461, %v2608
        %2610 = vmatmul.f32.gmra.mxu0 %v2609
        %v2611 = vpop.f32.mrf.mxu0
        %v2612 = vadd.f32 %v2567, %v2611
        %2613 = vdwg.mxu0
        %2614 = vmatpush.msra.mxu0 0.0
        %2615 = vmatpush.msra.mxu0 0.0
        %2616 = vmatpush.msra.mxu0 0.0
        %2617 = vmatpush.msra.mxu0 0.0
        %2618 = vmatpush.msra.mxu0 0.0
        %2619 = vmatpush.msra.mxu0 0.0
        %2620 = vmatpush.msra.mxu0 0.0
        %2621 = vmatpush.msra.mxu0 0.0
        %2622 = vmatpush.msra.mxu0 0.0
        %2623 = vmatpush.msra.mxu0 0.0
        %2624 = vmatpush.msra.mxu0 0.0
        %2625 = vmatpush.msra.mxu0 0.0
        %v2626 = vand.u32 %v546, 4294901760
        %2627 = vmatpush.msra.mxu0 %v2626
        %v2628 = vand.u32 %v545, 4294901760
        %2629 = vmatpush.msra.mxu0 %v2628
        %v2630 = vand.u32 %v544, 4294901760
        %2631 = vmatpush.msra.mxu0 %v2630
        %v2632 = vand.u32 %v543, 4294901760
        %2633 = vmatpush.msra.mxu0 %v2632
        %v2634 = vand.u32 %v2452, 4294901760
        %v2635 = vsub.f32 %v2452, %v2634
        %v2636 = vand.u32 %v2635, 4294901760
        %2637 = vmatmul.f32.gmra.mxu0 %v2636
        %v2638 = vpop.f32.mrf.mxu0
        %v2639 = vadd.f32 %v2597, %v2638
        %v2640 = vand.u32 %v2455, 4294901760
        %v2641 = vsub.f32 %v2455, %v2640
        %v2642 = vand.u32 %v2641, 4294901760
        %2643 = vmatmul.f32.gmra.mxu0 %v2642
        %v2644 = vpop.f32.mrf.mxu0
        %v2645 = vadd.f32 %v2602, %v2644
        %v2646 = vand.u32 %v2458, 4294901760
        %v2647 = vsub.f32 %v2458, %v2646
        %v2648 = vand.u32 %v2647, 4294901760
        %2649 = vmatmul.f32.gmra.mxu0 %v2648
        %v2650 = vpop.f32.mrf.mxu0
        %v2651 = vadd.f32 %v2607, %v2650
        %v2652 = vand.u32 %v2461, 4294901760
        %v2653 = vsub.f32 %v2461, %v2652
        %v2654 = vand.u32 %v2653, 4294901760
        %2655 = vmatmul.f32.gmra.mxu0 %v2654
        %v2656 = vpop.f32.mrf.mxu0
        %v2657 = vadd.f32 %v2612, %v2656
        %2658 = vdwg.mxu0
        %2659 = vmatpush.msra.mxu0 0.0
        %2660 = vmatpush.msra.mxu0 0.0
        %2661 = vmatpush.msra.mxu0 0.0
        %2662 = vmatpush.msra.mxu0 0.0
        %2663 = vmatpush.msra.mxu0 0.0
        %2664 = vmatpush.msra.mxu0 0.0
        %2665 = vmatpush.msra.mxu0 0.0
        %2666 = vmatpush.msra.mxu0 0.0
        %2667 = vmatpush.msra.mxu0 0.0
        %2668 = vmatpush.msra.mxu0 0.0
        %2669 = vmatpush.msra.mxu0 0.0
        %2670 = vmatpush.msra.mxu0 0.0
        %v2671 = vand.u32 %v546, 4294901760
        %v2672 = vsub.f32 %v546, %v2671
        %v2673 = vand.u32 %v2672, 4294901760
        %2674 = vmatpush.msra.mxu0 %v2673
        %v2675 = vand.u32 %v545, 4294901760
        %v2676 = vsub.f32 %v545, %v2675
        %v2677 = vand.u32 %v2676, 4294901760
        %2678 = vmatpush.msra.mxu0 %v2677
        %v2679 = vand.u32 %v544, 4294901760
        %v2680 = vsub.f32 %v544, %v2679
        %v2681 = vand.u32 %v2680, 4294901760
        %2682 = vmatpush.msra.mxu0 %v2681
        %v2683 = vand.u32 %v543, 4294901760
        %v2684 = vsub.f32 %v543, %v2683
        %v2685 = vand.u32 %v2684, 4294901760
        %2686 = vmatpush.msra.mxu0 %v2685
        %v2687 = vand.u32 %v2452, 4294901760
        %2688 = vmatmul.f32.gmra.mxu0 %v2687
        %v2689 = vpop.f32.mrf.mxu0
        %v2690 = vadd.f32 %v2639, %v2689
        %v2691 = vand.u32 %v2455, 4294901760
        %2692 = vmatmul.f32.gmra.mxu0 %v2691
        %v2693 = vpop.f32.mrf.mxu0
        %v2694 = vadd.f32 %v2645, %v2693
        %v2695 = vand.u32 %v2458, 4294901760
        %2696 = vmatmul.f32.gmra.mxu0 %v2695
        %v2697 = vpop.f32.mrf.mxu0
        %v2698 = vadd.f32 %v2651, %v2697
        %v2699 = vand.u32 %v2461, 4294901760
        %2700 = vmatmul.f32.gmra.mxu0 %v2699
        %v2701 = vpop.f32.mrf.mxu0
        %v2702 = vadd.f32 %v2657, %v2701
        %2703 = vdwg.mxu0
        %2704 = vmatpush.msra.mxu0 0.0
        %2705 = vmatpush.msra.mxu0 0.0
        %2706 = vmatpush.msra.mxu0 0.0
        %2707 = vmatpush.msra.mxu0 0.0
        %2708 = vmatpush.msra.mxu0 0.0
        %2709 = vmatpush.msra.mxu0 0.0
        %2710 = vmatpush.msra.mxu0 0.0
        %2711 = vmatpush.msra.mxu0 0.0
        %2712 = vmatpush.msra.mxu0 0.0
        %2713 = vmatpush.msra.mxu0 0.0
        %2714 = vmatpush.msra.mxu0 0.0
        %2715 = vmatpush.msra.mxu0 0.0
        %v2716 = vand.u32 %v546, 4294901760
        %2717 = vmatpush.msra.mxu0 %v2716
        %v2718 = vand.u32 %v545, 4294901760
        %2719 = vmatpush.msra.mxu0 %v2718
        %v2720 = vand.u32 %v544, 4294901760
        %2721 = vmatpush.msra.mxu0 %v2720
        %v2722 = vand.u32 %v543, 4294901760
        %2723 = vmatpush.msra.mxu0 %v2722
        %v2724 = vand.u32 %v2452, 4294901760
        %2725 = vmatmul.f32.gmra.mxu0 %v2724
        %v2726 = vpop.f32.mrf.mxu0
        %v2727 = vadd.f32 %v2690, %v2726
        %v2728 = vand.u32 %v2455, 4294901760
        %2729 = vmatmul.f32.gmra.mxu0 %v2728
        %v2730 = vpop.f32.mrf.mxu0
        %v2731 = vadd.f32 %v2694, %v2730
        %v2732 = vand.u32 %v2458, 4294901760
        %2733 = vmatmul.f32.gmra.mxu0 %v2732
        %v2734 = vpop.f32.mrf.mxu0
        %v2735 = vadd.f32 %v2698, %v2734
        %v2736 = vand.u32 %v2461, 4294901760
        %2737 = vmatmul.f32.gmra.mxu0 %v2736
        %v2738 = vpop.f32.mrf.mxu0
        %v2739 = vadd.f32 %v2702, %v2738
        %2740 = vdwg.mxu0
        %2741 = vmatpush.msra.mxu0 0.0
        %2742 = vmatpush.msra.mxu0 0.0
        %2743 = vmatpush.msra.mxu0 0.0
        %2744 = vmatpush.msra.mxu0 0.0
        %2745 = vmatpush.msra.mxu0 0.0
        %2746 = vmatpush.msra.mxu0 0.0
        %2747 = vmatpush.msra.mxu0 0.0
        %2748 = vmatpush.msra.mxu0 0.0
        %2749 = vmatpush.msra.mxu0 0.0
        %2750 = vmatpush.msra.mxu0 0.0
        %2751 = vmatpush.msra.mxu0 0.0
        %2752 = vmatpush.msra.mxu0 0.0
        %v2753 = vand.u32 %v550, 4294901760
        %2754 = vmatpush.msra.mxu0 %v2753
        %v2755 = vand.u32 %v549, 4294901760
        %2756 = vmatpush.msra.mxu0 %v2755
        %v2757 = vand.u32 %v548, 4294901760
        %2758 = vmatpush.msra.mxu0 %v2757
        %v2759 = vand.u32 %v547, 4294901760
        %2760 = vmatpush.msra.mxu0 %v2759
        %v2761 = vand.u32 %v2452, 4294901760
        %v2762 = vsub.f32 %v2452, %v2761
        %v2763 = vand.u32 %v2762, 4294901760
        %v2764 = vsub.f32 %v2762, %v2763
        %v2765 = vand.u32 %v2764, 4294901760
        %2766 = vmatmul.f32.gmra.mxu0 %v2765
        %v2767 = vpop.f32.mrf.mxu0
        %v2768 = vadd.f32 %v2434, %v2767
        %v2769 = vand.u32 %v2455, 4294901760
        %v2770 = vsub.f32 %v2455, %v2769
        %v2771 = vand.u32 %v2770, 4294901760
        %v2772 = vsub.f32 %v2770, %v2771
        %v2773 = vand.u32 %v2772, 4294901760
        %2774 = vmatmul.f32.gmra.mxu0 %v2773
        %v2775 = vpop.f32.mrf.mxu0
        %v2776 = vadd.f32 %v2439, %v2775
        %v2777 = vand.u32 %v2458, 4294901760
        %v2778 = vsub.f32 %v2458, %v2777
        %v2779 = vand.u32 %v2778, 4294901760
        %v2780 = vsub.f32 %v2778, %v2779
        %v2781 = vand.u32 %v2780, 4294901760
        %2782 = vmatmul.f32.gmra.mxu0 %v2781
        %v2783 = vpop.f32.mrf.mxu0
        %v2784 = vadd.f32 %v2444, %v2783
        %v2785 = vand.u32 %v2461, 4294901760
        %v2786 = vsub.f32 %v2461, %v2785
        %v2787 = vand.u32 %v2786, 4294901760
        %v2788 = vsub.f32 %v2786, %v2787
        %v2789 = vand.u32 %v2788, 4294901760
        %2790 = vmatmul.f32.gmra.mxu0 %v2789
        %v2791 = vpop.f32.mrf.mxu0
        %v2792 = vadd.f32 %v2449, %v2791
        %2793 = vdwg.mxu0
        %2794 = vmatpush.msra.mxu0 0.0
        %2795 = vmatpush.msra.mxu0 0.0
        %2796 = vmatpush.msra.mxu0 0.0
        %2797 = vmatpush.msra.mxu0 0.0
        %2798 = vmatpush.msra.mxu0 0.0
        %2799 = vmatpush.msra.mxu0 0.0
        %2800 = vmatpush.msra.mxu0 0.0
        %2801 = vmatpush.msra.mxu0 0.0
        %2802 = vmatpush.msra.mxu0 0.0
        %2803 = vmatpush.msra.mxu0 0.0
        %2804 = vmatpush.msra.mxu0 0.0
        %2805 = vmatpush.msra.mxu0 0.0
        %v2806 = vand.u32 %v550, 4294901760
        %v2807 = vsub.f32 %v550, %v2806
        %v2808 = vand.u32 %v2807, 4294901760
        %v2809 = vsub.f32 %v2807, %v2808
        %v2810 = vand.u32 %v2809, 4294901760
        %2811 = vmatpush.msra.mxu0 %v2810
        %v2812 = vand.u32 %v549, 4294901760
        %v2813 = vsub.f32 %v549, %v2812
        %v2814 = vand.u32 %v2813, 4294901760
        %v2815 = vsub.f32 %v2813, %v2814
        %v2816 = vand.u32 %v2815, 4294901760
        %2817 = vmatpush.msra.mxu0 %v2816
        %v2818 = vand.u32 %v548, 4294901760
        %v2819 = vsub.f32 %v548, %v2818
        %v2820 = vand.u32 %v2819, 4294901760
        %v2821 = vsub.f32 %v2819, %v2820
        %v2822 = vand.u32 %v2821, 4294901760
        %2823 = vmatpush.msra.mxu0 %v2822
        %v2824 = vand.u32 %v547, 4294901760
        %v2825 = vsub.f32 %v547, %v2824
        %v2826 = vand.u32 %v2825, 4294901760
        %v2827 = vsub.f32 %v2825, %v2826
        %v2828 = vand.u32 %v2827, 4294901760
        %2829 = vmatpush.msra.mxu0 %v2828
        %v2830 = vand.u32 %v2452, 4294901760
        %2831 = vmatmul.f32.gmra.mxu0 %v2830
        %v2832 = vpop.f32.mrf.mxu0
        %v2833 = vadd.f32 %v2768, %v2832
        %v2834 = vand.u32 %v2455, 4294901760
        %2835 = vmatmul.f32.gmra.mxu0 %v2834
        %v2836 = vpop.f32.mrf.mxu0
        %v2837 = vadd.f32 %v2776, %v2836
        %v2838 = vand.u32 %v2458, 4294901760
        %2839 = vmatmul.f32.gmra.mxu0 %v2838
        %v2840 = vpop.f32.mrf.mxu0
        %v2841 = vadd.f32 %v2784, %v2840
        %v2842 = vand.u32 %v2461, 4294901760
        %2843 = vmatmul.f32.gmra.mxu0 %v2842
        %v2844 = vpop.f32.mrf.mxu0
        %v2845 = vadd.f32 %v2792, %v2844
        %2846 = vdwg.mxu0
        %2847 = vmatpush.msra.mxu0 0.0
        %2848 = vmatpush.msra.mxu0 0.0
        %2849 = vmatpush.msra.mxu0 0.0
        %2850 = vmatpush.msra.mxu0 0.0
        %2851 = vmatpush.msra.mxu0 0.0
        %2852 = vmatpush.msra.mxu0 0.0
        %2853 = vmatpush.msra.mxu0 0.0
        %2854 = vmatpush.msra.mxu0 0.0
        %2855 = vmatpush.msra.mxu0 0.0
        %2856 = vmatpush.msra.mxu0 0.0
        %2857 = vmatpush.msra.mxu0 0.0
        %2858 = vmatpush.msra.mxu0 0.0
        %v2859 = vand.u32 %v550, 4294901760
        %v2860 = vsub.f32 %v550, %v2859
        %2861 = vmatpush.msra.mxu0 %v2860
        %v2862 = vand.u32 %v549, 4294901760
        %v2863 = vsub.f32 %v549, %v2862
        %2864 = vmatpush.msra.mxu0 %v2863
        %v2865 = vand.u32 %v548, 4294901760
        %v2866 = vsub.f32 %v548, %v2865
        %2867 = vmatpush.msra.mxu0 %v2866
        %v2868 = vand.u32 %v547, 4294901760
        %v2869 = vsub.f32 %v547, %v2868
        %2870 = vmatpush.msra.mxu0 %v2869
        %v2871 = vand.u32 %v2452, 4294901760
        %v2872 = vsub.f32 %v2452, %v2871
        %2873 = vmatmul.f32.gmra.mxu0 %v2872
        %v2874 = vpop.f32.mrf.mxu0
        %v2875 = vadd.f32 %v2833, %v2874
        %v2876 = vand.u32 %v2455, 4294901760
        %v2877 = vsub.f32 %v2455, %v2876
        %2878 = vmatmul.f32.gmra.mxu0 %v2877
        %v2879 = vpop.f32.mrf.mxu0
        %v2880 = vadd.f32 %v2837, %v2879
        %v2881 = vand.u32 %v2458, 4294901760
        %v2882 = vsub.f32 %v2458, %v2881
        %2883 = vmatmul.f32.gmra.mxu0 %v2882
        %v2884 = vpop.f32.mrf.mxu0
        %v2885 = vadd.f32 %v2841, %v2884
        %v2886 = vand.u32 %v2461, 4294901760
        %v2887 = vsub.f32 %v2461, %v2886
        %2888 = vmatmul.f32.gmra.mxu0 %v2887
        %v2889 = vpop.f32.mrf.mxu0
        %v2890 = vadd.f32 %v2845, %v2889
        %2891 = vdwg.mxu0
        %2892 = vmatpush.msra.mxu0 0.0
        %2893 = vmatpush.msra.mxu0 0.0
        %2894 = vmatpush.msra.mxu0 0.0
        %2895 = vmatpush.msra.mxu0 0.0
        %2896 = vmatpush.msra.mxu0 0.0
        %2897 = vmatpush.msra.mxu0 0.0
        %2898 = vmatpush.msra.mxu0 0.0
        %2899 = vmatpush.msra.mxu0 0.0
        %2900 = vmatpush.msra.mxu0 0.0
        %2901 = vmatpush.msra.mxu0 0.0
        %2902 = vmatpush.msra.mxu0 0.0
        %2903 = vmatpush.msra.mxu0 0.0
        %v2904 = vand.u32 %v550, 4294901760
        %2905 = vmatpush.msra.mxu0 %v2904
        %v2906 = vand.u32 %v549, 4294901760
        %2907 = vmatpush.msra.mxu0 %v2906
        %v2908 = vand.u32 %v548, 4294901760
        %2909 = vmatpush.msra.mxu0 %v2908
        %v2910 = vand.u32 %v547, 4294901760
        %2911 = vmatpush.msra.mxu0 %v2910
        %v2912 = vand.u32 %v2452, 4294901760
        %v2913 = vsub.f32 %v2452, %v2912
        %v2914 = vand.u32 %v2913, 4294901760
        %2915 = vmatmul.f32.gmra.mxu0 %v2914
        %v2916 = vpop.f32.mrf.mxu0
        %v2917 = vadd.f32 %v2875, %v2916
        %v2918 = vand.u32 %v2455, 4294901760
        %v2919 = vsub.f32 %v2455, %v2918
        %v2920 = vand.u32 %v2919, 4294901760
        %2921 = vmatmul.f32.gmra.mxu0 %v2920
        %v2922 = vpop.f32.mrf.mxu0
        %v2923 = vadd.f32 %v2880, %v2922
        %v2924 = vand.u32 %v2458, 4294901760
        %v2925 = vsub.f32 %v2458, %v2924
        %v2926 = vand.u32 %v2925, 4294901760
        %2927 = vmatmul.f32.gmra.mxu0 %v2926
        %v2928 = vpop.f32.mrf.mxu0
        %v2929 = vadd.f32 %v2885, %v2928
        %v2930 = vand.u32 %v2461, 4294901760
        %v2931 = vsub.f32 %v2461, %v2930
        %v2932 = vand.u32 %v2931, 4294901760
        %2933 = vmatmul.f32.gmra.mxu0 %v2932
        %v2934 = vpop.f32.mrf.mxu0
        %v2935 = vadd.f32 %v2890, %v2934
        %2936 = vdwg.mxu0
        %2937 = vmatpush.msra.mxu0 0.0
        %2938 = vmatpush.msra.mxu0 0.0
        %2939 = vmatpush.msra.mxu0 0.0
        %2940 = vmatpush.msra.mxu0 0.0
        %2941 = vmatpush.msra.mxu0 0.0
        %2942 = vmatpush.msra.mxu0 0.0
        %2943 = vmatpush.msra.mxu0 0.0
        %2944 = vmatpush.msra.mxu0 0.0
        %2945 = vmatpush.msra.mxu0 0.0
        %2946 = vmatpush.msra.mxu0 0.0
        %2947 = vmatpush.msra.mxu0 0.0
        %2948 = vmatpush.msra.mxu0 0.0
        %v2949 = vand.u32 %v550, 4294901760
        %v2950 = vsub.f32 %v550, %v2949
        %v2951 = vand.u32 %v2950, 4294901760
        %2952 = vmatpush.msra.mxu0 %v2951
        %v2953 = vand.u32 %v549, 4294901760
        %v2954 = vsub.f32 %v549, %v2953
        %v2955 = vand.u32 %v2954, 4294901760
        %2956 = vmatpush.msra.mxu0 %v2955
        %v2957 = vand.u32 %v548, 4294901760
        %v2958 = vsub.f32 %v548, %v2957
        %v2959 = vand.u32 %v2958, 4294901760
        %2960 = vmatpush.msra.mxu0 %v2959
        %v2961 = vand.u32 %v547, 4294901760
        %v2962 = vsub.f32 %v547, %v2961
        %v2963 = vand.u32 %v2962, 4294901760
        %2964 = vmatpush.msra.mxu0 %v2963
        %v2965 = vand.u32 %v2452, 4294901760
        %2966 = vmatmul.f32.gmra.mxu0 %v2965
        %v2967 = vpop.f32.mrf.mxu0
        %v2968 = vadd.f32 %v2917, %v2967
        %v2969 = vand.u32 %v2455, 4294901760
        %2970 = vmatmul.f32.gmra.mxu0 %v2969
        %v2971 = vpop.f32.mrf.mxu0
        %v2972 = vadd.f32 %v2923, %v2971
        %v2973 = vand.u32 %v2458, 4294901760
        %2974 = vmatmul.f32.gmra.mxu0 %v2973
        %v2975 = vpop.f32.mrf.mxu0
        %v2976 = vadd.f32 %v2929, %v2975
        %v2977 = vand.u32 %v2461, 4294901760
        %2978 = vmatmul.f32.gmra.mxu0 %v2977
        %v2979 = vpop.f32.mrf.mxu0
        %v2980 = vadd.f32 %v2935, %v2979
        %2981 = vdwg.mxu0
        %2982 = vmatpush.msra.mxu0 0.0
        %2983 = vmatpush.msra.mxu0 0.0
        %2984 = vmatpush.msra.mxu0 0.0
        %2985 = vmatpush.msra.mxu0 0.0
        %2986 = vmatpush.msra.mxu0 0.0
        %2987 = vmatpush.msra.mxu0 0.0
        %2988 = vmatpush.msra.mxu0 0.0
        %2989 = vmatpush.msra.mxu0 0.0
        %2990 = vmatpush.msra.mxu0 0.0
        %2991 = vmatpush.msra.mxu0 0.0
        %2992 = vmatpush.msra.mxu0 0.0
        %2993 = vmatpush.msra.mxu0 0.0
        %v2994 = vand.u32 %v550, 4294901760
        %2995 = vmatpush.msra.mxu0 %v2994
        %v2996 = vand.u32 %v549, 4294901760
        %2997 = vmatpush.msra.mxu0 %v2996
        %v2998 = vand.u32 %v548, 4294901760
        %2999 = vmatpush.msra.mxu0 %v2998
        %v3000 = vand.u32 %v547, 4294901760
        %3001 = vmatpush.msra.mxu0 %v3000
        %v3002 = vand.u32 %v2452, 4294901760
        %3003 = vmatmul.f32.gmra.mxu0 %v3002
        %v3004 = vpop.f32.mrf.mxu0
        %v3005 = vadd.f32 %v2968, %v3004
        %v3006 = vand.u32 %v2455, 4294901760
        %3007 = vmatmul.f32.gmra.mxu0 %v3006
        %v3008 = vpop.f32.mrf.mxu0
        %v3009 = vadd.f32 %v2972, %v3008
        %v3010 = vand.u32 %v2458, 4294901760
        %3011 = vmatmul.f32.gmra.mxu0 %v3010
        %v3012 = vpop.f32.mrf.mxu0
        %v3013 = vadd.f32 %v2976, %v3012
        %v3014 = vand.u32 %v2461, 4294901760
        %3015 = vmatmul.f32.gmra.mxu0 %v3014
        %v3016 = vpop.f32.mrf.mxu0
        %v3017 = vadd.f32 %v2980, %v3016
        %3018 = vdwg.mxu0
        %v3019 = vadd.f32 %v2393, %v2727
        %v3020 = vadd.f32 %v2397, %v2731
        %v3021 = vadd.f32 %v2401, %v2735
        %v3022 = vadd.f32 %v2405, %v2739
        %v3023 = vadd.f32 %v2409, %v3005
        %v3024 = vadd.f32 %v2413, %v3009
        %v3025 = vadd.f32 %v2417, %v3013
        %v3026 = vadd.f32 %v2421, %v3017
        %v3027 = vtanh.pop %v3019
        %v3028 = vtanh.pop %v3020
        %v3029 = vtanh.pop %v3021
        %v3030 = vtanh.pop %v3022
        %v3031 = vtanh.pop %v3023
        %v3032 = vtanh.pop %v3024
        %v3033 = vtanh.pop %v3025
        %v3034 = vtanh.pop %v3026
        %3035 = vst.msk [vmem:[#allocation2] sm:$0xff] %vm553, %v3027
        %3036 = vst.msk [vmem:[#allocation2 + $0x8] sm:$0xff] %vm553, %v3028
        %3037 = vst.msk [vmem:[#allocation2 + $0x10] sm:$0xff] %vm553, %v3029
        %3038 = vst.msk [vmem:[#allocation2 + $0x18] sm:$0xff] %vm553, %v3030
        %3039 = vst.msk [vmem:[#allocation2 + $0x20] sm:$0xff] %vm553, %v3031
        %3040 = vst.msk [vmem:[#allocation2 + $0x28] sm:$0xff] %vm553, %v3032
        %3041 = vst.msk [vmem:[#allocation2 + $0x30] sm:$0xff] %vm553, %v3033
        %3042 = vst.msk [vmem:[#allocation2 + $0x38] sm:$0xff] %vm553, %v3034
        %p3043 = scmp.eq.s32.totalorder %s36, 2
        // Predicated region
        $region77: #{tpu_custom_call.1} parent=63 // pred_check
          %p3044 = pneg %p3043
        $region78: #{tpu_custom_call.1} parent=63 // pred_check_branch
          %3046 = sbr.rel (%p3044) target = $region80
        $region79: #{tpu_custom_call.1} parent=63 // pred_region
          %v3047 = vld [vmem:[#allocation2] sm:$0xff]
          %v3048 = vld [vmem:[#allocation2 + $0x8] sm:$0xff]
          %v3049 = vld [vmem:[#allocation2 + $0x10] sm:$0xff]
          %v3050 = vld [vmem:[#allocation2 + $0x18] sm:$0xff]
          %v3051 = vld [vmem:[#allocation2 + $0x20] sm:$0xff]
          %v3052 = vld [vmem:[#allocation2 + $0x28] sm:$0xff]
          %v3053 = vld [vmem:[#allocation2 + $0x30] sm:$0xff]
          %v3054 = vld [vmem:[#allocation2 + $0x38] sm:$0xff]
          %v3055 = vld [vmem:[%s7] sm:$0xff]
          %v3056 = vld [vmem:[%s7 + $0x8] sm:$0xff]
          %v3057 = vld [vmem:[%s7 + $0x10] sm:$0xff]
          %v3058 = vld [vmem:[%s7 + $0x18] sm:$0xff]
          %v3059 = vld [vmem:[%s8] sm:$0xff]
          %v3060 = vld [vmem:[%s8 + $0x8] sm:$0xff]
          %v3061 = vld [vmem:[%s8 + $0x10] sm:$0xff]
          %v3062 = vld [vmem:[%s8 + $0x18] sm:$0xff]
          %3064 = vset.pattern.permute.xlu0 0
          %3065 = vperm.xlu0 %3064, %v3059
          %v3066 = vpop.permute.xlu0 %3065
          %3069 = vset.pattern.permute.xlu0 0
          %3070 = vperm.xlu0 %3069, %v3060
          %v3071 = vpop.permute.xlu0 %3070
          %3074 = vset.pattern.permute.xlu0 0
          %3075 = vperm.xlu0 %3074, %v3061
          %v3076 = vpop.permute.xlu0 %3075
          %3079 = vset.pattern.permute.xlu0 0
          %3080 = vperm.xlu0 %3079, %v3062
          %v3081 = vpop.permute.xlu0 %3080
          %v3084 = vsel %vm1177, %v3055, 0
          %v3087 = vsel %vm1177, %v3056, 0
          %v3090 = vsel %vm1177, %v3057, 0
          %v3093 = vsel %vm1177, %v3058, 0
          %3095 = vmatpush.msra.mxu0 0.0
          %3096 = vmatpush.msra.mxu0 0.0
          %3097 = vmatpush.msra.mxu0 0.0
          %3098 = vmatpush.msra.mxu0 0.0
          %3099 = vmatpush.msra.mxu0 0.0
          %3100 = vmatpush.msra.mxu0 0.0
          %3101 = vmatpush.msra.mxu0 0.0
          %3102 = vmatpush.msra.mxu0 0.0
          %3103 = vmatpush.msra.mxu0 0.0
          %3104 = vmatpush.msra.mxu0 0.0
          %3105 = vmatpush.msra.mxu0 0.0
          %3106 = vmatpush.msra.mxu0 0.0
          %v3107 = vand.u32 %v3050, 4294901760
          %3108 = vmatpush.msra.mxu0 %v3107
          %v3109 = vand.u32 %v3049, 4294901760
          %3110 = vmatpush.msra.mxu0 %v3109
          %v3111 = vand.u32 %v3048, 4294901760
          %3112 = vmatpush.msra.mxu0 %v3111
          %v3113 = vand.u32 %v3047, 4294901760
          %3114 = vmatpush.msra.mxu0 %v3113
          %v3115 = vand.u32 %v3084, 4294901760
          %v3116 = vsub.f32 %v3084, %v3115
          %v3117 = vand.u32 %v3116, 4294901760
          %v3118 = vsub.f32 %v3116, %v3117
          %v3119 = vand.u32 %v3118, 4294901760
          %3120 = vmatmul.f32.gmra.mxu0 %v3119
          %v3121 = vpop.f32.mrf.mxu0
          %v3122 = vadd.f32 %v3066, %v3121
          %v3123 = vand.u32 %v3087, 4294901760
          %v3124 = vsub.f32 %v3087, %v3123
          %v3125 = vand.u32 %v3124, 4294901760
          %v3126 = vsub.f32 %v3124, %v3125
          %v3127 = vand.u32 %v3126, 4294901760
          %3128 = vmatmul.f32.gmra.mxu0 %v3127
          %v3129 = vpop.f32.mrf.mxu0
          %v3130 = vadd.f32 %v3071, %v3129
          %v3131 = vand.u32 %v3090, 4294901760
          %v3132 = vsub.f32 %v3090, %v3131
          %v3133 = vand.u32 %v3132, 4294901760
          %v3134 = vsub.f32 %v3132, %v3133
          %v3135 = vand.u32 %v3134, 4294901760
          %3136 = vmatmul.f32.gmra.mxu0 %v3135
          %v3137 = vpop.f32.mrf.mxu0
          %v3138 = vadd.f32 %v3076, %v3137
          %v3139 = vand.u32 %v3093, 4294901760
          %v3140 = vsub.f32 %v3093, %v3139
          %v3141 = vand.u32 %v3140, 4294901760
          %v3142 = vsub.f32 %v3140, %v3141
          %v3143 = vand.u32 %v3142, 4294901760
          %3144 = vmatmul.f32.gmra.mxu0 %v3143
          %v3145 = vpop.f32.mrf.mxu0
          %v3146 = vadd.f32 %v3081, %v3145
          %3147 = vdwg.mxu0
          %3148 = vmatpush.msra.mxu0 0.0
          %3149 = vmatpush.msra.mxu0 0.0
          %3150 = vmatpush.msra.mxu0 0.0
          %3151 = vmatpush.msra.mxu0 0.0
          %3152 = vmatpush.msra.mxu0 0.0
          %3153 = vmatpush.msra.mxu0 0.0
          %3154 = vmatpush.msra.mxu0 0.0
          %3155 = vmatpush.msra.mxu0 0.0
          %3156 = vmatpush.msra.mxu0 0.0
          %3157 = vmatpush.msra.mxu0 0.0
          %3158 = vmatpush.msra.mxu0 0.0
          %3159 = vmatpush.msra.mxu0 0.0
          %v3160 = vand.u32 %v3050, 4294901760
          %v3161 = vsub.f32 %v3050, %v3160
          %v3162 = vand.u32 %v3161, 4294901760
          %v3163 = vsub.f32 %v3161, %v3162
          %v3164 = vand.u32 %v3163, 4294901760
          %3165 = vmatpush.msra.mxu0 %v3164
          %v3166 = vand.u32 %v3049, 4294901760
          %v3167 = vsub.f32 %v3049, %v3166
          %v3168 = vand.u32 %v3167, 4294901760
          %v3169 = vsub.f32 %v3167, %v3168
          %v3170 = vand.u32 %v3169, 4294901760
          %3171 = vmatpush.msra.mxu0 %v3170
          %v3172 = vand.u32 %v3048, 4294901760
          %v3173 = vsub.f32 %v3048, %v3172
          %v3174 = vand.u32 %v3173, 4294901760
          %v3175 = vsub.f32 %v3173, %v3174
          %v3176 = vand.u32 %v3175, 4294901760
          %3177 = vmatpush.msra.mxu0 %v3176
          %v3178 = vand.u32 %v3047, 4294901760
          %v3179 = vsub.f32 %v3047, %v3178
          %v3180 = vand.u32 %v3179, 4294901760
          %v3181 = vsub.f32 %v3179, %v3180
          %v3182 = vand.u32 %v3181, 4294901760
          %3183 = vmatpush.msra.mxu0 %v3182
          %v3184 = vand.u32 %v3084, 4294901760
          %3185 = vmatmul.f32.gmra.mxu0 %v3184
          %v3186 = vpop.f32.mrf.mxu0
          %v3187 = vadd.f32 %v3122, %v3186
          %v3188 = vand.u32 %v3087, 4294901760
          %3189 = vmatmul.f32.gmra.mxu0 %v3188
          %v3190 = vpop.f32.mrf.mxu0
          %v3191 = vadd.f32 %v3130, %v3190
          %v3192 = vand.u32 %v3090, 4294901760
          %3193 = vmatmul.f32.gmra.mxu0 %v3192
          %v3194 = vpop.f32.mrf.mxu0
          %v3195 = vadd.f32 %v3138, %v3194
          %v3196 = vand.u32 %v3093, 4294901760
          %3197 = vmatmul.f32.gmra.mxu0 %v3196
          %v3198 = vpop.f32.mrf.mxu0
          %v3199 = vadd.f32 %v3146, %v3198
          %3200 = vdwg.mxu0
          %3201 = vmatpush.msra.mxu0 0.0
          %3202 = vmatpush.msra.mxu0 0.0
          %3203 = vmatpush.msra.mxu0 0.0
          %3204 = vmatpush.msra.mxu0 0.0
          %3205 = vmatpush.msra.mxu0 0.0
          %3206 = vmatpush.msra.mxu0 0.0
          %3207 = vmatpush.msra.mxu0 0.0
          %3208 = vmatpush.msra.mxu0 0.0
          %3209 = vmatpush.msra.mxu0 0.0
          %3210 = vmatpush.msra.mxu0 0.0
          %3211 = vmatpush.msra.mxu0 0.0
          %3212 = vmatpush.msra.mxu0 0.0
          %v3213 = vand.u32 %v3050, 4294901760
          %v3214 = vsub.f32 %v3050, %v3213
          %3215 = vmatpush.msra.mxu0 %v3214
          %v3216 = vand.u32 %v3049, 4294901760
          %v3217 = vsub.f32 %v3049, %v3216
          %3218 = vmatpush.msra.mxu0 %v3217
          %v3219 = vand.u32 %v3048, 4294901760
          %v3220 = vsub.f32 %v3048, %v3219
          %3221 = vmatpush.msra.mxu0 %v3220
          %v3222 = vand.u32 %v3047, 4294901760
          %v3223 = vsub.f32 %v3047, %v3222
          %3224 = vmatpush.msra.mxu0 %v3223
          %v3225 = vand.u32 %v3084, 4294901760
          %v3226 = vsub.f32 %v3084, %v3225
          %3227 = vmatmul.f32.gmra.mxu0 %v3226
          %v3228 = vpop.f32.mrf.mxu0
          %v3229 = vadd.f32 %v3187, %v3228
          %v3230 = vand.u32 %v3087, 4294901760
          %v3231 = vsub.f32 %v3087, %v3230
          %3232 = vmatmul.f32.gmra.mxu0 %v3231
          %v3233 = vpop.f32.mrf.mxu0
          %v3234 = vadd.f32 %v3191, %v3233
          %v3235 = vand.u32 %v3090, 4294901760
          %v3236 = vsub.f32 %v3090, %v3235
          %3237 = vmatmul.f32.gmra.mxu0 %v3236
          %v3238 = vpop.f32.mrf.mxu0
          %v3239 = vadd.f32 %v3195, %v3238
          %v3240 = vand.u32 %v3093, 4294901760
          %v3241 = vsub.f32 %v3093, %v3240
          %3242 = vmatmul.f32.gmra.mxu0 %v3241
          %v3243 = vpop.f32.mrf.mxu0
          %v3244 = vadd.f32 %v3199, %v3243
          %3245 = vdwg.mxu0
          %3246 = vmatpush.msra.mxu0 0.0
          %3247 = vmatpush.msra.mxu0 0.0
          %3248 = vmatpush.msra.mxu0 0.0
          %3249 = vmatpush.msra.mxu0 0.0
          %3250 = vmatpush.msra.mxu0 0.0
          %3251 = vmatpush.msra.mxu0 0.0
          %3252 = vmatpush.msra.mxu0 0.0
          %3253 = vmatpush.msra.mxu0 0.0
          %3254 = vmatpush.msra.mxu0 0.0
          %3255 = vmatpush.msra.mxu0 0.0
          %3256 = vmatpush.msra.mxu0 0.0
          %3257 = vmatpush.msra.mxu0 0.0
          %v3258 = vand.u32 %v3050, 4294901760
          %3259 = vmatpush.msra.mxu0 %v3258
          %v3260 = vand.u32 %v3049, 4294901760
          %3261 = vmatpush.msra.mxu0 %v3260
          %v3262 = vand.u32 %v3048, 4294901760
          %3263 = vmatpush.msra.mxu0 %v3262
          %v3264 = vand.u32 %v3047, 4294901760
          %3265 = vmatpush.msra.mxu0 %v3264
          %v3266 = vand.u32 %v3084, 4294901760
          %v3267 = vsub.f32 %v3084, %v3266
          %v3268 = vand.u32 %v3267, 4294901760
          %3269 = vmatmul.f32.gmra.mxu0 %v3268
          %v3270 = vpop.f32.mrf.mxu0
          %v3271 = vadd.f32 %v3229, %v3270
          %v3272 = vand.u32 %v3087, 4294901760
          %v3273 = vsub.f32 %v3087, %v3272
          %v3274 = vand.u32 %v3273, 4294901760
          %3275 = vmatmul.f32.gmra.mxu0 %v3274
          %v3276 = vpop.f32.mrf.mxu0
          %v3277 = vadd.f32 %v3234, %v3276
          %v3278 = vand.u32 %v3090, 4294901760
          %v3279 = vsub.f32 %v3090, %v3278
          %v3280 = vand.u32 %v3279, 4294901760
          %3281 = vmatmul.f32.gmra.mxu0 %v3280
          %v3282 = vpop.f32.mrf.mxu0
          %v3283 = vadd.f32 %v3239, %v3282
          %v3284 = vand.u32 %v3093, 4294901760
          %v3285 = vsub.f32 %v3093, %v3284
          %v3286 = vand.u32 %v3285, 4294901760
          %3287 = vmatmul.f32.gmra.mxu0 %v3286
          %v3288 = vpop.f32.mrf.mxu0
          %v3289 = vadd.f32 %v3244, %v3288
          %3290 = vdwg.mxu0
          %3291 = vmatpush.msra.mxu0 0.0
          %3292 = vmatpush.msra.mxu0 0.0
          %3293 = vmatpush.msra.mxu0 0.0
          %3294 = vmatpush.msra.mxu0 0.0
          %3295 = vmatpush.msra.mxu0 0.0
          %3296 = vmatpush.msra.mxu0 0.0
          %3297 = vmatpush.msra.mxu0 0.0
          %3298 = vmatpush.msra.mxu0 0.0
          %3299 = vmatpush.msra.mxu0 0.0
          %3300 = vmatpush.msra.mxu0 0.0
          %3301 = vmatpush.msra.mxu0 0.0
          %3302 = vmatpush.msra.mxu0 0.0
          %v3303 = vand.u32 %v3050, 4294901760
          %v3304 = vsub.f32 %v3050, %v3303
          %v3305 = vand.u32 %v3304, 4294901760
          %3306 = vmatpush.msra.mxu0 %v3305
          %v3307 = vand.u32 %v3049, 4294901760
          %v3308 = vsub.f32 %v3049, %v3307
          %v3309 = vand.u32 %v3308, 4294901760
          %3310 = vmatpush.msra.mxu0 %v3309
          %v3311 = vand.u32 %v3048, 4294901760
          %v3312 = vsub.f32 %v3048, %v3311
          %v3313 = vand.u32 %v3312, 4294901760
          %3314 = vmatpush.msra.mxu0 %v3313
          %v3315 = vand.u32 %v3047, 4294901760
          %v3316 = vsub.f32 %v3047, %v3315
          %v3317 = vand.u32 %v3316, 4294901760
          %3318 = vmatpush.msra.mxu0 %v3317
          %v3319 = vand.u32 %v3084, 4294901760
          %3320 = vmatmul.f32.gmra.mxu0 %v3319
          %v3321 = vpop.f32.mrf.mxu0
          %v3322 = vadd.f32 %v3271, %v3321
          %v3323 = vand.u32 %v3087, 4294901760
          %3324 = vmatmul.f32.gmra.mxu0 %v3323
          %v3325 = vpop.f32.mrf.mxu0
          %v3326 = vadd.f32 %v3277, %v3325
          %v3327 = vand.u32 %v3090, 4294901760
          %3328 = vmatmul.f32.gmra.mxu0 %v3327
          %v3329 = vpop.f32.mrf.mxu0
          %v3330 = vadd.f32 %v3283, %v3329
          %v3331 = vand.u32 %v3093, 4294901760
          %3332 = vmatmul.f32.gmra.mxu0 %v3331
          %v3333 = vpop.f32.mrf.mxu0
          %v3334 = vadd.f32 %v3289, %v3333
          %3335 = vdwg.mxu0
          %3336 = vmatpush.msra.mxu0 0.0
          %3337 = vmatpush.msra.mxu0 0.0
          %3338 = vmatpush.msra.mxu0 0.0
          %3339 = vmatpush.msra.mxu0 0.0
          %3340 = vmatpush.msra.mxu0 0.0
          %3341 = vmatpush.msra.mxu0 0.0
          %3342 = vmatpush.msra.mxu0 0.0
          %3343 = vmatpush.msra.mxu0 0.0
          %3344 = vmatpush.msra.mxu0 0.0
          %3345 = vmatpush.msra.mxu0 0.0
          %3346 = vmatpush.msra.mxu0 0.0
          %3347 = vmatpush.msra.mxu0 0.0
          %v3348 = vand.u32 %v3050, 4294901760
          %3349 = vmatpush.msra.mxu0 %v3348
          %v3350 = vand.u32 %v3049, 4294901760
          %3351 = vmatpush.msra.mxu0 %v3350
          %v3352 = vand.u32 %v3048, 4294901760
          %3353 = vmatpush.msra.mxu0 %v3352
          %v3354 = vand.u32 %v3047, 4294901760
          %3355 = vmatpush.msra.mxu0 %v3354
          %v3356 = vand.u32 %v3084, 4294901760
          %3357 = vmatmul.f32.gmra.mxu0 %v3356
          %v3358 = vpop.f32.mrf.mxu0
          %v3359 = vadd.f32 %v3322, %v3358
          %v3360 = vand.u32 %v3087, 4294901760
          %3361 = vmatmul.f32.gmra.mxu0 %v3360
          %v3362 = vpop.f32.mrf.mxu0
          %v3363 = vadd.f32 %v3326, %v3362
          %v3364 = vand.u32 %v3090, 4294901760
          %3365 = vmatmul.f32.gmra.mxu0 %v3364
          %v3366 = vpop.f32.mrf.mxu0
          %v3367 = vadd.f32 %v3330, %v3366
          %v3368 = vand.u32 %v3093, 4294901760
          %3369 = vmatmul.f32.gmra.mxu0 %v3368
          %v3370 = vpop.f32.mrf.mxu0
          %v3371 = vadd.f32 %v3334, %v3370
          %3372 = vdwg.mxu0
          %3373 = vmatpush.msra.mxu0 0.0
          %3374 = vmatpush.msra.mxu0 0.0
          %3375 = vmatpush.msra.mxu0 0.0
          %3376 = vmatpush.msra.mxu0 0.0
          %3377 = vmatpush.msra.mxu0 0.0
          %3378 = vmatpush.msra.mxu0 0.0
          %3379 = vmatpush.msra.mxu0 0.0
          %3380 = vmatpush.msra.mxu0 0.0
          %3381 = vmatpush.msra.mxu0 0.0
          %3382 = vmatpush.msra.mxu0 0.0
          %3383 = vmatpush.msra.mxu0 0.0
          %3384 = vmatpush.msra.mxu0 0.0
          %v3385 = vand.u32 %v3054, 4294901760
          %3386 = vmatpush.msra.mxu0 %v3385
          %v3387 = vand.u32 %v3053, 4294901760
          %3388 = vmatpush.msra.mxu0 %v3387
          %v3389 = vand.u32 %v3052, 4294901760
          %3390 = vmatpush.msra.mxu0 %v3389
          %v3391 = vand.u32 %v3051, 4294901760
          %3392 = vmatpush.msra.mxu0 %v3391
          %v3393 = vand.u32 %v3084, 4294901760
          %v3394 = vsub.f32 %v3084, %v3393
          %v3395 = vand.u32 %v3394, 4294901760
          %v3396 = vsub.f32 %v3394, %v3395
          %v3397 = vand.u32 %v3396, 4294901760
          %3398 = vmatmul.f32.gmra.mxu0 %v3397
          %v3399 = vpop.f32.mrf.mxu0
          %v3400 = vadd.f32 %v3066, %v3399
          %v3401 = vand.u32 %v3087, 4294901760
          %v3402 = vsub.f32 %v3087, %v3401
          %v3403 = vand.u32 %v3402, 4294901760
          %v3404 = vsub.f32 %v3402, %v3403
          %v3405 = vand.u32 %v3404, 4294901760
          %3406 = vmatmul.f32.gmra.mxu0 %v3405
          %v3407 = vpop.f32.mrf.mxu0
          %v3408 = vadd.f32 %v3071, %v3407
          %v3409 = vand.u32 %v3090, 4294901760
          %v3410 = vsub.f32 %v3090, %v3409
          %v3411 = vand.u32 %v3410, 4294901760
          %v3412 = vsub.f32 %v3410, %v3411
          %v3413 = vand.u32 %v3412, 4294901760
          %3414 = vmatmul.f32.gmra.mxu0 %v3413
          %v3415 = vpop.f32.mrf.mxu0
          %v3416 = vadd.f32 %v3076, %v3415
          %v3417 = vand.u32 %v3093, 4294901760
          %v3418 = vsub.f32 %v3093, %v3417
          %v3419 = vand.u32 %v3418, 4294901760
          %v3420 = vsub.f32 %v3418, %v3419
          %v3421 = vand.u32 %v3420, 4294901760
          %3422 = vmatmul.f32.gmra.mxu0 %v3421
          %v3423 = vpop.f32.mrf.mxu0
          %v3424 = vadd.f32 %v3081, %v3423
          %3425 = vdwg.mxu0
          %3426 = vmatpush.msra.mxu0 0.0
          %3427 = vmatpush.msra.mxu0 0.0
          %3428 = vmatpush.msra.mxu0 0.0
          %3429 = vmatpush.msra.mxu0 0.0
          %3430 = vmatpush.msra.mxu0 0.0
          %3431 = vmatpush.msra.mxu0 0.0
          %3432 = vmatpush.msra.mxu0 0.0
          %3433 = vmatpush.msra.mxu0 0.0
          %3434 = vmatpush.msra.mxu0 0.0
          %3435 = vmatpush.msra.mxu0 0.0
          %3436 = vmatpush.msra.mxu0 0.0
          %3437 = vmatpush.msra.mxu0 0.0
          %v3438 = vand.u32 %v3054, 4294901760
          %v3439 = vsub.f32 %v3054, %v3438
          %v3440 = vand.u32 %v3439, 4294901760
          %v3441 = vsub.f32 %v3439, %v3440
          %v3442 = vand.u32 %v3441, 4294901760
          %3443 = vmatpush.msra.mxu0 %v3442
          %v3444 = vand.u32 %v3053, 4294901760
          %v3445 = vsub.f32 %v3053, %v3444
          %v3446 = vand.u32 %v3445, 4294901760
          %v3447 = vsub.f32 %v3445, %v3446
          %v3448 = vand.u32 %v3447, 4294901760
          %3449 = vmatpush.msra.mxu0 %v3448
          %v3450 = vand.u32 %v3052, 4294901760
          %v3451 = vsub.f32 %v3052, %v3450
          %v3452 = vand.u32 %v3451, 4294901760
          %v3453 = vsub.f32 %v3451, %v3452
          %v3454 = vand.u32 %v3453, 4294901760
          %3455 = vmatpush.msra.mxu0 %v3454
          %v3456 = vand.u32 %v3051, 4294901760
          %v3457 = vsub.f32 %v3051, %v3456
          %v3458 = vand.u32 %v3457, 4294901760
          %v3459 = vsub.f32 %v3457, %v3458
          %v3460 = vand.u32 %v3459, 4294901760
          %3461 = vmatpush.msra.mxu0 %v3460
          %v3462 = vand.u32 %v3084, 4294901760
          %3463 = vmatmul.f32.gmra.mxu0 %v3462
          %v3464 = vpop.f32.mrf.mxu0
          %v3465 = vadd.f32 %v3400, %v3464
          %v3466 = vand.u32 %v3087, 4294901760
          %3467 = vmatmul.f32.gmra.mxu0 %v3466
          %v3468 = vpop.f32.mrf.mxu0
          %v3469 = vadd.f32 %v3408, %v3468
          %v3470 = vand.u32 %v3090, 4294901760
          %3471 = vmatmul.f32.gmra.mxu0 %v3470
          %v3472 = vpop.f32.mrf.mxu0
          %v3473 = vadd.f32 %v3416, %v3472
          %v3474 = vand.u32 %v3093, 4294901760
          %3475 = vmatmul.f32.gmra.mxu0 %v3474
          %v3476 = vpop.f32.mrf.mxu0
          %v3477 = vadd.f32 %v3424, %v3476
          %3478 = vdwg.mxu0
          %3479 = vmatpush.msra.mxu0 0.0
          %3480 = vmatpush.msra.mxu0 0.0
          %3481 = vmatpush.msra.mxu0 0.0
          %3482 = vmatpush.msra.mxu0 0.0
          %3483 = vmatpush.msra.mxu0 0.0
          %3484 = vmatpush.msra.mxu0 0.0
          %3485 = vmatpush.msra.mxu0 0.0
          %3486 = vmatpush.msra.mxu0 0.0
          %3487 = vmatpush.msra.mxu0 0.0
          %3488 = vmatpush.msra.mxu0 0.0
          %3489 = vmatpush.msra.mxu0 0.0
          %3490 = vmatpush.msra.mxu0 0.0
          %v3491 = vand.u32 %v3054, 4294901760
          %v3492 = vsub.f32 %v3054, %v3491
          %3493 = vmatpush.msra.mxu0 %v3492
          %v3494 = vand.u32 %v3053, 4294901760
          %v3495 = vsub.f32 %v3053, %v3494
          %3496 = vmatpush.msra.mxu0 %v3495
          %v3497 = vand.u32 %v3052, 4294901760
          %v3498 = vsub.f32 %v3052, %v3497
          %3499 = vmatpush.msra.mxu0 %v3498
          %v3500 = vand.u32 %v3051, 4294901760
          %v3501 = vsub.f32 %v3051, %v3500
          %3502 = vmatpush.msra.mxu0 %v3501
          %v3503 = vand.u32 %v3084, 4294901760
          %v3504 = vsub.f32 %v3084, %v3503
          %3505 = vmatmul.f32.gmra.mxu0 %v3504
          %v3506 = vpop.f32.mrf.mxu0
          %v3507 = vadd.f32 %v3465, %v3506
          %v3508 = vand.u32 %v3087, 4294901760
          %v3509 = vsub.f32 %v3087, %v3508
          %3510 = vmatmul.f32.gmra.mxu0 %v3509
          %v3511 = vpop.f32.mrf.mxu0
          %v3512 = vadd.f32 %v3469, %v3511
          %v3513 = vand.u32 %v3090, 4294901760
          %v3514 = vsub.f32 %v3090, %v3513
          %3515 = vmatmul.f32.gmra.mxu0 %v3514
          %v3516 = vpop.f32.mrf.mxu0
          %v3517 = vadd.f32 %v3473, %v3516
          %v3518 = vand.u32 %v3093, 4294901760
          %v3519 = vsub.f32 %v3093, %v3518
          %3520 = vmatmul.f32.gmra.mxu0 %v3519
          %v3521 = vpop.f32.mrf.mxu0
          %v3522 = vadd.f32 %v3477, %v3521
          %3523 = vdwg.mxu0
          %3524 = vmatpush.msra.mxu0 0.0
          %3525 = vmatpush.msra.mxu0 0.0
          %3526 = vmatpush.msra.mxu0 0.0
          %3527 = vmatpush.msra.mxu0 0.0
          %3528 = vmatpush.msra.mxu0 0.0
          %3529 = vmatpush.msra.mxu0 0.0
          %3530 = vmatpush.msra.mxu0 0.0
          %3531 = vmatpush.msra.mxu0 0.0
          %3532 = vmatpush.msra.mxu0 0.0
          %3533 = vmatpush.msra.mxu0 0.0
          %3534 = vmatpush.msra.mxu0 0.0
          %3535 = vmatpush.msra.mxu0 0.0
          %v3536 = vand.u32 %v3054, 4294901760
          %3537 = vmatpush.msra.mxu0 %v3536
          %v3538 = vand.u32 %v3053, 4294901760
          %3539 = vmatpush.msra.mxu0 %v3538
          %v3540 = vand.u32 %v3052, 4294901760
          %3541 = vmatpush.msra.mxu0 %v3540
          %v3542 = vand.u32 %v3051, 4294901760
          %3543 = vmatpush.msra.mxu0 %v3542
          %v3544 = vand.u32 %v3084, 4294901760
          %v3545 = vsub.f32 %v3084, %v3544
          %v3546 = vand.u32 %v3545, 4294901760
          %3547 = vmatmul.f32.gmra.mxu0 %v3546
          %v3548 = vpop.f32.mrf.mxu0
          %v3549 = vadd.f32 %v3507, %v3548
          %v3550 = vand.u32 %v3087, 4294901760
          %v3551 = vsub.f32 %v3087, %v3550
          %v3552 = vand.u32 %v3551, 4294901760
          %3553 = vmatmul.f32.gmra.mxu0 %v3552
          %v3554 = vpop.f32.mrf.mxu0
          %v3555 = vadd.f32 %v3512, %v3554
          %v3556 = vand.u32 %v3090, 4294901760
          %v3557 = vsub.f32 %v3090, %v3556
          %v3558 = vand.u32 %v3557, 4294901760
          %3559 = vmatmul.f32.gmra.mxu0 %v3558
          %v3560 = vpop.f32.mrf.mxu0
          %v3561 = vadd.f32 %v3517, %v3560
          %v3562 = vand.u32 %v3093, 4294901760
          %v3563 = vsub.f32 %v3093, %v3562
          %v3564 = vand.u32 %v3563, 4294901760
          %3565 = vmatmul.f32.gmra.mxu0 %v3564
          %v3566 = vpop.f32.mrf.mxu0
          %v3567 = vadd.f32 %v3522, %v3566
          %3568 = vdwg.mxu0
          %3569 = vmatpush.msra.mxu0 0.0
          %3570 = vmatpush.msra.mxu0 0.0
          %3571 = vmatpush.msra.mxu0 0.0
          %3572 = vmatpush.msra.mxu0 0.0
          %3573 = vmatpush.msra.mxu0 0.0
          %3574 = vmatpush.msra.mxu0 0.0
          %3575 = vmatpush.msra.mxu0 0.0
          %3576 = vmatpush.msra.mxu0 0.0
          %3577 = vmatpush.msra.mxu0 0.0
          %3578 = vmatpush.msra.mxu0 0.0
          %3579 = vmatpush.msra.mxu0 0.0
          %3580 = vmatpush.msra.mxu0 0.0
          %v3581 = vand.u32 %v3054, 4294901760
          %v3582 = vsub.f32 %v3054, %v3581
          %v3583 = vand.u32 %v3582, 4294901760
          %3584 = vmatpush.msra.mxu0 %v3583
          %v3585 = vand.u32 %v3053, 4294901760
          %v3586 = vsub.f32 %v3053, %v3585
          %v3587 = vand.u32 %v3586, 4294901760
          %3588 = vmatpush.msra.mxu0 %v3587
          %v3589 = vand.u32 %v3052, 4294901760
          %v3590 = vsub.f32 %v3052, %v3589
          %v3591 = vand.u32 %v3590, 4294901760
          %3592 = vmatpush.msra.mxu0 %v3591
          %v3593 = vand.u32 %v3051, 4294901760
          %v3594 = vsub.f32 %v3051, %v3593
          %v3595 = vand.u32 %v3594, 4294901760
          %3596 = vmatpush.msra.mxu0 %v3595
          %v3597 = vand.u32 %v3084, 4294901760
          %3598 = vmatmul.f32.gmra.mxu0 %v3597
          %v3599 = vpop.f32.mrf.mxu0
          %v3600 = vadd.f32 %v3549, %v3599
          %v3601 = vand.u32 %v3087, 4294901760
          %3602 = vmatmul.f32.gmra.mxu0 %v3601
          %v3603 = vpop.f32.mrf.mxu0
          %v3604 = vadd.f32 %v3555, %v3603
          %v3605 = vand.u32 %v3090, 4294901760
          %3606 = vmatmul.f32.gmra.mxu0 %v3605
          %v3607 = vpop.f32.mrf.mxu0
          %v3608 = vadd.f32 %v3561, %v3607
          %v3609 = vand.u32 %v3093, 4294901760
          %3610 = vmatmul.f32.gmra.mxu0 %v3609
          %v3611 = vpop.f32.mrf.mxu0
          %v3612 = vadd.f32 %v3567, %v3611
          %3613 = vdwg.mxu0
          %3614 = vmatpush.msra.mxu0 0.0
          %3615 = vmatpush.msra.mxu0 0.0
          %3616 = vmatpush.msra.mxu0 0.0
          %3617 = vmatpush.msra.mxu0 0.0
          %3618 = vmatpush.msra.mxu0 0.0
          %3619 = vmatpush.msra.mxu0 0.0
          %3620 = vmatpush.msra.mxu0 0.0
          %3621 = vmatpush.msra.mxu0 0.0
          %3622 = vmatpush.msra.mxu0 0.0
          %3623 = vmatpush.msra.mxu0 0.0
          %3624 = vmatpush.msra.mxu0 0.0
          %3625 = vmatpush.msra.mxu0 0.0
          %v3626 = vand.u32 %v3054, 4294901760
          %3627 = vmatpush.msra.mxu0 %v3626
          %v3628 = vand.u32 %v3053, 4294901760
          %3629 = vmatpush.msra.mxu0 %v3628
          %v3630 = vand.u32 %v3052, 4294901760
          %3631 = vmatpush.msra.mxu0 %v3630
          %v3632 = vand.u32 %v3051, 4294901760
          %3633 = vmatpush.msra.mxu0 %v3632
          %v3634 = vand.u32 %v3084, 4294901760
          %3635 = vmatmul.f32.gmra.mxu0 %v3634
          %v3636 = vpop.f32.mrf.mxu0
          %v3637 = vadd.f32 %v3600, %v3636
          %v3638 = vand.u32 %v3087, 4294901760
          %3639 = vmatmul.f32.gmra.mxu0 %v3638
          %v3640 = vpop.f32.mrf.mxu0
          %v3641 = vadd.f32 %v3604, %v3640
          %v3642 = vand.u32 %v3090, 4294901760
          %3643 = vmatmul.f32.gmra.mxu0 %v3642
          %v3644 = vpop.f32.mrf.mxu0
          %v3645 = vadd.f32 %v3608, %v3644
          %v3646 = vand.u32 %v3093, 4294901760
          %3647 = vmatmul.f32.gmra.mxu0 %v3646
          %v3648 = vpop.f32.mrf.mxu0
          %v3649 = vadd.f32 %v3612, %v3648
          %3650 = vdwg.mxu0
          %v3651 = vtanh.pop %v3359
          %v3652 = vtanh.pop %v3363
          %v3653 = vtanh.pop %v3367
          %v3654 = vtanh.pop %v3371
          %v3655 = vtanh.pop %v3637
          %v3656 = vtanh.pop %v3641
          %v3657 = vtanh.pop %v3645
          %v3658 = vtanh.pop %v3649
          %v3659 = vld [vmem:[%s9] sm:$0xff]
          %v3660 = vld [vmem:[%s9 + $0x8] sm:$0xff]
          %v3661 = vld [vmem:[%s9 + $0x10] sm:$0xff]
          %v3662 = vld [vmem:[%s9 + $0x18] sm:$0xff]
          %3664 = vset.pattern.permute.xlu0 0
          %3665 = vperm.xlu0 %3664, %v3659
          %v3666 = vpop.permute.xlu0 %3665
          %3669 = vset.pattern.permute.xlu0 0
          %3670 = vperm.xlu0 %3669, %v3660
          %v3671 = vpop.permute.xlu0 %3670
          %3674 = vset.pattern.permute.xlu0 0
          %3675 = vperm.xlu0 %3674, %v3661
          %v3676 = vpop.permute.xlu0 %3675
          %3679 = vset.pattern.permute.xlu0 0
          %3680 = vperm.xlu0 %3679, %v3662
          %v3681 = vpop.permute.xlu0 %3680
          %v3683 = vmul.f32 %v3651, %v3666
          %v3684 = vmul.f32 %v3652, %v3671
          %v3685 = vmul.f32 %v3653, %v3676
          %v3686 = vmul.f32 %v3654, %v3681
          %v3687 = vmul.f32 %v3655, %v3666
          %v3688 = vmul.f32 %v3656, %v3671
          %v3689 = vmul.f32 %v3657, %v3676
          %v3690 = vmul.f32 %v3658, %v3681
          %v3691 = vsel %vm553, %v3683, 0.0
          %v3692 = vsel %vm553, %v3684, 0.0
          %v3693 = vadd.f32 %v3691, %v3692
          %v3694 = vsel %vm553, %v3685, 0.0
          %v3695 = vadd.f32 %v3693, %v3694
          %v3696 = vsel %vm553, %v3686, 0.0
          %v3697 = vadd.f32 %v3695, %v3696
          %v3698 = vrot.slane %v3697, 4
          %v3699 = vadd.f32 %v3697, %v3698
          %v3700 = vrot.slane %v3699, 2
          %v3701 = vadd.f32 %v3699, %v3700
          %v3702 = vrot.slane %v3701, 1
          %v3703 = vadd.f32 %v3701, %v3702
          %v3704 = vsel %vm553, %v3687, 0.0
          %v3705 = vsel %vm553, %v3688, 0.0
          %v3706 = vadd.f32 %v3704, %v3705
          %v3707 = vsel %vm553, %v3689, 0.0
          %v3708 = vadd.f32 %v3706, %v3707
          %v3709 = vsel %vm553, %v3690, 0.0
          %v3710 = vadd.f32 %v3708, %v3709
          %v3711 = vrot.slane %v3710, 4
          %v3712 = vadd.f32 %v3710, %v3711
          %v3713 = vrot.slane %v3712, 2
          %v3714 = vadd.f32 %v3712, %v3713
          %v3715 = vrot.slane %v3714, 1
          %v3716 = vadd.f32 %v3714, %v3715
          %v3717 = vld [vmem:[#allocation3] sm:$0x1]
          %v3719 = vperm.slane %v3717, 0
          %3720 = vset.pattern.permute.xlu0 0
          %3721 = vperm.xlu0 %3720, %v3719
          %v3722 = vpop.permute.xlu0 %3721
          %v3724 = vadd.f32 %v3703, %v3722
          %v3725 = vadd.f32 %v3716, %v3722
          %vm3726 = vcmask 122880
          %3727 = vst.msk [vmem:[#allocation9] sm:$0x1] %vm3726, %v3724
          %3728 = vst.msk [vmem:[#allocation9 + $0x1] sm:$0x1] %vm3726, %v3725
        $region80: #{tpu_custom_call.1} parent=63 // pred_fallthru
          _
        // Predicated region
        $region81: #{tpu_custom_call.1} parent=63 // pred_check
          %p3729 = pneg %p317
        $region82: #{tpu_custom_call.1} parent=63 // pred_check_branch
          %3731 = sbr.rel (%p3729) target = $region84
        $region83: #{tpu_custom_call.1} parent=63 // pred_region
          %s3732 = smul.u32 2, %s35
          %3734 = vsyncadd [#allocation6], 0
          %s3735 = scalar_lea.hbm %s11, %s3732
          %s3736 = sshll.u32 [#allocation9], 4
          %s3737 = int_to_ptr.vmem [resolvable:$true] %s3736
          %s3738 = sshll.u32 %s3735, 4
          %s3739 = int_to_ptr.hbm [resolvable:$true] %s3738
          %3744 = dma.vmem_to_hbm [thread:$0]  %s3737, 32, %s3739, [#allocation6], 16, 16, 1
        $region84: #{tpu_custom_call.1} parent=63 // pred_fallthru
          _
        // Predicated region
        $region85: #{tpu_custom_call.1} parent=63 // pred_check
          %p3745 = pneg %p317
        $region86: #{tpu_custom_call.1} parent=63 // pred_check_branch
          %3747 = sbr.rel (%p3745) target = $region88
        $region87: #{tpu_custom_call.1} parent=63 // pred_region
          %3749 = dma.done [#allocation6], 32
        $region88: #{tpu_custom_call.1} parent=63 // pred_fallthru
          _
      $region64: #{tpu_custom_call.1} parent=5 // pred_fallthru
        _
      %p3750 = scmp.le.s32.totalorder 2, %s26
      // Predicated region
      $region89: #{tpu_custom_call.1} parent=5 // pred_check
        %p3751 = pneg %p3750
      $region90: #{tpu_custom_call.1} parent=5 // pred_check_branch
        %3753 = sbr.rel (%p3751) target = $region92
      $region91: #{tpu_custom_call.1} parent=5 // pred_region
        %s3754 = ssub.s32 %s26, 2
      $region92: #{tpu_custom_call.1} parent=5 // pred_fallthru
        _
    $region6: #{tpu_custom_call.1} parent=1 // loop_footer
      %s30 = sadd.s32 1, %s26
    $region7: #{tpu_custom_call.1} parent=1 // loop_footer_branch
      %25 = sbr.rel target = $region3
    $region8: #{tpu_custom_call.1} parent=1 // loop_exit
      _
    %3755 = vsyncpa [#allocation5], 1
    %s3756 = scalar_lea.sflag [#allocation5], 1
    %3757 = vsyncpa %s3756, 1
    %3758 = vsyncpa [#allocation8], 1
    %s3759 = scalar_lea.sflag [#allocation8], 1
    %3760 = vsyncpa %s3759, 1
    %3761 = vsyncpa [#allocation6], 1
    %s3762 = scalar_lea.sflag [#allocation6], 1
    %3763 = vsyncpa %s3762, 1

// kernel: tpu_custom_call.1
$region0: #{tpu_custom_call.1}
  #allocation0 [shape = 'u32[]', space=smem, size = 0x4, offset = 0x4, fixed_abs, tag = 'smem constant byte address 0x4 - core index']
  #allocation1 [shape = 'u32[72,128]{1,0:T(1,128)}', space=vmem, size = 0x9000, scoped, tag = 'internal scratch']
  #allocation2 [shape = 'f32[2,32,16]{2,1,0:T(8,128)}', space=vmem, size = 0x8000, scoped, tag = 'scratch operand']
  #allocation3 [shape = 'f32[1,1]{1,0:T(1,128)S(1)}', space=vmem, size = 0x200, scoped, tag = 'scoped memory for tpu_custom_call.1']
  %s0 = inlined_call_operand.vmem [shape: f32[2,32,16], index: 0, kind: input, shape index: {}]
  %s1 = inlined_call_operand.vmem [shape: f32[16,16], index: 1, kind: input, shape index: {}]
  %s2 = inlined_call_operand.vmem [shape: f32[16,16], index: 2, kind: input, shape index: {}]
  %s3 = inlined_call_operand.hbm [shape: f32[3,8,32,32], index: 3, kind: input, shape index: {}]
  %s4 = inlined_call_operand.hbm [shape: f32[3,8,32,32], index: 4, kind: input, shape index: {}]
  %s5 = inlined_call_operand.vmem [shape: f32[3,32,32], index: 5, kind: input, shape index: {}]
  %s6 = inlined_call_operand.vmem [shape: f32[3,32,1], index: 6, kind: input, shape index: {}]
  %s7 = inlined_call_operand.vmem [shape: f32[32,32], index: 7, kind: input, shape index: {}]
  %s8 = inlined_call_operand.vmem [shape: f32[32,1], index: 8, kind: input, shape index: {}]
  %s9 = inlined_call_operand.vmem [shape: f32[32,1], index: 9, kind: input, shape index: {}]
  %s10 = inlined_call_operand.<no memory space> [shape: f32[1,1], index: 10, kind: input, shape index: {}]
  %s11 = inlined_call_operand.hbm [shape: f32[2,1,16], index: 11, kind: output, shape index: {}]
  %s12 = sld [smem:[#allocation0]]
  $region93: #{tpu_custom_call.1} parent=0
    _
  %s14 = ssub.s32 1, %s12
  %s15 = scalar_select 0, %s14, %s12
  %v16 = vstv %s10
  %17 = vst [vmem:[#allocation3] sm:$0x1] %v16
  $region1: #{tpu_custom_call.1} parent=0
    #allocation4 [shape = 'u8[262144]{0}', space=vmem, size = 0x40000, scoped, tag = 'input window, operand 3']
    #allocation5 [shape = 's32[2]{0}', space=sflag, size = 0x8, scoped, tag = 'scoped memory for tpu_custom_call.1']
    #allocation6 [shape = 's32[2]{0}', space=sflag, size = 0x8, scoped, tag = 'scoped memory for tpu_custom_call.1']
    #allocation7 [shape = 'u8[262144]{0}', space=vmem, size = 0x40000, scoped, tag = 'input window, operand 4']
    #allocation8 [shape = 's32[2]{0}', space=sflag, size = 0x8, scoped, tag = 'scoped memory for tpu_custom_call.1']
    #allocation9 [shape = 'u8[1024]{0}', space=vmem, size = 0x400, scoped, tag = 'output window, operand 0, single buffered']
    %18 = vsyncpa [#allocation5], 0
    %s19 = scalar_lea.sflag [#allocation5], 1
    %20 = vsyncpa %s19, 0
    %21 = vsyncpa [#allocation8], 0
    %s22 = scalar_lea.sflag [#allocation8], 1
    %23 = vsyncpa %s22, 0
    %24 = vsyncpa [#allocation6], 0
    loop: start=0, step=1, limit=5
    $region2: #{tpu_custom_call.1} parent=1 // loop_pre_header
      _
    $region3: #{tpu_custom_call.1} parent=1 // loop_header
      %s26 = sphi 0, %s30
      %p27 = scmp.ge.s32.totalorder %s26, 5
      %s33 = sphi 0, %s45
      %s34 = sphi 0, %s41
      %s35 = sphi 0, %s33
      %s36 = sphi 0, %s34
      %s37 = sphi 0, %s35
      %s38 = sphi 0, %s36
      %s48 = sphi 0, %s50
      %s51 = sphi 0, %s48
      %s52 = sphi 0, %s51
      %s68 = sphi 0, %s52
      %s72 = sphi 0, %s72
      %s74 = sphi 0, %s72
      %s75 = sphi 0, %s74
      %s89 = sphi 0, %s75
      %s93 = sphi 0, %s93
      %s95 = sphi 0, %s93
      %s96 = sphi 0, %s95
      %s110 = sphi 0, %s96
      %s116 = sphi 0, %s118
      %s119 = sphi 0, %s116
      %s120 = sphi 0, %s119
      %s136 = sphi 0, %s120
      %s142 = sphi 0, %s144
      %s145 = sphi 0, %s142
      %s146 = sphi 0, %s145
      %s162 = sphi 0, %s146
      %s168 = sphi 0, %s170
      %s171 = sphi 0, %s168
      %s172 = sphi 0, %s171
      %s188 = sphi 0, %s172
      %s194 = sphi 0, %s196
      %s197 = sphi 0, %s194
      %s198 = sphi 0, %s197
      %s214 = sphi 0, %s198
      %s218 = sphi 0, %s218
      %s220 = sphi 0, %s218
      %s221 = sphi 0, %s220
      %s235 = sphi 0, %s221
      %s239 = sphi 0, %s239
      %s241 = sphi 0, %s239
      %s242 = sphi 0, %s241
      %s256 = sphi 0, %s242
      %s260 = sphi 0, %s260
      %s262 = sphi 0, %s260
      %s263 = sphi 0, %s262
      %s277 = sphi 0, %s263
      %s281 = sphi 0, %s281
      %s283 = sphi 0, %s281
      %s284 = sphi 0, %s283
      %s298 = sphi 0, %s284
      %s304 = sphi 0, %s306
      %s307 = sphi 0, %s304
      %s308 = sphi 0, %s307
      %s324 = sphi 0, %s308
    $region4: #{tpu_custom_call.1} parent=1 // loop_header_branch
      %29 = sbr.rel (%p27) target = $region8
    $region5: #{tpu_custom_call.1} parent=1 // loop_body
      %s31 = ssub.s32 %s26, 1
      %s32 = ssub.s32 %s26, 2
      %s39 = sadd.s32 1, %s34
      %p40 = scmp.ge.s32.totalorder %s39, 3
      %s41 = scalar_select %p40, 0, %s39
      %s42 = sadd.s32 1, %s33
      %s43 = scalar_select %p40, %s42, %s33
      %p44 = scmp.ge.s32.totalorder %s43, 1
      %s45 = scalar_select %p44, 0, %s43
      %s46 = ssub.s32 %s33, %s45
      %p47 = scmp.eq.s32.totalorder %s46, 0
      %s49 = sadd.s32 %s48, 1
      %s50 = scalar_select %p47, %s48, %s49
      %p53 = pneg %p47
      %p54 = scmp.eq.s32.totalorder %s26, 2
      %p55 = por %p53, %p54
      %p56 = scmp.ne.s32.totalorder %s48, %s51
      %p57 = scmp.eq.s32.totalorder %s26, 0
      %p58 = por %p56, %p57
      %p59 = scmp.ne.s32.totalorder %s48, %s51
      %p60 = scmp.eq.s32.totalorder %s31, 2
      %p61 = por %p59, %p60
      %p62 = scmp.ne.s32.totalorder %s51, %s52
      %p63 = scmp.eq.s32.totalorder %s31, 0
      %p64 = por %p62, %p63
      %p65 = scmp.ne.s32.totalorder %s51, %s52
      %p66 = scmp.eq.s32.totalorder %s32, 2
      %p67 = por %p65, %p66
      %p69 = scmp.ne.s32.totalorder %s52, %s68
      %p70 = scmp.eq.s32.totalorder %s32, 0
      %p71 = por %p69, %p70
      %s73 = sadd.s32 %s72, 1
      %p76 = scmp.eq.s32.totalorder %s26, 2
      %p77 = scmp.ne.s32.totalorder %s72, %s74
      %p78 = scmp.eq.s32.totalorder %s26, 0
      %p79 = por %p77, %p78
      %p80 = scmp.ne.s32.totalorder %s72, %s74
      %p81 = scmp.eq.s32.totalorder %s31, 2
      %p82 = por %p80, %p81
      %p83 = scmp.ne.s32.totalorder %s74, %s75
      %p84 = scmp.eq.s32.totalorder %s31, 0
      %p85 = por %p83, %p84
      %p86 = scmp.ne.s32.totalorder %s74, %s75
      %p87 = scmp.eq.s32.totalorder %s32, 2
      %p88 = por %p86, %p87
      %p90 = scmp.ne.s32.totalorder %s75, %s89
      %p91 = scmp.eq.s32.totalorder %s32, 0
      %p92 = por %p90, %p91
      %s94 = sadd.s32 %s93, 1
      %p97 = scmp.eq.s32.totalorder %s26, 2
      %p98 = scmp.ne.s32.totalorder %s93, %s95
      %p99 = scmp.eq.s32.totalorder %s26, 0
      %p100 = por %p98, %p99
      %p101 = scmp.ne.s32.totalorder %s93, %s95
      %p102 = scmp.eq.s32.totalorder %s31, 2
      %p103 = por %p101, %p102
      %p104 = scmp.ne.s32.totalorder %s95, %s96
      %p105 = scmp.eq.s32.totalorder %s31, 0
      %p106 = por %p104, %p105
      %p107 = scmp.ne.s32.totalorder %s95, %s96
      %p108 = scmp.eq.s32.totalorder %s32, 2
      %p109 = por %p107, %p108
      %p111 = scmp.ne.s32.totalorder %s96, %s110
      %p112 = scmp.eq.s32.totalorder %s32, 0
      %p113 = por %p111, %p112
      %s114 = ssub.s32 %s34, %s41
      %p115 = scmp.eq.s32.totalorder %s114, 0
      %s117 = sadd.s32 %s116, 1
      %s118 = scalar_select %p115, %s116, %s117
      %p121 = pneg %p115
      %p122 = scmp.eq.s32.totalorder %s26, 2
      %p123 = por %p121, %p122
      %p124 = scmp.ne.s32.totalorder %s116, %s119
      %p125 = scmp.eq.s32.totalorder %s26, 0
      %p126 = por %p124, %p125
      %p127 = scmp.ne.s32.totalorder %s116, %s119
      %p128 = scmp.eq.s32.totalorder %s31, 2
      %p129 = por %p127, %p128
      %p130 = scmp.ne.s32.totalorder %s119, %s120
      %p131 = scmp.eq.s32.totalorder %s31, 0
      %p132 = por %p130, %p131
      %p133 = scmp.ne.s32.totalorder %s119, %s120
      %p134 = scmp.eq.s32.totalorder %s32, 2
      %p135 = por %p133, %p134
      %p137 = scmp.ne.s32.totalorder %s120, %s136
      %p138 = scmp.eq.s32.totalorder %s32, 0
      %p139 = por %p137, %p138
      %s140 = ssub.s32 %s34, %s41
      %p141 = scmp.eq.s32.totalorder %s140, 0
      %s143 = sadd.s32 %s142, 1
      %s144 = scalar_select %p141, %s142, %s143
      %p147 = pneg %p141
      %p148 = scmp.eq.s32.totalorder %s26, 2
      %p149 = por %p147, %p148
      %p150 = scmp.ne.s32.totalorder %s142, %s145
      %p151 = scmp.eq.s32.totalorder %s26, 0
      %p152 = por %p150, %p151
      %p153 = scmp.ne.s32.totalorder %s142, %s145
      %p154 = scmp.eq.s32.totalorder %s31, 2
      %p155 = por %p153, %p154
      %p156 = scmp.ne.s32.totalorder %s145, %s146
      %p157 = scmp.eq.s32.totalorder %s31, 0
      %p158 = por %p156, %p157
      %p159 = scmp.ne.s32.totalorder %s145, %s146
      %p160 = scmp.eq.s32.totalorder %s32, 2
      %p161 = por %p159, %p160
      %p163 = scmp.ne.s32.totalorder %s146, %s162
      %p164 = scmp.eq.s32.totalorder %s32, 0
      %p165 = por %p163, %p164
      %s166 = ssub.s32 %s34, %s41
      %p167 = scmp.eq.s32.totalorder %s166, 0
      %s169 = sadd.s32 %s168, 1
      %s170 = scalar_select %p167, %s168, %s169
      %p173 = pneg %p167
      %p174 = scmp.eq.s32.totalorder %s26, 2
      %p175 = por %p173, %p174
      %p176 = scmp.ne.s32.totalorder %s168, %s171
      %p177 = scmp.eq.s32.totalorder %s26, 0
      %p178 = por %p176, %p177
      %p179 = scmp.ne.s32.totalorder %s168, %s171
      %p180 = scmp.eq.s32.totalorder %s31, 2
      %p181 = por %p179, %p180
      %p182 = scmp.ne.s32.totalorder %s171, %s172
      %p183 = scmp.eq.s32.totalorder %s31, 0
      %p184 = por %p182, %p183
      %p185 = scmp.ne.s32.totalorder %s171, %s172
      %p186 = scmp.eq.s32.totalorder %s32, 2
      %p187 = por %p185, %p186
      %p189 = scmp.ne.s32.totalorder %s172, %s188
      %p190 = scmp.eq.s32.totalorder %s32, 0
      %p191 = por %p189, %p190
      %s192 = ssub.s32 %s34, %s41
      %p193 = scmp.eq.s32.totalorder %s192, 0
      %s195 = sadd.s32 %s194, 1
      %s196 = scalar_select %p193, %s194, %s195
      %p199 = pneg %p193
      %p200 = scmp.eq.s32.totalorder %s26, 2
      %p201 = por %p199, %p200
      %p202 = scmp.ne.s32.totalorder %s194, %s197
      %p203 = scmp.eq.s32.totalorder %s26, 0
      %p204 = por %p202, %p203
      %p205 = scmp.ne.s32.totalorder %s194, %s197
      %p206 = scmp.eq.s32.totalorder %s31, 2
      %p207 = por %p205, %p206
      %p208 = scmp.ne.s32.totalorder %s197, %s198
      %p209 = scmp.eq.s32.totalorder %s31, 0
      %p210 = por %p208, %p209
      %p211 = scmp.ne.s32.totalorder %s197, %s198
      %p212 = scmp.eq.s32.totalorder %s32, 2
      %p213 = por %p211, %p212
      %p215 = scmp.ne.s32.totalorder %s198, %s214
      %p216 = scmp.eq.s32.totalorder %s32, 0
      %p217 = por %p215, %p216
      %s219 = sadd.s32 %s218, 1
      %p222 = scmp.eq.s32.totalorder %s26, 2
      %p223 = scmp.ne.s32.totalorder %s218, %s220
      %p224 = scmp.eq.s32.totalorder %s26, 0
      %p225 = por %p223, %p224
      %p226 = scmp.ne.s32.totalorder %s218, %s220
      %p227 = scmp.eq.s32.totalorder %s31, 2
      %p228 = por %p226, %p227
      %p229 = scmp.ne.s32.totalorder %s220, %s221
      %p230 = scmp.eq.s32.totalorder %s31, 0
      %p231 = por %p229, %p230
      %p232 = scmp.ne.s32.totalorder %s220, %s221
      %p233 = scmp.eq.s32.totalorder %s32, 2
      %p234 = por %p232, %p233
      %p236 = scmp.ne.s32.totalorder %s221, %s235
      %p237 = scmp.eq.s32.totalorder %s32, 0
      %p238 = por %p236, %p237
      %s240 = sadd.s32 %s239, 1
      %p243 = scmp.eq.s32.totalorder %s26, 2
      %p244 = scmp.ne.s32.totalorder %s239, %s241
      %p245 = scmp.eq.s32.totalorder %s26, 0
      %p246 = por %p244, %p245
      %p247 = scmp.ne.s32.totalorder %s239, %s241
      %p248 = scmp.eq.s32.totalorder %s31, 2
      %p249 = por %p247, %p248
      %p250 = scmp.ne.s32.totalorder %s241, %s242
      %p251 = scmp.eq.s32.totalorder %s31, 0
      %p252 = por %p250, %p251
      %p253 = scmp.ne.s32.totalorder %s241, %s242
      %p254 = scmp.eq.s32.totalorder %s32, 2
      %p255 = por %p253, %p254
      %p257 = scmp.ne.s32.totalorder %s242, %s256
      %p258 = scmp.eq.s32.totalorder %s32, 0
      %p259 = por %p257, %p258
      %s261 = sadd.s32 %s260, 1
      %p264 = scmp.eq.s32.totalorder %s26, 2
      %p265 = scmp.ne.s32.totalorder %s260, %s262
      %p266 = scmp.eq.s32.totalorder %s26, 0
      %p267 = por %p265, %p266
      %p268 = scmp.ne.s32.totalorder %s260, %s262
      %p269 = scmp.eq.s32.totalorder %s31, 2
      %p270 = por %p268, %p269
      %p271 = scmp.ne.s32.totalorder %s262, %s263
      %p272 = scmp.eq.s32.totalorder %s31, 0
      %p273 = por %p271, %p272
      %p274 = scmp.ne.s32.totalorder %s262, %s263
      %p275 = scmp.eq.s32.totalorder %s32, 2
      %p276 = por %p274, %p275
      %p278 = scmp.ne.s32.totalorder %s263, %s277
      %p279 = scmp.eq.s32.totalorder %s32, 0
      %p280 = por %p278, %p279
      %s282 = sadd.s32 %s281, 1
      %p285 = scmp.eq.s32.totalorder %s26, 2
      %p286 = scmp.ne.s32.totalorder %s281, %s283
      %p287 = scmp.eq.s32.totalorder %s26, 0
      %p288 = por %p286, %p287
      %p289 = scmp.ne.s32.totalorder %s281, %s283
      %p290 = scmp.eq.s32.totalorder %s31, 2
      %p291 = por %p289, %p290
      %p292 = scmp.ne.s32.totalorder %s283, %s284
      %p293 = scmp.eq.s32.totalorder %s31, 0
      %p294 = por %p292, %p293
      %p295 = scmp.ne.s32.totalorder %s283, %s284
      %p296 = scmp.eq.s32.totalorder %s32, 2
      %p297 = por %p295, %p296
      %p299 = scmp.ne.s32.totalorder %s284, %s298
      %p300 = scmp.eq.s32.totalorder %s32, 0
      %p301 = por %p299, %p300
      %s302 = ssub.s32 %s33, %s45
      %p303 = scmp.eq.s32.totalorder %s302, 0
      %s305 = sadd.s32 %s304, 1
      %s306 = scalar_select %p303, %s304, %s305
      %p309 = pneg %p303
      %p310 = scmp.eq.s32.totalorder %s26, 2
      %p311 = por %p309, %p310
      %p312 = scmp.ne.s32.totalorder %s304, %s307
      %p313 = scmp.eq.s32.totalorder %s26, 0
      %p314 = por %p312, %p313
      %p315 = scmp.ne.s32.totalorder %s304, %s307
      %p316 = scmp.eq.s32.totalorder %s31, 2
      %p317 = por %p315, %p316
      %p318 = scmp.ne.s32.totalorder %s307, %s308
      %p319 = scmp.eq.s32.totalorder %s31, 0
      %p320 = por %p318, %p319
      %p321 = scmp.ne.s32.totalorder %s307, %s308
      %p322 = scmp.eq.s32.totalorder %s32, 2
      %p323 = por %p321, %p322
      %p325 = scmp.ne.s32.totalorder %s308, %s324
      %p326 = scmp.eq.s32.totalorder %s32, 0
      %p327 = por %p325, %p326
      %p328 = scmp.le.s32.totalorder 1, %s26
      %p329 = scmp.lt.s32.totalorder %s26, 4
      %p330 = pnand %p328, %p329
      %p331 = pneg %p330
      // Predicated region
      $region9: #{tpu_custom_call.1} parent=5 // pred_check
        _
      $region10: #{tpu_custom_call.1} parent=5 // pred_check_branch
        %333 = sbr.rel (%p330) target = $region12
      $region11: #{tpu_custom_call.1} parent=5 // pred_region
        %s334 = ssub.s32 %s26, 1
        // Predicated region
        $region13: #{tpu_custom_call.1} parent=11 // pred_check
          %p335 = pneg %p64
        $region14: #{tpu_custom_call.1} parent=11 // pred_check_branch
          %337 = sbr.rel (%p335) target = $region16
        $region15: #{tpu_custom_call.1} parent=11 // pred_region
          %s338 = smul.u32 2, %s35
          %p339 = scmp.lt.s32.totalorder %s338, 1
          %s340 = scalar_select %p339, %s338, 1
          %s341 = smul.addr %s340, 4
          %s342 = smul.addr %s341, 8
          %s343 = scalar_lea.vmem %s0, %s342
          %s344 = smul.u32 2, %s35
        $region16: #{tpu_custom_call.1} parent=11 // pred_fallthru
          _
        // Predicated region
        $region17: #{tpu_custom_call.1} parent=11 // pred_check
          %p345 = pneg %p85
        $region18: #{tpu_custom_call.1} parent=11 // pred_check_branch
          %347 = sbr.rel (%p345) target = $region20
        $region19: #{tpu_custom_call.1} parent=11 // pred_region
          _
        $region20: #{tpu_custom_call.1} parent=11 // pred_fallthru
          _
        // Predicated region
        $region21: #{tpu_custom_call.1} parent=11 // pred_check
          %p348 = pneg %p106
        $region22: #{tpu_custom_call.1} parent=11 // pred_check_branch
          %350 = sbr.rel (%p348) target = $region24
        $region23: #{tpu_custom_call.1} parent=11 // pred_region
          _
        $region24: #{tpu_custom_call.1} parent=11 // pred_fallthru
          _
        // Predicated region
        $region25: #{tpu_custom_call.1} parent=11 // pred_check
          %p351 = pneg %p231
        $region26: #{tpu_custom_call.1} parent=11 // pred_check_branch
          %353 = sbr.rel (%p351) target = $region28
        $region27: #{tpu_custom_call.1} parent=11 // pred_region
          _
        $region28: #{tpu_custom_call.1} parent=11 // pred_fallthru
          _
        // Predicated region
        $region29: #{tpu_custom_call.1} parent=11 // pred_check
          %p354 = pneg %p252
        $region30: #{tpu_custom_call.1} parent=11 // pred_check_branch
          %356 = sbr.rel (%p354) target = $region32
        $region31: #{tpu_custom_call.1} parent=11 // pred_region
          _
        $region32: #{tpu_custom_call.1} parent=11 // pred_fallthru
          _
        // Predicated region
        $region33: #{tpu_custom_call.1} parent=11 // pred_check
          %p357 = pneg %p273
        $region34: #{tpu_custom_call.1} parent=11 // pred_check_branch
          %359 = sbr.rel (%p357) target = $region36
        $region35: #{tpu_custom_call.1} parent=11 // pred_region
          _
        $region36: #{tpu_custom_call.1} parent=11 // pred_fallthru
          _
        // Predicated region
        $region37: #{tpu_custom_call.1} parent=11 // pred_check
          %p360 = pneg %p294
        $region38: #{tpu_custom_call.1} parent=11 // pred_check_branch
          %362 = sbr.rel (%p360) target = $region40
        $region39: #{tpu_custom_call.1} parent=11 // pred_region
          _
        $region40: #{tpu_custom_call.1} parent=11 // pred_fallthru
          _
      $region12: #{tpu_custom_call.1} parent=5 // pred_fallthru
        _
      %p363 = scmp.lt.s32.totalorder %s26, 3
      // Predicated region
      $region41: #{tpu_custom_call.1} parent=5 // pred_check
        %p364 = pneg %p363
      $region42: #{tpu_custom_call.1} parent=5 // pred_check_branch
        %366 = sbr.rel (%p364) target = $region44
      $region43: #{tpu_custom_call.1} parent=5 // pred_region
        // Predicated region
        $region45: #{tpu_custom_call.1} parent=43 // pred_check
          %p367 = pneg %p126
        $region46: #{tpu_custom_call.1} parent=43 // pred_check_branch
          %369 = sbr.rel (%p367) target = $region48
        $region47: #{tpu_custom_call.1} parent=43 // pred_region
          %s370 = sand.u32 %s116, 1
          %s371 = scalar_lea.sflag [#allocation5], %s370
          %s372 = sand.u32 %s116, 1
          %s373 = smul.addr %s372, 256
          %s374 = scalar_lea.vmem [#allocation4], %s373
          %376 = vsyncadd %s371, 0
          %s377 = smul.addr %s34, 32
          %s378 = smul.addr %s377, 8
          %s379 = scalar_lea.hbm %s3, %s378
          %s380 = sshll.u32 %s379, 4
          %s381 = int_to_ptr.hbm [resolvable:$true] %s380
          %s382 = sshll.u32 %s374, 4
          %s383 = int_to_ptr.vmem [resolvable:$true] %s382
          %388 = dma.hbm_to_vmem [thread:$0]  %s381, 4096, %s383, %s371, 128, 128, 8
        $region48: #{tpu_custom_call.1} parent=43 // pred_fallthru
          _
        // Predicated region
        $region49: #{tpu_custom_call.1} parent=43 // pred_check
          %p389 = pneg %p152
        $region50: #{tpu_custom_call.1} parent=43 // pred_check_branch
          %391 = sbr.rel (%p389) target = $region52
        $region51: #{tpu_custom_call.1} parent=43 // pred_region
          %s392 = sand.u32 %s142, 1
          %s393 = scalar_lea.sflag [#allocation8], %s392
          %s394 = sand.u32 %s142, 1
          %s395 = smul.addr %s394, 256
          %s396 = scalar_lea.vmem [#allocation7], %s395
          %398 = vsyncadd %s393, 0
          %s399 = smul.addr %s34, 32
          %s400 = smul.addr %s399, 8
          %s401 = scalar_lea.hbm %s4, %s400
          %s402 = sshll.u32 %s401, 4
          %s403 = int_to_ptr.hbm [resolvable:$true] %s402
          %s404 = sshll.u32 %s396, 4
          %s405 = int_to_ptr.vmem [resolvable:$true] %s404
          %410 = dma.hbm_to_vmem [thread:$0]  %s403, 4096, %s405, %s393, 128, 128, 8
        $region52: #{tpu_custom_call.1} parent=43 // pred_fallthru
          _
        // Predicated region
        $region53: #{tpu_custom_call.1} parent=43 // pred_check
          %p411 = pneg %p178
        $region54: #{tpu_custom_call.1} parent=43 // pred_check_branch
          %413 = sbr.rel (%p411) target = $region56
        $region55: #{tpu_custom_call.1} parent=43 // pred_region
          %p414 = scmp.lt.s32.totalorder %s34, 2
          %s415 = scalar_select %p414, %s34, 2
          %s416 = smul.addr %s415, 4
          %s417 = smul.addr %s416, 8
          %s418 = scalar_lea.vmem %s5, %s417
        $region56: #{tpu_custom_call.1} parent=43 // pred_fallthru
          _
        // Predicated region
        $region57: #{tpu_custom_call.1} parent=43 // pred_check
          %p419 = pneg %p204
        $region58: #{tpu_custom_call.1} parent=43 // pred_check_branch
          %421 = sbr.rel (%p419) target = $region60
        $region59: #{tpu_custom_call.1} parent=43 // pred_region
          %p422 = scmp.lt.s32.totalorder %s34, 2
          %s423 = scalar_select %p422, %s34, 2
          %s424 = smul.addr %s423, 4
          %s425 = smul.addr %s424, 8
          %s426 = scalar_lea.vmem %s6, %s425
        $region60: #{tpu_custom_call.1} parent=43 // pred_fallthru
          _
      $region44: #{tpu_custom_call.1} parent=5 // pred_fallthru
        _
      %p427 = scmp.le.s32.totalorder 1, %s26
      %p428 = scmp.lt.s32.totalorder %s26, 4
      %p429 = pnand %p427, %p428
      %p430 = pneg %p429
      // Predicated region
      $region61: #{tpu_custom_call.1} parent=5 // pred_check
        _
      $region62: #{tpu_custom_call.1} parent=5 // pred_check_branch
        %432 = sbr.rel (%p429) target = $region64
      $region63: #{tpu_custom_call.1} parent=5 // pred_region
        %s433 = ssub.s32 %s26, 1
        %s434 = sand.u32 %s119, 1
        %s435 = scalar_lea.sflag [#allocation5], %s434
        %s436 = sand.u32 %s119, 1
        %s437 = smul.addr %s436, 256
        %s438 = scalar_lea.vmem [#allocation4], %s437
        // Predicated region
        $region65: #{tpu_custom_call.1} parent=63 // pred_check
          %p439 = pneg %p132
        $region66: #{tpu_custom_call.1} parent=63 // pred_check_branch
          %441 = sbr.rel (%p439) target = $region68
        $region67: #{tpu_custom_call.1} parent=63 // pred_region
          %443 = dma.done %s435, 4096
        $region68: #{tpu_custom_call.1} parent=63 // pred_fallthru
          _
        %s444 = sand.u32 %s145, 1
        %s445 = scalar_lea.sflag [#allocation8], %s444
        %s446 = sand.u32 %s145, 1
        %s447 = smul.addr %s446, 256
        %s448 = scalar_lea.vmem [#allocation7], %s447
        // Predicated region
        $region69: #{tpu_custom_call.1} parent=63 // pred_check
          %p449 = pneg %p158
        $region70: #{tpu_custom_call.1} parent=63 // pred_check_branch
          %451 = sbr.rel (%p449) target = $region72
        $region71: #{tpu_custom_call.1} parent=63 // pred_region
          %453 = dma.done %s445, 4096
        $region72: #{tpu_custom_call.1} parent=63 // pred_fallthru
          _
        %s454 = smul.u32 2, %s35
        %p455 = scmp.lt.s32.totalorder %s454, 1
        %s456 = scalar_select %p455, %s454, 1
        %s457 = smul.addr %s456, 4
        %s458 = smul.addr %s457, 8
        %s459 = scalar_lea.vmem %s0, %s458
        %p460 = pneg %p64
        %p461 = pneg %p61
        %p462 = pneg %p85
        %p463 = pneg %p82
        %p464 = pneg %p106
        %p465 = pneg %p103
        %s466 = sand.u32 %s119, 1
        %s467 = scalar_lea.sflag [#allocation5], %s466
        %s468 = sand.u32 %s119, 1
        %s469 = smul.addr %s468, 256
        %s470 = scalar_lea.vmem [#allocation4], %s469
        %p471 = pneg %p132
        %p472 = pneg %p129
        %s473 = sand.u32 %s145, 1
        %s474 = scalar_lea.sflag [#allocation8], %s473
        %s475 = sand.u32 %s145, 1
        %s476 = smul.addr %s475, 256
        %s477 = scalar_lea.vmem [#allocation7], %s476
        %p478 = pneg %p158
        %p479 = pneg %p155
        %p480 = scmp.lt.s32.totalorder %s36, 2
        %s481 = scalar_select %p480, %s36, 2
        %s482 = smul.addr %s481, 4
        %s483 = smul.addr %s482, 8
        %s484 = scalar_lea.vmem %s5, %s483
        %p485 = pneg %p184
        %p486 = pneg %p181
        %p487 = scmp.lt.s32.totalorder %s36, 2
        %s488 = scalar_select %p487, %s36, 2
        %s489 = smul.addr %s488, 4
        %s490 = smul.addr %s489, 8
        %s491 = scalar_lea.vmem %s6, %s490
        %p492 = pneg %p210
        %p493 = pneg %p207
        %p494 = pneg %p231
        %p495 = pneg %p228
        %p496 = pneg %p252
        %p497 = pneg %p249
        %p498 = pneg %p273
        %p499 = pneg %p270
        %p500 = pneg %p294
        %p501 = pneg %p291
        %p502 = pneg %p320
        %p503 = pneg %p317
        %s504 = smul.u32 2, %s35
        %p505 = scmp.lt.s32.totalorder %s504, 1
        %s506 = scalar_select %p505, %s504, 1
        %s507 = smul.addr %s506, 4
        %s508 = smul.addr %s507, 8
        %s509 = scalar_lea.vmem %s0, %s508
        %s510 = smul.u32 2, %s35
        %p511 = scmp.lt.s32.totalorder %s36, 2
        %s512 = scalar_select %p511, %s36, 2
        %s513 = smul.addr %s512, 4
        %s514 = smul.addr %s513, 8
        %s515 = scalar_lea.vmem %s5, %s514
        %p516 = scmp.lt.s32.totalorder %s36, 2
        %s517 = scalar_select %p516, %s36, 2
        %s518 = smul.addr %s517, 4
        %s519 = smul.addr %s518, 8
        %s520 = scalar_lea.vmem %s6, %s519
        %s521 = smul.u32 2, %s35
        %p522 = scmp.eq.s32.totalorder %s36, 0
        // Predicated region
        $region73: #{tpu_custom_call.1} parent=63 // pred_check
          %p523 = pneg %p522
        $region74: #{tpu_custom_call.1} parent=63 // pred_check_branch
          %525 = sbr.rel (%p523) target = $region76
        $region75: #{tpu_custom_call.1} parent=63 // pred_region
          %v526 = vld [vmem:[%s509] sm:$0xff]
          %v527 = vld [vmem:[%s509 + $0x8] sm:$0xff]
          %v528 = vld [vmem:[%s509 + $0x10] sm:$0xff]
          %v529 = vld [vmem:[%s509 + $0x18] sm:$0xff]
          %v530 = vld [vmem:[%s509 + $0x20] sm:$0xff]
          %v531 = vld [vmem:[%s509 + $0x28] sm:$0xff]
          %v532 = vld [vmem:[%s509 + $0x30] sm:$0xff]
          %v533 = vld [vmem:[%s509 + $0x38] sm:$0xff]
          %vm534 = vcmask 130048
          %535 = vst.msk [vmem:[#allocation2] sm:$0xff] %vm534, %v526
          %536 = vst.msk [vmem:[#allocation2 + $0x8] sm:$0xff] %vm534, %v527
          %537 = vst.msk [vmem:[#allocation2 + $0x10] sm:$0xff] %vm534, %v528
          %538 = vst.msk [vmem:[#allocation2 + $0x18] sm:$0xff] %vm534, %v529
          %539 = vst.msk [vmem:[#allocation2 + $0x20] sm:$0xff] %vm534, %v530
          %540 = vst.msk [vmem:[#allocation2 + $0x28] sm:$0xff] %vm534, %v531
          %541 = vst.msk [vmem:[#allocation2 + $0x30] sm:$0xff] %vm534, %v532
          %542 = vst.msk [vmem:[#allocation2 + $0x38] sm:$0xff] %vm534, %v533
        $region76: #{tpu_custom_call.1} parent=63 // pred_fallthru
          _
        %v543 = vld [vmem:[#allocation2] sm:$0xff]
        %v544 = vld [vmem:[#allocation2 + $0x8] sm:$0xff]
        %v545 = vld [vmem:[#allocation2 + $0x10] sm:$0xff]
        %v546 = vld [vmem:[#allocation2 + $0x18] sm:$0xff]
        %v547 = vld [vmem:[#allocation2 + $0x20] sm:$0xff]
        %v548 = vld [vmem:[#allocation2 + $0x28] sm:$0xff]
        %v549 = vld [vmem:[#allocation2 + $0x30] sm:$0xff]
        %v550 = vld [vmem:[#allocation2 + $0x38] sm:$0xff]
        %v551 = vld [vmem:[%s1] sm:$0xff]
        %v552 = vld [vmem:[%s1 + $0x8] sm:$0xff]
        %vm553 = vcmask 130048
        %v555 = vsel %vm553, %v543, 0
        %v558 = vsel %vm553, %v544, 0
        %v561 = vsel %vm553, %v545, 0
        %v564 = vsel %vm553, %v546, 0
        %v567 = vsel %vm553, %v547, 0
        %v570 = vsel %vm553, %v548, 0
        %v573 = vsel %vm553, %v549, 0
        %v576 = vsel %vm553, %v550, 0
        %578 = vmatpush.msra.mxu0 0.0
        %579 = vmatpush.msra.mxu0 0.0
        %580 = vmatpush.msra.mxu0 0.0
        %581 = vmatpush.msra.mxu0 0.0
        %582 = vmatpush.msra.mxu0 0.0
        %583 = vmatpush.msra.mxu0 0.0
        %584 = vmatpush.msra.mxu0 0.0
        %585 = vmatpush.msra.mxu0 0.0
        %586 = vmatpush.msra.mxu0 0.0
        %587 = vmatpush.msra.mxu0 0.0
        %588 = vmatpush.msra.mxu0 0.0
        %589 = vmatpush.msra.mxu0 0.0
        %590 = vmatpush.msra.mxu0 0.0
        %591 = vmatpush.msra.mxu0 0.0
        %v592 = vand.u32 %v552, 4294901760
        %593 = vmatpush.msra.mxu0 %v592
        %v594 = vand.u32 %v551, 4294901760
        %595 = vmatpush.msra.mxu0 %v594
        %v596 = vand.u32 %v555, 4294901760
        %v597 = vsub.f32 %v555, %v596
        %v598 = vand.u32 %v597, 4294901760
        %v599 = vsub.f32 %v597, %v598
        %v600 = vand.u32 %v599, 4294901760
        %601 = vmatmul.f32.gmra.mxu0 %v600
        %v602 = vpop.f32.mrf.mxu0
        %v603 = vadd.f32 0.0, %v602
        %v604 = vand.u32 %v558, 4294901760
        %v605 = vsub.f32 %v558, %v604
        %v606 = vand.u32 %v605, 4294901760
        %v607 = vsub.f32 %v605, %v606
        %v608 = vand.u32 %v607, 4294901760
        %609 = vmatmul.f32.gmra.mxu0 %v608
        %v610 = vpop.f32.mrf.mxu0
        %v611 = vadd.f32 0.0, %v610
        %v612 = vand.u32 %v561, 4294901760
        %v613 = vsub.f32 %v561, %v612
        %v614 = vand.u32 %v613, 4294901760
        %v615 = vsub.f32 %v613, %v614
        %v616 = vand.u32 %v615, 4294901760
        %617 = vmatmul.f32.gmra.mxu0 %v616
        %v618 = vpop.f32.mrf.mxu0
        %v619 = vadd.f32 0.0, %v618
        %v620 = vand.u32 %v564, 4294901760
        %v621 = vsub.f32 %v564, %v620
        %v622 = vand.u32 %v621, 4294901760
        %v623 = vsub.f32 %v621, %v622
        %v624 = vand.u32 %v623, 4294901760
        %625 = vmatmul.f32.gmra.mxu0 %v624
        %v626 = vpop.f32.mrf.mxu0
        %v627 = vadd.f32 0.0, %v626
        %v628 = vand.u32 %v567, 4294901760
        %v629 = vsub.f32 %v567, %v628
        %v630 = vand.u32 %v629, 4294901760
        %v631 = vsub.f32 %v629, %v630
        %v632 = vand.u32 %v631, 4294901760
        %633 = vmatmul.f32.gmra.mxu0 %v632
        %v634 = vpop.f32.mrf.mxu0
        %v635 = vadd.f32 0.0, %v634
        %v636 = vand.u32 %v570, 4294901760
        %v637 = vsub.f32 %v570, %v636
        %v638 = vand.u32 %v637, 4294901760
        %v639 = vsub.f32 %v637, %v638
        %v640 = vand.u32 %v639, 4294901760
        %641 = vmatmul.f32.gmra.mxu0 %v640
        %v642 = vpop.f32.mrf.mxu0
        %v643 = vadd.f32 0.0, %v642
        %v644 = vand.u32 %v573, 4294901760
        %v645 = vsub.f32 %v573, %v644
        %v646 = vand.u32 %v645, 4294901760
        %v647 = vsub.f32 %v645, %v646
        %v648 = vand.u32 %v647, 4294901760
        %649 = vmatmul.f32.gmra.mxu0 %v648
        %v650 = vpop.f32.mrf.mxu0
        %v651 = vadd.f32 0.0, %v650
        %v652 = vand.u32 %v576, 4294901760
        %v653 = vsub.f32 %v576, %v652
        %v654 = vand.u32 %v653, 4294901760
        %v655 = vsub.f32 %v653, %v654
        %v656 = vand.u32 %v655, 4294901760
        %657 = vmatmul.f32.gmra.mxu0 %v656
        %v658 = vpop.f32.mrf.mxu0
        %v659 = vadd.f32 0.0, %v658
        %660 = vdwg.mxu0
        %661 = vmatpush.msra.mxu0 0.0
        %662 = vmatpush.msra.mxu0 0.0
        %663 = vmatpush.msra.mxu0 0.0
        %664 = vmatpush.msra.mxu0 0.0
        %665 = vmatpush.msra.mxu0 0.0
        %666 = vmatpush.msra.mxu0 0.0
        %667 = vmatpush.msra.mxu0 0.0
        %668 = vmatpush.msra.mxu0 0.0
        %669 = vmatpush.msra.mxu0 0.0
        %670 = vmatpush.msra.mxu0 0.0
        %671 = vmatpush.msra.mxu0 0.0
        %672 = vmatpush.msra.mxu0 0.0
        %673 = vmatpush.msra.mxu0 0.0
        %674 = vmatpush.msra.mxu0 0.0
        %v675 = vand.u32 %v552, 4294901760
        %v676 = vsub.f32 %v552, %v675
        %v677 = vand.u32 %v676, 4294901760
        %v678 = vsub.f32 %v676, %v677
        %v679 = vand.u32 %v678, 4294901760
        %680 = vmatpush.msra.mxu0 %v679
        %v681 = vand.u32 %v551, 4294901760
        %v682 = vsub.f32 %v551, %v681
        %v683 = vand.u32 %v682, 4294901760
        %v684 = vsub.f32 %v682, %v683
        %v685 = vand.u32 %v684, 4294901760
        %686 = vmatpush.msra.mxu0 %v685
        %v687 = vand.u32 %v555, 4294901760
        %688 = vmatmul.f32.gmra.mxu0 %v687
        %v689 = vpop.f32.mrf.mxu0
        %v690 = vadd.f32 %v603, %v689
        %v691 = vand.u32 %v558, 4294901760
        %692 = vmatmul.f32.gmra.mxu0 %v691
        %v693 = vpop.f32.mrf.mxu0
        %v694 = vadd.f32 %v611, %v693
        %v695 = vand.u32 %v561, 4294901760
        %696 = vmatmul.f32.gmra.mxu0 %v695
        %v697 = vpop.f32.mrf.mxu0
        %v698 = vadd.f32 %v619, %v697
        %v699 = vand.u32 %v564, 4294901760
        %700 = vmatmul.f32.gmra.mxu0 %v699
        %v701 = vpop.f32.mrf.mxu0
        %v702 = vadd.f32 %v627, %v701
        %v703 = vand.u32 %v567, 4294901760
        %704 = vmatmul.f32.gmra.mxu0 %v703
        %v705 = vpop.f32.mrf.mxu0
        %v706 = vadd.f32 %v635, %v705
        %v707 = vand.u32 %v570, 4294901760
        %708 = vmatmul.f32.gmra.mxu0 %v707
        %v709 = vpop.f32.mrf.mxu0
        %v710 = vadd.f32 %v643, %v709
        %v711 = vand.u32 %v573, 4294901760
        %712 = vmatmul.f32.gmra.mxu0 %v711
        %v713 = vpop.f32.mrf.mxu0
        %v714 = vadd.f32 %v651, %v713
        %v715 = vand.u32 %v576, 4294901760
        %716 = vmatmul.f32.gmra.mxu0 %v715
        %v717 = vpop.f32.mrf.mxu0
        %v718 = vadd.f32 %v659, %v717
        %719 = vdwg.mxu0
        %720 = vmatpush.msra.mxu0 0.0
        %721 = vmatpush.msra.mxu0 0.0
        %722 = vmatpush.msra.mxu0 0.0
        %723 = vmatpush.msra.mxu0 0.0
        %724 = vmatpush.msra.mxu0 0.0
        %725 = vmatpush.msra.mxu0 0.0
        %726 = vmatpush.msra.mxu0 0.0
        %727 = vmatpush.msra.mxu0 0.0
        %728 = vmatpush.msra.mxu0 0.0
        %729 = vmatpush.msra.mxu0 0.0
        %730 = vmatpush.msra.mxu0 0.0
        %731 = vmatpush.msra.mxu0 0.0
        %732 = vmatpush.msra.mxu0 0.0
        %733 = vmatpush.msra.mxu0 0.0
        %v734 = vand.u32 %v552, 4294901760
        %v735 = vsub.f32 %v552, %v734
        %736 = vmatpush.msra.mxu0 %v735
        %v737 = vand.u32 %v551, 4294901760
        %v738 = vsub.f32 %v551, %v737
        %739 = vmatpush.msra.mxu0 %v738
        %v740 = vand.u32 %v555, 4294901760
        %v741 = vsub.f32 %v555, %v740
        %742 = vmatmul.f32.gmra.mxu0 %v741
        %v743 = vpop.f32.mrf.mxu0
        %v744 = vadd.f32 %v690, %v743
        %v745 = vand.u32 %v558, 4294901760
        %v746 = vsub.f32 %v558, %v745
        %747 = vmatmul.f32.gmra.mxu0 %v746
        %v748 = vpop.f32.mrf.mxu0
        %v749 = vadd.f32 %v694, %v748
        %v750 = vand.u32 %v561, 4294901760
        %v751 = vsub.f32 %v561, %v750
        %752 = vmatmul.f32.gmra.mxu0 %v751
        %v753 = vpop.f32.mrf.mxu0
        %v754 = vadd.f32 %v698, %v753
        %v755 = vand.u32 %v564, 4294901760
        %v756 = vsub.f32 %v564, %v755
        %757 = vmatmul.f32.gmra.mxu0 %v756
        %v758 = vpop.f32.mrf.mxu0
        %v759 = vadd.f32 %v702, %v758
        %v760 = vand.u32 %v567, 4294901760
        %v761 = vsub.f32 %v567, %v760
        %762 = vmatmul.f32.gmra.mxu0 %v761
        %v763 = vpop.f32.mrf.mxu0
        %v764 = vadd.f32 %v706, %v763
        %v765 = vand.u32 %v570, 4294901760
        %v766 = vsub.f32 %v570, %v765
        %767 = vmatmul.f32.gmra.mxu0 %v766
        %v768 = vpop.f32.mrf.mxu0
        %v769 = vadd.f32 %v710, %v768
        %v770 = vand.u32 %v573, 4294901760
        %v771 = vsub.f32 %v573, %v770
        %772 = vmatmul.f32.gmra.mxu0 %v771
        %v773 = vpop.f32.mrf.mxu0
        %v774 = vadd.f32 %v714, %v773
        %v775 = vand.u32 %v576, 4294901760
        %v776 = vsub.f32 %v576, %v775
        %777 = vmatmul.f32.gmra.mxu0 %v776
        %v778 = vpop.f32.mrf.mxu0
        %v779 = vadd.f32 %v718, %v778
        %780 = vdwg.mxu0
        %781 = vmatpush.msra.mxu0 0.0
        %782 = vmatpush.msra.mxu0 0.0
        %783 = vmatpush.msra.mxu0 0.0
        %784 = vmatpush.msra.mxu0 0.0
        %785 = vmatpush.msra.mxu0 0.0
        %786 = vmatpush.msra.mxu0 0.0
        %787 = vmatpush.msra.mxu0 0.0
        %788 = vmatpush.msra.mxu0 0.0
        %789 = vmatpush.msra.mxu0 0.0
        %790 = vmatpush.msra.mxu0 0.0
        %791 = vmatpush.msra.mxu0 0.0
        %792 = vmatpush.msra.mxu0 0.0
        %793 = vmatpush.msra.mxu0 0.0
        %794 = vmatpush.msra.mxu0 0.0
        %v795 = vand.u32 %v552, 4294901760
        %796 = vmatpush.msra.mxu0 %v795
        %v797 = vand.u32 %v551, 4294901760
        %798 = vmatpush.msra.mxu0 %v797
        %v799 = vand.u32 %v555, 4294901760
        %v800 = vsub.f32 %v555, %v799
        %v801 = vand.u32 %v800, 4294901760
        %802 = vmatmul.f32.gmra.mxu0 %v801
        %v803 = vpop.f32.mrf.mxu0
        %v804 = vadd.f32 %v744, %v803
        %v805 = vand.u32 %v558, 4294901760
        %v806 = vsub.f32 %v558, %v805
        %v807 = vand.u32 %v806, 4294901760
        %808 = vmatmul.f32.gmra.mxu0 %v807
        %v809 = vpop.f32.mrf.mxu0
        %v810 = vadd.f32 %v749, %v809
        %v811 = vand.u32 %v561, 4294901760
        %v812 = vsub.f32 %v561, %v811
        %v813 = vand.u32 %v812, 4294901760
        %814 = vmatmul.f32.gmra.mxu0 %v813
        %v815 = vpop.f32.mrf.mxu0
        %v816 = vadd.f32 %v754, %v815
        %v817 = vand.u32 %v564, 4294901760
        %v818 = vsub.f32 %v564, %v817
        %v819 = vand.u32 %v818, 4294901760
        %820 = vmatmul.f32.gmra.mxu0 %v819
        %v821 = vpop.f32.mrf.mxu0
        %v822 = vadd.f32 %v759, %v821
        %v823 = vand.u32 %v567, 4294901760
        %v824 = vsub.f32 %v567, %v823
        %v825 = vand.u32 %v824, 4294901760
        %826 = vmatmul.f32.gmra.mxu0 %v825
        %v827 = vpop.f32.mrf.mxu0
        %v828 = vadd.f32 %v764, %v827
        %v829 = vand.u32 %v570, 4294901760
        %v830 = vsub.f32 %v570, %v829
        %v831 = vand.u32 %v830, 4294901760
        %832 = vmatmul.f32.gmra.mxu0 %v831
        %v833 = vpop.f32.mrf.mxu0
        %v834 = vadd.f32 %v769, %v833
        %v835 = vand.u32 %v573, 4294901760
        %v836 = vsub.f32 %v573, %v835
        %v837 = vand.u32 %v836, 4294901760
        %838 = vmatmul.f32.gmra.mxu0 %v837
        %v839 = vpop.f32.mrf.mxu0
        %v840 = vadd.f32 %v774, %v839
        %v841 = vand.u32 %v576, 4294901760
        %v842 = vsub.f32 %v576, %v841
        %v843 = vand.u32 %v842, 4294901760
        %844 = vmatmul.f32.gmra.mxu0 %v843
        %v845 = vpop.f32.mrf.mxu0
        %v846 = vadd.f32 %v779, %v845
        %847 = vdwg.mxu0
        %848 = vmatpush.msra.mxu0 0.0
        %849 = vmatpush.msra.mxu0 0.0
        %850 = vmatpush.msra.mxu0 0.0
        %851 = vmatpush.msra.mxu0 0.0
        %852 = vmatpush.msra.mxu0 0.0
        %853 = vmatpush.msra.mxu0 0.0
        %854 = vmatpush.msra.mxu0 0.0
        %855 = vmatpush.msra.mxu0 0.0
        %856 = vmatpush.msra.mxu0 0.0
        %857 = vmatpush.msra.mxu0 0.0
        %858 = vmatpush.msra.mxu0 0.0
        %859 = vmatpush.msra.mxu0 0.0
        %860 = vmatpush.msra.mxu0 0.0
        %861 = vmatpush.msra.mxu0 0.0
        %v862 = vand.u32 %v552, 4294901760
        %v863 = vsub.f32 %v552, %v862
        %v864 = vand.u32 %v863, 4294901760
        %865 = vmatpush.msra.mxu0 %v864
        %v866 = vand.u32 %v551, 4294901760
        %v867 = vsub.f32 %v551, %v866
        %v868 = vand.u32 %v867, 4294901760
        %869 = vmatpush.msra.mxu0 %v868
        %v870 = vand.u32 %v555, 4294901760
        %871 = vmatmul.f32.gmra.mxu0 %v870
        %v872 = vpop.f32.mrf.mxu0
        %v873 = vadd.f32 %v804, %v872
        %v874 = vand.u32 %v558, 4294901760
        %875 = vmatmul.f32.gmra.mxu0 %v874
        %v876 = vpop.f32.mrf.mxu0
        %v877 = vadd.f32 %v810, %v876
        %v878 = vand.u32 %v561, 4294901760
        %879 = vmatmul.f32.gmra.mxu0 %v878
        %v880 = vpop.f32.mrf.mxu0
        %v881 = vadd.f32 %v816, %v880
        %v882 = vand.u32 %v564, 4294901760
        %883 = vmatmul.f32.gmra.mxu0 %v882
        %v884 = vpop.f32.mrf.mxu0
        %v885 = vadd.f32 %v822, %v884
        %v886 = vand.u32 %v567, 4294901760
        %887 = vmatmul.f32.gmra.mxu0 %v886
        %v888 = vpop.f32.mrf.mxu0
        %v889 = vadd.f32 %v828, %v888
        %v890 = vand.u32 %v570, 4294901760
        %891 = vmatmul.f32.gmra.mxu0 %v890
        %v892 = vpop.f32.mrf.mxu0
        %v893 = vadd.f32 %v834, %v892
        %v894 = vand.u32 %v573, 4294901760
        %895 = vmatmul.f32.gmra.mxu0 %v894
        %v896 = vpop.f32.mrf.mxu0
        %v897 = vadd.f32 %v840, %v896
        %v898 = vand.u32 %v576, 4294901760
        %899 = vmatmul.f32.gmra.mxu0 %v898
        %v900 = vpop.f32.mrf.mxu0
        %v901 = vadd.f32 %v846, %v900
        %902 = vdwg.mxu0
        %903 = vmatpush.msra.mxu0 0.0
        %904 = vmatpush.msra.mxu0 0.0
        %905 = vmatpush.msra.mxu0 0.0
        %906 = vmatpush.msra.mxu0 0.0
        %907 = vmatpush.msra.mxu0 0.0
        %908 = vmatpush.msra.mxu0 0.0
        %909 = vmatpush.msra.mxu0 0.0
        %910 = vmatpush.msra.mxu0 0.0
        %911 = vmatpush.msra.mxu0 0.0
        %912 = vmatpush.msra.mxu0 0.0
        %913 = vmatpush.msra.mxu0 0.0
        %914 = vmatpush.msra.mxu0 0.0
        %915 = vmatpush.msra.mxu0 0.0
        %916 = vmatpush.msra.mxu0 0.0
        %v917 = vand.u32 %v552, 4294901760
        %918 = vmatpush.msra.mxu0 %v917
        %v919 = vand.u32 %v551, 4294901760
        %920 = vmatpush.msra.mxu0 %v919
        %v921 = vand.u32 %v555, 4294901760
        %922 = vmatmul.f32.gmra.mxu0 %v921
        %v923 = vpop.f32.mrf.mxu0
        %v924 = vadd.f32 %v873, %v923
        %v925 = vand.u32 %v558, 4294901760
        %926 = vmatmul.f32.gmra.mxu0 %v925
        %v927 = vpop.f32.mrf.mxu0
        %v928 = vadd.f32 %v877, %v927
        %v929 = vand.u32 %v561, 4294901760
        %930 = vmatmul.f32.gmra.mxu0 %v929
        %v931 = vpop.f32.mrf.mxu0
        %v932 = vadd.f32 %v881, %v931
        %v933 = vand.u32 %v564, 4294901760
        %934 = vmatmul.f32.gmra.mxu0 %v933
        %v935 = vpop.f32.mrf.mxu0
        %v936 = vadd.f32 %v885, %v935
        %v937 = vand.u32 %v567, 4294901760
        %938 = vmatmul.f32.gmra.mxu0 %v937
        %v939 = vpop.f32.mrf.mxu0
        %v940 = vadd.f32 %v889, %v939
        %v941 = vand.u32 %v570, 4294901760
        %942 = vmatmul.f32.gmra.mxu0 %v941
        %v943 = vpop.f32.mrf.mxu0
        %v944 = vadd.f32 %v893, %v943
        %v945 = vand.u32 %v573, 4294901760
        %946 = vmatmul.f32.gmra.mxu0 %v945
        %v947 = vpop.f32.mrf.mxu0
        %v948 = vadd.f32 %v897, %v947
        %v949 = vand.u32 %v576, 4294901760
        %950 = vmatmul.f32.gmra.mxu0 %v949
        %v951 = vpop.f32.mrf.mxu0
        %v952 = vadd.f32 %v901, %v951
        %953 = vdwg.mxu0
        %954 = vxpose.xlu0.b32.start [1/16] %v924, 128
        %955 = vxpose.xlu0.b32.cont [2/16] %v928, 128
        %956 = vxpose.xlu0.b32.cont [3/16] %v932, 128
        %957 = vxpose.xlu0.b32.cont [4/16] %v936, 128
        %958 = vxpose.xlu0.b32.cont [5/16] 0.0, 128
        %959 = vxpose.xlu0.b32.cont [6/16] 0.0, 128
        %960 = vxpose.xlu0.b32.cont [7/16] 0.0, 128
        %961 = vxpose.xlu0.b32.cont [8/16] 0.0, 128
        %962 = vxpose.xlu0.b32.cont [9/16] 0.0, 128
        %963 = vxpose.xlu0.b32.cont [10/16] 0.0, 128
        %964 = vxpose.xlu0.b32.cont [11/16] 0.0, 128
        %965 = vxpose.xlu0.b32.cont [12/16] 0.0, 128
        %966 = vxpose.xlu0.b32.cont [13/16] 0.0, 128
        %967 = vxpose.xlu0.b32.cont [14/16] 0.0, 128
        %968 = vxpose.xlu0.b32.cont [15/16] 0.0, 128
        %969 = vxpose.xlu0.b32.end [16/16] 0.0, 128
        %v970 = vpop.trf.xlu0
        %v971 = vpop.trf.xlu0
        %v972 = vpop.trf.xlu0
        %v973 = vpop.trf.xlu0
        %v974 = vpop.trf.xlu0
        %v975 = vpop.trf.xlu0
        %v976 = vpop.trf.xlu0
        %v977 = vpop.trf.xlu0
        %v978 = vpop.trf.xlu0
        %v979 = vpop.trf.xlu0
        %v980 = vpop.trf.xlu0
        %v981 = vpop.trf.xlu0
        %v982 = vpop.trf.xlu0
        %v983 = vpop.trf.xlu0
        %v984 = vpop.trf.xlu0
        %v985 = vpop.trf.xlu0
        %986 = vxpose.xlu0.b32.start [1/16] %v940, 128
        %987 = vxpose.xlu0.b32.cont [2/16] %v944, 128
        %988 = vxpose.xlu0.b32.cont [3/16] %v948, 128
        %989 = vxpose.xlu0.b32.cont [4/16] %v952, 128
        %990 = vxpose.xlu0.b32.cont [5/16] 0.0, 128
        %991 = vxpose.xlu0.b32.cont [6/16] 0.0, 128
        %992 = vxpose.xlu0.b32.cont [7/16] 0.0, 128
        %993 = vxpose.xlu0.b32.cont [8/16] 0.0, 128
        %994 = vxpose.xlu0.b32.cont [9/16] 0.0, 128
        %995 = vxpose.xlu0.b32.cont [10/16] 0.0, 128
        %996 = vxpose.xlu0.b32.cont [11/16] 0.0, 128
        %997 = vxpose.xlu0.b32.cont [12/16] 0.0, 128
        %998 = vxpose.xlu0.b32.cont [13/16] 0.0, 128
        %999 = vxpose.xlu0.b32.cont [14/16] 0.0, 128
        %1000 = vxpose.xlu0.b32.cont [15/16] 0.0, 128
        %1001 = vxpose.xlu0.b32.end [16/16] 0.0, 128
        %v1002 = vpop.trf.xlu0
        %v1003 = vpop.trf.xlu0
        %v1004 = vpop.trf.xlu0
        %v1005 = vpop.trf.xlu0
        %v1006 = vpop.trf.xlu0
        %v1007 = vpop.trf.xlu0
        %v1008 = vpop.trf.xlu0
        %v1009 = vpop.trf.xlu0
        %v1010 = vpop.trf.xlu0
        %v1011 = vpop.trf.xlu0
        %v1012 = vpop.trf.xlu0
        %v1013 = vpop.trf.xlu0
        %v1014 = vpop.trf.xlu0
        %v1015 = vpop.trf.xlu0
        %v1016 = vpop.trf.xlu0
        %v1017 = vpop.trf.xlu0
        %v1020 = vrot.slane %v970, 1
        %v1021 = vrot.slane %v970, 2
        %v1022 = vrot.slane %v970, 3
        %v1023 = vrot.slane %v970, 4
        %v1024 = vrot.slane %v970, 5
        %v1025 = vrot.slane %v970, 6
        %v1026 = vrot.slane %v970, 7
        %v1027 = vrot.slane %v971, 1
        %v1028 = vrot.slane %v971, 2
        %v1029 = vrot.slane %v971, 3
        %v1030 = vrot.slane %v971, 4
        %v1031 = vrot.slane %v971, 5
        %v1032 = vrot.slane %v971, 6
        %v1033 = vrot.slane %v971, 7
        %v1050 = vrot.slane %v1002, 1
        %v1051 = vrot.slane %v1002, 2
        %v1052 = vrot.slane %v1002, 3
        %v1053 = vrot.slane %v1002, 4
        %v1054 = vrot.slane %v1002, 5
        %v1055 = vrot.slane %v1002, 6
        %v1056 = vrot.slane %v1002, 7
        %v1057 = vrot.slane %v1003, 1
        %v1058 = vrot.slane %v1003, 2
        %v1059 = vrot.slane %v1003, 3
        %v1060 = vrot.slane %v1003, 4
        %v1061 = vrot.slane %v1003, 5
        %v1062 = vrot.slane %v1003, 6
        %v1063 = vrot.slane %v1003, 7
        %v1064 = vperm.slane %v1002, 0
        %v1065 = vperm.slane %v1050, 0
        %v1066 = vperm.slane %v1051, 0
        %v1067 = vperm.slane %v1052, 0
        %v1068 = vperm.slane %v1053, 0
        %v1069 = vperm.slane %v1054, 0
        %v1070 = vperm.slane %v1055, 0
        %v1071 = vperm.slane %v1056, 0
        %v1072 = vperm.slane %v1003, 0
        %v1073 = vperm.slane %v1057, 0
        %v1074 = vperm.slane %v1058, 0
        %v1075 = vperm.slane %v1059, 0
        %v1076 = vperm.slane %v1060, 0
        %v1077 = vperm.slane %v1061, 0
        %v1078 = vperm.slane %v1062, 0
        %v1079 = vperm.slane %v1063, 0
        %vm1096 = vcmask 1040384
        %v1097 = vsel %vm1096, %v970, %v1064
        %v1098 = vsel %vm1096, %v1020, %v1065
        %v1099 = vsel %vm1096, %v1021, %v1066
        %v1100 = vsel %vm1096, %v1022, %v1067
        %v1101 = vsel %vm1096, %v1023, %v1068
        %v1102 = vsel %vm1096, %v1024, %v1069
        %v1103 = vsel %vm1096, %v1025, %v1070
        %v1104 = vsel %vm1096, %v1026, %v1071
        %v1105 = vsel %vm1096, %v971, %v1072
        %v1106 = vsel %vm1096, %v1027, %v1073
        %v1107 = vsel %vm1096, %v1028, %v1074
        %v1108 = vsel %vm1096, %v1029, %v1075
        %v1109 = vsel %vm1096, %v1030, %v1076
        %v1110 = vsel %vm1096, %v1031, %v1077
        %v1111 = vsel %vm1096, %v1032, %v1078
        %v1112 = vsel %vm1096, %v1033, %v1079
        %v1113 = vld [vmem:[%s438] sm:$0xff]
        %v1114 = vld [vmem:[%s438 + $0x8] sm:$0xff]
        %v1115 = vld [vmem:[%s438 + $0x10] sm:$0xff]
        %v1116 = vld [vmem:[%s438 + $0x18] sm:$0xff]
        %v1117 = vld [vmem:[%s438 + $0x20] sm:$0xff]
        %v1118 = vld [vmem:[%s438 + $0x28] sm:$0xff]
        %v1119 = vld [vmem:[%s438 + $0x30] sm:$0xff]
        %v1120 = vld [vmem:[%s438 + $0x38] sm:$0xff]
        %v1121 = vld [vmem:[%s438 + $0x40] sm:$0xff]
        %v1122 = vld [vmem:[%s438 + $0x48] sm:$0xff]
        %v1123 = vld [vmem:[%s438 + $0x50] sm:$0xff]
        %v1124 = vld [vmem:[%s438 + $0x58] sm:$0xff]
        %v1125 = vld [vmem:[%s438 + $0x60] sm:$0xff]
        %v1126 = vld [vmem:[%s438 + $0x68] sm:$0xff]
        %v1127 = vld [vmem:[%s438 + $0x70] sm:$0xff]
        %v1128 = vld [vmem:[%s438 + $0x78] sm:$0xff]
        %v1129 = vld [vmem:[%s438 + $0x80] sm:$0xff]
        %v1130 = vld [vmem:[%s438 + $0x88] sm:$0xff]
        %v1131 = vld [vmem:[%s438 + $0x90] sm:$0xff]
        %v1132 = vld [vmem:[%s438 + $0x98] sm:$0xff]
        %v1133 = vld [vmem:[%s438 + $0xa0] sm:$0xff]
        %v1134 = vld [vmem:[%s438 + $0xa8] sm:$0xff]
        %v1135 = vld [vmem:[%s438 + $0xb0] sm:$0xff]
        %v1136 = vld [vmem:[%s438 + $0xb8] sm:$0xff]
        %v1137 = vld [vmem:[%s438 + $0xc0] sm:$0xff]
        %v1138 = vld [vmem:[%s438 + $0xc8] sm:$0xff]
        %v1139 = vld [vmem:[%s438 + $0xd0] sm:$0xff]
        %v1140 = vld [vmem:[%s438 + $0xd8] sm:$0xff]
        %v1141 = vld [vmem:[%s438 + $0xe0] sm:$0xff]
        %v1142 = vld [vmem:[%s438 + $0xe8] sm:$0xff]
        %v1143 = vld [vmem:[%s438 + $0xf0] sm:$0xff]
        %v1144 = vld [vmem:[%s438 + $0xf8] sm:$0xff]
        %v1145 = vld [vmem:[%s448] sm:$0xff]
        %v1146 = vld [vmem:[%s448 + $0x8] sm:$0xff]
        %v1147 = vld [vmem:[%s448 + $0x10] sm:$0xff]
        %v1148 = vld [vmem:[%s448 + $0x18] sm:$0xff]
        %v1149 = vld [vmem:[%s448 + $0x20] sm:$0xff]
        %v1150 = vld [vmem:[%s448 + $0x28] sm:$0xff]
        %v1151 = vld [vmem:[%s448 + $0x30] sm:$0xff]
        %v1152 = vld [vmem:[%s448 + $0x38] sm:$0xff]
        %v1153 = vld [vmem:[%s448 + $0x40] sm:$0xff]
        %v1154 = vld [vmem:[%s448 + $0x48] sm:$0xff]
        %v1155 = vld [vmem:[%s448 + $0x50] sm:$0xff]
        %v1156 = vld [vmem:[%s448 + $0x58] sm:$0xff]
        %v1157 = vld [vmem:[%s448 + $0x60] sm:$0xff]
        %v1158 = vld [vmem:[%s448 + $0x68] sm:$0xff]
        %v1159 = vld [vmem:[%s448 + $0x70] sm:$0xff]
        %v1160 = vld [vmem:[%s448 + $0x78] sm:$0xff]
        %v1161 = vld [vmem:[%s448 + $0x80] sm:$0xff]
        %v1162 = vld [vmem:[%s448 + $0x88] sm:$0xff]
        %v1163 = vld [vmem:[%s448 + $0x90] sm:$0xff]
        %v1164 = vld [vmem:[%s448 + $0x98] sm:$0xff]
        %v1165 = vld [vmem:[%s448 + $0xa0] sm:$0xff]
        %v1166 = vld [vmem:[%s448 + $0xa8] sm:$0xff]
        %v1167 = vld [vmem:[%s448 + $0xb0] sm:$0xff]
        %v1168 = vld [vmem:[%s448 + $0xb8] sm:$0xff]
        %v1169 = vld [vmem:[%s448 + $0xc0] sm:$0xff]
        %v1170 = vld [vmem:[%s448 + $0xc8] sm:$0xff]
        %v1171 = vld [vmem:[%s448 + $0xd0] sm:$0xff]
        %v1172 = vld [vmem:[%s448 + $0xd8] sm:$0xff]
        %v1173 = vld [vmem:[%s448 + $0xe0] sm:$0xff]
        %v1174 = vld [vmem:[%s448 + $0xe8] sm:$0xff]
        %v1175 = vld [vmem:[%s448 + $0xf0] sm:$0xff]
        %v1176 = vld [vmem:[%s448 + $0xf8] sm:$0xff]
        %vm1177 = vcmask 261120
        %v1179 = vsel %vm1177, %v1097, 0
        %1181 = vmatpush.msra.mxu0 0.0
        %1182 = vmatpush.msra.mxu0 0.0
        %1183 = vmatpush.msra.mxu0 0.0
        %1184 = vmatpush.msra.mxu0 0.0
        %1185 = vmatpush.msra.mxu0 0.0
        %1186 = vmatpush.msra.mxu0 0.0
        %1187 = vmatpush.msra.mxu0 0.0
        %1188 = vmatpush.msra.mxu0 0.0
        %1189 = vmatpush.msra.mxu0 0.0
        %1190 = vmatpush.msra.mxu0 0.0
        %1191 = vmatpush.msra.mxu0 0.0
        %1192 = vmatpush.msra.mxu0 0.0
        %1193 = vmatpush.msra.mxu0 %v1116
        %1194 = vmatpush.msra.mxu0 %v1115
        %1195 = vmatpush.msra.mxu0 %v1114
        %1196 = vmatpush.msra.mxu0 %v1113
        %1197 = vmatmul.f32.gmra.mxu0 %v1179
        %v1198 = vpop.f32.mrf.mxu0
        %v1199 = vadd.f32 0.0, %v1198
        %1200 = vdwg.mxu0
        %v1202 = vsel %vm1177, %v1098, 0
        %1204 = vmatpush.msra.mxu0 0.0
        %1205 = vmatpush.msra.mxu0 0.0
        %1206 = vmatpush.msra.mxu0 0.0
        %1207 = vmatpush.msra.mxu0 0.0
        %1208 = vmatpush.msra.mxu0 0.0
        %1209 = vmatpush.msra.mxu0 0.0
        %1210 = vmatpush.msra.mxu0 0.0
        %1211 = vmatpush.msra.mxu0 0.0
        %1212 = vmatpush.msra.mxu0 0.0
        %1213 = vmatpush.msra.mxu0 0.0
        %1214 = vmatpush.msra.mxu0 0.0
        %1215 = vmatpush.msra.mxu0 0.0
        %1216 = vmatpush.msra.mxu0 %v1120
        %1217 = vmatpush.msra.mxu0 %v1119
        %1218 = vmatpush.msra.mxu0 %v1118
        %1219 = vmatpush.msra.mxu0 %v1117
        %1220 = vmatmul.f32.gmra.mxu0 %v1202
        %v1221 = vpop.f32.mrf.mxu0
        %v1222 = vadd.f32 0.0, %v1221
        %1223 = vdwg.mxu0
        %v1225 = vsel %vm1177, %v1099, 0
        %1227 = vmatpush.msra.mxu0 0.0
        %1228 = vmatpush.msra.mxu0 0.0
        %1229 = vmatpush.msra.mxu0 0.0
        %1230 = vmatpush.msra.mxu0 0.0
        %1231 = vmatpush.msra.mxu0 0.0
        %1232 = vmatpush.msra.mxu0 0.0
        %1233 = vmatpush.msra.mxu0 0.0
        %1234 = vmatpush.msra.mxu0 0.0
        %1235 = vmatpush.msra.mxu0 0.0
        %1236 = vmatpush.msra.mxu0 0.0
        %1237 = vmatpush.msra.mxu0 0.0
        %1238 = vmatpush.msra.mxu0 0.0
        %1239 = vmatpush.msra.mxu0 %v1124
        %1240 = vmatpush.msra.mxu0 %v1123
        %1241 = vmatpush.msra.mxu0 %v1122
        %1242 = vmatpush.msra.mxu0 %v1121
        %1243 = vmatmul.f32.gmra.mxu0 %v1225
        %v1244 = vpop.f32.mrf.mxu0
        %v1245 = vadd.f32 0.0, %v1244
        %1246 = vdwg.mxu0
        %v1248 = vsel %vm1177, %v1100, 0
        %1250 = vmatpush.msra.mxu0 0.0
        %1251 = vmatpush.msra.mxu0 0.0
        %1252 = vmatpush.msra.mxu0 0.0
        %1253 = vmatpush.msra.mxu0 0.0
        %1254 = vmatpush.msra.mxu0 0.0
        %1255 = vmatpush.msra.mxu0 0.0
        %1256 = vmatpush.msra.mxu0 0.0
        %1257 = vmatpush.msra.mxu0 0.0
        %1258 = vmatpush.msra.mxu0 0.0
        %1259 = vmatpush.msra.mxu0 0.0
        %1260 = vmatpush.msra.mxu0 0.0
        %1261 = vmatpush.msra.mxu0 0.0
        %1262 = vmatpush.msra.mxu0 %v1128
        %1263 = vmatpush.msra.mxu0 %v1127
        %1264 = vmatpush.msra.mxu0 %v1126
        %1265 = vmatpush.msra.mxu0 %v1125
        %1266 = vmatmul.f32.gmra.mxu0 %v1248
        %v1267 = vpop.f32.mrf.mxu0
        %v1268 = vadd.f32 0.0, %v1267
        %1269 = vdwg.mxu0
        %v1271 = vsel %vm1177, %v1101, 0
        %1273 = vmatpush.msra.mxu0 0.0
        %1274 = vmatpush.msra.mxu0 0.0
        %1275 = vmatpush.msra.mxu0 0.0
        %1276 = vmatpush.msra.mxu0 0.0
        %1277 = vmatpush.msra.mxu0 0.0
        %1278 = vmatpush.msra.mxu0 0.0
        %1279 = vmatpush.msra.mxu0 0.0
        %1280 = vmatpush.msra.mxu0 0.0
        %1281 = vmatpush.msra.mxu0 0.0
        %1282 = vmatpush.msra.mxu0 0.0
        %1283 = vmatpush.msra.mxu0 0.0
        %1284 = vmatpush.msra.mxu0 0.0
        %1285 = vmatpush.msra.mxu0 %v1132
        %1286 = vmatpush.msra.mxu0 %v1131
        %1287 = vmatpush.msra.mxu0 %v1130
        %1288 = vmatpush.msra.mxu0 %v1129
        %1289 = vmatmul.f32.gmra.mxu0 %v1271
        %v1290 = vpop.f32.mrf.mxu0
        %v1291 = vadd.f32 0.0, %v1290
        %1292 = vdwg.mxu0
        %v1294 = vsel %vm1177, %v1102, 0
        %1296 = vmatpush.msra.mxu0 0.0
        %1297 = vmatpush.msra.mxu0 0.0
        %1298 = vmatpush.msra.mxu0 0.0
        %1299 = vmatpush.msra.mxu0 0.0
        %1300 = vmatpush.msra.mxu0 0.0
        %1301 = vmatpush.msra.mxu0 0.0
        %1302 = vmatpush.msra.mxu0 0.0
        %1303 = vmatpush.msra.mxu0 0.0
        %1304 = vmatpush.msra.mxu0 0.0
        %1305 = vmatpush.msra.mxu0 0.0
        %1306 = vmatpush.msra.mxu0 0.0
        %1307 = vmatpush.msra.mxu0 0.0
        %1308 = vmatpush.msra.mxu0 %v1136
        %1309 = vmatpush.msra.mxu0 %v1135
        %1310 = vmatpush.msra.mxu0 %v1134
        %1311 = vmatpush.msra.mxu0 %v1133
        %1312 = vmatmul.f32.gmra.mxu0 %v1294
        %v1313 = vpop.f32.mrf.mxu0
        %v1314 = vadd.f32 0.0, %v1313
        %1315 = vdwg.mxu0
        %v1317 = vsel %vm1177, %v1103, 0
        %1319 = vmatpush.msra.mxu0 0.0
        %1320 = vmatpush.msra.mxu0 0.0
        %1321 = vmatpush.msra.mxu0 0.0
        %1322 = vmatpush.msra.mxu0 0.0
        %1323 = vmatpush.msra.mxu0 0.0
        %1324 = vmatpush.msra.mxu0 0.0
        %1325 = vmatpush.msra.mxu0 0.0
        %1326 = vmatpush.msra.mxu0 0.0
        %1327 = vmatpush.msra.mxu0 0.0
        %1328 = vmatpush.msra.mxu0 0.0
        %1329 = vmatpush.msra.mxu0 0.0
        %1330 = vmatpush.msra.mxu0 0.0
        %1331 = vmatpush.msra.mxu0 %v1140
        %1332 = vmatpush.msra.mxu0 %v1139
        %1333 = vmatpush.msra.mxu0 %v1138
        %1334 = vmatpush.msra.mxu0 %v1137
        %1335 = vmatmul.f32.gmra.mxu0 %v1317
        %v1336 = vpop.f32.mrf.mxu0
        %v1337 = vadd.f32 0.0, %v1336
        %1338 = vdwg.mxu0
        %v1340 = vsel %vm1177, %v1104, 0
        %1342 = vmatpush.msra.mxu0 0.0
        %1343 = vmatpush.msra.mxu0 0.0
        %1344 = vmatpush.msra.mxu0 0.0
        %1345 = vmatpush.msra.mxu0 0.0
        %1346 = vmatpush.msra.mxu0 0.0
        %1347 = vmatpush.msra.mxu0 0.0
        %1348 = vmatpush.msra.mxu0 0.0
        %1349 = vmatpush.msra.mxu0 0.0
        %1350 = vmatpush.msra.mxu0 0.0
        %1351 = vmatpush.msra.mxu0 0.0
        %1352 = vmatpush.msra.mxu0 0.0
        %1353 = vmatpush.msra.mxu0 0.0
        %1354 = vmatpush.msra.mxu0 %v1144
        %1355 = vmatpush.msra.mxu0 %v1143
        %1356 = vmatpush.msra.mxu0 %v1142
        %1357 = vmatpush.msra.mxu0 %v1141
        %1358 = vmatmul.f32.gmra.mxu0 %v1340
        %v1359 = vpop.f32.mrf.mxu0
        %v1360 = vadd.f32 0.0, %v1359
        %1361 = vdwg.mxu0
        %v1363 = vsel %vm1177, %v1105, 0
        %1365 = vmatpush.msra.mxu0 0.0
        %1366 = vmatpush.msra.mxu0 0.0
        %1367 = vmatpush.msra.mxu0 0.0
        %1368 = vmatpush.msra.mxu0 0.0
        %1369 = vmatpush.msra.mxu0 0.0
        %1370 = vmatpush.msra.mxu0 0.0
        %1371 = vmatpush.msra.mxu0 0.0
        %1372 = vmatpush.msra.mxu0 0.0
        %1373 = vmatpush.msra.mxu0 0.0
        %1374 = vmatpush.msra.mxu0 0.0
        %1375 = vmatpush.msra.mxu0 0.0
        %1376 = vmatpush.msra.mxu0 0.0
        %1377 = vmatpush.msra.mxu0 %v1148
        %1378 = vmatpush.msra.mxu0 %v1147
        %1379 = vmatpush.msra.mxu0 %v1146
        %1380 = vmatpush.msra.mxu0 %v1145
        %1381 = vmatmul.f32.gmra.mxu0 %v1363
        %v1382 = vpop.f32.mrf.mxu0
        %v1383 = vadd.f32 0.0, %v1382
        %1384 = vdwg.mxu0
        %v1386 = vsel %vm1177, %v1106, 0
        %1388 = vmatpush.msra.mxu0 0.0
        %1389 = vmatpush.msra.mxu0 0.0
        %1390 = vmatpush.msra.mxu0 0.0
        %1391 = vmatpush.msra.mxu0 0.0
        %1392 = vmatpush.msra.mxu0 0.0
        %1393 = vmatpush.msra.mxu0 0.0
        %1394 = vmatpush.msra.mxu0 0.0
        %1395 = vmatpush.msra.mxu0 0.0
        %1396 = vmatpush.msra.mxu0 0.0
        %1397 = vmatpush.msra.mxu0 0.0
        %1398 = vmatpush.msra.mxu0 0.0
        %1399 = vmatpush.msra.mxu0 0.0
        %1400 = vmatpush.msra.mxu0 %v1152
        %1401 = vmatpush.msra.mxu0 %v1151
        %1402 = vmatpush.msra.mxu0 %v1150
        %1403 = vmatpush.msra.mxu0 %v1149
        %1404 = vmatmul.f32.gmra.mxu0 %v1386
        %v1405 = vpop.f32.mrf.mxu0
        %v1406 = vadd.f32 0.0, %v1405
        %1407 = vdwg.mxu0
        %v1409 = vsel %vm1177, %v1107, 0
        %1411 = vmatpush.msra.mxu0 0.0
        %1412 = vmatpush.msra.mxu0 0.0
        %1413 = vmatpush.msra.mxu0 0.0
        %1414 = vmatpush.msra.mxu0 0.0
        %1415 = vmatpush.msra.mxu0 0.0
        %1416 = vmatpush.msra.mxu0 0.0
        %1417 = vmatpush.msra.mxu0 0.0
        %1418 = vmatpush.msra.mxu0 0.0
        %1419 = vmatpush.msra.mxu0 0.0
        %1420 = vmatpush.msra.mxu0 0.0
        %1421 = vmatpush.msra.mxu0 0.0
        %1422 = vmatpush.msra.mxu0 0.0
        %1423 = vmatpush.msra.mxu0 %v1156
        %1424 = vmatpush.msra.mxu0 %v1155
        %1425 = vmatpush.msra.mxu0 %v1154
        %1426 = vmatpush.msra.mxu0 %v1153
        %1427 = vmatmul.f32.gmra.mxu0 %v1409
        %v1428 = vpop.f32.mrf.mxu0
        %v1429 = vadd.f32 0.0, %v1428
        %1430 = vdwg.mxu0
        %v1432 = vsel %vm1177, %v1108, 0
        %1434 = vmatpush.msra.mxu0 0.0
        %1435 = vmatpush.msra.mxu0 0.0
        %1436 = vmatpush.msra.mxu0 0.0
        %1437 = vmatpush.msra.mxu0 0.0
        %1438 = vmatpush.msra.mxu0 0.0
        %1439 = vmatpush.msra.mxu0 0.0
        %1440 = vmatpush.msra.mxu0 0.0
        %1441 = vmatpush.msra.mxu0 0.0
        %1442 = vmatpush.msra.mxu0 0.0
        %1443 = vmatpush.msra.mxu0 0.0
        %1444 = vmatpush.msra.mxu0 0.0
        %1445 = vmatpush.msra.mxu0 0.0
        %1446 = vmatpush.msra.mxu0 %v1160
        %1447 = vmatpush.msra.mxu0 %v1159
        %1448 = vmatpush.msra.mxu0 %v1158
        %1449 = vmatpush.msra.mxu0 %v1157
        %1450 = vmatmul.f32.gmra.mxu0 %v1432
        %v1451 = vpop.f32.mrf.mxu0
        %v1452 = vadd.f32 0.0, %v1451
        %1453 = vdwg.mxu0
        %v1455 = vsel %vm1177, %v1109, 0
        %1457 = vmatpush.msra.mxu0 0.0
        %1458 = vmatpush.msra.mxu0 0.0
        %1459 = vmatpush.msra.mxu0 0.0
        %1460 = vmatpush.msra.mxu0 0.0
        %1461 = vmatpush.msra.mxu0 0.0
        %1462 = vmatpush.msra.mxu0 0.0
        %1463 = vmatpush.msra.mxu0 0.0
        %1464 = vmatpush.msra.mxu0 0.0
        %1465 = vmatpush.msra.mxu0 0.0
        %1466 = vmatpush.msra.mxu0 0.0
        %1467 = vmatpush.msra.mxu0 0.0
        %1468 = vmatpush.msra.mxu0 0.0
        %1469 = vmatpush.msra.mxu0 %v1164
        %1470 = vmatpush.msra.mxu0 %v1163
        %1471 = vmatpush.msra.mxu0 %v1162
        %1472 = vmatpush.msra.mxu0 %v1161
        %1473 = vmatmul.f32.gmra.mxu0 %v1455
        %v1474 = vpop.f32.mrf.mxu0
        %v1475 = vadd.f32 0.0, %v1474
        %1476 = vdwg.mxu0
        %v1478 = vsel %vm1177, %v1110, 0
        %1480 = vmatpush.msra.mxu0 0.0
        %1481 = vmatpush.msra.mxu0 0.0
        %1482 = vmatpush.msra.mxu0 0.0
        %1483 = vmatpush.msra.mxu0 0.0
        %1484 = vmatpush.msra.mxu0 0.0
        %1485 = vmatpush.msra.mxu0 0.0
        %1486 = vmatpush.msra.mxu0 0.0
        %1487 = vmatpush.msra.mxu0 0.0
        %1488 = vmatpush.msra.mxu0 0.0
        %1489 = vmatpush.msra.mxu0 0.0
        %1490 = vmatpush.msra.mxu0 0.0
        %1491 = vmatpush.msra.mxu0 0.0
        %1492 = vmatpush.msra.mxu0 %v1168
        %1493 = vmatpush.msra.mxu0 %v1167
        %1494 = vmatpush.msra.mxu0 %v1166
        %1495 = vmatpush.msra.mxu0 %v1165
        %1496 = vmatmul.f32.gmra.mxu0 %v1478
        %v1497 = vpop.f32.mrf.mxu0
        %v1498 = vadd.f32 0.0, %v1497
        %1499 = vdwg.mxu0
        %v1501 = vsel %vm1177, %v1111, 0
        %1503 = vmatpush.msra.mxu0 0.0
        %1504 = vmatpush.msra.mxu0 0.0
        %1505 = vmatpush.msra.mxu0 0.0
        %1506 = vmatpush.msra.mxu0 0.0
        %1507 = vmatpush.msra.mxu0 0.0
        %1508 = vmatpush.msra.mxu0 0.0
        %1509 = vmatpush.msra.mxu0 0.0
        %1510 = vmatpush.msra.mxu0 0.0
        %1511 = vmatpush.msra.mxu0 0.0
        %1512 = vmatpush.msra.mxu0 0.0
        %1513 = vmatpush.msra.mxu0 0.0
        %1514 = vmatpush.msra.mxu0 0.0
        %1515 = vmatpush.msra.mxu0 %v1172
        %1516 = vmatpush.msra.mxu0 %v1171
        %1517 = vmatpush.msra.mxu0 %v1170
        %1518 = vmatpush.msra.mxu0 %v1169
        %1519 = vmatmul.f32.gmra.mxu0 %v1501
        %v1520 = vpop.f32.mrf.mxu0
        %v1521 = vadd.f32 0.0, %v1520
        %1522 = vdwg.mxu0
        %v1524 = vsel %vm1177, %v1112, 0
        %1526 = vmatpush.msra.mxu0 0.0
        %1527 = vmatpush.msra.mxu0 0.0
        %1528 = vmatpush.msra.mxu0 0.0
        %1529 = vmatpush.msra.mxu0 0.0
        %1530 = vmatpush.msra.mxu0 0.0
        %1531 = vmatpush.msra.mxu0 0.0
        %1532 = vmatpush.msra.mxu0 0.0
        %1533 = vmatpush.msra.mxu0 0.0
        %1534 = vmatpush.msra.mxu0 0.0
        %1535 = vmatpush.msra.mxu0 0.0
        %1536 = vmatpush.msra.mxu0 0.0
        %1537 = vmatpush.msra.mxu0 0.0
        %1538 = vmatpush.msra.mxu0 %v1176
        %1539 = vmatpush.msra.mxu0 %v1175
        %1540 = vmatpush.msra.mxu0 %v1174
        %1541 = vmatpush.msra.mxu0 %v1173
        %1542 = vmatmul.f32.gmra.mxu0 %v1524
        %v1543 = vpop.f32.mrf.mxu0
        %v1544 = vadd.f32 0.0, %v1543
        %1545 = vdwg.mxu0
        %1546 = vmatpush.msra.mxu0 0.0
        %1547 = vmatpush.msra.mxu0 0.0
        %1548 = vmatpush.msra.mxu0 0.0
        %1549 = vmatpush.msra.mxu0 0.0
        %1550 = vmatpush.msra.mxu0 0.0
        %1551 = vmatpush.msra.mxu0 0.0
        %1552 = vmatpush.msra.mxu0 0.0
        %1553 = vmatpush.msra.mxu0 0.0
        %1554 = vmatpush.msra.mxu0 0.0
        %1555 = vmatpush.msra.mxu0 0.0
        %1556 = vmatpush.msra.mxu0 0.0
        %1557 = vmatpush.msra.mxu0 0.0
        %1558 = vmatpush.msra.mxu0 %v1116
        %1559 = vmatpush.msra.mxu0 %v1115
        %1560 = vmatpush.msra.mxu0 %v1114
        %1561 = vmatpush.msra.mxu0 %v1113
        %1562 = vmatmul.f32.gmra.mxu0 %v1363
        %v1563 = vpop.f32.mrf.mxu0
        %v1564 = vadd.f32 0.0, %v1563
        %1565 = vdwg.mxu0
        %1566 = vmatpush.msra.mxu0 0.0
        %1567 = vmatpush.msra.mxu0 0.0
        %1568 = vmatpush.msra.mxu0 0.0
        %1569 = vmatpush.msra.mxu0 0.0
        %1570 = vmatpush.msra.mxu0 0.0
        %1571 = vmatpush.msra.mxu0 0.0
        %1572 = vmatpush.msra.mxu0 0.0
        %1573 = vmatpush.msra.mxu0 0.0
        %1574 = vmatpush.msra.mxu0 0.0
        %1575 = vmatpush.msra.mxu0 0.0
        %1576 = vmatpush.msra.mxu0 0.0
        %1577 = vmatpush.msra.mxu0 0.0
        %1578 = vmatpush.msra.mxu0 %v1120
        %1579 = vmatpush.msra.mxu0 %v1119
        %1580 = vmatpush.msra.mxu0 %v1118
        %1581 = vmatpush.msra.mxu0 %v1117
        %1582 = vmatmul.f32.gmra.mxu0 %v1386
        %v1583 = vpop.f32.mrf.mxu0
        %v1584 = vadd.f32 0.0, %v1583
        %1585 = vdwg.mxu0
        %1586 = vmatpush.msra.mxu0 0.0
        %1587 = vmatpush.msra.mxu0 0.0
        %1588 = vmatpush.msra.mxu0 0.0
        %1589 = vmatpush.msra.mxu0 0.0
        %1590 = vmatpush.msra.mxu0 0.0
        %1591 = vmatpush.msra.mxu0 0.0
        %1592 = vmatpush.msra.mxu0 0.0
        %1593 = vmatpush.msra.mxu0 0.0
        %1594 = vmatpush.msra.mxu0 0.0
        %1595 = vmatpush.msra.mxu0 0.0
        %1596 = vmatpush.msra.mxu0 0.0
        %1597 = vmatpush.msra.mxu0 0.0
        %1598 = vmatpush.msra.mxu0 %v1124
        %1599 = vmatpush.msra.mxu0 %v1123
        %1600 = vmatpush.msra.mxu0 %v1122
        %1601 = vmatpush.msra.mxu0 %v1121
        %1602 = vmatmul.f32.gmra.mxu0 %v1409
        %v1603 = vpop.f32.mrf.mxu0
        %v1604 = vadd.f32 0.0, %v1603
        %1605 = vdwg.mxu0
        %1606 = vmatpush.msra.mxu0 0.0
        %1607 = vmatpush.msra.mxu0 0.0
        %1608 = vmatpush.msra.mxu0 0.0
        %1609 = vmatpush.msra.mxu0 0.0
        %1610 = vmatpush.msra.mxu0 0.0
        %1611 = vmatpush.msra.mxu0 0.0
        %1612 = vmatpush.msra.mxu0 0.0
        %1613 = vmatpush.msra.mxu0 0.0
        %1614 = vmatpush.msra.mxu0 0.0
        %1615 = vmatpush.msra.mxu0 0.0
        %1616 = vmatpush.msra.mxu0 0.0
        %1617 = vmatpush.msra.mxu0 0.0
        %1618 = vmatpush.msra.mxu0 %v1128
        %1619 = vmatpush.msra.mxu0 %v1127
        %1620 = vmatpush.msra.mxu0 %v1126
        %1621 = vmatpush.msra.mxu0 %v1125
        %1622 = vmatmul.f32.gmra.mxu0 %v1432
        %v1623 = vpop.f32.mrf.mxu0
        %v1624 = vadd.f32 0.0, %v1623
        %1625 = vdwg.mxu0
        %1626 = vmatpush.msra.mxu0 0.0
        %1627 = vmatpush.msra.mxu0 0.0
        %1628 = vmatpush.msra.mxu0 0.0
        %1629 = vmatpush.msra.mxu0 0.0
        %1630 = vmatpush.msra.mxu0 0.0
        %1631 = vmatpush.msra.mxu0 0.0
        %1632 = vmatpush.msra.mxu0 0.0
        %1633 = vmatpush.msra.mxu0 0.0
        %1634 = vmatpush.msra.mxu0 0.0
        %1635 = vmatpush.msra.mxu0 0.0
        %1636 = vmatpush.msra.mxu0 0.0
        %1637 = vmatpush.msra.mxu0 0.0
        %1638 = vmatpush.msra.mxu0 %v1132
        %1639 = vmatpush.msra.mxu0 %v1131
        %1640 = vmatpush.msra.mxu0 %v1130
        %1641 = vmatpush.msra.mxu0 %v1129
        %1642 = vmatmul.f32.gmra.mxu0 %v1455
        %v1643 = vpop.f32.mrf.mxu0
        %v1644 = vadd.f32 0.0, %v1643
        %1645 = vdwg.mxu0
        %1646 = vmatpush.msra.mxu0 0.0
        %1647 = vmatpush.msra.mxu0 0.0
        %1648 = vmatpush.msra.mxu0 0.0
        %1649 = vmatpush.msra.mxu0 0.0
        %1650 = vmatpush.msra.mxu0 0.0
        %1651 = vmatpush.msra.mxu0 0.0
        %1652 = vmatpush.msra.mxu0 0.0
        %1653 = vmatpush.msra.mxu0 0.0
        %1654 = vmatpush.msra.mxu0 0.0
        %1655 = vmatpush.msra.mxu0 0.0
        %1656 = vmatpush.msra.mxu0 0.0
        %1657 = vmatpush.msra.mxu0 0.0
        %1658 = vmatpush.msra.mxu0 %v1136
        %1659 = vmatpush.msra.mxu0 %v1135
        %1660 = vmatpush.msra.mxu0 %v1134
        %1661 = vmatpush.msra.mxu0 %v1133
        %1662 = vmatmul.f32.gmra.mxu0 %v1478
        %v1663 = vpop.f32.mrf.mxu0
        %v1664 = vadd.f32 0.0, %v1663
        %1665 = vdwg.mxu0
        %1666 = vmatpush.msra.mxu0 0.0
        %1667 = vmatpush.msra.mxu0 0.0
        %1668 = vmatpush.msra.mxu0 0.0
        %1669 = vmatpush.msra.mxu0 0.0
        %1670 = vmatpush.msra.mxu0 0.0
        %1671 = vmatpush.msra.mxu0 0.0
        %1672 = vmatpush.msra.mxu0 0.0
        %1673 = vmatpush.msra.mxu0 0.0
        %1674 = vmatpush.msra.mxu0 0.0
        %1675 = vmatpush.msra.mxu0 0.0
        %1676 = vmatpush.msra.mxu0 0.0
        %1677 = vmatpush.msra.mxu0 0.0
        %1678 = vmatpush.msra.mxu0 %v1140
        %1679 = vmatpush.msra.mxu0 %v1139
        %1680 = vmatpush.msra.mxu0 %v1138
        %1681 = vmatpush.msra.mxu0 %v1137
        %1682 = vmatmul.f32.gmra.mxu0 %v1501
        %v1683 = vpop.f32.mrf.mxu0
        %v1684 = vadd.f32 0.0, %v1683
        %1685 = vdwg.mxu0
        %1686 = vmatpush.msra.mxu0 0.0
        %1687 = vmatpush.msra.mxu0 0.0
        %1688 = vmatpush.msra.mxu0 0.0
        %1689 = vmatpush.msra.mxu0 0.0
        %1690 = vmatpush.msra.mxu0 0.0
        %1691 = vmatpush.msra.mxu0 0.0
        %1692 = vmatpush.msra.mxu0 0.0
        %1693 = vmatpush.msra.mxu0 0.0
        %1694 = vmatpush.msra.mxu0 0.0
        %1695 = vmatpush.msra.mxu0 0.0
        %1696 = vmatpush.msra.mxu0 0.0
        %1697 = vmatpush.msra.mxu0 0.0
        %1698 = vmatpush.msra.mxu0 %v1144
        %1699 = vmatpush.msra.mxu0 %v1143
        %1700 = vmatpush.msra.mxu0 %v1142
        %1701 = vmatpush.msra.mxu0 %v1141
        %1702 = vmatmul.f32.gmra.mxu0 %v1524
        %v1703 = vpop.f32.mrf.mxu0
        %v1704 = vadd.f32 0.0, %v1703
        %1705 = vdwg.mxu0
        %v1706 = vsub.f32 %v1199, %v1383
        %v1707 = vsub.f32 %v1222, %v1406
        %v1708 = vsub.f32 %v1245, %v1429
        %v1709 = vsub.f32 %v1268, %v1452
        %v1710 = vsub.f32 %v1291, %v1475
        %v1711 = vsub.f32 %v1314, %v1498
        %v1712 = vsub.f32 %v1337, %v1521
        %v1713 = vsub.f32 %v1360, %v1544
        %1714 = vmatpush.msra.mxu0 0.0
        %1715 = vmatpush.msra.mxu0 0.0
        %1716 = vmatpush.msra.mxu0 0.0
        %1717 = vmatpush.msra.mxu0 0.0
        %1718 = vmatpush.msra.mxu0 0.0
        %1719 = vmatpush.msra.mxu0 0.0
        %1720 = vmatpush.msra.mxu0 0.0
        %1721 = vmatpush.msra.mxu0 0.0
        %1722 = vmatpush.msra.mxu0 0.0
        %1723 = vmatpush.msra.mxu0 0.0
        %1724 = vmatpush.msra.mxu0 0.0
        %1725 = vmatpush.msra.mxu0 0.0
        %1726 = vmatpush.msra.mxu0 %v1148
        %1727 = vmatpush.msra.mxu0 %v1147
        %1728 = vmatpush.msra.mxu0 %v1146
        %1729 = vmatpush.msra.mxu0 %v1145
        %1730 = vmatmul.f32.gmra.mxu0 %v1179
        %v1731 = vpop.f32.mrf.mxu0
        %v1732 = vadd.f32 %v1564, %v1731
        %1733 = vdwg.mxu0
        %1734 = vmatpush.msra.mxu0 0.0
        %1735 = vmatpush.msra.mxu0 0.0
        %1736 = vmatpush.msra.mxu0 0.0
        %1737 = vmatpush.msra.mxu0 0.0
        %1738 = vmatpush.msra.mxu0 0.0
        %1739 = vmatpush.msra.mxu0 0.0
        %1740 = vmatpush.msra.mxu0 0.0
        %1741 = vmatpush.msra.mxu0 0.0
        %1742 = vmatpush.msra.mxu0 0.0
        %1743 = vmatpush.msra.mxu0 0.0
        %1744 = vmatpush.msra.mxu0 0.0
        %1745 = vmatpush.msra.mxu0 0.0
        %1746 = vmatpush.msra.mxu0 %v1152
        %1747 = vmatpush.msra.mxu0 %v1151
        %1748 = vmatpush.msra.mxu0 %v1150
        %1749 = vmatpush.msra.mxu0 %v1149
        %1750 = vmatmul.f32.gmra.mxu0 %v1202
        %v1751 = vpop.f32.mrf.mxu0
        %v1752 = vadd.f32 %v1584, %v1751
        %1753 = vdwg.mxu0
        %1754 = vmatpush.msra.mxu0 0.0
        %1755 = vmatpush.msra.mxu0 0.0
        %1756 = vmatpush.msra.mxu0 0.0
        %1757 = vmatpush.msra.mxu0 0.0
        %1758 = vmatpush.msra.mxu0 0.0
        %1759 = vmatpush.msra.mxu0 0.0
        %1760 = vmatpush.msra.mxu0 0.0
        %1761 = vmatpush.msra.mxu0 0.0
        %1762 = vmatpush.msra.mxu0 0.0
        %1763 = vmatpush.msra.mxu0 0.0
        %1764 = vmatpush.msra.mxu0 0.0
        %1765 = vmatpush.msra.mxu0 0.0
        %1766 = vmatpush.msra.mxu0 %v1156
        %1767 = vmatpush.msra.mxu0 %v1155
        %1768 = vmatpush.msra.mxu0 %v1154
        %1769 = vmatpush.msra.mxu0 %v1153
        %1770 = vmatmul.f32.gmra.mxu0 %v1225
        %v1771 = vpop.f32.mrf.mxu0
        %v1772 = vadd.f32 %v1604, %v1771
        %1773 = vdwg.mxu0
        %1774 = vmatpush.msra.mxu0 0.0
        %1775 = vmatpush.msra.mxu0 0.0
        %1776 = vmatpush.msra.mxu0 0.0
        %1777 = vmatpush.msra.mxu0 0.0
        %1778 = vmatpush.msra.mxu0 0.0
        %1779 = vmatpush.msra.mxu0 0.0
        %1780 = vmatpush.msra.mxu0 0.0
        %1781 = vmatpush.msra.mxu0 0.0
        %1782 = vmatpush.msra.mxu0 0.0
        %1783 = vmatpush.msra.mxu0 0.0
        %1784 = vmatpush.msra.mxu0 0.0
        %1785 = vmatpush.msra.mxu0 0.0
        %1786 = vmatpush.msra.mxu0 %v1160
        %1787 = vmatpush.msra.mxu0 %v1159
        %1788 = vmatpush.msra.mxu0 %v1158
        %1789 = vmatpush.msra.mxu0 %v1157
        %1790 = vmatmul.f32.gmra.mxu0 %v1248
        %v1791 = vpop.f32.mrf.mxu0
        %v1792 = vadd.f32 %v1624, %v1791
        %1793 = vdwg.mxu0
        %1794 = vmatpush.msra.mxu0 0.0
        %1795 = vmatpush.msra.mxu0 0.0
        %1796 = vmatpush.msra.mxu0 0.0
        %1797 = vmatpush.msra.mxu0 0.0
        %1798 = vmatpush.msra.mxu0 0.0
        %1799 = vmatpush.msra.mxu0 0.0
        %1800 = vmatpush.msra.mxu0 0.0
        %1801 = vmatpush.msra.mxu0 0.0
        %1802 = vmatpush.msra.mxu0 0.0
        %1803 = vmatpush.msra.mxu0 0.0
        %1804 = vmatpush.msra.mxu0 0.0
        %1805 = vmatpush.msra.mxu0 0.0
        %1806 = vmatpush.msra.mxu0 %v1164
        %1807 = vmatpush.msra.mxu0 %v1163
        %1808 = vmatpush.msra.mxu0 %v1162
        %1809 = vmatpush.msra.mxu0 %v1161
        %1810 = vmatmul.f32.gmra.mxu0 %v1271
        %v1811 = vpop.f32.mrf.mxu0
        %v1812 = vadd.f32 %v1644, %v1811
        %1813 = vdwg.mxu0
        %1814 = vmatpush.msra.mxu0 0.0
        %1815 = vmatpush.msra.mxu0 0.0
        %1816 = vmatpush.msra.mxu0 0.0
        %1817 = vmatpush.msra.mxu0 0.0
        %1818 = vmatpush.msra.mxu0 0.0
        %1819 = vmatpush.msra.mxu0 0.0
        %1820 = vmatpush.msra.mxu0 0.0
        %1821 = vmatpush.msra.mxu0 0.0
        %1822 = vmatpush.msra.mxu0 0.0
        %1823 = vmatpush.msra.mxu0 0.0
        %1824 = vmatpush.msra.mxu0 0.0
        %1825 = vmatpush.msra.mxu0 0.0
        %1826 = vmatpush.msra.mxu0 %v1168
        %1827 = vmatpush.msra.mxu0 %v1167
        %1828 = vmatpush.msra.mxu0 %v1166
        %1829 = vmatpush.msra.mxu0 %v1165
        %1830 = vmatmul.f32.gmra.mxu0 %v1294
        %v1831 = vpop.f32.mrf.mxu0
        %v1832 = vadd.f32 %v1664, %v1831
        %1833 = vdwg.mxu0
        %1834 = vmatpush.msra.mxu0 0.0
        %1835 = vmatpush.msra.mxu0 0.0
        %1836 = vmatpush.msra.mxu0 0.0
        %1837 = vmatpush.msra.mxu0 0.0
        %1838 = vmatpush.msra.mxu0 0.0
        %1839 = vmatpush.msra.mxu0 0.0
        %1840 = vmatpush.msra.mxu0 0.0
        %1841 = vmatpush.msra.mxu0 0.0
        %1842 = vmatpush.msra.mxu0 0.0
        %1843 = vmatpush.msra.mxu0 0.0
        %1844 = vmatpush.msra.mxu0 0.0
        %1845 = vmatpush.msra.mxu0 0.0
        %1846 = vmatpush.msra.mxu0 %v1172
        %1847 = vmatpush.msra.mxu0 %v1171
        %1848 = vmatpush.msra.mxu0 %v1170
        %1849 = vmatpush.msra.mxu0 %v1169
        %1850 = vmatmul.f32.gmra.mxu0 %v1317
        %v1851 = vpop.f32.mrf.mxu0
        %v1852 = vadd.f32 %v1684, %v1851
        %1853 = vdwg.mxu0
        %1854 = vmatpush.msra.mxu0 0.0
        %1855 = vmatpush.msra.mxu0 0.0
        %1856 = vmatpush.msra.mxu0 0.0
        %1857 = vmatpush.msra.mxu0 0.0
        %1858 = vmatpush.msra.mxu0 0.0
        %1859 = vmatpush.msra.mxu0 0.0
        %1860 = vmatpush.msra.mxu0 0.0
        %1861 = vmatpush.msra.mxu0 0.0
        %1862 = vmatpush.msra.mxu0 0.0
        %1863 = vmatpush.msra.mxu0 0.0
        %1864 = vmatpush.msra.mxu0 0.0
        %1865 = vmatpush.msra.mxu0 0.0
        %1866 = vmatpush.msra.mxu0 %v1176
        %1867 = vmatpush.msra.mxu0 %v1175
        %1868 = vmatpush.msra.mxu0 %v1174
        %1869 = vmatpush.msra.mxu0 %v1173
        %1870 = vmatmul.f32.gmra.mxu0 %v1340
        %v1871 = vpop.f32.mrf.mxu0
        %v1872 = vadd.f32 %v1704, %v1871
        %1873 = vdwg.mxu0
        %v1890 = vrot.slane %v1707, 7
        %vm1891 = vcmask 1041409
        %v1892 = vsel %vm1891, %v1890, %v1706
        %v1893 = vrot.slane %v1708, 6
        %vm1894 = vcmask 1042434
        %v1895 = vsel %vm1894, %v1893, %v1892
        %v1896 = vrot.slane %v1709, 5
        %vm1897 = vcmask 1043459
        %v1898 = vsel %vm1897, %v1896, %v1895
        %v1899 = vrot.slane %v1710, 4
        %vm1900 = vcmask 1044484
        %v1901 = vsel %vm1900, %v1899, %v1898
        %v1902 = vrot.slane %v1711, 3
        %vm1903 = vcmask 1045509
        %v1904 = vsel %vm1903, %v1902, %v1901
        %v1905 = vrot.slane %v1712, 2
        %vm1906 = vcmask 1046534
        %v1907 = vsel %vm1906, %v1905, %v1904
        %v1908 = vrot.slane %v1713, 1
        %vm1909 = vcmask 1047559
        %v1910 = vsel %vm1909, %v1908, %v1907
        %v1911 = vrot.slane %v1752, 7
        %v1912 = vsel %vm1891, %v1911, %v1732
        %v1913 = vrot.slane %v1772, 6
        %v1914 = vsel %vm1894, %v1913, %v1912
        %v1915 = vrot.slane %v1792, 5
        %v1916 = vsel %vm1897, %v1915, %v1914
        %v1917 = vrot.slane %v1812, 4
        %v1918 = vsel %vm1900, %v1917, %v1916
        %v1919 = vrot.slane %v1832, 3
        %v1920 = vsel %vm1903, %v1919, %v1918
        %v1921 = vrot.slane %v1852, 2
        %v1922 = vsel %vm1906, %v1921, %v1920
        %v1923 = vrot.slane %v1872, 1
        %v1924 = vsel %vm1909, %v1923, %v1922
        %1927 = vxpose.xlu0.b32.start [1/16] %v1910, 128
        %1928 = vxpose.xlu0.b32.cont [2/16] %v1924, 128
        %1929 = vxpose.xlu0.b32.cont [3/16] 0.0, 128
        %1930 = vxpose.xlu0.b32.cont [4/16] 0.0, 128
        %1931 = vxpose.xlu0.b32.cont [5/16] 0.0, 128
        %1932 = vxpose.xlu0.b32.cont [6/16] 0.0, 128
        %1933 = vxpose.xlu0.b32.cont [7/16] 0.0, 128
        %1934 = vxpose.xlu0.b32.cont [8/16] 0.0, 128
        %1935 = vxpose.xlu0.b32.cont [9/16] 0.0, 128
        %1936 = vxpose.xlu0.b32.cont [10/16] 0.0, 128
        %1937 = vxpose.xlu0.b32.cont [11/16] 0.0, 128
        %1938 = vxpose.xlu0.b32.cont [12/16] 0.0, 128
        %1939 = vxpose.xlu0.b32.cont [13/16] 0.0, 128
        %1940 = vxpose.xlu0.b32.cont [14/16] 0.0, 128
        %1941 = vxpose.xlu0.b32.cont [15/16] 0.0, 128
        %1942 = vxpose.xlu0.b32.end [16/16] 0.0, 128
        %v1943 = vpop.trf.xlu0
        %v1944 = vpop.trf.xlu0
        %v1945 = vpop.trf.xlu0
        %v1946 = vpop.trf.xlu0
        %v1947 = vpop.trf.xlu0
        %v1948 = vpop.trf.xlu0
        %v1949 = vpop.trf.xlu0
        %v1950 = vpop.trf.xlu0
        %v1951 = vpop.trf.xlu0
        %v1952 = vpop.trf.xlu0
        %v1953 = vpop.trf.xlu0
        %v1954 = vpop.trf.xlu0
        %v1955 = vpop.trf.xlu0
        %v1956 = vpop.trf.xlu0
        %v1957 = vpop.trf.xlu0
        %v1958 = vpop.trf.xlu0
        %v1959 = vrot.slane %v1706, 1
        %v1960 = vsel %vm1891, %v1707, %v1959
        %v1961 = vrot.slane %v1708, 7
        %v1962 = vsel %vm1894, %v1961, %v1960
        %v1963 = vrot.slane %v1709, 6
        %v1964 = vsel %vm1897, %v1963, %v1962
        %v1965 = vrot.slane %v1710, 5
        %v1966 = vsel %vm1900, %v1965, %v1964
        %v1967 = vrot.slane %v1711, 4
        %v1968 = vsel %vm1903, %v1967, %v1966
        %v1969 = vrot.slane %v1712, 3
        %v1970 = vsel %vm1906, %v1969, %v1968
        %v1971 = vrot.slane %v1713, 2
        %v1972 = vsel %vm1909, %v1971, %v1970
        %v1973 = vrot.slane %v1732, 1
        %v1974 = vsel %vm1891, %v1752, %v1973
        %v1975 = vrot.slane %v1772, 7
        %v1976 = vsel %vm1894, %v1975, %v1974
        %v1977 = vrot.slane %v1792, 6
        %v1978 = vsel %vm1897, %v1977, %v1976
        %v1979 = vrot.slane %v1812, 5
        %v1980 = vsel %vm1900, %v1979, %v1978
        %v1981 = vrot.slane %v1832, 4
        %v1982 = vsel %vm1903, %v1981, %v1980
        %v1983 = vrot.slane %v1852, 3
        %v1984 = vsel %vm1906, %v1983, %v1982
        %v1985 = vrot.slane %v1872, 2
        %v1986 = vsel %vm1909, %v1985, %v1984
        %1989 = vxpose.xlu0.b32.start [1/16] %v1972, 128
        %1990 = vxpose.xlu0.b32.cont [2/16] %v1986, 128
        %1991 = vxpose.xlu0.b32.cont [3/16] 0.0, 128
        %1992 = vxpose.xlu0.b32.cont [4/16] 0.0, 128
        %1993 = vxpose.xlu0.b32.cont [5/16] 0.0, 128
        %1994 = vxpose.xlu0.b32.cont [6/16] 0.0, 128
        %1995 = vxpose.xlu0.b32.cont [7/16] 0.0, 128
        %1996 = vxpose.xlu0.b32.cont [8/16] 0.0, 128
        %1997 = vxpose.xlu0.b32.cont [9/16] 0.0, 128
        %1998 = vxpose.xlu0.b32.cont [10/16] 0.0, 128
        %1999 = vxpose.xlu0.b32.cont [11/16] 0.0, 128
        %2000 = vxpose.xlu0.b32.cont [12/16] 0.0, 128
        %2001 = vxpose.xlu0.b32.cont [13/16] 0.0, 128
        %2002 = vxpose.xlu0.b32.cont [14/16] 0.0, 128
        %2003 = vxpose.xlu0.b32.cont [15/16] 0.0, 128
        %2004 = vxpose.xlu0.b32.end [16/16] 0.0, 128
        %v2005 = vpop.trf.xlu0
        %v2006 = vpop.trf.xlu0
        %v2007 = vpop.trf.xlu0
        %v2008 = vpop.trf.xlu0
        %v2009 = vpop.trf.xlu0
        %v2010 = vpop.trf.xlu0
        %v2011 = vpop.trf.xlu0
        %v2012 = vpop.trf.xlu0
        %v2013 = vpop.trf.xlu0
        %v2014 = vpop.trf.xlu0
        %v2015 = vpop.trf.xlu0
        %v2016 = vpop.trf.xlu0
        %v2017 = vpop.trf.xlu0
        %v2018 = vpop.trf.xlu0
        %v2019 = vpop.trf.xlu0
        %v2020 = vpop.trf.xlu0
        %v2021 = vld [vmem:[%s2] sm:$0xff]
        %v2022 = vld [vmem:[%s2 + $0x8] sm:$0xff]
        %v2024 = vsel %vm553, %v1943, 0
        %v2027 = vsel %vm553, %v1944, 0
        %v2030 = vsel %vm553, %v1945, 0
        %v2033 = vsel %vm553, %v1946, 0
        %v2036 = vsel %vm553, %v2005, 0
        %v2039 = vsel %vm553, %v2006, 0
        %v2042 = vsel %vm553, %v2007, 0
        %v2045 = vsel %vm553, %v2008, 0
        %2047 = vmatpush.msra.mxu0 0.0
        %2048 = vmatpush.msra.mxu0 0.0
        %2049 = vmatpush.msra.mxu0 0.0
        %2050 = vmatpush.msra.mxu0 0.0
        %2051 = vmatpush.msra.mxu0 0.0
        %2052 = vmatpush.msra.mxu0 0.0
        %2053 = vmatpush.msra.mxu0 0.0
        %2054 = vmatpush.msra.mxu0 0.0
        %2055 = vmatpush.msra.mxu0 0.0
        %2056 = vmatpush.msra.mxu0 0.0
        %2057 = vmatpush.msra.mxu0 0.0
        %2058 = vmatpush.msra.mxu0 0.0
        %2059 = vmatpush.msra.mxu0 0.0
        %2060 = vmatpush.msra.mxu0 0.0
        %v2061 = vand.u32 %v2022, 4294901760
        %2062 = vmatpush.msra.mxu0 %v2061
        %v2063 = vand.u32 %v2021, 4294901760
        %2064 = vmatpush.msra.mxu0 %v2063
        %v2065 = vand.u32 %v2024, 4294901760
        %v2066 = vsub.f32 %v2024, %v2065
        %v2067 = vand.u32 %v2066, 4294901760
        %v2068 = vsub.f32 %v2066, %v2067
        %v2069 = vand.u32 %v2068, 4294901760
        %2070 = vmatmul.f32.gmra.mxu0 %v2069
        %v2071 = vpop.f32.mrf.mxu0
        %v2072 = vadd.f32 0.0, %v2071
        %v2073 = vand.u32 %v2027, 4294901760
        %v2074 = vsub.f32 %v2027, %v2073
        %v2075 = vand.u32 %v2074, 4294901760
        %v2076 = vsub.f32 %v2074, %v2075
        %v2077 = vand.u32 %v2076, 4294901760
        %2078 = vmatmul.f32.gmra.mxu0 %v2077
        %v2079 = vpop.f32.mrf.mxu0
        %v2080 = vadd.f32 0.0, %v2079
        %v2081 = vand.u32 %v2030, 4294901760
        %v2082 = vsub.f32 %v2030, %v2081
        %v2083 = vand.u32 %v2082, 4294901760
        %v2084 = vsub.f32 %v2082, %v2083
        %v2085 = vand.u32 %v2084, 4294901760
        %2086 = vmatmul.f32.gmra.mxu0 %v2085
        %v2087 = vpop.f32.mrf.mxu0
        %v2088 = vadd.f32 0.0, %v2087
        %v2089 = vand.u32 %v2033, 4294901760
        %v2090 = vsub.f32 %v2033, %v2089
        %v2091 = vand.u32 %v2090, 4294901760
        %v2092 = vsub.f32 %v2090, %v2091
        %v2093 = vand.u32 %v2092, 4294901760
        %2094 = vmatmul.f32.gmra.mxu0 %v2093
        %v2095 = vpop.f32.mrf.mxu0
        %v2096 = vadd.f32 0.0, %v2095
        %v2097 = vand.u32 %v2036, 4294901760
        %v2098 = vsub.f32 %v2036, %v2097
        %v2099 = vand.u32 %v2098, 4294901760
        %v2100 = vsub.f32 %v2098, %v2099
        %v2101 = vand.u32 %v2100, 4294901760
        %2102 = vmatmul.f32.gmra.mxu0 %v2101
        %v2103 = vpop.f32.mrf.mxu0
        %v2104 = vadd.f32 0.0, %v2103
        %v2105 = vand.u32 %v2039, 4294901760
        %v2106 = vsub.f32 %v2039, %v2105
        %v2107 = vand.u32 %v2106, 4294901760
        %v2108 = vsub.f32 %v2106, %v2107
        %v2109 = vand.u32 %v2108, 4294901760
        %2110 = vmatmul.f32.gmra.mxu0 %v2109
        %v2111 = vpop.f32.mrf.mxu0
        %v2112 = vadd.f32 0.0, %v2111
        %v2113 = vand.u32 %v2042, 4294901760
        %v2114 = vsub.f32 %v2042, %v2113
        %v2115 = vand.u32 %v2114, 4294901760
        %v2116 = vsub.f32 %v2114, %v2115
        %v2117 = vand.u32 %v2116, 4294901760
        %2118 = vmatmul.f32.gmra.mxu0 %v2117
        %v2119 = vpop.f32.mrf.mxu0
        %v2120 = vadd.f32 0.0, %v2119
        %v2121 = vand.u32 %v2045, 4294901760
        %v2122 = vsub.f32 %v2045, %v2121
        %v2123 = vand.u32 %v2122, 4294901760
        %v2124 = vsub.f32 %v2122, %v2123
        %v2125 = vand.u32 %v2124, 4294901760
        %2126 = vmatmul.f32.gmra.mxu0 %v2125
        %v2127 = vpop.f32.mrf.mxu0
        %v2128 = vadd.f32 0.0, %v2127
        %2129 = vdwg.mxu0
        %2130 = vmatpush.msra.mxu0 0.0
        %2131 = vmatpush.msra.mxu0 0.0
        %2132 = vmatpush.msra.mxu0 0.0
        %2133 = vmatpush.msra.mxu0 0.0
        %2134 = vmatpush.msra.mxu0 0.0
        %2135 = vmatpush.msra.mxu0 0.0
        %2136 = vmatpush.msra.mxu0 0.0
        %2137 = vmatpush.msra.mxu0 0.0
        %2138 = vmatpush.msra.mxu0 0.0
        %2139 = vmatpush.msra.mxu0 0.0
        %2140 = vmatpush.msra.mxu0 0.0
        %2141 = vmatpush.msra.mxu0 0.0
        %2142 = vmatpush.msra.mxu0 0.0
        %2143 = vmatpush.msra.mxu0 0.0
        %v2144 = vand.u32 %v2022, 4294901760
        %v2145 = vsub.f32 %v2022, %v2144
        %v2146 = vand.u32 %v2145, 4294901760
        %v2147 = vsub.f32 %v2145, %v2146
        %v2148 = vand.u32 %v2147, 4294901760
        %2149 = vmatpush.msra.mxu0 %v2148
        %v2150 = vand.u32 %v2021, 4294901760
        %v2151 = vsub.f32 %v2021, %v2150
        %v2152 = vand.u32 %v2151, 4294901760
        %v2153 = vsub.f32 %v2151, %v2152
        %v2154 = vand.u32 %v2153, 4294901760
        %2155 = vmatpush.msra.mxu0 %v2154
        %v2156 = vand.u32 %v2024, 4294901760
        %2157 = vmatmul.f32.gmra.mxu0 %v2156
        %v2158 = vpop.f32.mrf.mxu0
        %v2159 = vadd.f32 %v2072, %v2158
        %v2160 = vand.u32 %v2027, 4294901760
        %2161 = vmatmul.f32.gmra.mxu0 %v2160
        %v2162 = vpop.f32.mrf.mxu0
        %v2163 = vadd.f32 %v2080, %v2162
        %v2164 = vand.u32 %v2030, 4294901760
        %2165 = vmatmul.f32.gmra.mxu0 %v2164
        %v2166 = vpop.f32.mrf.mxu0
        %v2167 = vadd.f32 %v2088, %v2166
        %v2168 = vand.u32 %v2033, 4294901760
        %2169 = vmatmul.f32.gmra.mxu0 %v2168
        %v2170 = vpop.f32.mrf.mxu0
        %v2171 = vadd.f32 %v2096, %v2170
        %v2172 = vand.u32 %v2036, 4294901760
        %2173 = vmatmul.f32.gmra.mxu0 %v2172
        %v2174 = vpop.f32.mrf.mxu0
        %v2175 = vadd.f32 %v2104, %v2174
        %v2176 = vand.u32 %v2039, 4294901760
        %2177 = vmatmul.f32.gmra.mxu0 %v2176
        %v2178 = vpop.f32.mrf.mxu0
        %v2179 = vadd.f32 %v2112, %v2178
        %v2180 = vand.u32 %v2042, 4294901760
        %2181 = vmatmul.f32.gmra.mxu0 %v2180
        %v2182 = vpop.f32.mrf.mxu0
        %v2183 = vadd.f32 %v2120, %v2182
        %v2184 = vand.u32 %v2045, 4294901760
        %2185 = vmatmul.f32.gmra.mxu0 %v2184
        %v2186 = vpop.f32.mrf.mxu0
        %v2187 = vadd.f32 %v2128, %v2186
        %2188 = vdwg.mxu0
        %2189 = vmatpush.msra.mxu0 0.0
        %2190 = vmatpush.msra.mxu0 0.0
        %2191 = vmatpush.msra.mxu0 0.0
        %2192 = vmatpush.msra.mxu0 0.0
        %2193 = vmatpush.msra.mxu0 0.0
        %2194 = vmatpush.msra.mxu0 0.0
        %2195 = vmatpush.msra.mxu0 0.0
        %2196 = vmatpush.msra.mxu0 0.0
        %2197 = vmatpush.msra.mxu0 0.0
        %2198 = vmatpush.msra.mxu0 0.0
        %2199 = vmatpush.msra.mxu0 0.0
        %2200 = vmatpush.msra.mxu0 0.0
        %2201 = vmatpush.msra.mxu0 0.0
        %2202 = vmatpush.msra.mxu0 0.0
        %v2203 = vand.u32 %v2022, 4294901760
        %v2204 = vsub.f32 %v2022, %v2203
        %2205 = vmatpush.msra.mxu0 %v2204
        %v2206 = vand.u32 %v2021, 4294901760
        %v2207 = vsub.f32 %v2021, %v2206
        %2208 = vmatpush.msra.mxu0 %v2207
        %v2209 = vand.u32 %v2024, 4294901760
        %v2210 = vsub.f32 %v2024, %v2209
        %2211 = vmatmul.f32.gmra.mxu0 %v2210
        %v2212 = vpop.f32.mrf.mxu0
        %v2213 = vadd.f32 %v2159, %v2212
        %v2214 = vand.u32 %v2027, 4294901760
        %v2215 = vsub.f32 %v2027, %v2214
        %2216 = vmatmul.f32.gmra.mxu0 %v2215
        %v2217 = vpop.f32.mrf.mxu0
        %v2218 = vadd.f32 %v2163, %v2217
        %v2219 = vand.u32 %v2030, 4294901760
        %v2220 = vsub.f32 %v2030, %v2219
        %2221 = vmatmul.f32.gmra.mxu0 %v2220
        %v2222 = vpop.f32.mrf.mxu0
        %v2223 = vadd.f32 %v2167, %v2222
        %v2224 = vand.u32 %v2033, 4294901760
        %v2225 = vsub.f32 %v2033, %v2224
        %2226 = vmatmul.f32.gmra.mxu0 %v2225
        %v2227 = vpop.f32.mrf.mxu0
        %v2228 = vadd.f32 %v2171, %v2227
        %v2229 = vand.u32 %v2036, 4294901760
        %v2230 = vsub.f32 %v2036, %v2229
        %2231 = vmatmul.f32.gmra.mxu0 %v2230
        %v2232 = vpop.f32.mrf.mxu0
        %v2233 = vadd.f32 %v2175, %v2232
        %v2234 = vand.u32 %v2039, 4294901760
        %v2235 = vsub.f32 %v2039, %v2234
        %2236 = vmatmul.f32.gmra.mxu0 %v2235
        %v2237 = vpop.f32.mrf.mxu0
        %v2238 = vadd.f32 %v2179, %v2237
        %v2239 = vand.u32 %v2042, 4294901760
        %v2240 = vsub.f32 %v2042, %v2239
        %2241 = vmatmul.f32.gmra.mxu0 %v2240
        %v2242 = vpop.f32.mrf.mxu0
        %v2243 = vadd.f32 %v2183, %v2242
        %v2244 = vand.u32 %v2045, 4294901760
        %v2245 = vsub.f32 %v2045, %v2244
        %2246 = vmatmul.f32.gmra.mxu0 %v2245
        %v2247 = vpop.f32.mrf.mxu0
        %v2248 = vadd.f32 %v2187, %v2247
        %2249 = vdwg.mxu0
        %2250 = vmatpush.msra.mxu0 0.0
        %2251 = vmatpush.msra.mxu0 0.0
        %2252 = vmatpush.msra.mxu0 0.0
        %2253 = vmatpush.msra.mxu0 0.0
        %2254 = vmatpush.msra.mxu0 0.0
        %2255 = vmatpush.msra.mxu0 0.0
        %2256 = vmatpush.msra.mxu0 0.0
        %2257 = vmatpush.msra.mxu0 0.0
        %2258 = vmatpush.msra.mxu0 0.0
        %2259 = vmatpush.msra.mxu0 0.0
        %2260 = vmatpush.msra.mxu0 0.0
        %2261 = vmatpush.msra.mxu0 0.0
        %2262 = vmatpush.msra.mxu0 0.0
        %2263 = vmatpush.msra.mxu0 0.0
        %v2264 = vand.u32 %v2022, 4294901760
        %2265 = vmatpush.msra.mxu0 %v2264
        %v2266 = vand.u32 %v2021, 4294901760
        %2267 = vmatpush.msra.mxu0 %v2266
        %v2268 = vand.u32 %v2024, 4294901760
        %v2269 = vsub.f32 %v2024, %v2268
        %v2270 = vand.u32 %v2269, 4294901760
        %2271 = vmatmul.f32.gmra.mxu0 %v2270
        %v2272 = vpop.f32.mrf.mxu0
        %v2273 = vadd.f32 %v2213, %v2272
        %v2274 = vand.u32 %v2027, 4294901760
        %v2275 = vsub.f32 %v2027, %v2274
        %v2276 = vand.u32 %v2275, 4294901760
        %2277 = vmatmul.f32.gmra.mxu0 %v2276
        %v2278 = vpop.f32.mrf.mxu0
        %v2279 = vadd.f32 %v2218, %v2278
        %v2280 = vand.u32 %v2030, 4294901760
        %v2281 = vsub.f32 %v2030, %v2280
        %v2282 = vand.u32 %v2281, 4294901760
        %2283 = vmatmul.f32.gmra.mxu0 %v2282
        %v2284 = vpop.f32.mrf.mxu0
        %v2285 = vadd.f32 %v2223, %v2284
        %v2286 = vand.u32 %v2033, 4294901760
        %v2287 = vsub.f32 %v2033, %v2286
        %v2288 = vand.u32 %v2287, 4294901760
        %2289 = vmatmul.f32.gmra.mxu0 %v2288
        %v2290 = vpop.f32.mrf.mxu0
        %v2291 = vadd.f32 %v2228, %v2290
        %v2292 = vand.u32 %v2036, 4294901760
        %v2293 = vsub.f32 %v2036, %v2292
        %v2294 = vand.u32 %v2293, 4294901760
        %2295 = vmatmul.f32.gmra.mxu0 %v2294
        %v2296 = vpop.f32.mrf.mxu0
        %v2297 = vadd.f32 %v2233, %v2296
        %v2298 = vand.u32 %v2039, 4294901760
        %v2299 = vsub.f32 %v2039, %v2298
        %v2300 = vand.u32 %v2299, 4294901760
        %2301 = vmatmul.f32.gmra.mxu0 %v2300
        %v2302 = vpop.f32.mrf.mxu0
        %v2303 = vadd.f32 %v2238, %v2302
        %v2304 = vand.u32 %v2042, 4294901760
        %v2305 = vsub.f32 %v2042, %v2304
        %v2306 = vand.u32 %v2305, 4294901760
        %2307 = vmatmul.f32.gmra.mxu0 %v2306
        %v2308 = vpop.f32.mrf.mxu0
        %v2309 = vadd.f32 %v2243, %v2308
        %v2310 = vand.u32 %v2045, 4294901760
        %v2311 = vsub.f32 %v2045, %v2310
        %v2312 = vand.u32 %v2311, 4294901760
        %2313 = vmatmul.f32.gmra.mxu0 %v2312
        %v2314 = vpop.f32.mrf.mxu0
        %v2315 = vadd.f32 %v2248, %v2314
        %2316 = vdwg.mxu0
        %2317 = vmatpush.msra.mxu0 0.0
        %2318 = vmatpush.msra.mxu0 0.0
        %2319 = vmatpush.msra.mxu0 0.0
        %2320 = vmatpush.msra.mxu0 0.0
        %2321 = vmatpush.msra.mxu0 0.0
        %2322 = vmatpush.msra.mxu0 0.0
        %2323 = vmatpush.msra.mxu0 0.0
        %2324 = vmatpush.msra.mxu0 0.0
        %2325 = vmatpush.msra.mxu0 0.0
        %2326 = vmatpush.msra.mxu0 0.0
        %2327 = vmatpush.msra.mxu0 0.0
        %2328 = vmatpush.msra.mxu0 0.0
        %2329 = vmatpush.msra.mxu0 0.0
        %2330 = vmatpush.msra.mxu0 0.0
        %v2331 = vand.u32 %v2022, 4294901760
        %v2332 = vsub.f32 %v2022, %v2331
        %v2333 = vand.u32 %v2332, 4294901760
        %2334 = vmatpush.msra.mxu0 %v2333
        %v2335 = vand.u32 %v2021, 4294901760
        %v2336 = vsub.f32 %v2021, %v2335
        %v2337 = vand.u32 %v2336, 4294901760
        %2338 = vmatpush.msra.mxu0 %v2337
        %v2339 = vand.u32 %v2024, 4294901760
        %2340 = vmatmul.f32.gmra.mxu0 %v2339
        %v2341 = vpop.f32.mrf.mxu0
        %v2342 = vadd.f32 %v2273, %v2341
        %v2343 = vand.u32 %v2027, 4294901760
        %2344 = vmatmul.f32.gmra.mxu0 %v2343
        %v2345 = vpop.f32.mrf.mxu0
        %v2346 = vadd.f32 %v2279, %v2345
        %v2347 = vand.u32 %v2030, 4294901760
        %2348 = vmatmul.f32.gmra.mxu0 %v2347
        %v2349 = vpop.f32.mrf.mxu0
        %v2350 = vadd.f32 %v2285, %v2349
        %v2351 = vand.u32 %v2033, 4294901760
        %2352 = vmatmul.f32.gmra.mxu0 %v2351
        %v2353 = vpop.f32.mrf.mxu0
        %v2354 = vadd.f32 %v2291, %v2353
        %v2355 = vand.u32 %v2036, 4294901760
        %2356 = vmatmul.f32.gmra.mxu0 %v2355
        %v2357 = vpop.f32.mrf.mxu0
        %v2358 = vadd.f32 %v2297, %v2357
        %v2359 = vand.u32 %v2039, 4294901760
        %2360 = vmatmul.f32.gmra.mxu0 %v2359
        %v2361 = vpop.f32.mrf.mxu0
        %v2362 = vadd.f32 %v2303, %v2361
        %v2363 = vand.u32 %v2042, 4294901760
        %2364 = vmatmul.f32.gmra.mxu0 %v2363
        %v2365 = vpop.f32.mrf.mxu0
        %v2366 = vadd.f32 %v2309, %v2365
        %v2367 = vand.u32 %v2045, 4294901760
        %2368 = vmatmul.f32.gmra.mxu0 %v2367
        %v2369 = vpop.f32.mrf.mxu0
        %v2370 = vadd.f32 %v2315, %v2369
        %2371 = vdwg.mxu0
        %2372 = vmatpush.msra.mxu0 0.0
        %2373 = vmatpush.msra.mxu0 0.0
        %2374 = vmatpush.msra.mxu0 0.0
        %2375 = vmatpush.msra.mxu0 0.0
        %2376 = vmatpush.msra.mxu0 0.0
        %2377 = vmatpush.msra.mxu0 0.0
        %2378 = vmatpush.msra.mxu0 0.0
        %2379 = vmatpush.msra.mxu0 0.0
        %2380 = vmatpush.msra.mxu0 0.0
        %2381 = vmatpush.msra.mxu0 0.0
        %2382 = vmatpush.msra.mxu0 0.0
        %2383 = vmatpush.msra.mxu0 0.0
        %2384 = vmatpush.msra.mxu0 0.0
        %2385 = vmatpush.msra.mxu0 0.0
        %v2386 = vand.u32 %v2022, 4294901760
        %2387 = vmatpush.msra.mxu0 %v2386
        %v2388 = vand.u32 %v2021, 4294901760
        %2389 = vmatpush.msra.mxu0 %v2388
        %v2390 = vand.u32 %v2024, 4294901760
        %2391 = vmatmul.f32.gmra.mxu0 %v2390
        %v2392 = vpop.f32.mrf.mxu0
        %v2393 = vadd.f32 %v2342, %v2392
        %v2394 = vand.u32 %v2027, 4294901760
        %2395 = vmatmul.f32.gmra.mxu0 %v2394
        %v2396 = vpop.f32.mrf.mxu0
        %v2397 = vadd.f32 %v2346, %v2396
        %v2398 = vand.u32 %v2030, 4294901760
        %2399 = vmatmul.f32.gmra.mxu0 %v2398
        %v2400 = vpop.f32.mrf.mxu0
        %v2401 = vadd.f32 %v2350, %v2400
        %v2402 = vand.u32 %v2033, 4294901760
        %2403 = vmatmul.f32.gmra.mxu0 %v2402
        %v2404 = vpop.f32.mrf.mxu0
        %v2405 = vadd.f32 %v2354, %v2404
        %v2406 = vand.u32 %v2036, 4294901760
        %2407 = vmatmul.f32.gmra.mxu0 %v2406
        %v2408 = vpop.f32.mrf.mxu0
        %v2409 = vadd.f32 %v2358, %v2408
        %v2410 = vand.u32 %v2039, 4294901760
        %2411 = vmatmul.f32.gmra.mxu0 %v2410
        %v2412 = vpop.f32.mrf.mxu0
        %v2413 = vadd.f32 %v2362, %v2412
        %v2414 = vand.u32 %v2042, 4294901760
        %2415 = vmatmul.f32.gmra.mxu0 %v2414
        %v2416 = vpop.f32.mrf.mxu0
        %v2417 = vadd.f32 %v2366, %v2416
        %v2418 = vand.u32 %v2045, 4294901760
        %2419 = vmatmul.f32.gmra.mxu0 %v2418
        %v2420 = vpop.f32.mrf.mxu0
        %v2421 = vadd.f32 %v2370, %v2420
        %2422 = vdwg.mxu0
        %v2423 = vld [vmem:[%s515] sm:$0xff]
        %v2424 = vld [vmem:[%s515 + $0x8] sm:$0xff]
        %v2425 = vld [vmem:[%s515 + $0x10] sm:$0xff]
        %v2426 = vld [vmem:[%s515 + $0x18] sm:$0xff]
        %v2427 = vld [vmem:[%s520] sm:$0xff]
        %v2428 = vld [vmem:[%s520 + $0x8] sm:$0xff]
        %v2429 = vld [vmem:[%s520 + $0x10] sm:$0xff]
        %v2430 = vld [vmem:[%s520 + $0x18] sm:$0xff]
        %2432 = vset.pattern.permute.xlu0 0
        %2433 = vperm.xlu0 %2432, %v2427
        %v2434 = vpop.permute.xlu0 %2433
        %2437 = vset.pattern.permute.xlu0 0
        %2438 = vperm.xlu0 %2437, %v2428
        %v2439 = vpop.permute.xlu0 %2438
        %2442 = vset.pattern.permute.xlu0 0
        %2443 = vperm.xlu0 %2442, %v2429
        %v2444 = vpop.permute.xlu0 %2443
        %2447 = vset.pattern.permute.xlu0 0
        %2448 = vperm.xlu0 %2447, %v2430
        %v2449 = vpop.permute.xlu0 %2448
        %v2452 = vsel %vm1177, %v2423, 0
        %v2455 = vsel %vm1177, %v2424, 0
        %v2458 = vsel %vm1177, %v2425, 0
        %v2461 = vsel %vm1177, %v2426, 0
        %2463 = vmatpush.msra.mxu0 0.0
        %2464 = vmatpush.msra.mxu0 0.0
        %2465 = vmatpush.msra.mxu0 0.0
        %2466 = vmatpush.msra.mxu0 0.0
        %2467 = vmatpush.msra.mxu0 0.0
        %2468 = vmatpush.msra.mxu0 0.0
        %2469 = vmatpush.msra.mxu0 0.0
        %2470 = vmatpush.msra.mxu0 0.0
        %2471 = vmatpush.msra.mxu0 0.0
        %2472 = vmatpush.msra.mxu0 0.0
        %2473 = vmatpush.msra.mxu0 0.0
        %2474 = vmatpush.msra.mxu0 0.0
        %v2475 = vand.u32 %v546, 4294901760
        %2476 = vmatpush.msra.mxu0 %v2475
        %v2477 = vand.u32 %v545, 4294901760
        %2478 = vmatpush.msra.mxu0 %v2477
        %v2479 = vand.u32 %v544, 4294901760
        %2480 = vmatpush.msra.mxu0 %v2479
        %v2481 = vand.u32 %v543, 4294901760
        %2482 = vmatpush.msra.mxu0 %v2481
        %v2483 = vand.u32 %v2452, 4294901760
        %v2484 = vsub.f32 %v2452, %v2483
        %v2485 = vand.u32 %v2484, 4294901760
        %v2486 = vsub.f32 %v2484, %v2485
        %v2487 = vand.u32 %v2486, 4294901760
        %2488 = vmatmul.f32.gmra.mxu0 %v2487
        %v2489 = vpop.f32.mrf.mxu0
        %v2490 = vadd.f32 %v2434, %v2489
        %v2491 = vand.u32 %v2455, 4294901760
        %v2492 = vsub.f32 %v2455, %v2491
        %v2493 = vand.u32 %v2492, 4294901760
        %v2494 = vsub.f32 %v2492, %v2493
        %v2495 = vand.u32 %v2494, 4294901760
        %2496 = vmatmul.f32.gmra.mxu0 %v2495
        %v2497 = vpop.f32.mrf.mxu0
        %v2498 = vadd.f32 %v2439, %v2497
        %v2499 = vand.u32 %v2458, 4294901760
        %v2500 = vsub.f32 %v2458, %v2499
        %v2501 = vand.u32 %v2500, 4294901760
        %v2502 = vsub.f32 %v2500, %v2501
        %v2503 = vand.u32 %v2502, 4294901760
        %2504 = vmatmul.f32.gmra.mxu0 %v2503
        %v2505 = vpop.f32.mrf.mxu0
        %v2506 = vadd.f32 %v2444, %v2505
        %v2507 = vand.u32 %v2461, 4294901760
        %v2508 = vsub.f32 %v2461, %v2507
        %v2509 = vand.u32 %v2508, 4294901760
        %v2510 = vsub.f32 %v2508, %v2509
        %v2511 = vand.u32 %v2510, 4294901760
        %2512 = vmatmul.f32.gmra.mxu0 %v2511
        %v2513 = vpop.f32.mrf.mxu0
        %v2514 = vadd.f32 %v2449, %v2513
        %2515 = vdwg.mxu0
        %2516 = vmatpush.msra.mxu0 0.0
        %2517 = vmatpush.msra.mxu0 0.0
        %2518 = vmatpush.msra.mxu0 0.0
        %2519 = vmatpush.msra.mxu0 0.0
        %2520 = vmatpush.msra.mxu0 0.0
        %2521 = vmatpush.msra.mxu0 0.0
        %2522 = vmatpush.msra.mxu0 0.0
        %2523 = vmatpush.msra.mxu0 0.0
        %2524 = vmatpush.msra.mxu0 0.0
        %2525 = vmatpush.msra.mxu0 0.0
        %2526 = vmatpush.msra.mxu0 0.0
        %2527 = vmatpush.msra.mxu0 0.0
        %v2528 = vand.u32 %v546, 4294901760
        %v2529 = vsub.f32 %v546, %v2528
        %v2530 = vand.u32 %v2529, 4294901760
        %v2531 = vsub.f32 %v2529, %v2530
        %v2532 = vand.u32 %v2531, 4294901760
        %2533 = vmatpush.msra.mxu0 %v2532
        %v2534 = vand.u32 %v545, 4294901760
        %v2535 = vsub.f32 %v545, %v2534
        %v2536 = vand.u32 %v2535, 4294901760
        %v2537 = vsub.f32 %v2535, %v2536
        %v2538 = vand.u32 %v2537, 4294901760
        %2539 = vmatpush.msra.mxu0 %v2538
        %v2540 = vand.u32 %v544, 4294901760
        %v2541 = vsub.f32 %v544, %v2540
        %v2542 = vand.u32 %v2541, 4294901760
        %v2543 = vsub.f32 %v2541, %v2542
        %v2544 = vand.u32 %v2543, 4294901760
        %2545 = vmatpush.msra.mxu0 %v2544
        %v2546 = vand.u32 %v543, 4294901760
        %v2547 = vsub.f32 %v543, %v2546
        %v2548 = vand.u32 %v2547, 4294901760
        %v2549 = vsub.f32 %v2547, %v2548
        %v2550 = vand.u32 %v2549, 4294901760
        %2551 = vmatpush.msra.mxu0 %v2550
        %v2552 = vand.u32 %v2452, 4294901760
        %2553 = vmatmul.f32.gmra.mxu0 %v2552
        %v2554 = vpop.f32.mrf.mxu0
        %v2555 = vadd.f32 %v2490, %v2554
        %v2556 = vand.u32 %v2455, 4294901760
        %2557 = vmatmul.f32.gmra.mxu0 %v2556
        %v2558 = vpop.f32.mrf.mxu0
        %v2559 = vadd.f32 %v2498, %v2558
        %v2560 = vand.u32 %v2458, 4294901760
        %2561 = vmatmul.f32.gmra.mxu0 %v2560
        %v2562 = vpop.f32.mrf.mxu0
        %v2563 = vadd.f32 %v2506, %v2562
        %v2564 = vand.u32 %v2461, 4294901760
        %2565 = vmatmul.f32.gmra.mxu0 %v2564
        %v2566 = vpop.f32.mrf.mxu0
        %v2567 = vadd.f32 %v2514, %v2566
        %2568 = vdwg.mxu0
        %2569 = vmatpush.msra.mxu0 0.0
        %2570 = vmatpush.msra.mxu0 0.0
        %2571 = vmatpush.msra.mxu0 0.0
        %2572 = vmatpush.msra.mxu0 0.0
        %2573 = vmatpush.msra.mxu0 0.0
        %2574 = vmatpush.msra.mxu0 0.0
        %2575 = vmatpush.msra.mxu0 0.0
        %2576 = vmatpush.msra.mxu0 0.0
        %2577 = vmatpush.msra.mxu0 0.0
        %2578 = vmatpush.msra.mxu0 0.0
        %2579 = vmatpush.msra.mxu0 0.0
        %2580 = vmatpush.msra.mxu0 0.0
        %v2581 = vand.u32 %v546, 4294901760
        %v2582 = vsub.f32 %v546, %v2581
        %2583 = vmatpush.msra.mxu0 %v2582
        %v2584 = vand.u32 %v545, 4294901760
        %v2585 = vsub.f32 %v545, %v2584
        %2586 = vmatpush.msra.mxu0 %v2585
        %v2587 = vand.u32 %v544, 4294901760
        %v2588 = vsub.f32 %v544, %v2587
        %2589 = vmatpush.msra.mxu0 %v2588
        %v2590 = vand.u32 %v543, 4294901760
        %v2591 = vsub.f32 %v543, %v2590
        %2592 = vmatpush.msra.mxu0 %v2591
        %v2593 = vand.u32 %v2452, 4294901760
        %v2594 = vsub.f32 %v2452, %v2593
        %2595 = vmatmul.f32.gmra.mxu0 %v2594
        %v2596 = vpop.f32.mrf.mxu0
        %v2597 = vadd.f32 %v2555, %v2596
        %v2598 = vand.u32 %v2455, 4294901760
        %v2599 = vsub.f32 %v2455, %v2598
        %2600 = vmatmul.f32.gmra.mxu0 %v2599
        %v2601 = vpop.f32.mrf.mxu0
        %v2602 = vadd.f32 %v2559, %v2601
        %v2603 = vand.u32 %v2458, 4294901760
        %v2604 = vsub.f32 %v2458, %v2603
        %2605 = vmatmul.f32.gmra.mxu0 %v2604
        %v2606 = vpop.f32.mrf.mxu0
        %v2607 = vadd.f32 %v2563, %v2606
        %v2608 = vand.u32 %v2461, 4294901760
        %v2609 = vsub.f32 %v2461, %v2608
        %2610 = vmatmul.f32.gmra.mxu0 %v2609
        %v2611 = vpop.f32.mrf.mxu0
        %v2612 = vadd.f32 %v2567, %v2611
        %2613 = vdwg.mxu0
        %2614 = vmatpush.msra.mxu0 0.0
        %2615 = vmatpush.msra.mxu0 0.0
        %2616 = vmatpush.msra.mxu0 0.0
        %2617 = vmatpush.msra.mxu0 0.0
        %2618 = vmatpush.msra.mxu0 0.0
        %2619 = vmatpush.msra.mxu0 0.0
        %2620 = vmatpush.msra.mxu0 0.0
        %2621 = vmatpush.msra.mxu0 0.0
        %2622 = vmatpush.msra.mxu0 0.0
        %2623 = vmatpush.msra.mxu0 0.0
        %2624 = vmatpush.msra.mxu0 0.0
        %2625 = vmatpush.msra.mxu0 0.0
        %v2626 = vand.u32 %v546, 4294901760
        %2627 = vmatpush.msra.mxu0 %v2626
        %v2628 = vand.u32 %v545, 4294901760
        %2629 = vmatpush.msra.mxu0 %v2628
        %v2630 = vand.u32 %v544, 4294901760
        %2631 = vmatpush.msra.mxu0 %v2630
        %v2632 = vand.u32 %v543, 4294901760
        %2633 = vmatpush.msra.mxu0 %v2632
        %v2634 = vand.u32 %v2452, 4294901760
        %v2635 = vsub.f32 %v2452, %v2634
        %v2636 = vand.u32 %v2635, 4294901760
        %2637 = vmatmul.f32.gmra.mxu0 %v2636
        %v2638 = vpop.f32.mrf.mxu0
        %v2639 = vadd.f32 %v2597, %v2638
        %v2640 = vand.u32 %v2455, 4294901760
        %v2641 = vsub.f32 %v2455, %v2640
        %v2642 = vand.u32 %v2641, 4294901760
        %2643 = vmatmul.f32.gmra.mxu0 %v2642
        %v2644 = vpop.f32.mrf.mxu0
        %v2645 = vadd.f32 %v2602, %v2644
        %v2646 = vand.u32 %v2458, 4294901760
        %v2647 = vsub.f32 %v2458, %v2646
        %v2648 = vand.u32 %v2647, 4294901760
        %2649 = vmatmul.f32.gmra.mxu0 %v2648
        %v2650 = vpop.f32.mrf.mxu0
        %v2651 = vadd.f32 %v2607, %v2650
        %v2652 = vand.u32 %v2461, 4294901760
        %v2653 = vsub.f32 %v2461, %v2652
        %v2654 = vand.u32 %v2653, 4294901760
        %2655 = vmatmul.f32.gmra.mxu0 %v2654
        %v2656 = vpop.f32.mrf.mxu0
        %v2657 = vadd.f32 %v2612, %v2656
        %2658 = vdwg.mxu0
        %2659 = vmatpush.msra.mxu0 0.0
        %2660 = vmatpush.msra.mxu0 0.0
        %2661 = vmatpush.msra.mxu0 0.0
        %2662 = vmatpush.msra.mxu0 0.0
        %2663 = vmatpush.msra.mxu0 0.0
        %2664 = vmatpush.msra.mxu0 0.0
        %2665 = vmatpush.msra.mxu0 0.0
        %2666 = vmatpush.msra.mxu0 0.0
        %2667 = vmatpush.msra.mxu0 0.0
        %2668 = vmatpush.msra.mxu0 0.0
        %2669 = vmatpush.msra.mxu0 0.0
        %2670 = vmatpush.msra.mxu0 0.0
        %v2671 = vand.u32 %v546, 4294901760
        %v2672 = vsub.f32 %v546, %v2671
        %v2673 = vand.u32 %v2672, 4294901760
        %2674 = vmatpush.msra.mxu0 %v2673
        %v2675 = vand.u32 %v545, 4294901760
        %v2676 = vsub.f32 %v545, %v2675
        %v2677 = vand.u32 %v2676, 4294901760
        %2678 = vmatpush.msra.mxu0 %v2677
        %v2679 = vand.u32 %v544, 4294901760
        %v2680 = vsub.f32 %v544, %v2679
        %v2681 = vand.u32 %v2680, 4294901760
        %2682 = vmatpush.msra.mxu0 %v2681
        %v2683 = vand.u32 %v543, 4294901760
        %v2684 = vsub.f32 %v543, %v2683
        %v2685 = vand.u32 %v2684, 4294901760
        %2686 = vmatpush.msra.mxu0 %v2685
        %v2687 = vand.u32 %v2452, 4294901760
        %2688 = vmatmul.f32.gmra.mxu0 %v2687
        %v2689 = vpop.f32.mrf.mxu0
        %v2690 = vadd.f32 %v2639, %v2689
        %v2691 = vand.u32 %v2455, 4294901760
        %2692 = vmatmul.f32.gmra.mxu0 %v2691
        %v2693 = vpop.f32.mrf.mxu0
        %v2694 = vadd.f32 %v2645, %v2693
        %v2695 = vand.u32 %v2458, 4294901760
        %2696 = vmatmul.f32.gmra.mxu0 %v2695
        %v2697 = vpop.f32.mrf.mxu0
        %v2698 = vadd.f32 %v2651, %v2697
        %v2699 = vand.u32 %v2461, 4294901760
        %2700 = vmatmul.f32.gmra.mxu0 %v2699
        %v2701 = vpop.f32.mrf.mxu0
        %v2702 = vadd.f32 %v2657, %v2701
        %2703 = vdwg.mxu0
        %2704 = vmatpush.msra.mxu0 0.0
        %2705 = vmatpush.msra.mxu0 0.0
        %2706 = vmatpush.msra.mxu0 0.0
        %2707 = vmatpush.msra.mxu0 0.0
        %2708 = vmatpush.msra.mxu0 0.0
        %2709 = vmatpush.msra.mxu0 0.0
        %2710 = vmatpush.msra.mxu0 0.0
        %2711 = vmatpush.msra.mxu0 0.0
        %2712 = vmatpush.msra.mxu0 0.0
        %2713 = vmatpush.msra.mxu0 0.0
        %2714 = vmatpush.msra.mxu0 0.0
        %2715 = vmatpush.msra.mxu0 0.0
        %v2716 = vand.u32 %v546, 4294901760
        %2717 = vmatpush.msra.mxu0 %v2716
        %v2718 = vand.u32 %v545, 4294901760
        %2719 = vmatpush.msra.mxu0 %v2718
        %v2720 = vand.u32 %v544, 4294901760
        %2721 = vmatpush.msra.mxu0 %v2720
        %v2722 = vand.u32 %v543, 4294901760
        %2723 = vmatpush.msra.mxu0 %v2722
        %v2724 = vand.u32 %v2452, 4294901760
        %2725 = vmatmul.f32.gmra.mxu0 %v2724
        %v2726 = vpop.f32.mrf.mxu0
        %v2727 = vadd.f32 %v2690, %v2726
        %v2728 = vand.u32 %v2455, 4294901760
        %2729 = vmatmul.f32.gmra.mxu0 %v2728
        %v2730 = vpop.f32.mrf.mxu0
        %v2731 = vadd.f32 %v2694, %v2730
        %v2732 = vand.u32 %v2458, 4294901760
        %2733 = vmatmul.f32.gmra.mxu0 %v2732
        %v2734 = vpop.f32.mrf.mxu0
        %v2735 = vadd.f32 %v2698, %v2734
        %v2736 = vand.u32 %v2461, 4294901760
        %2737 = vmatmul.f32.gmra.mxu0 %v2736
        %v2738 = vpop.f32.mrf.mxu0
        %v2739 = vadd.f32 %v2702, %v2738
        %2740 = vdwg.mxu0
        %2741 = vmatpush.msra.mxu0 0.0
        %2742 = vmatpush.msra.mxu0 0.0
        %2743 = vmatpush.msra.mxu0 0.0
        %2744 = vmatpush.msra.mxu0 0.0
        %2745 = vmatpush.msra.mxu0 0.0
        %2746 = vmatpush.msra.mxu0 0.0
        %2747 = vmatpush.msra.mxu0 0.0
        %2748 = vmatpush.msra.mxu0 0.0
        %2749 = vmatpush.msra.mxu0 0.0
        %2750 = vmatpush.msra.mxu0 0.0
        %2751 = vmatpush.msra.mxu0 0.0
        %2752 = vmatpush.msra.mxu0 0.0
        %v2753 = vand.u32 %v550, 4294901760
        %2754 = vmatpush.msra.mxu0 %v2753
        %v2755 = vand.u32 %v549, 4294901760
        %2756 = vmatpush.msra.mxu0 %v2755
        %v2757 = vand.u32 %v548, 4294901760
        %2758 = vmatpush.msra.mxu0 %v2757
        %v2759 = vand.u32 %v547, 4294901760
        %2760 = vmatpush.msra.mxu0 %v2759
        %v2761 = vand.u32 %v2452, 4294901760
        %v2762 = vsub.f32 %v2452, %v2761
        %v2763 = vand.u32 %v2762, 4294901760
        %v2764 = vsub.f32 %v2762, %v2763
        %v2765 = vand.u32 %v2764, 4294901760
        %2766 = vmatmul.f32.gmra.mxu0 %v2765
        %v2767 = vpop.f32.mrf.mxu0
        %v2768 = vadd.f32 %v2434, %v2767
        %v2769 = vand.u32 %v2455, 4294901760
        %v2770 = vsub.f32 %v2455, %v2769
        %v2771 = vand.u32 %v2770, 4294901760
        %v2772 = vsub.f32 %v2770, %v2771
        %v2773 = vand.u32 %v2772, 4294901760
        %2774 = vmatmul.f32.gmra.mxu0 %v2773
        %v2775 = vpop.f32.mrf.mxu0
        %v2776 = vadd.f32 %v2439, %v2775
        %v2777 = vand.u32 %v2458, 4294901760
        %v2778 = vsub.f32 %v2458, %v2777
        %v2779 = vand.u32 %v2778, 4294901760
        %v2780 = vsub.f32 %v2778, %v2779
        %v2781 = vand.u32 %v2780, 4294901760
        %2782 = vmatmul.f32.gmra.mxu0 %v2781
        %v2783 = vpop.f32.mrf.mxu0
        %v2784 = vadd.f32 %v2444, %v2783
        %v2785 = vand.u32 %v2461, 4294901760
        %v2786 = vsub.f32 %v2461, %v2785
        %v2787 = vand.u32 %v2786, 4294901760
        %v2788 = vsub.f32 %v2786, %v2787
        %v2789 = vand.u32 %v2788, 4294901760
        %2790 = vmatmul.f32.gmra.mxu0 %v2789
        %v2791 = vpop.f32.mrf.mxu0
        %v2792 = vadd.f32 %v2449, %v2791
        %2793 = vdwg.mxu0
        %2794 = vmatpush.msra.mxu0 0.0
        %2795 = vmatpush.msra.mxu0 0.0
        %2796 = vmatpush.msra.mxu0 0.0
        %2797 = vmatpush.msra.mxu0 0.0
        %2798 = vmatpush.msra.mxu0 0.0
        %2799 = vmatpush.msra.mxu0 0.0
        %2800 = vmatpush.msra.mxu0 0.0
        %2801 = vmatpush.msra.mxu0 0.0
        %2802 = vmatpush.msra.mxu0 0.0
        %2803 = vmatpush.msra.mxu0 0.0
        %2804 = vmatpush.msra.mxu0 0.0
        %2805 = vmatpush.msra.mxu0 0.0
        %v2806 = vand.u32 %v550, 4294901760
        %v2807 = vsub.f32 %v550, %v2806
        %v2808 = vand.u32 %v2807, 4294901760
        %v2809 = vsub.f32 %v2807, %v2808
        %v2810 = vand.u32 %v2809, 4294901760
        %2811 = vmatpush.msra.mxu0 %v2810
        %v2812 = vand.u32 %v549, 4294901760
        %v2813 = vsub.f32 %v549, %v2812
        %v2814 = vand.u32 %v2813, 4294901760
        %v2815 = vsub.f32 %v2813, %v2814
        %v2816 = vand.u32 %v2815, 4294901760
        %2817 = vmatpush.msra.mxu0 %v2816
        %v2818 = vand.u32 %v548, 4294901760
        %v2819 = vsub.f32 %v548, %v2818
        %v2820 = vand.u32 %v2819, 4294901760
        %v2821 = vsub.f32 %v2819, %v2820
        %v2822 = vand.u32 %v2821, 4294901760
        %2823 = vmatpush.msra.mxu0 %v2822
        %v2824 = vand.u32 %v547, 4294901760
        %v2825 = vsub.f32 %v547, %v2824
        %v2826 = vand.u32 %v2825, 4294901760
        %v2827 = vsub.f32 %v2825, %v2826
        %v2828 = vand.u32 %v2827, 4294901760
        %2829 = vmatpush.msra.mxu0 %v2828
        %v2830 = vand.u32 %v2452, 4294901760
        %2831 = vmatmul.f32.gmra.mxu0 %v2830
        %v2832 = vpop.f32.mrf.mxu0
        %v2833 = vadd.f32 %v2768, %v2832
        %v2834 = vand.u32 %v2455, 4294901760
        %2835 = vmatmul.f32.gmra.mxu0 %v2834
        %v2836 = vpop.f32.mrf.mxu0
        %v2837 = vadd.f32 %v2776, %v2836
        %v2838 = vand.u32 %v2458, 4294901760
        %2839 = vmatmul.f32.gmra.mxu0 %v2838
        %v2840 = vpop.f32.mrf.mxu0
        %v2841 = vadd.f32 %v2784, %v2840
        %v2842 = vand.u32 %v2461, 4294901760
        %2843 = vmatmul.f32.gmra.mxu0 %v2842
        %v2844 = vpop.f32.mrf.mxu0
        %v2845 = vadd.f32 %v2792, %v2844
        %2846 = vdwg.mxu0
        %2847 = vmatpush.msra.mxu0 0.0
        %2848 = vmatpush.msra.mxu0 0.0
        %2849 = vmatpush.msra.mxu0 0.0
        %2850 = vmatpush.msra.mxu0 0.0
        %2851 = vmatpush.msra.mxu0 0.0
        %2852 = vmatpush.msra.mxu0 0.0
        %2853 = vmatpush.msra.mxu0 0.0
        %2854 = vmatpush.msra.mxu0 0.0
        %2855 = vmatpush.msra.mxu0 0.0
        %2856 = vmatpush.msra.mxu0 0.0
        %2857 = vmatpush.msra.mxu0 0.0
        %2858 = vmatpush.msra.mxu0 0.0
        %v2859 = vand.u32 %v550, 4294901760
        %v2860 = vsub.f32 %v550, %v2859
        %2861 = vmatpush.msra.mxu0 %v2860
        %v2862 = vand.u32 %v549, 4294901760
        %v2863 = vsub.f32 %v549, %v2862
        %2864 = vmatpush.msra.mxu0 %v2863
        %v2865 = vand.u32 %v548, 4294901760
        %v2866 = vsub.f32 %v548, %v2865
        %2867 = vmatpush.msra.mxu0 %v2866
        %v2868 = vand.u32 %v547, 4294901760
        %v2869 = vsub.f32 %v547, %v2868
        %2870 = vmatpush.msra.mxu0 %v2869
        %v2871 = vand.u32 %v2452, 4294901760
        %v2872 = vsub.f32 %v2452, %v2871
        %2873 = vmatmul.f32.gmra.mxu0 %v2872
        %v2874 = vpop.f32.mrf.mxu0
        %v2875 = vadd.f32 %v2833, %v2874
        %v2876 = vand.u32 %v2455, 4294901760
        %v2877 = vsub.f32 %v2455, %v2876
        %2878 = vmatmul.f32.gmra.mxu0 %v2877
        %v2879 = vpop.f32.mrf.mxu0
        %v2880 = vadd.f32 %v2837, %v2879
        %v2881 = vand.u32 %v2458, 4294901760
        %v2882 = vsub.f32 %v2458, %v2881
        %2883 = vmatmul.f32.gmra.mxu0 %v2882
        %v2884 = vpop.f32.mrf.mxu0
        %v2885 = vadd.f32 %v2841, %v2884
        %v2886 = vand.u32 %v2461, 4294901760
        %v2887 = vsub.f32 %v2461, %v2886
        %2888 = vmatmul.f32.gmra.mxu0 %v2887
        %v2889 = vpop.f32.mrf.mxu0
        %v2890 = vadd.f32 %v2845, %v2889
        %2891 = vdwg.mxu0
        %2892 = vmatpush.msra.mxu0 0.0
        %2893 = vmatpush.msra.mxu0 0.0
        %2894 = vmatpush.msra.mxu0 0.0
        %2895 = vmatpush.msra.mxu0 0.0
        %2896 = vmatpush.msra.mxu0 0.0
        %2897 = vmatpush.msra.mxu0 0.0
        %2898 = vmatpush.msra.mxu0 0.0
        %2899 = vmatpush.msra.mxu0 0.0
        %2900 = vmatpush.msra.mxu0 0.0
        %2901 = vmatpush.msra.mxu0 0.0
        %2902 = vmatpush.msra.mxu0 0.0
        %2903 = vmatpush.msra.mxu0 0.0
        %v2904 = vand.u32 %v550, 4294901760
        %2905 = vmatpush.msra.mxu0 %v2904
        %v2906 = vand.u32 %v549, 4294901760
        %2907 = vmatpush.msra.mxu0 %v2906
        %v2908 = vand.u32 %v548, 4294901760
        %2909 = vmatpush.msra.mxu0 %v2908
        %v2910 = vand.u32 %v547, 4294901760
        %2911 = vmatpush.msra.mxu0 %v2910
        %v2912 = vand.u32 %v2452, 4294901760
        %v2913 = vsub.f32 %v2452, %v2912
        %v2914 = vand.u32 %v2913, 4294901760
        %2915 = vmatmul.f32.gmra.mxu0 %v2914
        %v2916 = vpop.f32.mrf.mxu0
        %v2917 = vadd.f32 %v2875, %v2916
        %v2918 = vand.u32 %v2455, 4294901760
        %v2919 = vsub.f32 %v2455, %v2918
        %v2920 = vand.u32 %v2919, 4294901760
        %2921 = vmatmul.f32.gmra.mxu0 %v2920
        %v2922 = vpop.f32.mrf.mxu0
        %v2923 = vadd.f32 %v2880, %v2922
        %v2924 = vand.u32 %v2458, 4294901760
        %v2925 = vsub.f32 %v2458, %v2924
        %v2926 = vand.u32 %v2925, 4294901760
        %2927 = vmatmul.f32.gmra.mxu0 %v2926
        %v2928 = vpop.f32.mrf.mxu0
        %v2929 = vadd.f32 %v2885, %v2928
        %v2930 = vand.u32 %v2461, 4294901760
        %v2931 = vsub.f32 %v2461, %v2930
        %v2932 = vand.u32 %v2931, 4294901760
        %2933 = vmatmul.f32.gmra.mxu0 %v2932
        %v2934 = vpop.f32.mrf.mxu0
        %v2935 = vadd.f32 %v2890, %v2934
        %2936 = vdwg.mxu0
        %2937 = vmatpush.msra.mxu0 0.0
        %2938 = vmatpush.msra.mxu0 0.0
        %2939 = vmatpush.msra.mxu0 0.0
        %2940 = vmatpush.msra.mxu0 0.0
        %2941 = vmatpush.msra.mxu0 0.0
        %2942 = vmatpush.msra.mxu0 0.0
        %2943 = vmatpush.msra.mxu0 0.0
        %2944 = vmatpush.msra.mxu0 0.0
        %2945 = vmatpush.msra.mxu0 0.0
        %2946 = vmatpush.msra.mxu0 0.0
        %2947 = vmatpush.msra.mxu0 0.0
        %2948 = vmatpush.msra.mxu0 0.0
        %v2949 = vand.u32 %v550, 4294901760
        %v2950 = vsub.f32 %v550, %v2949
        %v2951 = vand.u32 %v2950, 4294901760
        %2952 = vmatpush.msra.mxu0 %v2951
        %v2953 = vand.u32 %v549, 4294901760
        %v2954 = vsub.f32 %v549, %v2953
        %v2955 = vand.u32 %v2954, 4294901760
        %2956 = vmatpush.msra.mxu0 %v2955
        %v2957 = vand.u32 %v548, 4294901760
        %v2958 = vsub.f32 %v548, %v2957
        %v2959 = vand.u32 %v2958, 4294901760
        %2960 = vmatpush.msra.mxu0 %v2959
        %v2961 = vand.u32 %v547, 4294901760
        %v2962 = vsub.f32 %v547, %v2961
        %v2963 = vand.u32 %v2962, 4294901760
        %2964 = vmatpush.msra.mxu0 %v2963
        %v2965 = vand.u32 %v2452, 4294901760
        %2966 = vmatmul.f32.gmra.mxu0 %v2965
        %v2967 = vpop.f32.mrf.mxu0
        %v2968 = vadd.f32 %v2917, %v2967
        %v2969 = vand.u32 %v2455, 4294901760
        %2970 = vmatmul.f32.gmra.mxu0 %v2969
        %v2971 = vpop.f32.mrf.mxu0
        %v2972 = vadd.f32 %v2923, %v2971
        %v2973 = vand.u32 %v2458, 4294901760
        %2974 = vmatmul.f32.gmra.mxu0 %v2973
        %v2975 = vpop.f32.mrf.mxu0
        %v2976 = vadd.f32 %v2929, %v2975
        %v2977 = vand.u32 %v2461, 4294901760
        %2978 = vmatmul.f32.gmra.mxu0 %v2977
        %v2979 = vpop.f32.mrf.mxu0
        %v2980 = vadd.f32 %v2935, %v2979
        %2981 = vdwg.mxu0
        %2982 = vmatpush.msra.mxu0 0.0
        %2983 = vmatpush.msra.mxu0 0.0
        %2984 = vmatpush.msra.mxu0 0.0
        %2985 = vmatpush.msra.mxu0 0.0
        %2986 = vmatpush.msra.mxu0 0.0
        %2987 = vmatpush.msra.mxu0 0.0
        %2988 = vmatpush.msra.mxu0 0.0
        %2989 = vmatpush.msra.mxu0 0.0
        %2990 = vmatpush.msra.mxu0 0.0
        %2991 = vmatpush.msra.mxu0 0.0
        %2992 = vmatpush.msra.mxu0 0.0
        %2993 = vmatpush.msra.mxu0 0.0
        %v2994 = vand.u32 %v550, 4294901760
        %2995 = vmatpush.msra.mxu0 %v2994
        %v2996 = vand.u32 %v549, 4294901760
        %2997 = vmatpush.msra.mxu0 %v2996
        %v2998 = vand.u32 %v548, 4294901760
        %2999 = vmatpush.msra.mxu0 %v2998
        %v3000 = vand.u32 %v547, 4294901760
        %3001 = vmatpush.msra.mxu0 %v3000
        %v3002 = vand.u32 %v2452, 4294901760
        %3003 = vmatmul.f32.gmra.mxu0 %v3002
        %v3004 = vpop.f32.mrf.mxu0
        %v3005 = vadd.f32 %v2968, %v3004
        %v3006 = vand.u32 %v2455, 4294901760
        %3007 = vmatmul.f32.gmra.mxu0 %v3006
        %v3008 = vpop.f32.mrf.mxu0
        %v3009 = vadd.f32 %v2972, %v3008
        %v3010 = vand.u32 %v2458, 4294901760
        %3011 = vmatmul.f32.gmra.mxu0 %v3010
        %v3012 = vpop.f32.mrf.mxu0
        %v3013 = vadd.f32 %v2976, %v3012
        %v3014 = vand.u32 %v2461, 4294901760
        %3015 = vmatmul.f32.gmra.mxu0 %v3014
        %v3016 = vpop.f32.mrf.mxu0
        %v3017 = vadd.f32 %v2980, %v3016
        %3018 = vdwg.mxu0
        %v3019 = vadd.f32 %v2393, %v2727
        %v3020 = vadd.f32 %v2397, %v2731
        %v3021 = vadd.f32 %v2401, %v2735
        %v3022 = vadd.f32 %v2405, %v2739
        %v3023 = vadd.f32 %v2409, %v3005
        %v3024 = vadd.f32 %v2413, %v3009
        %v3025 = vadd.f32 %v2417, %v3013
        %v3026 = vadd.f32 %v2421, %v3017
        %v3027 = vtanh.pop %v3019
        %v3028 = vtanh.pop %v3020
        %v3029 = vtanh.pop %v3021
        %v3030 = vtanh.pop %v3022
        %v3031 = vtanh.pop %v3023
        %v3032 = vtanh.pop %v3024
        %v3033 = vtanh.pop %v3025
        %v3034 = vtanh.pop %v3026
        %3035 = vst.msk [vmem:[#allocation2] sm:$0xff] %vm553, %v3027
        %3036 = vst.msk [vmem:[#allocation2 + $0x8] sm:$0xff] %vm553, %v3028
        %3037 = vst.msk [vmem:[#allocation2 + $0x10] sm:$0xff] %vm553, %v3029
        %3038 = vst.msk [vmem:[#allocation2 + $0x18] sm:$0xff] %vm553, %v3030
        %3039 = vst.msk [vmem:[#allocation2 + $0x20] sm:$0xff] %vm553, %v3031
        %3040 = vst.msk [vmem:[#allocation2 + $0x28] sm:$0xff] %vm553, %v3032
        %3041 = vst.msk [vmem:[#allocation2 + $0x30] sm:$0xff] %vm553, %v3033
        %3042 = vst.msk [vmem:[#allocation2 + $0x38] sm:$0xff] %vm553, %v3034
        %p3043 = scmp.eq.s32.totalorder %s36, 2
        // Predicated region
        $region77: #{tpu_custom_call.1} parent=63 // pred_check
          %p3044 = pneg %p3043
        $region78: #{tpu_custom_call.1} parent=63 // pred_check_branch
          %3046 = sbr.rel (%p3044) target = $region80
        $region79: #{tpu_custom_call.1} parent=63 // pred_region
          %v3047 = vld [vmem:[#allocation2] sm:$0xff]
          %v3048 = vld [vmem:[#allocation2 + $0x8] sm:$0xff]
          %v3049 = vld [vmem:[#allocation2 + $0x10] sm:$0xff]
          %v3050 = vld [vmem:[#allocation2 + $0x18] sm:$0xff]
          %v3051 = vld [vmem:[#allocation2 + $0x20] sm:$0xff]
          %v3052 = vld [vmem:[#allocation2 + $0x28] sm:$0xff]
          %v3053 = vld [vmem:[#allocation2 + $0x30] sm:$0xff]
          %v3054 = vld [vmem:[#allocation2 + $0x38] sm:$0xff]
          %v3055 = vld [vmem:[%s7] sm:$0xff]
          %v3056 = vld [vmem:[%s7 + $0x8] sm:$0xff]
          %v3057 = vld [vmem:[%s7 + $0x10] sm:$0xff]
          %v3058 = vld [vmem:[%s7 + $0x18] sm:$0xff]
          %v3059 = vld [vmem:[%s8] sm:$0xff]
          %v3060 = vld [vmem:[%s8 + $0x8] sm:$0xff]
          %v3061 = vld [vmem:[%s8 + $0x10] sm:$0xff]
          %v3062 = vld [vmem:[%s8 + $0x18] sm:$0xff]
          %3064 = vset.pattern.permute.xlu0 0
          %3065 = vperm.xlu0 %3064, %v3059
          %v3066 = vpop.permute.xlu0 %3065
          %3069 = vset.pattern.permute.xlu0 0
          %3070 = vperm.xlu0 %3069, %v3060
          %v3071 = vpop.permute.xlu0 %3070
          %3074 = vset.pattern.permute.xlu0 0
          %3075 = vperm.xlu0 %3074, %v3061
          %v3076 = vpop.permute.xlu0 %3075
          %3079 = vset.pattern.permute.xlu0 0
          %3080 = vperm.xlu0 %3079, %v3062
          %v3081 = vpop.permute.xlu0 %3080
          %v3084 = vsel %vm1177, %v3055, 0
          %v3087 = vsel %vm1177, %v3056, 0
          %v3090 = vsel %vm1177, %v3057, 0
          %v3093 = vsel %vm1177, %v3058, 0
          %3095 = vmatpush.msra.mxu0 0.0
          %3096 = vmatpush.msra.mxu0 0.0
          %3097 = vmatpush.msra.mxu0 0.0
          %3098 = vmatpush.msra.mxu0 0.0
          %3099 = vmatpush.msra.mxu0 0.0
          %3100 = vmatpush.msra.mxu0 0.0
          %3101 = vmatpush.msra.mxu0 0.0
          %3102 = vmatpush.msra.mxu0 0.0
          %3103 = vmatpush.msra.mxu0 0.0
          %3104 = vmatpush.msra.mxu0 0.0
          %3105 = vmatpush.msra.mxu0 0.0
          %3106 = vmatpush.msra.mxu0 0.0
          %v3107 = vand.u32 %v3050, 4294901760
          %3108 = vmatpush.msra.mxu0 %v3107
          %v3109 = vand.u32 %v3049, 4294901760
          %3110 = vmatpush.msra.mxu0 %v3109
          %v3111 = vand.u32 %v3048, 4294901760
          %3112 = vmatpush.msra.mxu0 %v3111
          %v3113 = vand.u32 %v3047, 4294901760
          %3114 = vmatpush.msra.mxu0 %v3113
          %v3115 = vand.u32 %v3084, 4294901760
          %v3116 = vsub.f32 %v3084, %v3115
          %v3117 = vand.u32 %v3116, 4294901760
          %v3118 = vsub.f32 %v3116, %v3117
          %v3119 = vand.u32 %v3118, 4294901760
          %3120 = vmatmul.f32.gmra.mxu0 %v3119
          %v3121 = vpop.f32.mrf.mxu0
          %v3122 = vadd.f32 %v3066, %v3121
          %v3123 = vand.u32 %v3087, 4294901760
          %v3124 = vsub.f32 %v3087, %v3123
          %v3125 = vand.u32 %v3124, 4294901760
          %v3126 = vsub.f32 %v3124, %v3125
          %v3127 = vand.u32 %v3126, 4294901760
          %3128 = vmatmul.f32.gmra.mxu0 %v3127
          %v3129 = vpop.f32.mrf.mxu0
          %v3130 = vadd.f32 %v3071, %v3129
          %v3131 = vand.u32 %v3090, 4294901760
          %v3132 = vsub.f32 %v3090, %v3131
          %v3133 = vand.u32 %v3132, 4294901760
          %v3134 = vsub.f32 %v3132, %v3133
          %v3135 = vand.u32 %v3134, 4294901760
          %3136 = vmatmul.f32.gmra.mxu0 %v3135
          %v3137 = vpop.f32.mrf.mxu0
          %v3138 = vadd.f32 %v3076, %v3137
          %v3139 = vand.u32 %v3093, 4294901760
          %v3140 = vsub.f32 %v3093, %v3139
          %v3141 = vand.u32 %v3140, 4294901760
          %v3142 = vsub.f32 %v3140, %v3141
          %v3143 = vand.u32 %v3142, 4294901760
          %3144 = vmatmul.f32.gmra.mxu0 %v3143
          %v3145 = vpop.f32.mrf.mxu0
          %v3146 = vadd.f32 %v3081, %v3145
          %3147 = vdwg.mxu0
          %3148 = vmatpush.msra.mxu0 0.0
          %3149 = vmatpush.msra.mxu0 0.0
          %3150 = vmatpush.msra.mxu0 0.0
          %3151 = vmatpush.msra.mxu0 0.0
          %3152 = vmatpush.msra.mxu0 0.0
          %3153 = vmatpush.msra.mxu0 0.0
          %3154 = vmatpush.msra.mxu0 0.0
          %3155 = vmatpush.msra.mxu0 0.0
          %3156 = vmatpush.msra.mxu0 0.0
          %3157 = vmatpush.msra.mxu0 0.0
          %3158 = vmatpush.msra.mxu0 0.0
          %3159 = vmatpush.msra.mxu0 0.0
          %v3160 = vand.u32 %v3050, 4294901760
          %v3161 = vsub.f32 %v3050, %v3160
          %v3162 = vand.u32 %v3161, 4294901760
          %v3163 = vsub.f32 %v3161, %v3162
          %v3164 = vand.u32 %v3163, 4294901760
          %3165 = vmatpush.msra.mxu0 %v3164
          %v3166 = vand.u32 %v3049, 4294901760
          %v3167 = vsub.f32 %v3049, %v3166
          %v3168 = vand.u32 %v3167, 4294901760
          %v3169 = vsub.f32 %v3167, %v3168
          %v3170 = vand.u32 %v3169, 4294901760
          %3171 = vmatpush.msra.mxu0 %v3170
          %v3172 = vand.u32 %v3048, 4294901760
          %v3173 = vsub.f32 %v3048, %v3172
          %v3174 = vand.u32 %v3173, 4294901760
          %v3175 = vsub.f32 %v3173, %v3174
          %v3176 = vand.u32 %v3175, 4294901760
          %3177 = vmatpush.msra.mxu0 %v3176
          %v3178 = vand.u32 %v3047, 4294901760
          %v3179 = vsub.f32 %v3047, %v3178
          %v3180 = vand.u32 %v3179, 4294901760
          %v3181 = vsub.f32 %v3179, %v3180
          %v3182 = vand.u32 %v3181, 4294901760
          %3183 = vmatpush.msra.mxu0 %v3182
          %v3184 = vand.u32 %v3084, 4294901760
          %3185 = vmatmul.f32.gmra.mxu0 %v3184
          %v3186 = vpop.f32.mrf.mxu0
          %v3187 = vadd.f32 %v3122, %v3186
          %v3188 = vand.u32 %v3087, 4294901760
          %3189 = vmatmul.f32.gmra.mxu0 %v3188
          %v3190 = vpop.f32.mrf.mxu0
          %v3191 = vadd.f32 %v3130, %v3190
          %v3192 = vand.u32 %v3090, 4294901760
          %3193 = vmatmul.f32.gmra.mxu0 %v3192
          %v3194 = vpop.f32.mrf.mxu0
          %v3195 = vadd.f32 %v3138, %v3194
          %v3196 = vand.u32 %v3093, 4294901760
          %3197 = vmatmul.f32.gmra.mxu0 %v3196
          %v3198 = vpop.f32.mrf.mxu0
          %v3199 = vadd.f32 %v3146, %v3198
          %3200 = vdwg.mxu0
          %3201 = vmatpush.msra.mxu0 0.0
          %3202 = vmatpush.msra.mxu0 0.0
          %3203 = vmatpush.msra.mxu0 0.0
          %3204 = vmatpush.msra.mxu0 0.0
          %3205 = vmatpush.msra.mxu0 0.0
          %3206 = vmatpush.msra.mxu0 0.0
          %3207 = vmatpush.msra.mxu0 0.0
          %3208 = vmatpush.msra.mxu0 0.0
          %3209 = vmatpush.msra.mxu0 0.0
          %3210 = vmatpush.msra.mxu0 0.0
          %3211 = vmatpush.msra.mxu0 0.0
          %3212 = vmatpush.msra.mxu0 0.0
          %v3213 = vand.u32 %v3050, 4294901760
          %v3214 = vsub.f32 %v3050, %v3213
          %3215 = vmatpush.msra.mxu0 %v3214
          %v3216 = vand.u32 %v3049, 4294901760
          %v3217 = vsub.f32 %v3049, %v3216
          %3218 = vmatpush.msra.mxu0 %v3217
          %v3219 = vand.u32 %v3048, 4294901760
          %v3220 = vsub.f32 %v3048, %v3219
          %3221 = vmatpush.msra.mxu0 %v3220
          %v3222 = vand.u32 %v3047, 4294901760
          %v3223 = vsub.f32 %v3047, %v3222
          %3224 = vmatpush.msra.mxu0 %v3223
          %v3225 = vand.u32 %v3084, 4294901760
          %v3226 = vsub.f32 %v3084, %v3225
          %3227 = vmatmul.f32.gmra.mxu0 %v3226
          %v3228 = vpop.f32.mrf.mxu0
          %v3229 = vadd.f32 %v3187, %v3228
          %v3230 = vand.u32 %v3087, 4294901760
          %v3231 = vsub.f32 %v3087, %v3230
          %3232 = vmatmul.f32.gmra.mxu0 %v3231
          %v3233 = vpop.f32.mrf.mxu0
          %v3234 = vadd.f32 %v3191, %v3233
          %v3235 = vand.u32 %v3090, 4294901760
          %v3236 = vsub.f32 %v3090, %v3235
          %3237 = vmatmul.f32.gmra.mxu0 %v3236
          %v3238 = vpop.f32.mrf.mxu0
          %v3239 = vadd.f32 %v3195, %v3238
          %v3240 = vand.u32 %v3093, 4294901760
          %v3241 = vsub.f32 %v3093, %v3240
          %3242 = vmatmul.f32.gmra.mxu0 %v3241
          %v3243 = vpop.f32.mrf.mxu0
          %v3244 = vadd.f32 %v3199, %v3243
          %3245 = vdwg.mxu0
          %3246 = vmatpush.msra.mxu0 0.0
          %3247 = vmatpush.msra.mxu0 0.0
          %3248 = vmatpush.msra.mxu0 0.0
          %3249 = vmatpush.msra.mxu0 0.0
          %3250 = vmatpush.msra.mxu0 0.0
          %3251 = vmatpush.msra.mxu0 0.0
          %3252 = vmatpush.msra.mxu0 0.0
          %3253 = vmatpush.msra.mxu0 0.0
          %3254 = vmatpush.msra.mxu0 0.0
          %3255 = vmatpush.msra.mxu0 0.0
          %3256 = vmatpush.msra.mxu0 0.0
          %3257 = vmatpush.msra.mxu0 0.0
          %v3258 = vand.u32 %v3050, 4294901760
          %3259 = vmatpush.msra.mxu0 %v3258
          %v3260 = vand.u32 %v3049, 4294901760
          %3261 = vmatpush.msra.mxu0 %v3260
          %v3262 = vand.u32 %v3048, 4294901760
          %3263 = vmatpush.msra.mxu0 %v3262
          %v3264 = vand.u32 %v3047, 4294901760
          %3265 = vmatpush.msra.mxu0 %v3264
          %v3266 = vand.u32 %v3084, 4294901760
          %v3267 = vsub.f32 %v3084, %v3266
          %v3268 = vand.u32 %v3267, 4294901760
          %3269 = vmatmul.f32.gmra.mxu0 %v3268
          %v3270 = vpop.f32.mrf.mxu0
          %v3271 = vadd.f32 %v3229, %v3270
          %v3272 = vand.u32 %v3087, 4294901760
          %v3273 = vsub.f32 %v3087, %v3272
          %v3274 = vand.u32 %v3273, 4294901760
          %3275 = vmatmul.f32.gmra.mxu0 %v3274
          %v3276 = vpop.f32.mrf.mxu0
          %v3277 = vadd.f32 %v3234, %v3276
          %v3278 = vand.u32 %v3090, 4294901760
          %v3279 = vsub.f32 %v3090, %v3278
          %v3280 = vand.u32 %v3279, 4294901760
          %3281 = vmatmul.f32.gmra.mxu0 %v3280
          %v3282 = vpop.f32.mrf.mxu0
          %v3283 = vadd.f32 %v3239, %v3282
          %v3284 = vand.u32 %v3093, 4294901760
          %v3285 = vsub.f32 %v3093, %v3284
          %v3286 = vand.u32 %v3285, 4294901760
          %3287 = vmatmul.f32.gmra.mxu0 %v3286
          %v3288 = vpop.f32.mrf.mxu0
          %v3289 = vadd.f32 %v3244, %v3288
          %3290 = vdwg.mxu0
          %3291 = vmatpush.msra.mxu0 0.0
          %3292 = vmatpush.msra.mxu0 0.0
          %3293 = vmatpush.msra.mxu0 0.0
          %3294 = vmatpush.msra.mxu0 0.0
          %3295 = vmatpush.msra.mxu0 0.0
          %3296 = vmatpush.msra.mxu0 0.0
          %3297 = vmatpush.msra.mxu0 0.0
          %3298 = vmatpush.msra.mxu0 0.0
          %3299 = vmatpush.msra.mxu0 0.0
          %3300 = vmatpush.msra.mxu0 0.0
          %3301 = vmatpush.msra.mxu0 0.0
          %3302 = vmatpush.msra.mxu0 0.0
          %v3303 = vand.u32 %v3050, 4294901760
          %v3304 = vsub.f32 %v3050, %v3303
          %v3305 = vand.u32 %v3304, 4294901760
          %3306 = vmatpush.msra.mxu0 %v3305
          %v3307 = vand.u32 %v3049, 4294901760
          %v3308 = vsub.f32 %v3049, %v3307
          %v3309 = vand.u32 %v3308, 4294901760
          %3310 = vmatpush.msra.mxu0 %v3309
          %v3311 = vand.u32 %v3048, 4294901760
          %v3312 = vsub.f32 %v3048, %v3311
          %v3313 = vand.u32 %v3312, 4294901760
          %3314 = vmatpush.msra.mxu0 %v3313
          %v3315 = vand.u32 %v3047, 4294901760
          %v3316 = vsub.f32 %v3047, %v3315
          %v3317 = vand.u32 %v3316, 4294901760
          %3318 = vmatpush.msra.mxu0 %v3317
          %v3319 = vand.u32 %v3084, 4294901760
          %3320 = vmatmul.f32.gmra.mxu0 %v3319
          %v3321 = vpop.f32.mrf.mxu0
          %v3322 = vadd.f32 %v3271, %v3321
          %v3323 = vand.u32 %v3087, 4294901760
          %3324 = vmatmul.f32.gmra.mxu0 %v3323
          %v3325 = vpop.f32.mrf.mxu0
          %v3326 = vadd.f32 %v3277, %v3325
          %v3327 = vand.u32 %v3090, 4294901760
          %3328 = vmatmul.f32.gmra.mxu0 %v3327
          %v3329 = vpop.f32.mrf.mxu0
          %v3330 = vadd.f32 %v3283, %v3329
          %v3331 = vand.u32 %v3093, 4294901760
          %3332 = vmatmul.f32.gmra.mxu0 %v3331
          %v3333 = vpop.f32.mrf.mxu0
          %v3334 = vadd.f32 %v3289, %v3333
          %3335 = vdwg.mxu0
          %3336 = vmatpush.msra.mxu0 0.0
          %3337 = vmatpush.msra.mxu0 0.0
          %3338 = vmatpush.msra.mxu0 0.0
          %3339 = vmatpush.msra.mxu0 0.0
          %3340 = vmatpush.msra.mxu0 0.0
          %3341 = vmatpush.msra.mxu0 0.0
          %3342 = vmatpush.msra.mxu0 0.0
          %3343 = vmatpush.msra.mxu0 0.0
          %3344 = vmatpush.msra.mxu0 0.0
          %3345 = vmatpush.msra.mxu0 0.0
          %3346 = vmatpush.msra.mxu0 0.0
          %3347 = vmatpush.msra.mxu0 0.0
          %v3348 = vand.u32 %v3050, 4294901760
          %3349 = vmatpush.msra.mxu0 %v3348
          %v3350 = vand.u32 %v3049, 4294901760
          %3351 = vmatpush.msra.mxu0 %v3350
          %v3352 = vand.u32 %v3048, 4294901760
          %3353 = vmatpush.msra.mxu0 %v3352
          %v3354 = vand.u32 %v3047, 4294901760
          %3355 = vmatpush.msra.mxu0 %v3354
          %v3356 = vand.u32 %v3084, 4294901760
          %3357 = vmatmul.f32.gmra.mxu0 %v3356
          %v3358 = vpop.f32.mrf.mxu0
          %v3359 = vadd.f32 %v3322, %v3358
          %v3360 = vand.u32 %v3087, 4294901760
          %3361 = vmatmul.f32.gmra.mxu0 %v3360
          %v3362 = vpop.f32.mrf.mxu0
          %v3363 = vadd.f32 %v3326, %v3362
          %v3364 = vand.u32 %v3090, 4294901760
          %3365 = vmatmul.f32.gmra.mxu0 %v3364
          %v3366 = vpop.f32.mrf.mxu0
          %v3367 = vadd.f32 %v3330, %v3366
          %v3368 = vand.u32 %v3093, 4294901760
          %3369 = vmatmul.f32.gmra.mxu0 %v3368
          %v3370 = vpop.f32.mrf.mxu0
          %v3371 = vadd.f32 %v3334, %v3370
          %3372 = vdwg.mxu0
          %3373 = vmatpush.msra.mxu0 0.0
          %3374 = vmatpush.msra.mxu0 0.0
          %3375 = vmatpush.msra.mxu0 0.0
          %3376 = vmatpush.msra.mxu0 0.0
          %3377 = vmatpush.msra.mxu0 0.0
          %3378 = vmatpush.msra.mxu0 0.0
          %3379 = vmatpush.msra.mxu0 0.0
          %3380 = vmatpush.msra.mxu0 0.0
          %3381 = vmatpush.msra.mxu0 0.0
          %3382 = vmatpush.msra.mxu0 0.0
          %3383 = vmatpush.msra.mxu0 0.0
          %3384 = vmatpush.msra.mxu0 0.0
          %v3385 = vand.u32 %v3054, 4294901760
          %3386 = vmatpush.msra.mxu0 %v3385
          %v3387 = vand.u32 %v3053, 4294901760
          %3388 = vmatpush.msra.mxu0 %v3387
          %v3389 = vand.u32 %v3052, 4294901760
          %3390 = vmatpush.msra.mxu0 %v3389
          %v3391 = vand.u32 %v3051, 4294901760
          %3392 = vmatpush.msra.mxu0 %v3391
          %v3393 = vand.u32 %v3084, 4294901760
          %v3394 = vsub.f32 %v3084, %v3393
          %v3395 = vand.u32 %v3394, 4294901760
          %v3396 = vsub.f32 %v3394, %v3395
          %v3397 = vand.u32 %v3396, 4294901760
          %3398 = vmatmul.f32.gmra.mxu0 %v3397
          %v3399 = vpop.f32.mrf.mxu0
          %v3400 = vadd.f32 %v3066, %v3399
          %v3401 = vand.u32 %v3087, 4294901760
          %v3402 = vsub.f32 %v3087, %v3401
          %v3403 = vand.u32 %v3402, 4294901760
          %v3404 = vsub.f32 %v3402, %v3403
          %v3405 = vand.u32 %v3404, 4294901760
          %3406 = vmatmul.f32.gmra.mxu0 %v3405
          %v3407 = vpop.f32.mrf.mxu0
          %v3408 = vadd.f32 %v3071, %v3407
          %v3409 = vand.u32 %v3090, 4294901760
          %v3410 = vsub.f32 %v3090, %v3409
          %v3411 = vand.u32 %v3410, 4294901760
          %v3412 = vsub.f32 %v3410, %v3411
          %v3413 = vand.u32 %v3412, 4294901760
          %3414 = vmatmul.f32.gmra.mxu0 %v3413
          %v3415 = vpop.f32.mrf.mxu0
          %v3416 = vadd.f32 %v3076, %v3415
          %v3417 = vand.u32 %v3093, 4294901760
          %v3418 = vsub.f32 %v3093, %v3417
          %v3419 = vand.u32 %v3418, 4294901760
          %v3420 = vsub.f32 %v3418, %v3419
          %v3421 = vand.u32 %v3420, 4294901760
          %3422 = vmatmul.f32.gmra.mxu0 %v3421
          %v3423 = vpop.f32.mrf.mxu0
          %v3424 = vadd.f32 %v3081, %v3423
          %3425 = vdwg.mxu0
          %3426 = vmatpush.msra.mxu0 0.0
          %3427 = vmatpush.msra.mxu0 0.0
          %3428 = vmatpush.msra.mxu0 0.0
          %3429 = vmatpush.msra.mxu0 0.0
          %3430 = vmatpush.msra.mxu0 0.0
          %3431 = vmatpush.msra.mxu0 0.0
          %3432 = vmatpush.msra.mxu0 0.0
          %3433 = vmatpush.msra.mxu0 0.0
          %3434 = vmatpush.msra.mxu0 0.0
          %3435 = vmatpush.msra.mxu0 0.0
          %3436 = vmatpush.msra.mxu0 0.0
          %3437 = vmatpush.msra.mxu0 0.0
          %v3438 = vand.u32 %v3054, 4294901760
          %v3439 = vsub.f32 %v3054, %v3438
          %v3440 = vand.u32 %v3439, 4294901760
          %v3441 = vsub.f32 %v3439, %v3440
          %v3442 = vand.u32 %v3441, 4294901760
          %3443 = vmatpush.msra.mxu0 %v3442
          %v3444 = vand.u32 %v3053, 4294901760
          %v3445 = vsub.f32 %v3053, %v3444
          %v3446 = vand.u32 %v3445, 4294901760
          %v3447 = vsub.f32 %v3445, %v3446
          %v3448 = vand.u32 %v3447, 4294901760
          %3449 = vmatpush.msra.mxu0 %v3448
          %v3450 = vand.u32 %v3052, 4294901760
          %v3451 = vsub.f32 %v3052, %v3450
          %v3452 = vand.u32 %v3451, 4294901760
          %v3453 = vsub.f32 %v3451, %v3452
          %v3454 = vand.u32 %v3453, 4294901760
          %3455 = vmatpush.msra.mxu0 %v3454
          %v3456 = vand.u32 %v3051, 4294901760
          %v3457 = vsub.f32 %v3051, %v3456
          %v3458 = vand.u32 %v3457, 4294901760
          %v3459 = vsub.f32 %v3457, %v3458
          %v3460 = vand.u32 %v3459, 4294901760
          %3461 = vmatpush.msra.mxu0 %v3460
          %v3462 = vand.u32 %v3084, 4294901760
          %3463 = vmatmul.f32.gmra.mxu0 %v3462
          %v3464 = vpop.f32.mrf.mxu0
          %v3465 = vadd.f32 %v3400, %v3464
          %v3466 = vand.u32 %v3087, 4294901760
          %3467 = vmatmul.f32.gmra.mxu0 %v3466
          %v3468 = vpop.f32.mrf.mxu0
          %v3469 = vadd.f32 %v3408, %v3468
          %v3470 = vand.u32 %v3090, 4294901760
          %3471 = vmatmul.f32.gmra.mxu0 %v3470
          %v3472 = vpop.f32.mrf.mxu0
          %v3473 = vadd.f32 %v3416, %v3472
          %v3474 = vand.u32 %v3093, 4294901760
          %3475 = vmatmul.f32.gmra.mxu0 %v3474
          %v3476 = vpop.f32.mrf.mxu0
          %v3477 = vadd.f32 %v3424, %v3476
          %3478 = vdwg.mxu0
          %3479 = vmatpush.msra.mxu0 0.0
          %3480 = vmatpush.msra.mxu0 0.0
          %3481 = vmatpush.msra.mxu0 0.0
          %3482 = vmatpush.msra.mxu0 0.0
          %3483 = vmatpush.msra.mxu0 0.0
          %3484 = vmatpush.msra.mxu0 0.0
          %3485 = vmatpush.msra.mxu0 0.0
          %3486 = vmatpush.msra.mxu0 0.0
          %3487 = vmatpush.msra.mxu0 0.0
          %3488 = vmatpush.msra.mxu0 0.0
          %3489 = vmatpush.msra.mxu0 0.0
          %3490 = vmatpush.msra.mxu0 0.0
          %v3491 = vand.u32 %v3054, 4294901760
          %v3492 = vsub.f32 %v3054, %v3491
          %3493 = vmatpush.msra.mxu0 %v3492
          %v3494 = vand.u32 %v3053, 4294901760
          %v3495 = vsub.f32 %v3053, %v3494
          %3496 = vmatpush.msra.mxu0 %v3495
          %v3497 = vand.u32 %v3052, 4294901760
          %v3498 = vsub.f32 %v3052, %v3497
          %3499 = vmatpush.msra.mxu0 %v3498
          %v3500 = vand.u32 %v3051, 4294901760
          %v3501 = vsub.f32 %v3051, %v3500
          %3502 = vmatpush.msra.mxu0 %v3501
          %v3503 = vand.u32 %v3084, 4294901760
          %v3504 = vsub.f32 %v3084, %v3503
          %3505 = vmatmul.f32.gmra.mxu0 %v3504
          %v3506 = vpop.f32.mrf.mxu0
          %v3507 = vadd.f32 %v3465, %v3506
          %v3508 = vand.u32 %v3087, 4294901760
          %v3509 = vsub.f32 %v3087, %v3508
          %3510 = vmatmul.f32.gmra.mxu0 %v3509
          %v3511 = vpop.f32.mrf.mxu0
          %v3512 = vadd.f32 %v3469, %v3511
          %v3513 = vand.u32 %v3090, 4294901760
          %v3514 = vsub.f32 %v3090, %v3513
          %3515 = vmatmul.f32.gmra.mxu0 %v3514
          %v3516 = vpop.f32.mrf.mxu0
          %v3517 = vadd.f32 %v3473, %v3516
          %v3518 = vand.u32 %v3093, 4294901760
          %v3519 = vsub.f32 %v3093, %v3518
          %3520 = vmatmul.f32.gmra.mxu0 %v3519
          %v3521 = vpop.f32.mrf.mxu0
          %v3522 = vadd.f32 %v3477, %v3521
          %3523 = vdwg.mxu0
          %3524 = vmatpush.msra.mxu0 0.0
          %3525 = vmatpush.msra.mxu0 0.0
          %3526 = vmatpush.msra.mxu0 0.0
          %3527 = vmatpush.msra.mxu0 0.0
          %3528 = vmatpush.msra.mxu0 0.0
          %3529 = vmatpush.msra.mxu0 0.0
          %3530 = vmatpush.msra.mxu0 0.0
          %3531 = vmatpush.msra.mxu0 0.0
          %3532 = vmatpush.msra.mxu0 0.0
          %3533 = vmatpush.msra.mxu0 0.0
          %3534 = vmatpush.msra.mxu0 0.0
          %3535 = vmatpush.msra.mxu0 0.0
          %v3536 = vand.u32 %v3054, 4294901760
          %3537 = vmatpush.msra.mxu0 %v3536
          %v3538 = vand.u32 %v3053, 4294901760
          %3539 = vmatpush.msra.mxu0 %v3538
          %v3540 = vand.u32 %v3052, 4294901760
          %3541 = vmatpush.msra.mxu0 %v3540
          %v3542 = vand.u32 %v3051, 4294901760
          %3543 = vmatpush.msra.mxu0 %v3542
          %v3544 = vand.u32 %v3084, 4294901760
          %v3545 = vsub.f32 %v3084, %v3544
          %v3546 = vand.u32 %v3545, 4294901760
          %3547 = vmatmul.f32.gmra.mxu0 %v3546
          %v3548 = vpop.f32.mrf.mxu0
          %v3549 = vadd.f32 %v3507, %v3548
          %v3550 = vand.u32 %v3087, 4294901760
          %v3551 = vsub.f32 %v3087, %v3550
          %v3552 = vand.u32 %v3551, 4294901760
          %3553 = vmatmul.f32.gmra.mxu0 %v3552
          %v3554 = vpop.f32.mrf.mxu0
          %v3555 = vadd.f32 %v3512, %v3554
          %v3556 = vand.u32 %v3090, 4294901760
          %v3557 = vsub.f32 %v3090, %v3556
          %v3558 = vand.u32 %v3557, 4294901760
          %3559 = vmatmul.f32.gmra.mxu0 %v3558
          %v3560 = vpop.f32.mrf.mxu0
          %v3561 = vadd.f32 %v3517, %v3560
          %v3562 = vand.u32 %v3093, 4294901760
          %v3563 = vsub.f32 %v3093, %v3562
          %v3564 = vand.u32 %v3563, 4294901760
          %3565 = vmatmul.f32.gmra.mxu0 %v3564
          %v3566 = vpop.f32.mrf.mxu0
          %v3567 = vadd.f32 %v3522, %v3566
          %3568 = vdwg.mxu0
          %3569 = vmatpush.msra.mxu0 0.0
          %3570 = vmatpush.msra.mxu0 0.0
          %3571 = vmatpush.msra.mxu0 0.0
          %3572 = vmatpush.msra.mxu0 0.0
          %3573 = vmatpush.msra.mxu0 0.0
          %3574 = vmatpush.msra.mxu0 0.0
          %3575 = vmatpush.msra.mxu0 0.0
          %3576 = vmatpush.msra.mxu0 0.0
          %3577 = vmatpush.msra.mxu0 0.0
          %3578 = vmatpush.msra.mxu0 0.0
          %3579 = vmatpush.msra.mxu0 0.0
          %3580 = vmatpush.msra.mxu0 0.0
          %v3581 = vand.u32 %v3054, 4294901760
          %v3582 = vsub.f32 %v3054, %v3581
          %v3583 = vand.u32 %v3582, 4294901760
          %3584 = vmatpush.msra.mxu0 %v3583
          %v3585 = vand.u32 %v3053, 4294901760
          %v3586 = vsub.f32 %v3053, %v3585
          %v3587 = vand.u32 %v3586, 4294901760
          %3588 = vmatpush.msra.mxu0 %v3587
          %v3589 = vand.u32 %v3052, 4294901760
          %v3590 = vsub.f32 %v3052, %v3589
          %v3591 = vand.u32 %v3590, 4294901760
          %3592 = vmatpush.msra.mxu0 %v3591
          %v3593 = vand.u32 %v3051, 4294901760
          %v3594 = vsub.f32 %v3051, %v3593
          %v3595 = vand.u32 %v3594, 4294901760
          %3596 = vmatpush.msra.mxu0 %v3595
          %v3597 = vand.u32 %v3084, 4294901760
          %3598 = vmatmul.f32.gmra.mxu0 %v3597
          %v3599 = vpop.f32.mrf.mxu0
          %v3600 = vadd.f32 %v3549, %v3599
          %v3601 = vand.u32 %v3087, 4294901760
          %3602 = vmatmul.f32.gmra.mxu0 %v3601
          %v3603 = vpop.f32.mrf.mxu0
          %v3604 = vadd.f32 %v3555, %v3603
          %v3605 = vand.u32 %v3090, 4294901760
          %3606 = vmatmul.f32.gmra.mxu0 %v3605
          %v3607 = vpop.f32.mrf.mxu0
          %v3608 = vadd.f32 %v3561, %v3607
          %v3609 = vand.u32 %v3093, 4294901760
          %3610 = vmatmul.f32.gmra.mxu0 %v3609
          %v3611 = vpop.f32.mrf.mxu0
          %v3612 = vadd.f32 %v3567, %v3611
          %3613 = vdwg.mxu0
          %3614 = vmatpush.msra.mxu0 0.0
          %3615 = vmatpush.msra.mxu0 0.0
          %3616 = vmatpush.msra.mxu0 0.0
          %3617 = vmatpush.msra.mxu0 0.0
          %3618 = vmatpush.msra.mxu0 0.0
          %3619 = vmatpush.msra.mxu0 0.0
          %3620 = vmatpush.msra.mxu0 0.0
          %3621 = vmatpush.msra.mxu0 0.0
          %3622 = vmatpush.msra.mxu0 0.0
          %3623 = vmatpush.msra.mxu0 0.0
          %3624 = vmatpush.msra.mxu0 0.0
          %3625 = vmatpush.msra.mxu0 0.0
          %v3626 = vand.u32 %v3054, 4294901760
          %3627 = vmatpush.msra.mxu0 %v3626
          %v3628 = vand.u32 %v3053, 4294901760
          %3629 = vmatpush.msra.mxu0 %v3628
          %v3630 = vand.u32 %v3052, 4294901760
          %3631 = vmatpush.msra.mxu0 %v3630
          %v3632 = vand.u32 %v3051, 4294901760
          %3633 = vmatpush.msra.mxu0 %v3632
          %v3634 = vand.u32 %v3084, 4294901760
          %3635 = vmatmul.f32.gmra.mxu0 %v3634
          %v3636 = vpop.f32.mrf.mxu0
          %v3637 = vadd.f32 %v3600, %v3636
          %v3638 = vand.u32 %v3087, 4294901760
          %3639 = vmatmul.f32.gmra.mxu0 %v3638
          %v3640 = vpop.f32.mrf.mxu0
          %v3641 = vadd.f32 %v3604, %v3640
          %v3642 = vand.u32 %v3090, 4294901760
          %3643 = vmatmul.f32.gmra.mxu0 %v3642
          %v3644 = vpop.f32.mrf.mxu0
          %v3645 = vadd.f32 %v3608, %v3644
          %v3646 = vand.u32 %v3093, 4294901760
          %3647 = vmatmul.f32.gmra.mxu0 %v3646
          %v3648 = vpop.f32.mrf.mxu0
          %v3649 = vadd.f32 %v3612, %v3648
          %3650 = vdwg.mxu0
          %v3651 = vtanh.pop %v3359
          %v3652 = vtanh.pop %v3363
          %v3653 = vtanh.pop %v3367
          %v3654 = vtanh.pop %v3371
          %v3655 = vtanh.pop %v3637
          %v3656 = vtanh.pop %v3641
          %v3657 = vtanh.pop %v3645
          %v3658 = vtanh.pop %v3649
          %v3659 = vld [vmem:[%s9] sm:$0xff]
          %v3660 = vld [vmem:[%s9 + $0x8] sm:$0xff]
          %v3661 = vld [vmem:[%s9 + $0x10] sm:$0xff]
          %v3662 = vld [vmem:[%s9 + $0x18] sm:$0xff]
          %3664 = vset.pattern.permute.xlu0 0
          %3665 = vperm.xlu0 %3664, %v3659
          %v3666 = vpop.permute.xlu0 %3665
          %3669 = vset.pattern.permute.xlu0 0
          %3670 = vperm.xlu0 %3669, %v3660
          %v3671 = vpop.permute.xlu0 %3670
          %3674 = vset.pattern.permute.xlu0 0
          %3675 = vperm.xlu0 %3674, %v3661
          %v3676 = vpop.permute.xlu0 %3675
          %3679 = vset.pattern.permute.xlu0 0
          %3680 = vperm.xlu0 %3679, %v3662
          %v3681 = vpop.permute.xlu0 %3680
          %v3683 = vmul.f32 %v3651, %v3666
          %v3684 = vmul.f32 %v3652, %v3671
          %v3685 = vmul.f32 %v3653, %v3676
          %v3686 = vmul.f32 %v3654, %v3681
          %v3687 = vmul.f32 %v3655, %v3666
          %v3688 = vmul.f32 %v3656, %v3671
          %v3689 = vmul.f32 %v3657, %v3676
          %v3690 = vmul.f32 %v3658, %v3681
          %v3691 = vsel %vm553, %v3683, 0.0
          %v3692 = vsel %vm553, %v3684, 0.0
          %v3693 = vadd.f32 %v3691, %v3692
          %v3694 = vsel %vm553, %v3685, 0.0
          %v3695 = vadd.f32 %v3693, %v3694
          %v3696 = vsel %vm553, %v3686, 0.0
          %v3697 = vadd.f32 %v3695, %v3696
          %v3698 = vrot.slane %v3697, 4
          %v3699 = vadd.f32 %v3697, %v3698
          %v3700 = vrot.slane %v3699, 2
          %v3701 = vadd.f32 %v3699, %v3700
          %v3702 = vrot.slane %v3701, 1
          %v3703 = vadd.f32 %v3701, %v3702
          %v3704 = vsel %vm553, %v3687, 0.0
          %v3705 = vsel %vm553, %v3688, 0.0
          %v3706 = vadd.f32 %v3704, %v3705
          %v3707 = vsel %vm553, %v3689, 0.0
          %v3708 = vadd.f32 %v3706, %v3707
          %v3709 = vsel %vm553, %v3690, 0.0
          %v3710 = vadd.f32 %v3708, %v3709
          %v3711 = vrot.slane %v3710, 4
          %v3712 = vadd.f32 %v3710, %v3711
          %v3713 = vrot.slane %v3712, 2
          %v3714 = vadd.f32 %v3712, %v3713
          %v3715 = vrot.slane %v3714, 1
          %v3716 = vadd.f32 %v3714, %v3715
          %v3717 = vld [vmem:[#allocation3] sm:$0x1]
          %v3719 = vperm.slane %v3717, 0
          %3720 = vset.pattern.permute.xlu0 0
          %3721 = vperm.xlu0 %3720, %v3719
          %v3722 = vpop.permute.xlu0 %3721
          %v3724 = vadd.f32 %v3703, %v3722
          %v3725 = vadd.f32 %v3716, %v3722
          %vm3726 = vcmask 122880
          %3727 = vst.msk [vmem:[#allocation9] sm:$0x1] %vm3726, %v3724
          %3728 = vst.msk [vmem:[#allocation9 + $0x1] sm:$0x1] %vm3726, %v3725
        $region80: #{tpu_custom_call.1} parent=63 // pred_fallthru
          _
        // Predicated region
        $region81: #{tpu_custom_call.1} parent=63 // pred_check
          %p3729 = pneg %p317
        $region82: #{tpu_custom_call.1} parent=63 // pred_check_branch
          %3731 = sbr.rel (%p3729) target = $region84
        $region83: #{tpu_custom_call.1} parent=63 // pred_region
          %s3732 = smul.u32 2, %s35
          %3734 = vsyncadd [#allocation6], 0
          %s3735 = scalar_lea.hbm %s11, %s3732
          %s3736 = sshll.u32 [#allocation9], 4
          %s3737 = int_to_ptr.vmem [resolvable:$true] %s3736
          %s3738 = sshll.u32 %s3735, 4
          %s3739 = int_to_ptr.hbm [resolvable:$true] %s3738
          %3744 = dma.vmem_to_hbm [thread:$0]  %s3737, 32, %s3739, [#allocation6], 16, 16, 1
        $region84: #{tpu_custom_call.1} parent=63 // pred_fallthru
          _
        // Predicated region
        $region85: #{tpu_custom_call.1} parent=63 // pred_check
          %p3745 = pneg %p317
        $region86: #{tpu_custom_call.1} parent=63 // pred_check_branch
          %3747 = sbr.rel (%p3745) target = $region88
        $region87: #{tpu_custom_call.1} parent=63 // pred_region
          %3749 = dma.done [#allocation6], 32
        $region88: #{tpu_custom_call.1} parent=63 // pred_fallthru
          _
      $region64: #{tpu_custom_call.1} parent=5 // pred_fallthru
        _
      %p3750 = scmp.le.s32.totalorder 2, %s26
      // Predicated region
      $region89: #{tpu_custom_call.1} parent=5 // pred_check
        %p3751 = pneg %p3750
      $region90: #{tpu_custom_call.1} parent=5 // pred_check_branch
        %3753 = sbr.rel (%p3751) target = $region92
      $region91: #{tpu_custom_call.1} parent=5 // pred_region
        %s3754 = ssub.s32 %s26, 2
      $region92: #{tpu_custom_call.1} parent=5 // pred_fallthru
        _
    $region6: #{tpu_custom_call.1} parent=1 // loop_footer
      %s30 = sadd.s32 1, %s26
    $region7: #{tpu_custom_call.1} parent=1 // loop_footer_branch
      %25 = sbr.rel target = $region3
    $region8: #{tpu_custom_call.1} parent=1 // loop_exit
      _
    %3755 = vsyncpa [#allocation5], 1
    %s3756 = scalar_lea.sflag [#allocation5], 1
    %3757 = vsyncpa %s3756, 1
    %3758 = vsyncpa [#allocation8], 1
    %s3759 = scalar_lea.sflag [#allocation8], 1
    %3760 = vsyncpa %s3759, 1
    %3761 = vsyncpa [#allocation6], 1
    %s3762 = scalar_lea.sflag [#allocation6], 1
    %3763 = vsyncpa %s3762, 1

</llo_original>
